<compile_context>
chip_gen: v5e
topology: v5e:2x2
jax: 0.10.0
libtpu: 0.0.40
codegen_flags: <defaults>
</compile_context>

<pallas_src>
import functools
import numpy as np
import jax
import jax.numpy as jnp
from jax.experimental import pallas as pl
from jax.experimental.pallas import tpu as pltpu

# ----------------------------- configuration --------------------------------
IMG = 32          # input spatial size (orig 448)
PAD_SIDE = 16     # orig 224
C_FEAT = 64       # backbone feature channels (orig 2048)
HIDDEN = 32       # ProposalNet hidden channels (orig 128)
TOPN = 4
NCLASS = 45
TM = 128          # M-tile for the generic matmul kernel
LANE = 128        # lane width; channel dims are padded to this


def _round_up(x, m):
    return ((x + m - 1) // m) * m


# ------------------------- generic fused matmul kernel ------------------------
def _matmul_bias_kernel(a_ref, w_ref, bias_ref, o_ref, *, relu):
    # bf16 x bf16 -> f32 MXU accumulate; bias (+ ReLU) in f32; cast on store.
    acc = jnp.dot(a_ref[...], w_ref[...], preferred_element_type=jnp.float32)
    acc = acc + bias_ref[...]
    if relu:
        acc = jnp.maximum(acc, 0.0)
    o_ref[...] = acc.astype(o_ref.dtype)


def _pick_m_tile(M):
    """Tile M only when it actually has rows; tiny-M heads get a full-M block."""
    if M % TM == 0 and M >= 2 * TM:
        return TM
    if M % 64 == 0 and M >= 2 * 64:
        return 64            # >=2 parallel grid steps (keeps both v7x TCs busy)
    return M                 # full-extent block: no M padding, grid=(1,)


def matmul_bias(a, w, bias, *, relu=False, out_dtype=jnp.float32):
    """a: (M, K); w: (K, Np) bf16 (N padded to 128, K unpadded); bias: (1, Np) f32.

    Returns (M, Np) in `out_dtype` (lane-dense, padded N).  No HBM-side padding
    of A: full-extent K block, Mosaic pads in VMEM.
    """
    M, K = a.shape
    Kw, Np = w.shape
    assert K == Kw
    a = a.astype(jnp.bfloat16)
    tm = _pick_m_tile(M)
    grid_m = M // tm

    # TODO(synk): at the original scale (K up to 18432 / 10240) add a K grid axis
    # marked "arbitrary" with an f32 VMEM accumulator so per-step VMEM fits v7x's
    # 64 MiB; also single-buffer the resident weight block (pl.Buffered(1)).
    return pl.pallas_call(
        functools.partial(_matmul_bias_kernel, relu=relu),
        out_shape=jax.ShapeDtypeStruct((M, Np), out_dtype),
        grid_spec=pltpu.PrefetchScalarGridSpec(
            num_scalar_prefetch=0,
            grid=(grid_m,),
            in_specs=[
                pl.BlockSpec((tm, K), lambda i: (i, 0)),   # A row-tile (full K)
                pl.BlockSpec((K, Np), lambda i: (0, 0)),   # weight, resident
                pl.BlockSpec((1, Np), lambda i: (0, 0)),   # bias
            ],
            out_specs=pl.BlockSpec((tm, Np), lambda i: (i, 0)),
        ),
        compiler_params=pltpu.CompilerParams(
            dimension_semantics=("parallel",)),
    )(a, w, bias)


# ---------------------- fused ProposalNet Pallas kernel -----------------------
def _proposal_kernel(feat_ref, t1_ref, t2_ref, t3_ref,
                     w1_ref, b1_ref, w2_ref, b2_ref, w3_ref, b3_ref,
                     tw1_ref, tb1_ref, tw2_ref, tb2_ref, tw3_ref, tb3_ref,
                     o1_ref, o2_ref, o3_ref):
    f32, bf16 = jnp.float32, jnp.bfloat16

    def conv3x3(x_bf, t_ref, w_ref, b_ref):
        # 3x3 conv (any stride/pad baked into T) as 9 shift-matrix matmuls:
        #   out = sum_t (T_t @ x) @ W_t  ;  T_t is 0/1 so the shift is exact.
        po = t_ref.shape[1]
        acc = jnp.zeros((po, LANE), f32)
        for t in range(9):
            shifted = jnp.dot(t_ref[t], x_bf,
                              preferred_element_type=f32).astype(bf16)
            acc = acc + jnp.dot(shifted, w_ref[t], preferred_element_type=f32)
        return jnp.maximum(acc + b_ref[...], 0.0).astype(bf16)

    def tidy(x_bf, w_ref, b_ref):  # 1x1 conv head, f32 output
        return jnp.dot(x_bf, w_ref[...], preferred_element_type=f32) + b_ref[...]

    x = feat_ref[0]                                    # (64, 128) bf16, in VMEM
    d1 = conv3x3(x, t1_ref, w1_ref, b1_ref)            # (64, 128)
    o1_ref[0] = tidy(d1, tw1_ref, tb1_ref)
    d2 = conv3x3(d1, t2_ref, w2_ref, b2_ref)           # (16, 128)
    o2_ref[0] = tidy(d2, tw2_ref, tb2_ref)
    d3 = conv3x3(d2, t3_ref, w3_ref, b3_ref)           # (4, 128)
    o3_ref[0] = tidy(d3, tw3_ref, tb3_ref)


def proposal_net_fused(rpn_feat, p, consts):
    """rpn_feat: (B, 64, 128) bf16 lane-dense.  Returns rpn_score (B, 516) f32."""
    B = rpn_feat.shape[0]
    args = (rpn_feat, consts["T1"], consts["T2"], consts["T3"],
            p["down1_w"], p["down1_b"], p["down2_w"], p["down2_b"],
            p["down3_w"], p["down3_b"],
            p["tidy1_w"], p["tidy1_b"], p["tidy2_w"], p["tidy2_b"],
            p["tidy3_w"], p["tidy3_b"])

    def resident(a):  # full-extent block, same for every grid step
        if a.ndim == 2:
            return pl.BlockSpec(a.shape, lambda b: (0, 0))
        return pl.BlockSpec(a.shape, lambda b: (0, 0, 0))

    in_specs = [pl.BlockSpec((1, 64, LANE), lambda b: (b, 0, 0))]
    in_specs += [resident(a) for a in args[1:]]

    o1, o2, o3 = pl.pallas_call(
        _proposal_kernel,
        out_shape=(jax.ShapeDtypeStruct((B, 64, LANE), jnp.float32),
                   jax.ShapeDtypeStruct((B, 16, LANE), jnp.float32),
                   jax.ShapeDtypeStruct((B, 4, LANE), jnp.float32)),
        grid_spec=pltpu.PrefetchScalarGridSpec(
            num_scalar_prefetch=0,
            grid=(B,),
            in_specs=in_specs,
            out_specs=(pl.BlockSpec((1, 64, LANE), lambda b: (b, 0, 0)),
                       pl.BlockSpec((1, 16, LANE), lambda b: (b, 0, 0)),
                       pl.BlockSpec((1, 4, LANE), lambda b: (b, 0, 0))),
        ),
        compiler_params=pltpu.CompilerParams(
            dimension_semantics=("parallel",)),
    )(*args)

    # PyTorch t?.view(B, -1) flattens channel-major (c, h, w); tiny reorder in XLA.
    t1 = jnp.transpose(o1[:, :, :6], (0, 2, 1)).reshape(B, -1)   # (B, 384)
    t2 = jnp.transpose(o2[:, :, :6], (0, 2, 1)).reshape(B, -1)   # (B, 96)
    t3 = jnp.transpose(o3[:, :, :9], (0, 2, 1)).reshape(B, -1)   # (B, 36)
    return jnp.concatenate([t1, t2, t3], axis=1)                 # (B, 516)


# --------------------------- weight / constant packing ------------------------
def pack_conv_mat(w_oihw, bias):
    """Conv (Cout,Cin,kh,kw) -> im2col matrix (kh*kw*Cin, Np) bf16 (K unpadded)."""
    Cout, Cin, kh, kw = w_oihw.shape
    K = kh * kw * Cin
    w_mat = jnp.transpose(w_oihw, (2, 3, 1, 0)).reshape(K, Cout)
    Np = _round_up(Cout, LANE)
    w_p = jnp.pad(w_mat, ((0, 0), (0, Np - Cout))).astype(jnp.bfloat16)
    b_p = jnp.pad(bias, (0, Np - Cout)).reshape(1, Np).astype(jnp.float32)
    return w_p, b_p


def pack_conv_taps(w_oihw, bias):
    """3x3 conv -> per-tap matrices (9, Cin_pad=128, Cout_pad=128) bf16."""
    Cout, Cin, kh, kw = w_oihw.shape
    w = jnp.transpose(w_oihw, (2, 3, 1, 0)).reshape(kh * kw, Cin, Cout)
    w = jnp.pad(w, ((0, 0), (0, LANE - Cin), (0, LANE - Cout))).astype(jnp.bfloat16)
    b = jnp.pad(bias, (0, LANE - Cout)).reshape(1, LANE).astype(jnp.float32)
    return w, b


def pack_1x1(w_oihw, bias):
    """1x1 conv -> (Cin_pad=128, Cout_pad=128) bf16."""
    Cout, Cin = w_oihw.shape[0], w_oihw.shape[1]
    w = jnp.transpose(w_oihw[:, :, 0, 0], (1, 0))
    w = jnp.pad(w, ((0, LANE - Cin), (0, LANE - Cout))).astype(jnp.bfloat16)
    b = jnp.pad(bias, (0, LANE - Cout)).reshape(1, LANE).astype(jnp.float32)
    return w, b


def pack_linear(w_in_out, bias):
    """nn.Linear weight stored as (in, out) == W^T; pad N only."""
    K, N = w_in_out.shape
    Np = _round_up(N, LANE)
    w_p = jnp.pad(w_in_out, ((0, 0), (0, Np - N))).astype(jnp.bfloat16)
    b_p = jnp.pad(bias, (0, Np - N)).reshape(1, Np).astype(jnp.float32)
    return w_p, b_p


def conv_shift_matrix(H, W, Ho, Wo, k, stride, pad):
    """T[t, p_out, p_in] = 1 iff input pos p_in feeds output pos p_out for tap t."""
    T = np.zeros((k * k, Ho * Wo, H * W), np.float32)
    for di in range(k):
        for dj in range(k):
            t = di * k + dj
            for ho in range(Ho):
                hi = stride * ho + di - pad
                if not (0 <= hi < H):
                    continue
                for wo in range(Wo):
                    wi = stride * wo + dj - pad
                    if 0 <= wi < W:
                        T[t, ho * Wo + wo, hi * W + wi] = 1.0
    return T


def build_shift_matrices():
    return {
        "T1": jnp.asarray(conv_shift_matrix(8, 8, 8, 8, 3, 1, 1), jnp.bfloat16),
        "T2": jnp.asarray(conv_shift_matrix(8, 8, 4, 4, 3, 2, 1), jnp.bfloat16),
        "T3": jnp.asarray(conv_shift_matrix(4, 4, 2, 2, 3, 2, 1), jnp.bfloat16),
    }


# --------------------------- backbone stand-in (stem) -------------------------
def _im2col(x_nhwc, k, stride, pad):
    B, H, W, C = x_nhwc.shape
    xp = jnp.pad(x_nhwc, ((0, 0), (pad, pad), (pad, pad), (0, 0)))
    Ho = (H + 2 * pad - k) // stride + 1
    Wo = (W + 2 * pad - k) // stride + 1
    cols = [xp[:, di:di + stride * Ho:stride, dj:dj + stride * Wo:stride, :]
            for di in range(k) for dj in range(k)]
    return jnp.concatenate(cols, -1).reshape(B * Ho * Wo, k * k * C), Ho, Wo


def backbone(x_nhwc, p):
    # TODO(synk): resnet.resnet50(pretrained=True) is an external backbone; replaced
    # by one strided Pallas conv stem + global average pool with the same roles
    # (rpn feature map, pooled feature vector).
    B = x_nhwc.shape[0]
    patches, Ho, Wo = _im2col(x_nhwc.astype(jnp.bfloat16), k=3, stride=4, pad=1)
    d = matmul_bias(patches, p["stem_w"], p["stem_b"], relu=True,
                    out_dtype=jnp.bfloat16)                 # (B*64, 128) bf16
    d = d.reshape(B, Ho * Wo, LANE)                         # lane-dense rpn feature
    feature = jnp.mean(d.astype(jnp.float32), axis=1)[:, :C_FEAT]   # (B, C_FEAT)
    return d, feature


# ------------------------ on-device NMS + ROI resize --------------------------
def _nms_topn(scores, boxes_f, topn, iou_thresh):
    """Greedy hard-NMS, fixed topn iterations, fully on device."""
    areas = (boxes_f[:, 2] - boxes_f[:, 0]) * (boxes_f[:, 3] - boxes_f[:, 1])
    valid = jnp.ones(scores.shape, dtype=jnp.bool_)
    idxs = []
    for _ in range(topn):
        masked = jnp.where(valid, scores, -jnp.inf)
        idx = jnp.argmax(masked)
        idxs.append(idx)
        box = boxes_f[idx]
        yy0 = jnp.maximum(boxes_f[:, 0], box[0])
        xx0 = jnp.maximum(boxes_f[:, 1], box[1])
        yy1 = jnp.minimum(boxes_f[:, 2], box[2])
        xx1 = jnp.minimum(boxes_f[:, 3], box[3])
        ih, iw = yy1 - yy0, xx1 - xx0
        inter = jnp.where((ih > 0) & (iw > 0), ih * iw, 0.0)
        union = areas + (box[2] - box[0]) * (box[3] - box[1]) - inter
        iou = inter / (union + 1e-8)
        valid = valid & (iou < iou_thresh)
    return jnp.stack(idxs).astype(jnp.int32)


def _interp_weights(lo, hi, size):
    """Bilinear (align_corners=True) source weights as an (IMG, size) matrix."""
    lo_f = lo.astype(jnp.float32)
    span = (hi - lo).astype(jnp.float32)
    pos = lo_f + jnp.arange(IMG, dtype=jnp.float32) * (span - 1.0) / (IMG - 1)
    p0 = jnp.floor(pos).astype(jnp.int32)
    p1 = jnp.minimum(p0 + 1, hi - 1)
    w = pos - p0.astype(jnp.float32)
    grid = jnp.arange(size, dtype=jnp.int32)[None, :]
    m0 = (grid == p0[:, None]).astype(jnp.float32)
    m1 = (grid == p1[:, None]).astype(jnp.float32)
    return (1.0 - w)[:, None] * m0 + w[:, None] * m1       # (IMG, size)


def _roi_resize_mm(x_pad_i, box):
    """F.interpolate(crop, (IMG,IMG), bilinear, align_corners=True) as two matmuls."""
    Hp, Wp = x_pad_i.shape[0], x_pad_i.shape[1]
    box = jnp.clip(box, 0, Hp)                              # original clips anchors
    Ry = _interp_weights(box[0], box[2], Hp)                # (IMG, Hp)
    Rx = _interp_weights(box[1], box[3], Wp)                # (IMG, Wp)
    return jnp.einsum('iy,yxc,jx->ijc', Ry, x_pad_i, Rx)    # (IMG, IMG, 3)


# ----------------------------- host-side anchors ------------------------------
def generate_edge_anchors():
    # TODO(synk): generate_default_anchor_maps() is not provided; deterministic
    # stand-in with identical count/ordering as the tidy heads (6@8x8, 6@4x4, 9@2x2),
    # flattened channel-major to match rpn_score ordering.
    specs = [(8, 4, [6, 8, 10, 12, 14, 16]),
             (4, 8, [8, 12, 16, 20, 24, 28]),
             (2, 16, [8, 10, 12, 14, 16, 18, 20, 22, 24])]
    anchors = []
    for fm, stride, sizes in specs:
        for s in sizes:
            for h in range(fm):
                for w in range(fm):
                    cy = (h + 0.5) * stride
                    cx = (w + 0.5) * stride
                    anchors.append([cy - s / 2, cx - s / 2, cy + s / 2, cx + s / 2])
    return np.array(anchors, dtype=np.float32)


# ------------------------------ full forward ---------------------------------
def attention_net_cosine_forward(x_nchw, params, edge_anchors_i32, consts):
    B = x_nchw.shape[0]
    x = jnp.transpose(x_nchw, (0, 2, 3, 1)).astype(jnp.float32)   # NCHW -> NHWC

    rpn_feature, feature = backbone(x, params)        # (B, 64, 128) bf16, (B, 64) f32
    x_pad = jnp.pad(x, ((0, 0), (PAD_SIDE, PAD_SIDE), (PAD_SIDE, PAD_SIDE), (0, 0)))

    rpn_score = proposal_net_fused(rpn_feature, params, consts)    # (B, 516) f32

    # Top-N selection (hard NMS) on device — no host round-trip.
    boxes_f = edge_anchors_i32.astype(jnp.float32)
    top_n_index = jax.vmap(lambda s: _nms_topn(s, boxes_f, TOPN, 0.45))(rpn_score)
    top_n_prob = jnp.take_along_axis(rpn_score, top_n_index, axis=1)     # (B, topN)

    # Batched fixed-shape ROI crop + bilinear resize via selection-matrix matmuls.
    boxes_sel = edge_anchors_i32[top_n_index]                            # (B, topN, 4)
    roi = jax.vmap(jax.vmap(_roi_resize_mm, in_axes=(None, 0)),
                   in_axes=(0, 0))(x_pad, boxes_sel)
    part_imgs = roi.reshape(B * TOPN, IMG, IMG, 3)

    _, part_features = backbone(part_imgs, params)                       # (B*topN, 64)
    part_feature = part_features.reshape(B, TOPN * C_FEAT)
    concat_out = jnp.concatenate([part_feature, feature], axis=1)        # (B, 320)

    concat_logits = matmul_bias(concat_out, params["concat_w"],
                                params["concat_b"])[:, :NCLASS]
    part_logits = matmul_bias(part_features, params["partcls_w"],
                              params["partcls_b"])[:, :NCLASS].reshape(B, TOPN, NCLASS)

    return feature, concat_logits, concat_out, part_logits, top_n_index, top_n_prob


# ------------------------------ parameters ------------------------------------
def init_params(key):
    ks = jax.random.split(key, 18)
    w = lambda k, shape, s=0.1: jax.random.normal(k, shape, jnp.float32) * s
    p = {}
    # backbone stand-in (stem conv 3 -> C_FEAT, stride 4)
    p["stem_w"], p["stem_b"] = pack_conv_mat(w(ks[0], (C_FEAT, 3, 3, 3)),
                                             w(ks[1], (C_FEAT,), 0.01))
    # ProposalNet (orig: 2048->128, 128->128 s2, 128->128 s2, tidy 6/6/9)
    p["down1_w"], p["down1_b"] = pack_conv_taps(w(ks[2], (HIDDEN, C_FEAT, 3, 3)),
                                                w(ks[3], (HIDDEN,), 0.01))
    p["down2_w"], p["down2_b"] = pack_conv_taps(w(ks[4], (HIDDEN, HIDDEN, 3, 3)),
                                                w(ks[5], (HIDDEN,), 0.01))
    p["down3_w"], p["down3_b"] = pack_conv_taps(w(ks[6], (HIDDEN, HIDDEN, 3, 3)),
                                                w(ks[7], (HIDDEN,), 0.01))
    p["tidy1_w"], p["tidy1_b"] = pack_1x1(w(ks[8], (6, HIDDEN, 1, 1)),
                                          w(ks[9], (6,), 0.01))
    p["tidy2_w"], p["tidy2_b"] = pack_1x1(w(ks[10], (6, HIDDEN, 1, 1)),
                                          w(ks[11], (6,), 0.01))
    p["tidy3_w"], p["tidy3_b"] = pack_1x1(w(ks[12], (9, HIDDEN, 1, 1)),
                                          w(ks[13], (9,), 0.01))
    # heads; linear weights stored as (in, out) == W^T of nn.Linear
    p["concat_w"], p["concat_b"] = pack_linear(w(ks[14], (C_FEAT * (TOPN + 1), NCLASS)),
                                               w(ks[15], (NCLASS,), 0.01))
    p["partcls_w"], p["partcls_b"] = pack_linear(w(ks[16], (C_FEAT, NCLASS)),
                                                 w(ks[17], (NCLASS,), 0.01))
    return p


# ---------------------------------- main --------------------------------------
if __name__ == "__main__":
    key = jax.random.PRNGKey(0)
    kp, kx = jax.random.split(key)
    params = init_params(kp)
    consts = build_shift_matrices()
    # NCHW input, like the PyTorch module
    x = jax.random.normal(kx, (2, 3, IMG, IMG), jnp.float32)
    edge_anchors = jnp.asarray(generate_edge_anchors() + PAD_SIDE, dtype=jnp.int32)

    fwd = jax.jit(attention_net_cosine_forward)
    outs = jax.block_until_ready(fwd(x, params, edge_anchors, consts))
    feature, concat_logits, concat_out, part_logits, top_n_index, top_n_prob = outs

    assert feature.shape == (2, C_FEAT)
    assert concat_logits.shape == (2, NCLASS)
    assert concat_out.shape == (2, C_FEAT * (TOPN + 1))
    assert part_logits.shape == (2, TOPN, NCLASS)
    assert top_n_index.shape == (2, TOPN)
    assert top_n_prob.shape == (2, TOPN)
    assert bool(jnp.all(jnp.isfinite(concat_logits)))
    assert bool(jnp.all(jnp.isfinite(part_logits)))
    print("KERNEL_OK")
</pallas_src>

<mosaic_0001>
module attributes {stable_mosaic.version = 11 : i64} {
  func.func @_matmul_bias_kernel(%arg0: i32, %arg1: memref<64x27xbf16, #tpu.memory_space<vmem>>, %arg2: memref<27x128xbf16, #tpu.memory_space<vmem>>, %arg3: memref<1x128xf32, #tpu.memory_space<vmem>>, %arg4: memref<64x128xbf16, #tpu.memory_space<vmem>>) attributes {dimension_semantics = [#tpu.dimension_semantics<parallel>], iteration_bounds = array<i64: 2>, scalar_prefetch = 0 : i64, scratch_operands = 0 : i64, tpu.core_type = #tpu.core_type<tc>, window_params = [{transform_indices = @transform_0, window_bounds = array<i64: 64, 27>}, {pipeline_mode = #tpu.pipeline_mode<synchronous>, transform_indices = @transform_1, window_bounds = array<i64: 27, 128>}, {pipeline_mode = #tpu.pipeline_mode<synchronous>, transform_indices = @transform_2, window_bounds = array<i64: 1, 128>}, {transform_indices = @transform_3, window_bounds = array<i64: 64, 128>}]} {
    %c0 = arith.constant 0 : index
    %c0_0 = arith.constant 0 : index
    %0 = vector.load %arg1[%c0, %c0_0] : memref<64x27xbf16, #tpu.memory_space<vmem>>, vector<64x27xbf16>
    %c0_1 = arith.constant 0 : index
    %c0_2 = arith.constant 0 : index
    %1 = vector.load %arg2[%c0_1, %c0_2] : memref<27x128xbf16, #tpu.memory_space<vmem>>, vector<27x128xbf16>
    %cst = arith.constant dense<0.000000e+00> : vector<64x128xf32>
    %2 = tpu.matmul %0, %1, %cst {dimension_numbers = #tpu.dot_dimension_numbers<[1], [0], [0], [1], [0, 0, 1, 1], [], []>} : vector<64x27xbf16>, vector<27x128xbf16>, vector<64x128xf32> -> vector<64x128xf32>
    %c0_3 = arith.constant 0 : index
    %c0_4 = arith.constant 0 : index
    %3 = vector.load %arg3[%c0_3, %c0_4] : memref<1x128xf32, #tpu.memory_space<vmem>>, vector<1x128xf32>
    %4 = vector.broadcast %3 : vector<1x128xf32> to vector<64x128xf32>
    %5 = arith.addf %2, %4 : vector<64x128xf32>
    %cst_5 = arith.constant 0.000000e+00 : f32
    %6 = vector.broadcast %cst_5 : f32 to vector<64x128xf32>
    %7 = arith.maximumf %5, %6 : vector<64x128xf32>
    %8 = arith.truncf %7 : vector<64x128xf32> to vector<64x128xbf16>
    %c0_6 = arith.constant 0 : index
    %c0_7 = arith.constant 0 : index
    %9 = vector.load %arg4[%c0_6, %c0_7] : memref<64x128xbf16, #tpu.memory_space<vmem>>, vector<64x128xbf16>
    tpu.vector_store %arg4[%c0_6, %c0_7], %8 {strides = array<i32>} : memref<64x128xbf16, #tpu.memory_space<vmem>>, vector<64x128xbf16>,
    return
  }
  func.func @transform_0(%arg0: i32) -> (i32, i32) {
    %c0_i32 = arith.constant 0 : i32
    %c0_i32_0 = arith.constant 0 : i32
    return %arg0, %c0_i32 : i32, i32
  }
  func.func @transform_1(%arg0: i32) -> (i32, i32) {
    %c0_i32 = arith.constant 0 : i32
    %c0_i32_0 = arith.constant 0 : i32
    %c0_i32_1 = arith.constant 0 : i32
    return %c0_i32, %c0_i32_0 : i32, i32
  }
  func.func @transform_2(%arg0: i32) -> (i32, i32) {
    %c0_i32 = arith.constant 0 : i32
    %c0_i32_0 = arith.constant 0 : i32
    %c0_i32_1 = arith.constant 0 : i32
    return %c0_i32, %c0_i32_0 : i32, i32
  }
  func.func @transform_3(%arg0: i32) -> (i32, i32) {
    %c0_i32 = arith.constant 0 : i32
    %c0_i32_0 = arith.constant 0 : i32
    return %arg0, %c0_i32 : i32, i32
  }
}

module attributes {stable_mosaic.version = 11 : i64} {
  func.func @_proposal_kernel(%arg0: i32, %arg1: memref<1x64x128xbf16, #tpu.memory_space<vmem>>, %arg2: memref<9x64x64xbf16, #tpu.memory_space<vmem>>, %arg3: memref<9x16x64xbf16, #tpu.memory_space<vmem>>, %arg4: memref<9x4x16xbf16, #tpu.memory_space<vmem>>, %arg5: memref<9x128x128xbf16, #tpu.memory_space<vmem>>, %arg6: memref<1x128xf32, #tpu.memory_space<vmem>>, %arg7: memref<9x128x128xbf16, #tpu.memory_space<vmem>>, %arg8: memref<1x128xf32, #tpu.memory_space<vmem>>, %arg9: memref<9x128x128xbf16, #tpu.memory_space<vmem>>, %arg10: memref<1x128xf32, #tpu.memory_space<vmem>>, %arg11: memref<128x128xbf16, #tpu.memory_space<vmem>>, %arg12: memref<1x128xf32, #tpu.memory_space<vmem>>, %arg13: memref<128x128xbf16, #tpu.memory_space<vmem>>, %arg14: memref<1x128xf32, #tpu.memory_space<vmem>>, %arg15: memref<128x128xbf16, #tpu.memory_space<vmem>>, %arg16: memref<1x128xf32, #tpu.memory_space<vmem>>, %arg17: memref<1x64x128xf32, #tpu.memory_space<vmem>>, %arg18: memref<1x16x128xf32, #tpu.memory_space<vmem>>, %arg19: memref<1x4x128xf32, #tpu.memory_space<vmem>>) attributes {dimension_semantics = [#tpu.dimension_semantics<parallel>], iteration_bounds = array<i64: 2>, scalar_prefetch = 0 : i64, scratch_operands = 0 : i64, tpu.core_type = #tpu.core_type<tc>, window_params = [{transform_indices = @transform_0, window_bounds = array<i64: 1, 64, 128>}, {pipeline_mode = #tpu.pipeline_mode<synchronous>, transform_indices = @transform_1, window_bounds = array<i64: 9, 64, 64>}, {pipeline_mode = #tpu.pipeline_mode<synchronous>, transform_indices = @transform_2, window_bounds = array<i64: 9, 16, 64>}, {pipeline_mode = #tpu.pipeline_mode<synchronous>, transform_indices = @transform_3, window_bounds = array<i64: 9, 4, 16>}, {pipeline_mode = #tpu.pipeline_mode<synchronous>, transform_indices = @transform_4, window_bounds = array<i64: 9, 128, 128>}, {pipeline_mode = #tpu.pipeline_mode<synchronous>, transform_indices = @transform_5, window_bounds = array<i64: 1, 128>}, {pipeline_mode = #tpu.pipeline_mode<synchronous>, transform_indices = @transform_6, window_bounds = array<i64: 9, 128, 128>}, {pipeline_mode = #tpu.pipeline_mode<synchronous>, transform_indices = @transform_7, window_bounds = array<i64: 1, 128>}, {pipeline_mode = #tpu.pipeline_mode<synchronous>, transform_indices = @transform_8, window_bounds = array<i64: 9, 128, 128>}, {pipeline_mode = #tpu.pipeline_mode<synchronous>, transform_indices = @transform_9, window_bounds = array<i64: 1, 128>}, {pipeline_mode = #tpu.pipeline_mode<synchronous>, transform_indices = @transform_10, window_bounds = array<i64: 128, 128>}, {pipeline_mode = #tpu.pipeline_mode<synchronous>, transform_indices = @transform_11, window_bounds = array<i64: 1, 128>}, {pipeline_mode = #tpu.pipeline_mode<synchronous>, transform_indices = @transform_12, window_bounds = array<i64: 128, 128>}, {pipeline_mode = #tpu.pipeline_mode<synchronous>, transform_indices = @transform_13, window_bounds = array<i64: 1, 128>}, {pipeline_mode = #tpu.pipeline_mode<synchronous>, transform_indices = @transform_14, window_bounds = array<i64: 128, 128>}, {pipeline_mode = #tpu.pipeline_mode<synchronous>, transform_indices = @transform_15, window_bounds = array<i64: 1, 128>}, {transform_indices = @transform_16, window_bounds = array<i64: 1, 64, 128>}, {transform_indices = @transform_17, window_bounds = array<i64: 1, 16, 128>}, {transform_indices = @transform_18, window_bounds = array<i64: 1, 4, 128>}]} {
    %c0 = arith.constant 0 : index
    %c0_0 = arith.constant 0 : index
    %c0_1 = arith.constant 0 : index
    %0 = vector.load %arg1[%c0, %c0_0, %c0_1] : memref<1x64x128xbf16, #tpu.memory_space<vmem>>, vector<1x64x128xbf16>
    %1 = vector.shape_cast %0 : vector<1x64x128xbf16> to vector<64x128xbf16>
    %cst = arith.constant 0.000000e+00 : f32
    %2 = vector.broadcast %cst : f32 to vector<64x128xf32>
    %c0_2 = arith.constant 0 : index
    %c0_3 = arith.constant 0 : index
    %c0_4 = arith.constant 0 : index
    %3 = vector.load %arg2[%c0_2, %c0_3, %c0_4] : memref<9x64x64xbf16, #tpu.memory_space<vmem>>, vector<1x64x64xbf16>
    %4 = vector.shape_cast %3 : vector<1x64x64xbf16> to vector<64x64xbf16>
    %cst_5 = arith.constant dense<0.000000e+00> : vector<64x128xf32>
    %5 = tpu.matmul %4, %1, %cst_5 {dimension_numbers = #tpu.dot_dimension_numbers<[1], [0], [0], [1], [0, 0, 1, 1], [], []>} : vector<64x64xbf16>, vector<64x128xbf16>, vector<64x128xf32> -> vector<64x128xf32>
    %6 = arith.truncf %5 : vector<64x128xf32> to vector<64x128xbf16>
    %c0_6 = arith.constant 0 : index
    %c0_7 = arith.constant 0 : index
    %c0_8 = arith.constant 0 : index
    %7 = vector.load %arg5[%c0_6, %c0_7, %c0_8] : memref<9x128x128xbf16, #tpu.memory_space<vmem>>, vector<1x128x128xbf16>
    %8 = vector.shape_cast %7 : vector<1x128x128xbf16> to vector<128x128xbf16>
    %cst_9 = arith.constant dense<0.000000e+00> : vector<64x128xf32>
    %9 = tpu.matmul %6, %8, %cst_9 {dimension_numbers = #tpu.dot_dimension_numbers<[1], [0], [0], [1], [0, 0, 1, 1], [], []>} : vector<64x128xbf16>, vector<128x128xbf16>, vector<64x128xf32> -> vector<64x128xf32>
    %10 = arith.addf %2, %9 : vector<64x128xf32>
    %c1 = arith.constant 1 : index
    %c0_10 = arith.constant 0 : index
    %c0_11 = arith.constant 0 : index
    %11 = vector.load %arg2[%c1, %c0_10, %c0_11] : memref<9x64x64xbf16, #tpu.memory_space<vmem>>, vector<1x64x64xbf16>
    %12 = vector.shape_cast %11 : vector<1x64x64xbf16> to vector<64x64xbf16>
    %cst_12 = arith.constant dense<0.000000e+00> : vector<64x128xf32>
    %13 = tpu.matmul %12, %1, %cst_12 {dimension_numbers = #tpu.dot_dimension_numbers<[1], [0], [0], [1], [0, 0, 1, 1], [], []>} : vector<64x64xbf16>, vector<64x128xbf16>, vector<64x128xf32> -> vector<64x128xf32>
    %14 = arith.truncf %13 : vector<64x128xf32> to vector<64x128xbf16>
    %c1_13 = arith.constant 1 : index
    %c0_14 = arith.constant 0 : index
    %c0_15 = arith.constant 0 : index
    %15 = vector.load %arg5[%c1_13, %c0_14, %c0_15] : memref<9x128x128xbf16, #tpu.memory_space<vmem>>, vector<1x128x128xbf16>
    %16 = vector.shape_cast %15 : vector<1x128x128xbf16> to vector<128x128xbf16>
    %cst_16 = arith.constant dense<0.000000e+00> : vector<64x128xf32>
    %17 = tpu.matmul %14, %16, %cst_16 {dimension_numbers = #tpu.dot_dimension_numbers<[1], [0], [0], [1], [0, 0, 1, 1], [], []>} : vector<64x128xbf16>, vector<128x128xbf16>, vector<64x128xf32> -> vector<64x128xf32>
    %18 = arith.addf %10, %17 : vector<64x128xf32>
    %c2 = arith.constant 2 : index
    %c0_17 = arith.constant 0 : index
    %c0_18 = arith.constant 0 : index
    %19 = vector.load %arg2[%c2, %c0_17, %c0_18] : memref<9x64x64xbf16, #tpu.memory_space<vmem>>, vector<1x64x64xbf16>
    %20 = vector.shape_cast %19 : vector<1x64x64xbf16> to vector<64x64xbf16>
    %cst_19 = arith.constant dense<0.000000e+00> : vector<64x128xf32>
    %21 = tpu.matmul %20, %1, %cst_19 {dimension_numbers = #tpu.dot_dimension_numbers<[1], [0], [0], [1], [0, 0, 1, 1], [], []>} : vector<64x64xbf16>, vector<64x128xbf16>, vector<64x128xf32> -> vector<64x128xf32>
    %22 = arith.truncf %21 : vector<64x128xf32> to vector<64x128xbf16>
    %c2_20 = arith.constant 2 : index
    %c0_21 = arith.constant 0 : index
    %c0_22 = arith.constant 0 : index
    %23 = vector.load %arg5[%c2_20, %c0_21, %c0_22] : memref<9x128x128xbf16, #tpu.memory_space<vmem>>, vector<1x128x128xbf16>
    %24 = vector.shape_cast %23 : vector<1x128x128xbf16> to vector<128x128xbf16>
    %cst_23 = arith.constant dense<0.000000e+00> : vector<64x128xf32>
    %25 = tpu.matmul %22, %24, %cst_23 {dimension_numbers = #tpu.dot_dimension_numbers<[1], [0], [0], [1], [0, 0, 1, 1], [], []>} : vector<64x128xbf16>, vector<128x128xbf16>, vector<64x128xf32> -> vector<64x128xf32>
    %26 = arith.addf %18, %25 : vector<64x128xf32>
    %c3 = arith.constant 3 : index
    %c0_24 = arith.constant 0 : index
    %c0_25 = arith.constant 0 : index
    %27 = vector.load %arg2[%c3, %c0_24, %c0_25] : memref<9x64x64xbf16, #tpu.memory_space<vmem>>, vector<1x64x64xbf16>
    %28 = vector.shape_cast %27 : vector<1x64x64xbf16> to vector<64x64xbf16>
    %cst_26 = arith.constant dense<0.000000e+00> : vector<64x128xf32>
    %29 = tpu.matmul %28, %1, %cst_26 {dimension_numbers = #tpu.dot_dimension_numbers<[1], [0], [0], [1], [0, 0, 1, 1], [], []>} : vector<64x64xbf16>, vector<64x128xbf16>, vector<64x128xf32> -> vector<64x128xf32>
    %30 = arith.truncf %29 : vector<64x128xf32> to vector<64x128xbf16>
    %c3_27 = arith.constant 3 : index
    %c0_28 = arith.constant 0 : index
    %c0_29 = arith.constant 0 : index
    %31 = vector.load %arg5[%c3_27, %c0_28, %c0_29] : memref<9x128x128xbf16, #tpu.memory_space<vmem>>, vector<1x128x128xbf16>
    %32 = vector.shape_cast %31 : vector<1x128x128xbf16> to vector<128x128xbf16>
    %cst_30 = arith.constant dense<0.000000e+00> : vector<64x128xf32>
    %33 = tpu.matmul %30, %32, %cst_30 {dimension_numbers = #tpu.dot_dimension_numbers<[1], [0], [0], [1], [0, 0, 1, 1], [], []>} : vector<64x128xbf16>, vector<128x128xbf16>, vector<64x128xf32> -> vector<64x128xf32>
    %34 = arith.addf %26, %33 : vector<64x128xf32>
    %c4 = arith.constant 4 : index
    %c0_31 = arith.constant 0 : index
    %c0_32 = arith.constant 0 : index
    %35 = vector.load %arg2[%c4, %c0_31, %c0_32] : memref<9x64x64xbf16, #tpu.memory_space<vmem>>, vector<1x64x64xbf16>
    %36 = vector.shape_cast %35 : vector<1x64x64xbf16> to vector<64x64xbf16>
    %cst_33 = arith.constant dense<0.000000e+00> : vector<64x128xf32>
    %37 = tpu.matmul %36, %1, %cst_33 {dimension_numbers = #tpu.dot_dimension_numbers<[1], [0], [0], [1], [0, 0, 1, 1], [], []>} : vector<64x64xbf16>, vector<64x128xbf16>, vector<64x128xf32> -> vector<64x128xf32>
    %38 = arith.truncf %37 : vector<64x128xf32> to vector<64x128xbf16>
    %c4_34 = arith.constant 4 : index
    %c0_35 = arith.constant 0 : index
    %c0_36 = arith.constant 0 : index
    %39 = vector.load %arg5[%c4_34, %c0_35, %c0_36] : memref<9x128x128xbf16, #tpu.memory_space<vmem>>, vector<1x128x128xbf16>
    %40 = vector.shape_cast %39 : vector<1x128x128xbf16> to vector<128x128xbf16>
    %cst_37 = arith.constant dense<0.000000e+00> : vector<64x128xf32>
    %41 = tpu.matmul %38, %40, %cst_37 {dimension_numbers = #tpu.dot_dimension_numbers<[1], [0], [0], [1], [0, 0, 1, 1], [], []>} : vector<64x128xbf16>, vector<128x128xbf16>, vector<64x128xf32> -> vector<64x128xf32>
    %42 = arith.addf %34, %41 : vector<64x128xf32>
    %c5 = arith.constant 5 : index
    %c0_38 = arith.constant 0 : index
    %c0_39 = arith.constant 0 : index
    %43 = vector.load %arg2[%c5, %c0_38, %c0_39] : memref<9x64x64xbf16, #tpu.memory_space<vmem>>, vector<1x64x64xbf16>
    %44 = vector.shape_cast %43 : vector<1x64x64xbf16> to vector<64x64xbf16>
    %cst_40 = arith.constant dense<0.000000e+00> : vector<64x128xf32>
    %45 = tpu.matmul %44, %1, %cst_40 {dimension_numbers = #tpu.dot_dimension_numbers<[1], [0], [0], [1], [0, 0, 1, 1], [], []>} : vector<64x64xbf16>, vector<64x128xbf16>, vector<64x128xf32> -> vector<64x128xf32>
    %46 = arith.truncf %45 : vector<64x128xf32> to vector<64x128xbf16>
    %c5_41 = arith.constant 5 : index
    %c0_42 = arith.constant 0 : index
    %c0_43 = arith.constant 0 : index
    %47 = vector.load %arg5[%c5_41, %c0_42, %c0_43] : memref<9x128x128xbf16, #tpu.memory_space<vmem>>, vector<1x128x128xbf16>
    %48 = vector.shape_cast %47 : vector<1x128x128xbf16> to vector<128x128xbf16>
    %cst_44 = arith.constant dense<0.000000e+00> : vector<64x128xf32>
    %49 = tpu.matmul %46, %48, %cst_44 {dimension_numbers = #tpu.dot_dimension_numbers<[1], [0], [0], [1], [0, 0, 1, 1], [], []>} : vector<64x128xbf16>, vector<128x128xbf16>, vector<64x128xf32> -> vector<64x128xf32>
    %50 = arith.addf %42, %49 : vector<64x128xf32>
    %c6 = arith.constant 6 : index
    %c0_45 = arith.constant 0 : index
    %c0_46 = arith.constant 0 : index
    %51 = vector.load %arg2[%c6, %c0_45, %c0_46] : memref<9x64x64xbf16, #tpu.memory_space<vmem>>, vector<1x64x64xbf16>
    %52 = vector.shape_cast %51 : vector<1x64x64xbf16> to vector<64x64xbf16>
    %cst_47 = arith.constant dense<0.000000e+00> : vector<64x128xf32>
    %53 = tpu.matmul %52, %1, %cst_47 {dimension_numbers = #tpu.dot_dimension_numbers<[1], [0], [0], [1], [0, 0, 1, 1], [], []>} : vector<64x64xbf16>, vector<64x128xbf16>, vector<64x128xf32> -> vector<64x128xf32>
    %54 = arith.truncf %53 : vector<64x128xf32> to vector<64x128xbf16>
    %c6_48 = arith.constant 6 : index
    %c0_49 = arith.constant 0 : index
    %c0_50 = arith.constant 0 : index
    %55 = vector.load %arg5[%c6_48, %c0_49, %c0_50] : memref<9x128x128xbf16, #tpu.memory_space<vmem>>, vector<1x128x128xbf16>
    %56 = vector.shape_cast %55 : vector<1x128x128xbf16> to vector<128x128xbf16>
    %cst_51 = arith.constant dense<0.000000e+00> : vector<64x128xf32>
    %57 = tpu.matmul %54, %56, %cst_51 {dimension_numbers = #tpu.dot_dimension_numbers<[1], [0], [0], [1], [0, 0, 1, 1], [], []>} : vector<64x128xbf16>, vector<128x128xbf16>, vector<64x128xf32> -> vector<64x128xf32>
    %58 = arith.addf %50, %57 : vector<64x128xf32>
    %c7 = arith.constant 7 : index
    %c0_52 = arith.constant 0 : index
    %c0_53 = arith.constant 0 : index
    %59 = vector.load %arg2[%c7, %c0_52, %c0_53] : memref<9x64x64xbf16, #tpu.memory_space<vmem>>, vector<1x64x64xbf16>
    %60 = vector.shape_cast %59 : vector<1x64x64xbf16> to vector<64x64xbf16>
    %cst_54 = arith.constant dense<0.000000e+00> : vector<64x128xf32>
    %61 = tpu.matmul %60, %1, %cst_54 {dimension_numbers = #tpu.dot_dimension_numbers<[1], [0], [0], [1], [0, 0, 1, 1], [], []>} : vector<64x64xbf16>, vector<64x128xbf16>, vector<64x128xf32> -> vector<64x128xf32>
    %62 = arith.truncf %61 : vector<64x128xf32> to vector<64x128xbf16>
    %c7_55 = arith.constant 7 : index
    %c0_56 = arith.constant 0 : index
    %c0_57 = arith.constant 0 : index
    %63 = vector.load %arg5[%c7_55, %c0_56, %c0_57] : memref<9x128x128xbf16, #tpu.memory_space<vmem>>, vector<1x128x128xbf16>
    %64 = vector.shape_cast %63 : vector<1x128x128xbf16> to vector<128x128xbf16>
    %cst_58 = arith.constant dense<0.000000e+00> : vector<64x128xf32>
    %65 = tpu.matmul %62, %64, %cst_58 {dimension_numbers = #tpu.dot_dimension_numbers<[1], [0], [0], [1], [0, 0, 1, 1], [], []>} : vector<64x128xbf16>, vector<128x128xbf16>, vector<64x128xf32> -> vector<64x128xf32>
    %66 = arith.addf %58, %65 : vector<64x128xf32>
    %c8 = arith.constant 8 : index
    %c0_59 = arith.constant 0 : index
    %c0_60 = arith.constant 0 : index
    %67 = vector.load %arg2[%c8, %c0_59, %c0_60] : memref<9x64x64xbf16, #tpu.memory_space<vmem>>, vector<1x64x64xbf16>
    %68 = vector.shape_cast %67 : vector<1x64x64xbf16> to vector<64x64xbf16>
    %cst_61 = arith.constant dense<0.000000e+00> : vector<64x128xf32>
    %69 = tpu.matmul %68, %1, %cst_61 {dimension_numbers = #tpu.dot_dimension_numbers<[1], [0], [0], [1], [0, 0, 1, 1], [], []>} : vector<64x64xbf16>, vector<64x128xbf16>, vector<64x128xf32> -> vector<64x128xf32>
    %70 = arith.truncf %69 : vector<64x128xf32> to vector<64x128xbf16>
    %c8_62 = arith.constant 8 : index
    %c0_63 = arith.constant 0 : index
    %c0_64 = arith.constant 0 : index
    %71 = vector.load %arg5[%c8_62, %c0_63, %c0_64] : memref<9x128x128xbf16, #tpu.memory_space<vmem>>, vector<1x128x128xbf16>
    %72 = vector.shape_cast %71 : vector<1x128x128xbf16> to vector<128x128xbf16>
    %cst_65 = arith.constant dense<0.000000e+00> : vector<64x128xf32>
    %73 = tpu.matmul %70, %72, %cst_65 {dimension_numbers = #tpu.dot_dimension_numbers<[1], [0], [0], [1], [0, 0, 1, 1], [], []>} : vector<64x128xbf16>, vector<128x128xbf16>, vector<64x128xf32> -> vector<64x128xf32>
    %74 = arith.addf %66, %73 : vector<64x128xf32>
    %c0_66 = arith.constant 0 : index
    %c0_67 = arith.constant 0 : index
    %75 = vector.load %arg6[%c0_66, %c0_67] : memref<1x128xf32, #tpu.memory_space<vmem>>, vector<1x128xf32>
    %76 = vector.broadcast %75 : vector<1x128xf32> to vector<64x128xf32>
    %77 = arith.addf %74, %76 : vector<64x128xf32>
    %cst_68 = arith.constant 0.000000e+00 : f32
    %78 = vector.broadcast %cst_68 : f32 to vector<64x128xf32>
    %79 = arith.maximumf %77, %78 : vector<64x128xf32>
    %80 = arith.truncf %79 : vector<64x128xf32> to vector<64x128xbf16>
    %c0_69 = arith.constant 0 : index
    %c0_70 = arith.constant 0 : index
    %81 = vector.load %arg11[%c0_69, %c0_70] : memref<128x128xbf16, #tpu.memory_space<vmem>>, vector<128x128xbf16>
    %cst_71 = arith.constant dense<0.000000e+00> : vector<64x128xf32>
    %82 = tpu.matmul %80, %81, %cst_71 {dimension_numbers = #tpu.dot_dimension_numbers<[1], [0], [0], [1], [0, 0, 1, 1], [], []>} : vector<64x128xbf16>, vector<128x128xbf16>, vector<64x128xf32> -> vector<64x128xf32>
    %c0_72 = arith.constant 0 : index
    %c0_73 = arith.constant 0 : index
    %83 = vector.load %arg12[%c0_72, %c0_73] : memref<1x128xf32, #tpu.memory_space<vmem>>, vector<1x128xf32>
    %84 = vector.broadcast %83 : vector<1x128xf32> to vector<64x128xf32>
    %85 = arith.addf %82, %84 : vector<64x128xf32>
    %c0_74 = arith.constant 0 : index
    %c0_75 = arith.constant 0 : index
    %c0_76 = arith.constant 0 : index
    %86 = vector.load %arg17[%c0_74, %c0_75, %c0_76] : memref<1x64x128xf32, #tpu.memory_space<vmem>>, vector<1x64x128xf32>
    %87 = vector.shape_cast %86 : vector<1x64x128xf32> to vector<64x128xf32>
    %88 = vector.shape_cast %85 : vector<64x128xf32> to vector<1x64x128xf32>
    tpu.vector_store %arg17[%c0_74, %c0_75, %c0_76], %88 {strides = array<i32>} : memref<1x64x128xf32, #tpu.memory_space<vmem>>, vector<1x64x128xf32>,
    %cst_77 = arith.constant 0.000000e+00 : f32
    %89 = vector.broadcast %cst_77 : f32 to vector<16x128xf32>
    %c0_78 = arith.constant 0 : index
    %c0_79 = arith.constant 0 : index
    %c0_80 = arith.constant 0 : index
    %90 = vector.load %arg3[%c0_78, %c0_79, %c0_80] : memref<9x16x64xbf16, #tpu.memory_space<vmem>>, vector<1x16x64xbf16>
    %91 = vector.shape_cast %90 : vector<1x16x64xbf16> to vector<16x64xbf16>
    %cst_81 = arith.constant dense<0.000000e+00> : vector<16x128xf32>
    %92 = tpu.matmul %91, %80, %cst_81 {dimension_numbers = #tpu.dot_dimension_numbers<[1], [0], [0], [1], [0, 0, 1, 1], [], []>} : vector<16x64xbf16>, vector<64x128xbf16>, vector<16x128xf32> -> vector<16x128xf32>
    %93 = arith.truncf %92 : vector<16x128xf32> to vector<16x128xbf16>
    %c0_82 = arith.constant 0 : index
    %c0_83 = arith.constant 0 : index
    %c0_84 = arith.constant 0 : index
    %94 = vector.load %arg7[%c0_82, %c0_83, %c0_84] : memref<9x128x128xbf16, #tpu.memory_space<vmem>>, vector<1x128x128xbf16>
    %95 = vector.shape_cast %94 : vector<1x128x128xbf16> to vector<128x128xbf16>
    %cst_85 = arith.constant dense<0.000000e+00> : vector<16x128xf32>
    %96 = tpu.matmul %93, %95, %cst_85 {dimension_numbers = #tpu.dot_dimension_numbers<[1], [0], [0], [1], [0, 0, 1, 1], [], []>} : vector<16x128xbf16>, vector<128x128xbf16>, vector<16x128xf32> -> vector<16x128xf32>
    %97 = arith.addf %89, %96 : vector<16x128xf32>
    %c1_86 = arith.constant 1 : index
    %c0_87 = arith.constant 0 : index
    %c0_88 = arith.constant 0 : index
    %98 = vector.load %arg3[%c1_86, %c0_87, %c0_88] : memref<9x16x64xbf16, #tpu.memory_space<vmem>>, vector<1x16x64xbf16>
    %99 = vector.shape_cast %98 : vector<1x16x64xbf16> to vector<16x64xbf16>
    %cst_89 = arith.constant dense<0.000000e+00> : vector<16x128xf32>
    %100 = tpu.matmul %99, %80, %cst_89 {dimension_numbers = #tpu.dot_dimension_numbers<[1], [0], [0], [1], [0, 0, 1, 1], [], []>} : vector<16x64xbf16>, vector<64x128xbf16>, vector<16x128xf32> -> vector<16x128xf32>
    %101 = arith.truncf %100 : vector<16x128xf32> to vector<16x128xbf16>
    %c1_90 = arith.constant 1 : index
    %c0_91 = arith.constant 0 : index
    %c0_92 = arith.constant 0 : index
    %102 = vector.load %arg7[%c1_90, %c0_91, %c0_92] : memref<9x128x128xbf16, #tpu.memory_space<vmem>>, vector<1x128x128xbf16>
    %103 = vector.shape_cast %102 : vector<1x128x128xbf16> to vector<128x128xbf16>
    %cst_93 = arith.constant dense<0.000000e+00> : vector<16x128xf32>
    %104 = tpu.matmul %101, %103, %cst_93 {dimension_numbers = #tpu.dot_dimension_numbers<[1], [0], [0], [1], [0, 0, 1, 1], [], []>} : vector<16x128xbf16>, vector<128x128xbf16>, vector<16x128xf32> -> vector<16x128xf32>
    %105 = arith.addf %97, %104 : vector<16x128xf32>
    %c2_94 = arith.constant 2 : index
    %c0_95 = arith.constant 0 : index
    %c0_96 = arith.constant 0 : index
    %106 = vector.load %arg3[%c2_94, %c0_95, %c0_96] : memref<9x16x64xbf16, #tpu.memory_space<vmem>>, vector<1x16x64xbf16>
    %107 = vector.shape_cast %106 : vector<1x16x64xbf16> to vector<16x64xbf16>
    %cst_97 = arith.constant dense<0.000000e+00> : vector<16x128xf32>
    %108 = tpu.matmul %107, %80, %cst_97 {dimension_numbers = #tpu.dot_dimension_numbers<[1], [0], [0], [1], [0, 0, 1, 1], [], []>} : vector<16x64xbf16>, vector<64x128xbf16>, vector<16x128xf32> -> vector<16x128xf32>
    %109 = arith.truncf %108 : vector<16x128xf32> to vector<16x128xbf16>
    %c2_98 = arith.constant 2 : index
    %c0_99 = arith.constant 0 : index
    %c0_100 = arith.constant 0 : index
    %110 = vector.load %arg7[%c2_98, %c0_99, %c0_100] : memref<9x128x128xbf16, #tpu.memory_space<vmem>>, vector<1x128x128xbf16>
    %111 = vector.shape_cast %110 : vector<1x128x128xbf16> to vector<128x128xbf16>
    %cst_101 = arith.constant dense<0.000000e+00> : vector<16x128xf32>
    %112 = tpu.matmul %109, %111, %cst_101 {dimension_numbers = #tpu.dot_dimension_numbers<[1], [0], [0], [1], [0, 0, 1, 1], [], []>} : vector<16x128xbf16>, vector<128x128xbf16>, vector<16x128xf32> -> vector<16x128xf32>
    %113 = arith.addf %105, %112 : vector<16x128xf32>
    %c3_102 = arith.constant 3 : index
    %c0_103 = arith.constant 0 : index
    %c0_104 = arith.constant 0 : index
    %114 = vector.load %arg3[%c3_102, %c0_103, %c0_104] : memref<9x16x64xbf16, #tpu.memory_space<vmem>>, vector<1x16x64xbf16>
    %115 = vector.shape_cast %114 : vector<1x16x64xbf16> to vector<16x64xbf16>
    %cst_105 = arith.constant dense<0.000000e+00> : vector<16x128xf32>
    %116 = tpu.matmul %115, %80, %cst_105 {dimension_numbers = #tpu.dot_dimension_numbers<[1], [0], [0], [1], [0, 0, 1, 1], [], []>} : vector<16x64xbf16>, vector<64x128xbf16>, vector<16x128xf32> -> vector<16x128xf32>
    %117 = arith.truncf %116 : vector<16x128xf32> to vector<16x128xbf16>
    %c3_106 = arith.constant 3 : index
    %c0_107 = arith.constant 0 : index
    %c0_108 = arith.constant 0 : index
    %118 = vector.load %arg7[%c3_106, %c0_107, %c0_108] : memref<9x128x128xbf16, #tpu.memory_space<vmem>>, vector<1x128x128xbf16>
    %119 = vector.shape_cast %118 : vector<1x128x128xbf16> to vector<128x128xbf16>
    %cst_109 = arith.constant dense<0.000000e+00> : vector<16x128xf32>
    %120 = tpu.matmul %117, %119, %cst_109 {dimension_numbers = #tpu.dot_dimension_numbers<[1], [0], [0], [1], [0, 0, 1, 1], [], []>} : vector<16x128xbf16>, vector<128x128xbf16>, vector<16x128xf32> -> vector<16x128xf32>
    %121 = arith.addf %113, %120 : vector<16x128xf32>
    %c4_110 = arith.constant 4 : index
    %c0_111 = arith.constant 0 : index
    %c0_112 = arith.constant 0 : index
    %122 = vector.load %arg3[%c4_110, %c0_111, %c0_112] : memref<9x16x64xbf16, #tpu.memory_space<vmem>>, vector<1x16x64xbf16>
    %123 = vector.shape_cast %122 : vector<1x16x64xbf16> to vector<16x64xbf16>
    %cst_113 = arith.constant dense<0.000000e+00> : vector<16x128xf32>
    %124 = tpu.matmul %123, %80, %cst_113 {dimension_numbers = #tpu.dot_dimension_numbers<[1], [0], [0], [1], [0, 0, 1, 1], [], []>} : vector<16x64xbf16>, vector<64x128xbf16>, vector<16x128xf32> -> vector<16x128xf32>
    %125 = arith.truncf %124 : vector<16x128xf32> to vector<16x128xbf16>
    %c4_114 = arith.constant 4 : index
    %c0_115 = arith.constant 0 : index
    %c0_116 = arith.constant 0 : index
    %126 = vector.load %arg7[%c4_114, %c0_115, %c0_116] : memref<9x128x128xbf16, #tpu.memory_space<vmem>>, vector<1x128x128xbf16>
    %127 = vector.shape_cast %126 : vector<1x128x128xbf16> to vector<128x128xbf16>
    %cst_117 = arith.constant dense<0.000000e+00> : vector<16x128xf32>
    %128 = tpu.matmul %125, %127, %cst_117 {dimension_numbers = #tpu.dot_dimension_numbers<[1], [0], [0], [1], [0, 0, 1, 1], [], []>} : vector<16x128xbf16>, vector<128x128xbf16>, vector<16x128xf32> -> vector<16x128xf32>
    %129 = arith.addf %121, %128 : vector<16x128xf32>
    %c5_118 = arith.constant 5 : index
    %c0_119 = arith.constant 0 : index
    %c0_120 = arith.constant 0 : index
    %130 = vector.load %arg3[%c5_118, %c0_119, %c0_120] : memref<9x16x64xbf16, #tpu.memory_space<vmem>>, vector<1x16x64xbf16>
    %131 = vector.shape_cast %130 : vector<1x16x64xbf16> to vector<16x64xbf16>
    %cst_121 = arith.constant dense<0.000000e+00> : vector<16x128xf32>
    %132 = tpu.matmul %131, %80, %cst_121 {dimension_numbers = #tpu.dot_dimension_numbers<[1], [0], [0], [1], [0, 0, 1, 1], [], []>} : vector<16x64xbf16>, vector<64x128xbf16>, vector<16x128xf32> -> vector<16x128xf32>
    %133 = arith.truncf %132 : vector<16x128xf32> to vector<16x128xbf16>
    %c5_122 = arith.constant 5 : index
    %c0_123 = arith.constant 0 : index
    %c0_124 = arith.constant 0 : index
    %134 = vector.load %arg7[%c5_122, %c0_123, %c0_124] : memref<9x128x128xbf16, #tpu.memory_space<vmem>>, vector<1x128x128xbf16>
    %135 = vector.shape_cast %134 : vector<1x128x128xbf16> to vector<128x128xbf16>
    %cst_125 = arith.constant dense<0.000000e+00> : vector<16x128xf32>
    %136 = tpu.matmul %133, %135, %cst_125 {dimension_numbers = #tpu.dot_dimension_numbers<[1], [0], [0], [1], [0, 0, 1, 1], [], []>} : vector<16x128xbf16>, vector<128x128xbf16>, vector<16x128xf32> -> vector<16x128xf32>
    %137 = arith.addf %129, %136 : vector<16x128xf32>
    %c6_126 = arith.constant 6 : index
    %c0_127 = arith.constant 0 : index
    %c0_128 = arith.constant 0 : index
    %138 = vector.load %arg3[%c6_126, %c0_127, %c0_128] : memref<9x16x64xbf16, #tpu.memory_space<vmem>>, vector<1x16x64xbf16>
    %139 = vector.shape_cast %138 : vector<1x16x64xbf16> to vector<16x64xbf16>
    %cst_129 = arith.constant dense<0.000000e+00> : vector<16x128xf32>
    %140 = tpu.matmul %139, %80, %cst_129 {dimension_numbers = #tpu.dot_dimension_numbers<[1], [0], [0], [1], [0, 0, 1, 1], [], []>} : vector<16x64xbf16>, vector<64x128xbf16>, vector<16x128xf32> -> vector<16x128xf32>
    %141 = arith.truncf %140 : vector<16x128xf32> to vector<16x128xbf16>
    %c6_130 = arith.constant 6 : index
    %c0_131 = arith.constant 0 : index
    %c0_132 = arith.constant 0 : index
    %142 = vector.load %arg7[%c6_130, %c0_131, %c0_132] : memref<9x128x128xbf16, #tpu.memory_space<vmem>>, vector<1x128x128xbf16>
    %143 = vector.shape_cast %142 : vector<1x128x128xbf16> to vector<128x128xbf16>
    %cst_133 = arith.constant dense<0.000000e+00> : vector<16x128xf32>
    %144 = tpu.matmul %141, %143, %cst_133 {dimension_numbers = #tpu.dot_dimension_numbers<[1], [0], [0], [1], [0, 0, 1, 1], [], []>} : vector<16x128xbf16>, vector<128x128xbf16>, vector<16x128xf32> -> vector<16x128xf32>
    %145 = arith.addf %137, %144 : vector<16x128xf32>
    %c7_134 = arith.constant 7 : index
    %c0_135 = arith.constant 0 : index
    %c0_136 = arith.constant 0 : index
    %146 = vector.load %arg3[%c7_134, %c0_135, %c0_136] : memref<9x16x64xbf16, #tpu.memory_space<vmem>>, vector<1x16x64xbf16>
    %147 = vector.shape_cast %146 : vector<1x16x64xbf16> to vector<16x64xbf16>
    %cst_137 = arith.constant dense<0.000000e+00> : vector<16x128xf32>
    %148 = tpu.matmul %147, %80, %cst_137 {dimension_numbers = #tpu.dot_dimension_numbers<[1], [0], [0], [1], [0, 0, 1, 1], [], []>} : vector<16x64xbf16>, vector<64x128xbf16>, vector<16x128xf32> -> vector<16x128xf32>
    %149 = arith.truncf %148 : vector<16x128xf32> to vector<16x128xbf16>
    %c7_138 = arith.constant 7 : index
    %c0_139 = arith.constant 0 : index
    %c0_140 = arith.constant 0 : index
    %150 = vector.load %arg7[%c7_138, %c0_139, %c0_140] : memref<9x128x128xbf16, #tpu.memory_space<vmem>>, vector<1x128x128xbf16>
    %151 = vector.shape_cast %150 : vector<1x128x128xbf16> to vector<128x128xbf16>
    %cst_141 = arith.constant dense<0.000000e+00> : vector<16x128xf32>
    %152 = tpu.matmul %149, %151, %cst_141 {dimension_numbers = #tpu.dot_dimension_numbers<[1], [0], [0], [1], [0, 0, 1, 1], [], []>} : vector<16x128xbf16>, vector<128x128xbf16>, vector<16x128xf32> -> vector<16x128xf32>
    %153 = arith.addf %145, %152 : vector<16x128xf32>
    %c8_142 = arith.constant 8 : index
    %c0_143 = arith.constant 0 : index
    %c0_144 = arith.constant 0 : index
    %154 = vector.load %arg3[%c8_142, %c0_143, %c0_144] : memref<9x16x64xbf16, #tpu.memory_space<vmem>>, vector<1x16x64xbf16>
    %155 = vector.shape_cast %154 : vector<1x16x64xbf16> to vector<16x64xbf16>
    %cst_145 = arith.constant dense<0.000000e+00> : vector<16x128xf32>
    %156 = tpu.matmul %155, %80, %cst_145 {dimension_numbers = #tpu.dot_dimension_numbers<[1], [0], [0], [1], [0, 0, 1, 1], [], []>} : vector<16x64xbf16>, vector<64x128xbf16>, vector<16x128xf32> -> vector<16x128xf32>
    %157 = arith.truncf %156 : vector<16x128xf32> to vector<16x128xbf16>
    %c8_146 = arith.constant 8 : index
    %c0_147 = arith.constant 0 : index
    %c0_148 = arith.constant 0 : index
    %158 = vector.load %arg7[%c8_146, %c0_147, %c0_148] : memref<9x128x128xbf16, #tpu.memory_space<vmem>>, vector<1x128x128xbf16>
    %159 = vector.shape_cast %158 : vector<1x128x128xbf16> to vector<128x128xbf16>
    %cst_149 = arith.constant dense<0.000000e+00> : vector<16x128xf32>
    %160 = tpu.matmul %157, %159, %cst_149 {dimension_numbers = #tpu.dot_dimension_numbers<[1], [0], [0], [1], [0, 0, 1, 1], [], []>} : vector<16x128xbf16>, vector<128x128xbf16>, vector<16x128xf32> -> vector<16x128xf32>
    %161 = arith.addf %153, %160 : vector<16x128xf32>
    %c0_150 = arith.constant 0 : index
    %c0_151 = arith.constant 0 : index
    %162 = vector.load %arg8[%c0_150, %c0_151] : memref<1x128xf32, #tpu.memory_space<vmem>>, vector<1x128xf32>
    %163 = vector.broadcast %162 : vector<1x128xf32> to vector<16x128xf32>
    %164 = arith.addf %161, %163 : vector<16x128xf32>
    %cst_152 = arith.constant 0.000000e+00 : f32
    %165 = vector.broadcast %cst_152 : f32 to vector<16x128xf32>
    %166 = arith.maximumf %164, %165 : vector<16x128xf32>
    %167 = arith.truncf %166 : vector<16x128xf32> to vector<16x128xbf16>
    %c0_153 = arith.constant 0 : index
    %c0_154 = arith.constant 0 : index
    %168 = vector.load %arg13[%c0_153, %c0_154] : memref<128x128xbf16, #tpu.memory_space<vmem>>, vector<128x128xbf16>
    %cst_155 = arith.constant dense<0.000000e+00> : vector<16x128xf32>
    %169 = tpu.matmul %167, %168, %cst_155 {dimension_numbers = #tpu.dot_dimension_numbers<[1], [0], [0], [1], [0, 0, 1, 1], [], []>} : vector<16x128xbf16>, vector<128x128xbf16>, vector<16x128xf32> -> vector<16x128xf32>
    %c0_156 = arith.constant 0 : index
    %c0_157 = arith.constant 0 : index
    %170 = vector.load %arg14[%c0_156, %c0_157] : memref<1x128xf32, #tpu.memory_space<vmem>>, vector<1x128xf32>
    %171 = vector.broadcast %170 : vector<1x128xf32> to vector<16x128xf32>
    %172 = arith.addf %169, %171 : vector<16x128xf32>
    %c0_158 = arith.constant 0 : index
    %c0_159 = arith.constant 0 : index
    %c0_160 = arith.constant 0 : index
    %173 = vector.load %arg18[%c0_158, %c0_159, %c0_160] : memref<1x16x128xf32, #tpu.memory_space<vmem>>, vector<1x16x128xf32>
    %174 = vector.shape_cast %173 : vector<1x16x128xf32> to vector<16x128xf32>
    %175 = vector.shape_cast %172 : vector<16x128xf32> to vector<1x16x128xf32>
    tpu.vector_store %arg18[%c0_158, %c0_159, %c0_160], %175 {strides = array<i32>} : memref<1x16x128xf32, #tpu.memory_space<vmem>>, vector<1x16x128xf32>,
    %cst_161 = arith.constant 0.000000e+00 : f32
    %176 = vector.broadcast %cst_161 : f32 to vector<4x128xf32>
    %c0_162 = arith.constant 0 : index
    %c0_163 = arith.constant 0 : index
    %c0_164 = arith.constant 0 : index
    %177 = vector.load %arg4[%c0_162, %c0_163, %c0_164] : memref<9x4x16xbf16, #tpu.memory_space<vmem>>, vector<1x4x16xbf16>
    %178 = vector.shape_cast %177 : vector<1x4x16xbf16> to vector<4x16xbf16>
    %cst_165 = arith.constant dense<0.000000e+00> : vector<4x128xf32>
    %179 = tpu.matmul %178, %167, %cst_165 {dimension_numbers = #tpu.dot_dimension_numbers<[1], [0], [0], [1], [0, 0, 1, 1], [], []>} : vector<4x16xbf16>, vector<16x128xbf16>, vector<4x128xf32> -> vector<4x128xf32>
    %180 = arith.truncf %179 : vector<4x128xf32> to vector<4x128xbf16>
    %c0_166 = arith.constant 0 : index
    %c0_167 = arith.constant 0 : index
    %c0_168 = arith.constant 0 : index
    %181 = vector.load %arg9[%c0_166, %c0_167, %c0_168] : memref<9x128x128xbf16, #tpu.memory_space<vmem>>, vector<1x128x128xbf16>
    %182 = vector.shape_cast %181 : vector<1x128x128xbf16> to vector<128x128xbf16>
    %cst_169 = arith.constant dense<0.000000e+00> : vector<4x128xf32>
    %183 = tpu.matmul %180, %182, %cst_169 {dimension_numbers = #tpu.dot_dimension_numbers<[1], [0], [0], [1], [0, 0, 1, 1], [], []>} : vector<4x128xbf16>, vector<128x128xbf16>, vector<4x128xf32> -> vector<4x128xf32>
    %184 = arith.addf %176, %183 : vector<4x128xf32>
    %c1_170 = arith.constant 1 : index
    %c0_171 = arith.constant 0 : index
    %c0_172 = arith.constant 0 : index
    %185 = vector.load %arg4[%c1_170, %c0_171, %c0_172] : memref<9x4x16xbf16, #tpu.memory_space<vmem>>, vector<1x4x16xbf16>
    %186 = vector.shape_cast %185 : vector<1x4x16xbf16> to vector<4x16xbf16>
    %cst_173 = arith.constant dense<0.000000e+00> : vector<4x128xf32>
    %187 = tpu.matmul %186, %167, %cst_173 {dimension_numbers = #tpu.dot_dimension_numbers<[1], [0], [0], [1], [0, 0, 1, 1], [], []>} : vector<4x16xbf16>, vector<16x128xbf16>, vector<4x128xf32> -> vector<4x128xf32>
    %188 = arith.truncf %187 : vector<4x128xf32> to vector<4x128xbf16>
    %c1_174 = arith.constant 1 : index
    %c0_175 = arith.constant 0 : index
    %c0_176 = arith.constant 0 : index
    %189 = vector.load %arg9[%c1_174, %c0_175, %c0_176] : memref<9x128x128xbf16, #tpu.memory_space<vmem>>, vector<1x128x128xbf16>
    %190 = vector.shape_cast %189 : vector<1x128x128xbf16> to vector<128x128xbf16>
    %cst_177 = arith.constant dense<0.000000e+00> : vector<4x128xf32>
    %191 = tpu.matmul %188, %190, %cst_177 {dimension_numbers = #tpu.dot_dimension_numbers<[1], [0], [0], [1], [0, 0, 1, 1], [], []>} : vector<4x128xbf16>, vector<128x128xbf16>, vector<4x128xf32> -> vector<4x128xf32>
    %192 = arith.addf %184, %191 : vector<4x128xf32>
    %c2_178 = arith.constant 2 : index
    %c0_179 = arith.constant 0 : index
    %c0_180 = arith.constant 0 : index
    %193 = vector.load %arg4[%c2_178, %c0_179, %c0_180] : memref<9x4x16xbf16, #tpu.memory_space<vmem>>, vector<1x4x16xbf16>
    %194 = vector.shape_cast %193 : vector<1x4x16xbf16> to vector<4x16xbf16>
    %cst_181 = arith.constant dense<0.000000e+00> : vector<4x128xf32>
    %195 = tpu.matmul %194, %167, %cst_181 {dimension_numbers = #tpu.dot_dimension_numbers<[1], [0], [0], [1], [0, 0, 1, 1], [], []>} : vector<4x16xbf16>, vector<16x128xbf16>, vector<4x128xf32> -> vector<4x128xf32>
    %196 = arith.truncf %195 : vector<4x128xf32> to vector<4x128xbf16>
    %c2_182 = arith.constant 2 : index
    %c0_183 = arith.constant 0 : index
    %c0_184 = arith.constant 0 : index
    %197 = vector.load %arg9[%c2_182, %c0_183, %c0_184] : memref<9x128x128xbf16, #tpu.memory_space<vmem>>, vector<1x128x128xbf16>
    %198 = vector.shape_cast %197 : vector<1x128x128xbf16> to vector<128x128xbf16>
    %cst_185 = arith.constant dense<0.000000e+00> : vector<4x128xf32>
    %199 = tpu.matmul %196, %198, %cst_185 {dimension_numbers = #tpu.dot_dimension_numbers<[1], [0], [0], [1], [0, 0, 1, 1], [], []>} : vector<4x128xbf16>, vector<128x128xbf16>, vector<4x128xf32> -> vector<4x128xf32>
    %200 = arith.addf %192, %199 : vector<4x128xf32>
    %c3_186 = arith.constant 3 : index
    %c0_187 = arith.constant 0 : index
    %c0_188 = arith.constant 0 : index
    %201 = vector.load %arg4[%c3_186, %c0_187, %c0_188] : memref<9x4x16xbf16, #tpu.memory_space<vmem>>, vector<1x4x16xbf16>
    %202 = vector.shape_cast %201 : vector<1x4x16xbf16> to vector<4x16xbf16>
    %cst_189 = arith.constant dense<0.000000e+00> : vector<4x128xf32>
    %203 = tpu.matmul %202, %167, %cst_189 {dimension_numbers = #tpu.dot_dimension_numbers<[1], [0], [0], [1], [0, 0, 1, 1], [], []>} : vector<4x16xbf16>, vector<16x128xbf16>, vector<4x128xf32> -> vector<4x128xf32>
    %204 = arith.truncf %203 : vector<4x128xf32> to vector<4x128xbf16>
    %c3_190 = arith.constant 3 : index
    %c0_191 = arith.constant 0 : index
    %c0_192 = arith.constant 0 : index
    %205 = vector.load %arg9[%c3_190, %c0_191, %c0_192] : memref<9x128x128xbf16, #tpu.memory_space<vmem>>, vector<1x128x128xbf16>
    %206 = vector.shape_cast %205 : vector<1x128x128xbf16> to vector<128x128xbf16>
    %cst_193 = arith.constant dense<0.000000e+00> : vector<4x128xf32>
    %207 = tpu.matmul %204, %206, %cst_193 {dimension_numbers = #tpu.dot_dimension_numbers<[1], [0], [0], [1], [0, 0, 1, 1], [], []>} : vector<4x128xbf16>, vector<128x128xbf16>, vector<4x128xf32> -> vector<4x128xf32>
    %208 = arith.addf %200, %207 : vector<4x128xf32>
    %c4_194 = arith.constant 4 : index
    %c0_195 = arith.constant 0 : index
    %c0_196 = arith.constant 0 : index
    %209 = vector.load %arg4[%c4_194, %c0_195, %c0_196] : memref<9x4x16xbf16, #tpu.memory_space<vmem>>, vector<1x4x16xbf16>
    %210 = vector.shape_cast %209 : vector<1x4x16xbf16> to vector<4x16xbf16>
    %cst_197 = arith.constant dense<0.000000e+00> : vector<4x128xf32>
    %211 = tpu.matmul %210, %167, %cst_197 {dimension_numbers = #tpu.dot_dimension_numbers<[1], [0], [0], [1], [0, 0, 1, 1], [], []>} : vector<4x16xbf16>, vector<16x128xbf16>, vector<4x128xf32> -> vector<4x128xf32>
    %212 = arith.truncf %211 : vector<4x128xf32> to vector<4x128xbf16>
    %c4_198 = arith.constant 4 : index
    %c0_199 = arith.constant 0 : index
    %c0_200 = arith.constant 0 : index
    %213 = vector.load %arg9[%c4_198, %c0_199, %c0_200] : memref<9x128x128xbf16, #tpu.memory_space<vmem>>, vector<1x128x128xbf16>
    %214 = vector.shape_cast %213 : vector<1x128x128xbf16> to vector<128x128xbf16>
    %cst_201 = arith.constant dense<0.000000e+00> : vector<4x128xf32>
    %215 = tpu.matmul %212, %214, %cst_201 {dimension_numbers = #tpu.dot_dimension_numbers<[1], [0], [0], [1], [0, 0, 1, 1], [], []>} : vector<4x128xbf16>, vector<128x128xbf16>, vector<4x128xf32> -> vector<4x128xf32>
    %216 = arith.addf %208, %215 : vector<4x128xf32>
    %c5_202 = arith.constant 5 : index
    %c0_203 = arith.constant 0 : index
    %c0_204 = arith.constant 0 : index
    %217 = vector.load %arg4[%c5_202, %c0_203, %c0_204] : memref<9x4x16xbf16, #tpu.memory_space<vmem>>, vector<1x4x16xbf16>
    %218 = vector.shape_cast %217 : vector<1x4x16xbf16> to vector<4x16xbf16>
    %cst_205 = arith.constant dense<0.000000e+00> : vector<4x128xf32>
    %219 = tpu.matmul %218, %167, %cst_205 {dimension_numbers = #tpu.dot_dimension_numbers<[1], [0], [0], [1], [0, 0, 1, 1], [], []>} : vector<4x16xbf16>, vector<16x128xbf16>, vector<4x128xf32> -> vector<4x128xf32>
    %220 = arith.truncf %219 : vector<4x128xf32> to vector<4x128xbf16>
    %c5_206 = arith.constant 5 : index
    %c0_207 = arith.constant 0 : index
    %c0_208 = arith.constant 0 : index
    %221 = vector.load %arg9[%c5_206, %c0_207, %c0_208] : memref<9x128x128xbf16, #tpu.memory_space<vmem>>, vector<1x128x128xbf16>
    %222 = vector.shape_cast %221 : vector<1x128x128xbf16> to vector<128x128xbf16>
    %cst_209 = arith.constant dense<0.000000e+00> : vector<4x128xf32>
    %223 = tpu.matmul %220, %222, %cst_209 {dimension_numbers = #tpu.dot_dimension_numbers<[1], [0], [0], [1], [0, 0, 1, 1], [], []>} : vector<4x128xbf16>, vector<128x128xbf16>, vector<4x128xf32> -> vector<4x128xf32>
    %224 = arith.addf %216, %223 : vector<4x128xf32>
    %c6_210 = arith.constant 6 : index
    %c0_211 = arith.constant 0 : index
    %c0_212 = arith.constant 0 : index
    %225 = vector.load %arg4[%c6_210, %c0_211, %c0_212] : memref<9x4x16xbf16, #tpu.memory_space<vmem>>, vector<1x4x16xbf16>
    %226 = vector.shape_cast %225 : vector<1x4x16xbf16> to vector<4x16xbf16>
    %cst_213 = arith.constant dense<0.000000e+00> : vector<4x128xf32>
    %227 = tpu.matmul %226, %167, %cst_213 {dimension_numbers = #tpu.dot_dimension_numbers<[1], [0], [0], [1], [0, 0, 1, 1], [], []>} : vector<4x16xbf16>, vector<16x128xbf16>, vector<4x128xf32> -> vector<4x128xf32>
    %228 = arith.truncf %227 : vector<4x128xf32> to vector<4x128xbf16>
    %c6_214 = arith.constant 6 : index
    %c0_215 = arith.constant 0 : index
    %c0_216 = arith.constant 0 : index
    %229 = vector.load %arg9[%c6_214, %c0_215, %c0_216] : memref<9x128x128xbf16, #tpu.memory_space<vmem>>, vector<1x128x128xbf16>
    %230 = vector.shape_cast %229 : vector<1x128x128xbf16> to vector<128x128xbf16>
    %cst_217 = arith.constant dense<0.000000e+00> : vector<4x128xf32>
    %231 = tpu.matmul %228, %230, %cst_217 {dimension_numbers = #tpu.dot_dimension_numbers<[1], [0], [0], [1], [0, 0, 1, 1], [], []>} : vector<4x128xbf16>, vector<128x128xbf16>, vector<4x128xf32> -> vector<4x128xf32>
    %232 = arith.addf %224, %231 : vector<4x128xf32>
    %c7_218 = arith.constant 7 : index
    %c0_219 = arith.constant 0 : index
    %c0_220 = arith.constant 0 : index
    %233 = vector.load %arg4[%c7_218, %c0_219, %c0_220] : memref<9x4x16xbf16, #tpu.memory_space<vmem>>, vector<1x4x16xbf16>
    %234 = vector.shape_cast %233 : vector<1x4x16xbf16> to vector<4x16xbf16>
    %cst_221 = arith.constant dense<0.000000e+00> : vector<4x128xf32>
    %235 = tpu.matmul %234, %167, %cst_221 {dimension_numbers = #tpu.dot_dimension_numbers<[1], [0], [0], [1], [0, 0, 1, 1], [], []>} : vector<4x16xbf16>, vector<16x128xbf16>, vector<4x128xf32> -> vector<4x128xf32>
    %236 = arith.truncf %235 : vector<4x128xf32> to vector<4x128xbf16>
    %c7_222 = arith.constant 7 : index
    %c0_223 = arith.constant 0 : index
    %c0_224 = arith.constant 0 : index
    %237 = vector.load %arg9[%c7_222, %c0_223, %c0_224] : memref<9x128x128xbf16, #tpu.memory_space<vmem>>, vector<1x128x128xbf16>
    %238 = vector.shape_cast %237 : vector<1x128x128xbf16> to vector<128x128xbf16>
    %cst_225 = arith.constant dense<0.000000e+00> : vector<4x128xf32>
    %239 = tpu.matmul %236, %238, %cst_225 {dimension_numbers = #tpu.dot_dimension_numbers<[1], [0], [0], [1], [0, 0, 1, 1], [], []>} : vector<4x128xbf16>, vector<128x128xbf16>, vector<4x128xf32> -> vector<4x128xf32>
    %240 = arith.addf %232, %239 : vector<4x128xf32>
    %c8_226 = arith.constant 8 : index
    %c0_227 = arith.constant 0 : index
    %c0_228 = arith.constant 0 : index
    %241 = vector.load %arg4[%c8_226, %c0_227, %c0_228] : memref<9x4x16xbf16, #tpu.memory_space<vmem>>, vector<1x4x16xbf16>
    %242 = vector.shape_cast %241 : vector<1x4x16xbf16> to vector<4x16xbf16>
    %cst_229 = arith.constant dense<0.000000e+00> : vector<4x128xf32>
    %243 = tpu.matmul %242, %167, %cst_229 {dimension_numbers = #tpu.dot_dimension_numbers<[1], [0], [0], [1], [0, 0, 1, 1], [], []>} : vector<4x16xbf16>, vector<16x128xbf16>, vector<4x128xf32> -> vector<4x128xf32>
    %244 = arith.truncf %243 : vector<4x128xf32> to vector<4x128xbf16>
    %c8_230 = arith.constant 8 : index
    %c0_231 = arith.constant 0 : index
    %c0_232 = arith.constant 0 : index
    %245 = vector.load %arg9[%c8_230, %c0_231, %c0_232] : memref<9x128x128xbf16, #tpu.memory_space<vmem>>, vector<1x128x128xbf16>
    %246 = vector.shape_cast %245 : vector<1x128x128xbf16> to vector<128x128xbf16>
    %cst_233 = arith.constant dense<0.000000e+00> : vector<4x128xf32>
    %247 = tpu.matmul %244, %246, %cst_233 {dimension_numbers = #tpu.dot_dimension_numbers<[1], [0], [0], [1], [0, 0, 1, 1], [], []>} : vector<4x128xbf16>, vector<128x128xbf16>, vector<4x128xf32> -> vector<4x128xf32>
    %248 = arith.addf %240, %247 : vector<4x128xf32>
    %c0_234 = arith.constant 0 : index
    %c0_235 = arith.constant 0 : index
    %249 = vector.load %arg10[%c0_234, %c0_235] : memref<1x128xf32, #tpu.memory_space<vmem>>, vector<1x128xf32>
    %250 = vector.broadcast %249 : vector<1x128xf32> to vector<4x128xf32>
    %251 = arith.addf %248, %250 : vector<4x128xf32>
    %cst_236 = arith.constant 0.000000e+00 : f32
    %252 = vector.broadcast %cst_236 : f32 to vector<4x128xf32>
    %253 = arith.maximumf %251, %252 : vector<4x128xf32>
    %254 = arith.truncf %253 : vector<4x128xf32> to vector<4x128xbf16>
    %c0_237 = arith.constant 0 : index
    %c0_238 = arith.constant 0 : index
    %255 = vector.load %arg15[%c0_237, %c0_238] : memref<128x128xbf16, #tpu.memory_space<vmem>>, vector<128x128xbf16>
    %cst_239 = arith.constant dense<0.000000e+00> : vector<4x128xf32>
    %256 = tpu.matmul %254, %255, %cst_239 {dimension_numbers = #tpu.dot_dimension_numbers<[1], [0], [0], [1], [0, 0, 1, 1], [], []>} : vector<4x128xbf16>, vector<128x128xbf16>, vector<4x128xf32> -> vector<4x128xf32>
    %c0_240 = arith.constant 0 : index
    %c0_241 = arith.constant 0 : index
    %257 = vector.load %arg16[%c0_240, %c0_241] : memref<1x128xf32, #tpu.memory_space<vmem>>, vector<1x128xf32>
    %258 = vector.broadcast %257 : vector<1x128xf32> to vector<4x128xf32>
    %259 = arith.addf %256, %258 : vector<4x128xf32>
    %c0_242 = arith.constant 0 : index
    %c0_243 = arith.constant 0 : index
    %c0_244 = arith.constant 0 : index
    %260 = vector.load %arg19[%c0_242, %c0_243, %c0_244] : memref<1x4x128xf32, #tpu.memory_space<vmem>>, vector<1x4x128xf32>
    %261 = vector.shape_cast %260 : vector<1x4x128xf32> to vector<4x128xf32>
    %262 = vector.shape_cast %259 : vector<4x128xf32> to vector<1x4x128xf32>
    tpu.vector_store %arg19[%c0_242, %c0_243, %c0_244], %262 {strides = array<i32>} : memref<1x4x128xf32, #tpu.memory_space<vmem>>, vector<1x4x128xf32>,
    return
  }
  func.func @transform_0(%arg0: i32) -> (i32, i32, i32) {
    %c0_i32 = arith.constant 0 : i32
    %c0_i32_0 = arith.constant 0 : i32
    %c0_i32_1 = arith.constant 0 : i32
    return %arg0, %c0_i32, %c0_i32_0 : i32, i32, i32
  }
  func.func @transform_1(%arg0: i32) -> (i32, i32, i32) {
    %c0_i32 = arith.constant 0 : i32
    %c0_i32_0 = arith.constant 0 : i32
    %c0_i32_1 = arith.constant 0 : i32
    %c0_i32_2 = arith.constant 0 : i32
    return %c0_i32, %c0_i32_0, %c0_i32_1 : i32, i32, i32
  }
  func.func @transform_2(%arg0: i32) -> (i32, i32, i32) {
    %c0_i32 = arith.constant 0 : i32
    %c0_i32_0 = arith.constant 0 : i32
    %c0_i32_1 = arith.constant 0 : i32
    %c0_i32_2 = arith.constant 0 : i32
    return %c0_i32, %c0_i32_0, %c0_i32_1 : i32, i32, i32
  }
  func.func @transform_3(%arg0: i32) -> (i32, i32, i32) {
    %c0_i32 = arith.constant 0 : i32
    %c0_i32_0 = arith.constant 0 : i32
    %c0_i32_1 = arith.constant 0 : i32
    %c0_i32_2 = arith.constant 0 : i32
    return %c0_i32, %c0_i32_0, %c0_i32_1 : i32, i32, i32
  }
  func.func @transform_4(%arg0: i32) -> (i32, i32, i32) {
    %c0_i32 = arith.constant 0 : i32
    %c0_i32_0 = arith.constant 0 : i32
    %c0_i32_1 = arith.constant 0 : i32
    %c0_i32_2 = arith.constant 0 : i32
    return %c0_i32, %c0_i32_0, %c0_i32_1 : i32, i32, i32
  }
  func.func @transform_5(%arg0: i32) -> (i32, i32) {
    %c0_i32 = arith.constant 0 : i32
    %c0_i32_0 = arith.constant 0 : i32
    %c0_i32_1 = arith.constant 0 : i32
    return %c0_i32, %c0_i32_0 : i32, i32
  }
  func.func @transform_6(%arg0: i32) -> (i32, i32, i32) {
    %c0_i32 = arith.constant 0 : i32
    %c0_i32_0 = arith.constant 0 : i32
    %c0_i32_1 = arith.constant 0 : i32
    %c0_i32_2 = arith.constant 0 : i32
    return %c0_i32, %c0_i32_0, %c0_i32_1 : i32, i32, i32
  }
  func.func @transform_7(%arg0: i32) -> (i32, i32) {
    %c0_i32 = arith.constant 0 : i32
    %c0_i32_0 = arith.constant 0 : i32
    %c0_i32_1 = arith.constant 0 : i32
    return %c0_i32, %c0_i32_0 : i32, i32
  }
  func.func @transform_8(%arg0: i32) -> (i32, i32, i32) {
    %c0_i32 = arith.constant 0 : i32
    %c0_i32_0 = arith.constant 0 : i32
    %c0_i32_1 = arith.constant 0 : i32
    %c0_i32_2 = arith.constant 0 : i32
    return %c0_i32, %c0_i32_0, %c0_i32_1 : i32, i32, i32
  }
  func.func @transform_9(%arg0: i32) -> (i32, i32) {
    %c0_i32 = arith.constant 0 : i32
    %c0_i32_0 = arith.constant 0 : i32
    %c0_i32_1 = arith.constant 0 : i32
    return %c0_i32, %c0_i32_0 : i32, i32
  }
  func.func @transform_10(%arg0: i32) -> (i32, i32) {
    %c0_i32 = arith.constant 0 : i32
    %c0_i32_0 = arith.constant 0 : i32
    %c0_i32_1 = arith.constant 0 : i32
    return %c0_i32, %c0_i32_0 : i32, i32
  }
  func.func @transform_11(%arg0: i32) -> (i32, i32) {
    %c0_i32 = arith.constant 0 : i32
    %c0_i32_0 = arith.constant 0 : i32
    %c0_i32_1 = arith.constant 0 : i32
    return %c0_i32, %c0_i32_0 : i32, i32
  }
  func.func @transform_12(%arg0: i32) -> (i32, i32) {
    %c0_i32 = arith.constant 0 : i32
    %c0_i32_0 = arith.constant 0 : i32
    %c0_i32_1 = arith.constant 0 : i32
    return %c0_i32, %c0_i32_0 : i32, i32
  }
  func.func @transform_13(%arg0: i32) -> (i32, i32) {
    %c0_i32 = arith.constant 0 : i32
    %c0_i32_0 = arith.constant 0 : i32
    %c0_i32_1 = arith.constant 0 : i32
    return %c0_i32, %c0_i32_0 : i32, i32
  }
  func.func @transform_14(%arg0: i32) -> (i32, i32) {
    %c0_i32 = arith.constant 0 : i32
    %c0_i32_0 = arith.constant 0 : i32
    %c0_i32_1 = arith.constant 0 : i32
    return %c0_i32, %c0_i32_0 : i32, i32
  }
  func.func @transform_15(%arg0: i32) -> (i32, i32) {
    %c0_i32 = arith.constant 0 : i32
    %c0_i32_0 = arith.constant 0 : i32
    %c0_i32_1 = arith.constant 0 : i32
    return %c0_i32, %c0_i32_0 : i32, i32
  }
  func.func @transform_16(%arg0: i32) -> (i32, i32, i32) {
    %c0_i32 = arith.constant 0 : i32
    %c0_i32_0 = arith.constant 0 : i32
    %c0_i32_1 = arith.constant 0 : i32
    return %arg0, %c0_i32, %c0_i32_0 : i32, i32, i32
  }
  func.func @transform_17(%arg0: i32) -> (i32, i32, i32) {
    %c0_i32 = arith.constant 0 : i32
    %c0_i32_0 = arith.constant 0 : i32
    %c0_i32_1 = arith.constant 0 : i32
    return %arg0, %c0_i32, %c0_i32_0 : i32, i32, i32
  }
  func.func @transform_18(%arg0: i32) -> (i32, i32, i32) {
    %c0_i32 = arith.constant 0 : i32
    %c0_i32_0 = arith.constant 0 : i32
    %c0_i32_1 = arith.constant 0 : i32
    return %arg0, %c0_i32, %c0_i32_0 : i32, i32, i32
  }
}

module attributes {stable_mosaic.version = 11 : i64} {
  func.func @_matmul_bias_kernel(%arg0: i32, %arg1: memref<128x27xbf16, #tpu.memory_space<vmem>>, %arg2: memref<27x128xbf16, #tpu.memory_space<vmem>>, %arg3: memref<1x128xf32, #tpu.memory_space<vmem>>, %arg4: memref<128x128xbf16, #tpu.memory_space<vmem>>) attributes {dimension_semantics = [#tpu.dimension_semantics<parallel>], iteration_bounds = array<i64: 4>, scalar_prefetch = 0 : i64, scratch_operands = 0 : i64, tpu.core_type = #tpu.core_type<tc>, window_params = [{transform_indices = @transform_0, window_bounds = array<i64: 128, 27>}, {pipeline_mode = #tpu.pipeline_mode<synchronous>, transform_indices = @transform_1, window_bounds = array<i64: 27, 128>}, {pipeline_mode = #tpu.pipeline_mode<synchronous>, transform_indices = @transform_2, window_bounds = array<i64: 1, 128>}, {transform_indices = @transform_3, window_bounds = array<i64: 128, 128>}]} {
    %c0 = arith.constant 0 : index
    %c0_0 = arith.constant 0 : index
    %0 = vector.load %arg1[%c0, %c0_0] : memref<128x27xbf16, #tpu.memory_space<vmem>>, vector<128x27xbf16>
    %c0_1 = arith.constant 0 : index
    %c0_2 = arith.constant 0 : index
    %1 = vector.load %arg2[%c0_1, %c0_2] : memref<27x128xbf16, #tpu.memory_space<vmem>>, vector<27x128xbf16>
    %cst = arith.constant dense<0.000000e+00> : vector<128x128xf32>
    %2 = tpu.matmul %0, %1, %cst {dimension_numbers = #tpu.dot_dimension_numbers<[1], [0], [0], [1], [0, 0, 1, 1], [], []>} : vector<128x27xbf16>, vector<27x128xbf16>, vector<128x128xf32> -> vector<128x128xf32>
    %c0_3 = arith.constant 0 : index
    %c0_4 = arith.constant 0 : index
    %3 = vector.load %arg3[%c0_3, %c0_4] : memref<1x128xf32, #tpu.memory_space<vmem>>, vector<1x128xf32>
    %4 = vector.broadcast %3 : vector<1x128xf32> to vector<128x128xf32>
    %5 = arith.addf %2, %4 : vector<128x128xf32>
    %cst_5 = arith.constant 0.000000e+00 : f32
    %6 = vector.broadcast %cst_5 : f32 to vector<128x128xf32>
    %7 = arith.maximumf %5, %6 : vector<128x128xf32>
    %8 = arith.truncf %7 : vector<128x128xf32> to vector<128x128xbf16>
    %c0_6 = arith.constant 0 : index
    %c0_7 = arith.constant 0 : index
    %9 = vector.load %arg4[%c0_6, %c0_7] : memref<128x128xbf16, #tpu.memory_space<vmem>>, vector<128x128xbf16>
    tpu.vector_store %arg4[%c0_6, %c0_7], %8 {strides = array<i32>} : memref<128x128xbf16, #tpu.memory_space<vmem>>, vector<128x128xbf16>,
    return
  }
  func.func @transform_0(%arg0: i32) -> (i32, i32) {
    %c0_i32 = arith.constant 0 : i32
    %c0_i32_0 = arith.constant 0 : i32
    return %arg0, %c0_i32 : i32, i32
  }
  func.func @transform_1(%arg0: i32) -> (i32, i32) {
    %c0_i32 = arith.constant 0 : i32
    %c0_i32_0 = arith.constant 0 : i32
    %c0_i32_1 = arith.constant 0 : i32
    return %c0_i32, %c0_i32_0 : i32, i32
  }
  func.func @transform_2(%arg0: i32) -> (i32, i32) {
    %c0_i32 = arith.constant 0 : i32
    %c0_i32_0 = arith.constant 0 : i32
    %c0_i32_1 = arith.constant 0 : i32
    return %c0_i32, %c0_i32_0 : i32, i32
  }
  func.func @transform_3(%arg0: i32) -> (i32, i32) {
    %c0_i32 = arith.constant 0 : i32
    %c0_i32_0 = arith.constant 0 : i32
    return %arg0, %c0_i32 : i32, i32
  }
}

module attributes {stable_mosaic.version = 11 : i64} {
  func.func @_matmul_bias_kernel(%arg0: i32, %arg1: memref<8x64xbf16, #tpu.memory_space<vmem>>, %arg2: memref<64x128xbf16, #tpu.memory_space<vmem>>, %arg3: memref<1x128xf32, #tpu.memory_space<vmem>>, %arg4: memref<8x128xf32, #tpu.memory_space<vmem>>) attributes {dimension_semantics = [#tpu.dimension_semantics<parallel>], iteration_bounds = array<i64: 1>, scalar_prefetch = 0 : i64, scratch_operands = 0 : i64, tpu.core_type = #tpu.core_type<tc>, window_params = [{transform_indices = @transform_0, window_bounds = array<i64: 8, 64>}, {pipeline_mode = #tpu.pipeline_mode<synchronous>, transform_indices = @transform_1, window_bounds = array<i64: 64, 128>}, {pipeline_mode = #tpu.pipeline_mode<synchronous>, transform_indices = @transform_2, window_bounds = array<i64: 1, 128>}, {transform_indices = @transform_3, window_bounds = array<i64: 8, 128>}]} {
    %c0 = arith.constant 0 : index
    %c0_0 = arith.constant 0 : index
    %0 = vector.load %arg1[%c0, %c0_0] : memref<8x64xbf16, #tpu.memory_space<vmem>>, vector<8x64xbf16>
    %c0_1 = arith.constant 0 : index
    %c0_2 = arith.constant 0 : index
    %1 = vector.load %arg2[%c0_1, %c0_2] : memref<64x128xbf16, #tpu.memory_space<vmem>>, vector<64x128xbf16>
    %cst = arith.constant dense<0.000000e+00> : vector<8x128xf32>
    %2 = tpu.matmul %0, %1, %cst {dimension_numbers = #tpu.dot_dimension_numbers<[1], [0], [0], [1], [0, 0, 1, 1], [], []>} : vector<8x64xbf16>, vector<64x128xbf16>, vector<8x128xf32> -> vector<8x128xf32>
    %c0_3 = arith.constant 0 : index
    %c0_4 = arith.constant 0 : index
    %3 = vector.load %arg3[%c0_3, %c0_4] : memref<1x128xf32, #tpu.memory_space<vmem>>, vector<1x128xf32>
    %4 = vector.broadcast %3 : vector<1x128xf32> to vector<8x128xf32>
    %5 = arith.addf %2, %4 : vector<8x128xf32>
    %c0_5 = arith.constant 0 : index
    %c0_6 = arith.constant 0 : index
    %6 = vector.load %arg4[%c0_5, %c0_6] : memref<8x128xf32, #tpu.memory_space<vmem>>, vector<8x128xf32>
    tpu.vector_store %arg4[%c0_5, %c0_6], %5 {strides = array<i32>} : memref<8x128xf32, #tpu.memory_space<vmem>>, vector<8x128xf32>,
    return
  }
  func.func @transform_0(%arg0: i32) -> (i32, i32) {
    %c0_i32 = arith.constant 0 : i32
    %c0_i32_0 = arith.constant 0 : i32
    return %arg0, %c0_i32 : i32, i32
  }
  func.func @transform_1(%arg0: i32) -> (i32, i32) {
    %c0_i32 = arith.constant 0 : i32
    %c0_i32_0 = arith.constant 0 : i32
    %c0_i32_1 = arith.constant 0 : i32
    return %c0_i32, %c0_i32_0 : i32, i32
  }
  func.func @transform_2(%arg0: i32) -> (i32, i32) {
    %c0_i32 = arith.constant 0 : i32
    %c0_i32_0 = arith.constant 0 : i32
    %c0_i32_1 = arith.constant 0 : i32
    return %c0_i32, %c0_i32_0 : i32, i32
  }
  func.func @transform_3(%arg0: i32) -> (i32, i32) {
    %c0_i32 = arith.constant 0 : i32
    %c0_i32_0 = arith.constant 0 : i32
    return %arg0, %c0_i32 : i32, i32
  }
}

module attributes {stable_mosaic.version = 11 : i64} {
  func.func @_matmul_bias_kernel(%arg0: i32, %arg1: memref<2x320xbf16, #tpu.memory_space<vmem>>, %arg2: memref<320x128xbf16, #tpu.memory_space<vmem>>, %arg3: memref<1x128xf32, #tpu.memory_space<vmem>>, %arg4: memref<2x128xf32, #tpu.memory_space<vmem>>) attributes {dimension_semantics = [#tpu.dimension_semantics<parallel>], iteration_bounds = array<i64: 1>, scalar_prefetch = 0 : i64, scratch_operands = 0 : i64, tpu.core_type = #tpu.core_type<tc>, window_params = [{transform_indices = @transform_0, window_bounds = array<i64: 2, 320>}, {pipeline_mode = #tpu.pipeline_mode<synchronous>, transform_indices = @transform_1, window_bounds = array<i64: 320, 128>}, {pipeline_mode = #tpu.pipeline_mode<synchronous>, transform_indices = @transform_2, window_bounds = array<i64: 1, 128>}, {transform_indices = @transform_3, window_bounds = array<i64: 2, 128>}]} {
    %c0 = arith.constant 0 : index
    %c0_0 = arith.constant 0 : index
    %0 = vector.load %arg1[%c0, %c0_0] : memref<2x320xbf16, #tpu.memory_space<vmem>>, vector<2x320xbf16>
    %c0_1 = arith.constant 0 : index
    %c0_2 = arith.constant 0 : index
    %1 = vector.load %arg2[%c0_1, %c0_2] : memref<320x128xbf16, #tpu.memory_space<vmem>>, vector<320x128xbf16>
    %cst = arith.constant dense<0.000000e+00> : vector<2x128xf32>
    %2 = tpu.matmul %0, %1, %cst {dimension_numbers = #tpu.dot_dimension_numbers<[1], [0], [0], [1], [0, 0, 1, 1], [], []>} : vector<2x320xbf16>, vector<320x128xbf16>, vector<2x128xf32> -> vector<2x128xf32>
    %c0_3 = arith.constant 0 : index
    %c0_4 = arith.constant 0 : index
    %3 = vector.load %arg3[%c0_3, %c0_4] : memref<1x128xf32, #tpu.memory_space<vmem>>, vector<1x128xf32>
    %4 = vector.broadcast %3 : vector<1x128xf32> to vector<2x128xf32>
    %5 = arith.addf %2, %4 : vector<2x128xf32>
    %c0_5 = arith.constant 0 : index
    %c0_6 = arith.constant 0 : index
    %6 = vector.load %arg4[%c0_5, %c0_6] : memref<2x128xf32, #tpu.memory_space<vmem>>, vector<2x128xf32>
    tpu.vector_store %arg4[%c0_5, %c0_6], %5 {strides = array<i32>} : memref<2x128xf32, #tpu.memory_space<vmem>>, vector<2x128xf32>,
    return
  }
  func.func @transform_0(%arg0: i32) -> (i32, i32) {
    %c0_i32 = arith.constant 0 : i32
    %c0_i32_0 = arith.constant 0 : i32
    return %arg0, %c0_i32 : i32, i32
  }
  func.func @transform_1(%arg0: i32) -> (i32, i32) {
    %c0_i32 = arith.constant 0 : i32
    %c0_i32_0 = arith.constant 0 : i32
    %c0_i32_1 = arith.constant 0 : i32
    return %c0_i32, %c0_i32_0 : i32, i32
  }
  func.func @transform_2(%arg0: i32) -> (i32, i32) {
    %c0_i32 = arith.constant 0 : i32
    %c0_i32_0 = arith.constant 0 : i32
    %c0_i32_1 = arith.constant 0 : i32
    return %c0_i32, %c0_i32_0 : i32, i32
  }
  func.func @transform_3(%arg0: i32) -> (i32, i32) {
    %c0_i32 = arith.constant 0 : i32
    %c0_i32_0 = arith.constant 0 : i32
    return %arg0, %c0_i32 : i32, i32
  }
}

</mosaic_0001>

<llo_original>
// kernel: attention_net_cosine_forward.5
$region0: #{attention_net_cosine_forward.5}
  #allocation0 [shape = 'u32[]', space=smem, size = 0x4, offset = 0x4, fixed_abs, tag = 'smem constant byte address 0x4 - core index']
  #allocation1 [shape = 'u32[72,128]{1,0:T(1,128)}', space=vmem, size = 0x9000, scoped, tag = 'internal scratch']
  %s0 = inlined_call_operand.vmem [shape: bf16[128,27], index: 0, kind: input, shape index: {}]
  %s1 = inlined_call_operand.hbm [shape: bf16[27,128], index: 1, kind: input, shape index: {}]
  %s2 = inlined_call_operand.hbm [shape: f32[1,128], index: 2, kind: input, shape index: {}]
  %s3 = inlined_call_operand.vmem [shape: bf16[128,128], index: 3, kind: output, shape index: {}]
  %s4 = sld [smem:[#allocation0]]
  $region53: #{attention_net_cosine_forward.5} parent=0
    _
  %s6 = ssub.s32 1, %s4
  %s7 = scalar_select 0, %s6, %s4
  $region1: #{attention_net_cosine_forward.5} parent=0
    #allocation2 [shape = 'u8[8192]{0}', space=vmem, size = 0x2000, scoped, tag = 'input window, operand 1, single buffered']
    #allocation3 [shape = 's32[2]{0}', space=sflag, size = 0x8, scoped, tag = 'scoped memory for attention_net_cosine_forward.5']
    #allocation4 [shape = 'u8[512]{0}', space=vmem, size = 0x400, scoped, tag = 'input window, operand 2, single buffered']
    #allocation5 [shape = 's32[1]{0}', space=sflag, size = 0x4, scoped, tag = 'scoped memory for attention_net_cosine_forward.5']
    %8 = vsyncpa [#allocation3], 0
    %9 = vsyncpa [#allocation5], 0
    loop: start=0, step=1, limit=4
    $region2: #{attention_net_cosine_forward.5} parent=1 // loop_pre_header
      _
    $region3: #{attention_net_cosine_forward.5} parent=1 // loop_header
      %s11 = sphi 0, %s15
      %p12 = scmp.ge.s32.totalorder %s11, 4
      %s21 = sphi 0, %s23
      %s24 = sphi 0, %s21
      %s25 = sphi 0, %s24
      %s41 = sphi 0, %s25
      %s45 = sphi 0, %s45
      %s47 = sphi 0, %s45
      %s48 = sphi 0, %s47
      %s62 = sphi 0, %s48
      %s66 = sphi 0, %s66
      %s68 = sphi 0, %s66
      %s69 = sphi 0, %s68
      %s83 = sphi 0, %s69
      %s89 = sphi 0, %s91
      %s92 = sphi 0, %s89
      %s93 = sphi 0, %s92
      %s109 = sphi 0, %s93
    $region4: #{attention_net_cosine_forward.5} parent=1 // loop_header_branch
      %14 = sbr.rel (%p12) target = $region8
    $region5: #{attention_net_cosine_forward.5} parent=1 // loop_body
      %s16 = ssub.s32 %s11, 1
      %s17 = ssub.s32 %s11, 2
      %s18 = sadd.s32 %s11, 1
      %s19 = ssub.s32 %s11, %s18
      %p20 = scmp.eq.s32.totalorder %s19, 0
      %s22 = sadd.s32 %s21, 1
      %s23 = scalar_select %p20, %s21, %s22
      %p26 = pneg %p20
      %p27 = scmp.eq.s32.totalorder %s11, 1
      %p28 = por %p26, %p27
      %p29 = scmp.ne.s32.totalorder %s21, %s24
      %p30 = scmp.eq.s32.totalorder %s11, 0
      %p31 = por %p29, %p30
      %p32 = scmp.ne.s32.totalorder %s21, %s24
      %p33 = scmp.eq.s32.totalorder %s16, 1
      %p34 = por %p32, %p33
      %p35 = scmp.ne.s32.totalorder %s24, %s25
      %p36 = scmp.eq.s32.totalorder %s16, 0
      %p37 = por %p35, %p36
      %p38 = scmp.ne.s32.totalorder %s24, %s25
      %p39 = scmp.eq.s32.totalorder %s17, 1
      %p40 = por %p38, %p39
      %p42 = scmp.ne.s32.totalorder %s25, %s41
      %p43 = scmp.eq.s32.totalorder %s17, 0
      %p44 = por %p42, %p43
      %s46 = sadd.s32 %s45, 1
      %p49 = scmp.eq.s32.totalorder %s11, 1
      %p50 = scmp.ne.s32.totalorder %s45, %s47
      %p51 = scmp.eq.s32.totalorder %s11, 0
      %p52 = por %p50, %p51
      %p53 = scmp.ne.s32.totalorder %s45, %s47
      %p54 = scmp.eq.s32.totalorder %s16, 1
      %p55 = por %p53, %p54
      %p56 = scmp.ne.s32.totalorder %s47, %s48
      %p57 = scmp.eq.s32.totalorder %s16, 0
      %p58 = por %p56, %p57
      %p59 = scmp.ne.s32.totalorder %s47, %s48
      %p60 = scmp.eq.s32.totalorder %s17, 1
      %p61 = por %p59, %p60
      %p63 = scmp.ne.s32.totalorder %s48, %s62
      %p64 = scmp.eq.s32.totalorder %s17, 0
      %p65 = por %p63, %p64
      %s67 = sadd.s32 %s66, 1
      %p70 = scmp.eq.s32.totalorder %s11, 1
      %p71 = scmp.ne.s32.totalorder %s66, %s68
      %p72 = scmp.eq.s32.totalorder %s11, 0
      %p73 = por %p71, %p72
      %p74 = scmp.ne.s32.totalorder %s66, %s68
      %p75 = scmp.eq.s32.totalorder %s16, 1
      %p76 = por %p74, %p75
      %p77 = scmp.ne.s32.totalorder %s68, %s69
      %p78 = scmp.eq.s32.totalorder %s16, 0
      %p79 = por %p77, %p78
      %p80 = scmp.ne.s32.totalorder %s68, %s69
      %p81 = scmp.eq.s32.totalorder %s17, 1
      %p82 = por %p80, %p81
      %p84 = scmp.ne.s32.totalorder %s69, %s83
      %p85 = scmp.eq.s32.totalorder %s17, 0
      %p86 = por %p84, %p85
      %s87 = ssub.s32 %s11, %s18
      %p88 = scmp.eq.s32.totalorder %s87, 0
      %s90 = sadd.s32 %s89, 1
      %s91 = scalar_select %p88, %s89, %s90
      %p94 = pneg %p88
      %p95 = scmp.eq.s32.totalorder %s11, 1
      %p96 = por %p94, %p95
      %p97 = scmp.ne.s32.totalorder %s89, %s92
      %p98 = scmp.eq.s32.totalorder %s11, 0
      %p99 = por %p97, %p98
      %p100 = scmp.ne.s32.totalorder %s89, %s92
      %p101 = scmp.eq.s32.totalorder %s16, 1
      %p102 = por %p100, %p101
      %p103 = scmp.ne.s32.totalorder %s92, %s93
      %p104 = scmp.eq.s32.totalorder %s16, 0
      %p105 = por %p103, %p104
      %p106 = scmp.ne.s32.totalorder %s92, %s93
      %p107 = scmp.eq.s32.totalorder %s17, 1
      %p108 = por %p106, %p107
      %p110 = scmp.ne.s32.totalorder %s93, %s109
      %p111 = scmp.eq.s32.totalorder %s17, 0
      %p112 = por %p110, %p111
      %p113 = scmp.le.s32.totalorder 1, %s11
      %p114 = scmp.lt.s32.totalorder %s11, 3
      %p115 = pnand %p113, %p114
      %p116 = pneg %p115
      // Predicated region
      $region9: #{attention_net_cosine_forward.5} parent=5 // pred_check
        _
      $region10: #{attention_net_cosine_forward.5} parent=5 // pred_check_branch
        %118 = sbr.rel (%p115) target = $region12
      $region11: #{attention_net_cosine_forward.5} parent=5 // pred_region
        %s119 = ssub.s32 %s11, 1
        // Predicated region
        $region13: #{attention_net_cosine_forward.5} parent=11 // pred_check
          %p120 = pneg %p58
        $region14: #{attention_net_cosine_forward.5} parent=11 // pred_check_branch
          %122 = sbr.rel (%p120) target = $region16
        $region15: #{attention_net_cosine_forward.5} parent=11 // pred_region
          %124 = vsyncadd [#allocation3], 0
          %s125 = sshll.u32 %s1, 4
          %s126 = int_to_ptr.hbm [resolvable:$true] %s125
          %s127 = sshll.u32 [#allocation2], 4
          %s128 = int_to_ptr.vmem [resolvable:$true] %s127
          %133 = dma.hbm_to_vmem [thread:$0]  %s126, 256, %s128, [#allocation3], 64, 64, 4
        $region16: #{attention_net_cosine_forward.5} parent=11 // pred_fallthru
          _
        // Predicated region
        $region17: #{attention_net_cosine_forward.5} parent=11 // pred_check
          %p134 = pneg %p79
        $region18: #{attention_net_cosine_forward.5} parent=11 // pred_check_branch
          %136 = sbr.rel (%p134) target = $region20
        $region19: #{attention_net_cosine_forward.5} parent=11 // pred_region
          %138 = vsyncadd [#allocation5], 0
          %s140 = sshll.u32 %s2, 4
          %s141 = int_to_ptr.hbm [resolvable:$true] %s140
          %s142 = sshll.u32 [#allocation4], 4
          %s143 = int_to_ptr.vmem [resolvable:$true] %s142
          %145 = dma.hbm_to_vmem [thread:$0]  %s141, 16, %s143, [#allocation5]
        $region20: #{attention_net_cosine_forward.5} parent=11 // pred_fallthru
          _
      $region12: #{attention_net_cosine_forward.5} parent=5 // pred_fallthru
        _
      %p146 = scmp.lt.s32.totalorder %s11, 2
      // Predicated region
      $region21: #{attention_net_cosine_forward.5} parent=5 // pred_check
        %p147 = pneg %p146
      $region22: #{attention_net_cosine_forward.5} parent=5 // pred_check_branch
        %149 = sbr.rel (%p147) target = $region24
      $region23: #{attention_net_cosine_forward.5} parent=5 // pred_region
        // Predicated region
        $region25: #{attention_net_cosine_forward.5} parent=23 // pred_check
          %p150 = pneg %p31
        $region26: #{attention_net_cosine_forward.5} parent=23 // pred_check_branch
          %152 = sbr.rel (%p150) target = $region28
        $region27: #{attention_net_cosine_forward.5} parent=23 // pred_region
          %s153 = smul.u32 8, %s11
          %p154 = scmp.lt.s32.totalorder %s153, 15
          %s155 = scalar_select %p154, %s153, 15
          %s156 = smul.addr %s155, 4
          %s157 = scalar_lea.vmem %s0, %s156
          %s158 = smul.u32 8, %s11
        $region28: #{attention_net_cosine_forward.5} parent=23 // pred_fallthru
          _
      $region24: #{attention_net_cosine_forward.5} parent=5 // pred_fallthru
        _
      %p159 = scmp.le.s32.totalorder 1, %s11
      %p160 = scmp.lt.s32.totalorder %s11, 3
      %p161 = pnand %p159, %p160
      %p162 = pneg %p161
      // Predicated region
      $region29: #{attention_net_cosine_forward.5} parent=5 // pred_check
        _
      $region30: #{attention_net_cosine_forward.5} parent=5 // pred_check_branch
        %164 = sbr.rel (%p161) target = $region32
      $region31: #{attention_net_cosine_forward.5} parent=5 // pred_region
        %s165 = ssub.s32 %s11, 1
        // Predicated region
        $region33: #{attention_net_cosine_forward.5} parent=31 // pred_check
          %p166 = pneg %p58
        $region34: #{attention_net_cosine_forward.5} parent=31 // pred_check_branch
          %168 = sbr.rel (%p166) target = $region36
        $region35: #{attention_net_cosine_forward.5} parent=31 // pred_region
          %170 = dma.done [#allocation3], 256
        $region36: #{attention_net_cosine_forward.5} parent=31 // pred_fallthru
          _
        // Predicated region
        $region37: #{attention_net_cosine_forward.5} parent=31 // pred_check
          %p171 = pneg %p79
        $region38: #{attention_net_cosine_forward.5} parent=31 // pred_check_branch
          %173 = sbr.rel (%p171) target = $region40
        $region39: #{attention_net_cosine_forward.5} parent=31 // pred_region
          %175 = dma.done [#allocation5], 16
        $region40: #{attention_net_cosine_forward.5} parent=31 // pred_fallthru
          _
        %s176 = smul.u32 8, %s16
        %p177 = scmp.lt.s32.totalorder %s176, 15
        %s178 = scalar_select %p177, %s176, 15
        %s179 = smul.addr %s178, 4
        %s180 = scalar_lea.vmem %s0, %s179
        %p181 = pneg %p37
        %p182 = pneg %p34
        %p183 = pneg %p58
        %p184 = pneg %p55
        %p185 = pneg %p79
        %p186 = pneg %p76
        %p187 = pneg %p105
        %p188 = pneg %p102
        %s189 = smul.u32 8, %s16
        %p190 = scmp.lt.s32.totalorder %s189, 15
        %s191 = scalar_select %p190, %s189, 15
        %s192 = smul.addr %s191, 4
        %s193 = scalar_lea.vmem %s3, %s192
        %s194 = smul.u32 8, %s16
        %p195 = scmp.lt.s32.totalorder %s194, 15
        %s196 = scalar_select %p195, %s194, 15
        %s197 = smul.addr %s196, 4
        %s198 = scalar_lea.vmem %s0, %s197
        %s199 = smul.u32 8, %s16
        %s200 = smul.u32 8, %s16
        %p201 = scmp.lt.s32.totalorder %s200, 15
        %s202 = scalar_select %p201, %s200, 15
        %s203 = smul.addr %s202, 4
        %s204 = scalar_lea.vmem %s3, %s203
        %s205 = smul.u32 8, %s16
        %v207 = vld [vmem:[%s198] sm:$0xf]
        %v208 = vld [vmem:[%s198 + $0x4] sm:$0xf]
        %v209 = vld [vmem:[%s198 + $0x8] sm:$0xf]
        %v210 = vld [vmem:[%s198 + $0xc] sm:$0xf]
        %v211 = vld [vmem:[%s198 + $0x10] sm:$0xf]
        %v212 = vld [vmem:[%s198 + $0x14] sm:$0xf]
        %v213 = vld [vmem:[%s198 + $0x18] sm:$0xf]
        %v214 = vld [vmem:[%s198 + $0x1c] sm:$0xf]
        %v215 = vld [vmem:[#allocation2] sm:$0xf]
        %v216 = vld [vmem:[#allocation2 + $0x4] sm:$0xf]
        %v217 = vld [vmem:[#allocation2 + $0x8] sm:$0xf]
        %v218 = vld [vmem:[#allocation2 + $0xc] sm:$0x3]
        %v219 = vld [vmem:[#allocation4] sm:$0x1]
        %v221 = vperm.slane %v219, 0
        %v231 = vunpack.c.l.b16 %v207
        %v232 = vunpack.c.l.b16 %v208
        %v233 = vunpack.c.l.b16 %v209
        %v234 = vunpack.c.l.b16 %v210
        %v235 = vunpack.c.l.b16 %v211
        %v236 = vunpack.c.l.b16 %v212
        %v237 = vunpack.c.l.b16 %v213
        %v238 = vunpack.c.l.b16 %v214
        %v239 = vpack.c.b16 %v232, %v231
        %v240 = vpack.c.b16 %v234, %v233
        %v241 = vpack.c.b16 %v236, %v235
        %v242 = vpack.c.b16 %v238, %v237
        %v247 = vunpack.c.l.b16 %v215
        %v248 = vunpack.c.l.b16 %v216
        %v249 = vunpack.c.l.b16 %v217
        %v250 = vunpack.c.l.b16 %v218
        %v251 = vpack.c.b16 %v248, %v247
        %v252 = vpack.c.b16 %v250, %v249
        %vm254 = vcmask 220160
        %v256 = vsel %vm254, %v239, 0
        %v259 = vsel %vm254, %v240, 0
        %v262 = vsel %vm254, %v241, 0
        %v265 = vsel %vm254, %v242, 0
        %vm267 = vcmask 1044480
        %vm268 = vcmask 1045504
        %v269 = vsel %vm267, 4294967295, 65535
        %v270 = vsel %vm268, %v269, 0
        %v272 = vand.u32 %v252, %v270
        %274 = vmatpush.bf16.msra.mxu0 0
        %275 = vmatpush.bf16.msra.mxu0 0
        %276 = vmatpush.bf16.msra.mxu0 0
        %277 = vmatpush.bf16.msra.mxu0 0
        %278 = vmatpush.bf16.msra.mxu0 0
        %279 = vmatpush.bf16.msra.mxu0 0
        %280 = vmatpush.bf16.msra.mxu0 %v272
        %281 = vmatpush.bf16.msra.mxu0 %v251
        %282 = vmatmul.bf16.gmra.mxu0 %v256
        %v283 = vpop.f32.mrf.mxu0
        %v284 = vadd.f32 %v221, %v283
        %v285 = vpop.f32.mrf.mxu0
        %v286 = vadd.f32 %v221, %v285
        %287 = vmatmul.bf16.gmra.mxu0 %v259
        %v288 = vpop.f32.mrf.mxu0
        %v289 = vadd.f32 %v221, %v288
        %v290 = vpop.f32.mrf.mxu0
        %v291 = vadd.f32 %v221, %v290
        %292 = vmatmul.bf16.gmra.mxu0 %v262
        %v293 = vpop.f32.mrf.mxu0
        %v294 = vadd.f32 %v221, %v293
        %v295 = vpop.f32.mrf.mxu0
        %v296 = vadd.f32 %v221, %v295
        %297 = vmatmul.bf16.gmra.mxu0 %v265
        %v298 = vpop.f32.mrf.mxu0
        %v299 = vadd.f32 %v221, %v298
        %v300 = vpop.f32.mrf.mxu0
        %v301 = vadd.f32 %v221, %v300
        %302 = vdwg.mxu0
        %v303 = vmax.f32 %v284, 0.0
        %v304 = vmax.f32 %v286, 0.0
        %v305 = vmax.f32 %v289, 0.0
        %v306 = vmax.f32 %v291, 0.0
        %v307 = vmax.f32 %v294, 0.0
        %v308 = vmax.f32 %v296, 0.0
        %v309 = vmax.f32 %v299, 0.0
        %v310 = vmax.f32 %v301, 0.0
        %v311 = vpack.c.bf16 %v303, %v303
        %v312 = vpack.c.bf16 %v304, %v304
        %v313 = vpack.c.bf16 %v305, %v305
        %v314 = vpack.c.bf16 %v306, %v306
        %v315 = vpack.c.bf16 %v307, %v307
        %v316 = vpack.c.bf16 %v308, %v308
        %v317 = vpack.c.bf16 %v309, %v309
        %v318 = vpack.c.bf16 %v310, %v310
        %319 = vst [vmem:[%s204] sm:$0xf] %v311
        %320 = vst [vmem:[%s204 + $0x4] sm:$0xf] %v312
        %321 = vst [vmem:[%s204 + $0x8] sm:$0xf] %v313
        %322 = vst [vmem:[%s204 + $0xc] sm:$0xf] %v314
        %323 = vst [vmem:[%s204 + $0x10] sm:$0xf] %v315
        %324 = vst [vmem:[%s204 + $0x14] sm:$0xf] %v316
        %325 = vst [vmem:[%s204 + $0x18] sm:$0xf] %v317
        %326 = vst [vmem:[%s204 + $0x1c] sm:$0xf] %v318
        %s327 = smul.u32 8, %s16
        %p328 = scmp.lt.s32.totalorder %s327, 15
        %s329 = scalar_select %p328, %s327, 15
        %s330 = smul.addr %s329, 4
        %s331 = scalar_lea.vmem %s3, %s330
        // Predicated region
        $region41: #{attention_net_cosine_forward.5} parent=31 // pred_check
          %p332 = pneg %p102
        $region42: #{attention_net_cosine_forward.5} parent=31 // pred_check_branch
          %334 = sbr.rel (%p332) target = $region44
        $region43: #{attention_net_cosine_forward.5} parent=31 // pred_region
          %s335 = smul.u32 8, %s16
        $region44: #{attention_net_cosine_forward.5} parent=31 // pred_fallthru
          _
      $region32: #{attention_net_cosine_forward.5} parent=5 // pred_fallthru
        _
      %p336 = scmp.le.s32.totalorder 2, %s11
      // Predicated region
      $region45: #{attention_net_cosine_forward.5} parent=5 // pred_check
        %p337 = pneg %p336
      $region46: #{attention_net_cosine_forward.5} parent=5 // pred_check_branch
        %339 = sbr.rel (%p337) target = $region48
      $region47: #{attention_net_cosine_forward.5} parent=5 // pred_region
        %s340 = ssub.s32 %s11, 2
        // Predicated region
        $region49: #{attention_net_cosine_forward.5} parent=47 // pred_check
          %p341 = pneg %p108
        $region50: #{attention_net_cosine_forward.5} parent=47 // pred_check_branch
          %343 = sbr.rel (%p341) target = $region52
        $region51: #{attention_net_cosine_forward.5} parent=47 // pred_region
          %s344 = smul.u32 8, %s17
          %p345 = scmp.lt.s32.totalorder %s344, 15
          %s346 = scalar_select %p345, %s344, 15
          %s347 = smul.addr %s346, 4
          %s348 = scalar_lea.vmem %s3, %s347
        $region52: #{attention_net_cosine_forward.5} parent=47 // pred_fallthru
          _
      $region48: #{attention_net_cosine_forward.5} parent=5 // pred_fallthru
        _
    $region6: #{attention_net_cosine_forward.5} parent=1 // loop_footer
      %s15 = sadd.s32 1, %s11
    $region7: #{attention_net_cosine_forward.5} parent=1 // loop_footer_branch
      %10 = sbr.rel target = $region3
    $region8: #{attention_net_cosine_forward.5} parent=1 // loop_exit
      _
    %349 = vsyncpa [#allocation3], 1
    %s350 = scalar_lea.sflag [#allocation3], 1
    %351 = vsyncpa %s350, 1
    %352 = vsyncpa [#allocation5], 1

// kernel: attention_net_cosine_forward.6
$region0: #{attention_net_cosine_forward.6}
  #allocation0 [shape = 'u32[]', space=smem, size = 0x4, offset = 0x4, fixed_abs, tag = 'smem constant byte address 0x4 - core index']
  #allocation1 [shape = 'u32[72,128]{1,0:T(1,128)}', space=vmem, size = 0x9000, scoped, tag = 'internal scratch']
  %s0 = inlined_call_operand.vmem [shape: bf16[2,64,128], index: 0, kind: input, shape index: {}]
  %s1 = inlined_call_operand.hbm [shape: bf16[9,64,64], index: 1, kind: input, shape index: {}]
  %s2 = inlined_call_operand.hbm [shape: bf16[9,16,64], index: 2, kind: input, shape index: {}]
  %s3 = inlined_call_operand.hbm [shape: bf16[9,4,16], index: 3, kind: input, shape index: {}]
  %s4 = inlined_call_operand.hbm [shape: bf16[9,128,128], index: 4, kind: input, shape index: {}]
  %s5 = inlined_call_operand.hbm [shape: f32[1,128], index: 5, kind: input, shape index: {}]
  %s6 = inlined_call_operand.hbm [shape: bf16[9,128,128], index: 6, kind: input, shape index: {}]
  %s7 = inlined_call_operand.hbm [shape: f32[1,128], index: 7, kind: input, shape index: {}]
  %s8 = inlined_call_operand.hbm [shape: bf16[9,128,128], index: 8, kind: input, shape index: {}]
  %s9 = inlined_call_operand.hbm [shape: f32[1,128], index: 9, kind: input, shape index: {}]
  %s10 = inlined_call_operand.hbm [shape: bf16[128,128], index: 10, kind: input, shape index: {}]
  %s11 = inlined_call_operand.hbm [shape: f32[1,128], index: 11, kind: input, shape index: {}]
  %s12 = inlined_call_operand.hbm [shape: bf16[128,128], index: 12, kind: input, shape index: {}]
  %s13 = inlined_call_operand.hbm [shape: f32[1,128], index: 13, kind: input, shape index: {}]
  %s14 = inlined_call_operand.hbm [shape: bf16[128,128], index: 14, kind: input, shape index: {}]
  %s15 = inlined_call_operand.hbm [shape: f32[1,128], index: 15, kind: input, shape index: {}]
  %s16 = inlined_call_operand.vmem [shape: f32[2,64,128], index: 16, kind: output, shape index: {0}]
  %s17 = inlined_call_operand.vmem [shape: f32[2,16,128], index: 17, kind: output, shape index: {1}]
  %s18 = inlined_call_operand.vmem [shape: f32[2,4,128], index: 18, kind: output, shape index: {2}]
  %19 = xla_tuple %s16, %s17, %s18
  %s20 = sld [smem:[#allocation0]]
  $region173: #{attention_net_cosine_forward.6} parent=0
    _
  %s22 = ssub.s32 1, %s20
  %s23 = scalar_select 0, %s22, %s20
  $region1: #{attention_net_cosine_forward.6} parent=0
    #allocation2 [shape = 'u8[147456]{0}', space=vmem, size = 0x24000, scoped, tag = 'input window, operand 1, single buffered']
    #allocation3 [shape = 's32[2]{0}', space=sflag, size = 0x8, scoped, tag = 'scoped memory for attention_net_cosine_forward.6']
    #allocation4 [shape = 'u8[36864]{0}', space=vmem, size = 0x9000, scoped, tag = 'input window, operand 2, single buffered']
    #allocation5 [shape = 's32[1]{0}', space=sflag, size = 0x4, scoped, tag = 'scoped memory for attention_net_cosine_forward.6']
    #allocation6 [shape = 'u8[9216]{0}', space=vmem, size = 0x2400, scoped, tag = 'input window, operand 3, single buffered']
    #allocation7 [shape = 'u8[294912]{0}', space=vmem, size = 0x48000, scoped, tag = 'input window, operand 4, single buffered']
    #allocation8 [shape = 's32[1]{0}', space=sflag, size = 0x4, scoped, tag = 'scoped memory for attention_net_cosine_forward.6']
    #allocation9 [shape = 'u8[512]{0}', space=vmem, size = 0x400, scoped, tag = 'input window, operand 5, single buffered']
    #allocation10 [shape = 'u8[294912]{0}', space=vmem, size = 0x48000, scoped, tag = 'input window, operand 6, single buffered']
    #allocation11 [shape = 's32[1]{0}', space=sflag, size = 0x4, scoped, tag = 'scoped memory for attention_net_cosine_forward.6']
    #allocation12 [shape = 'u8[512]{0}', space=vmem, size = 0x400, scoped, tag = 'input window, operand 7, single buffered']
    #allocation13 [shape = 'u8[294912]{0}', space=vmem, size = 0x48000, scoped, tag = 'input window, operand 8, single buffered']
    #allocation14 [shape = 's32[1]{0}', space=sflag, size = 0x4, scoped, tag = 'scoped memory for attention_net_cosine_forward.6']
    #allocation15 [shape = 'u8[512]{0}', space=vmem, size = 0x400, scoped, tag = 'input window, operand 9, single buffered']
    #allocation16 [shape = 'u8[32768]{0}', space=vmem, size = 0x8000, scoped, tag = 'input window, operand 10, single buffered']
    #allocation17 [shape = 's32[1]{0}', space=sflag, size = 0x4, scoped, tag = 'scoped memory for attention_net_cosine_forward.6']
    #allocation18 [shape = 'u8[512]{0}', space=vmem, size = 0x400, scoped, tag = 'input window, operand 11, single buffered']
    #allocation19 [shape = 'u8[32768]{0}', space=vmem, size = 0x8000, scoped, tag = 'input window, operand 12, single buffered']
    #allocation20 [shape = 's32[1]{0}', space=sflag, size = 0x4, scoped, tag = 'scoped memory for attention_net_cosine_forward.6']
    #allocation21 [shape = 'u8[512]{0}', space=vmem, size = 0x400, scoped, tag = 'input window, operand 13, single buffered']
    #allocation22 [shape = 'u8[32768]{0}', space=vmem, size = 0x8000, scoped, tag = 'input window, operand 14, single buffered']
    #allocation23 [shape = 's32[1]{0}', space=sflag, size = 0x4, scoped, tag = 'scoped memory for attention_net_cosine_forward.6']
    #allocation24 [shape = 'u8[512]{0}', space=vmem, size = 0x400, scoped, tag = 'input window, operand 15, single buffered']
    %24 = vsyncpa [#allocation3], 0
    %25 = vsyncpa [#allocation5], 0
    %26 = vsyncpa [#allocation8], 0
    %27 = vsyncpa [#allocation11], 0
    %28 = vsyncpa [#allocation14], 0
    %29 = vsyncpa [#allocation17], 0
    %30 = vsyncpa [#allocation20], 0
    %31 = vsyncpa [#allocation23], 0
    loop: start=0, step=1, limit=4
    $region2: #{attention_net_cosine_forward.6} parent=1 // loop_pre_header
      _
    $region3: #{attention_net_cosine_forward.6} parent=1 // loop_header
      %s33 = sphi 0, %s37
      %p34 = scmp.ge.s32.totalorder %s33, 4
      %s43 = sphi 0, %s45
      %s46 = sphi 0, %s43
      %s47 = sphi 0, %s46
      %s63 = sphi 0, %s47
      %s67 = sphi 0, %s67
      %s69 = sphi 0, %s67
      %s70 = sphi 0, %s69
      %s84 = sphi 0, %s70
      %s88 = sphi 0, %s88
      %s90 = sphi 0, %s88
      %s91 = sphi 0, %s90
      %s105 = sphi 0, %s91
      %s109 = sphi 0, %s109
      %s111 = sphi 0, %s109
      %s112 = sphi 0, %s111
      %s126 = sphi 0, %s112
      %s130 = sphi 0, %s130
      %s132 = sphi 0, %s130
      %s133 = sphi 0, %s132
      %s147 = sphi 0, %s133
      %s151 = sphi 0, %s151
      %s153 = sphi 0, %s151
      %s154 = sphi 0, %s153
      %s168 = sphi 0, %s154
      %s172 = sphi 0, %s172
      %s174 = sphi 0, %s172
      %s175 = sphi 0, %s174
      %s189 = sphi 0, %s175
      %s193 = sphi 0, %s193
      %s195 = sphi 0, %s193
      %s196 = sphi 0, %s195
      %s210 = sphi 0, %s196
      %s214 = sphi 0, %s214
      %s216 = sphi 0, %s214
      %s217 = sphi 0, %s216
      %s231 = sphi 0, %s217
      %s235 = sphi 0, %s235
      %s237 = sphi 0, %s235
      %s238 = sphi 0, %s237
      %s252 = sphi 0, %s238
      %s256 = sphi 0, %s256
      %s258 = sphi 0, %s256
      %s259 = sphi 0, %s258
      %s273 = sphi 0, %s259
      %s277 = sphi 0, %s277
      %s279 = sphi 0, %s277
      %s280 = sphi 0, %s279
      %s294 = sphi 0, %s280
      %s298 = sphi 0, %s298
      %s300 = sphi 0, %s298
      %s301 = sphi 0, %s300
      %s315 = sphi 0, %s301
      %s319 = sphi 0, %s319
      %s321 = sphi 0, %s319
      %s322 = sphi 0, %s321
      %s336 = sphi 0, %s322
      %s340 = sphi 0, %s340
      %s342 = sphi 0, %s340
      %s343 = sphi 0, %s342
      %s357 = sphi 0, %s343
      %s361 = sphi 0, %s361
      %s363 = sphi 0, %s361
      %s364 = sphi 0, %s363
      %s378 = sphi 0, %s364
      %s384 = sphi 0, %s386
      %s387 = sphi 0, %s384
      %s388 = sphi 0, %s387
      %s404 = sphi 0, %s388
      %s410 = sphi 0, %s412
      %s413 = sphi 0, %s410
      %s414 = sphi 0, %s413
      %s430 = sphi 0, %s414
      %s436 = sphi 0, %s438
      %s439 = sphi 0, %s436
      %s440 = sphi 0, %s439
      %s456 = sphi 0, %s440
    $region4: #{attention_net_cosine_forward.6} parent=1 // loop_header_branch
      %36 = sbr.rel (%p34) target = $region8
    $region5: #{attention_net_cosine_forward.6} parent=1 // loop_body
      %s38 = ssub.s32 %s33, 1
      %s39 = ssub.s32 %s33, 2
      %s40 = sadd.s32 %s33, 1
      %s41 = ssub.s32 %s33, %s40
      %p42 = scmp.eq.s32.totalorder %s41, 0
      %s44 = sadd.s32 %s43, 1
      %s45 = scalar_select %p42, %s43, %s44
      %p48 = pneg %p42
      %p49 = scmp.eq.s32.totalorder %s33, 1
      %p50 = por %p48, %p49
      %p51 = scmp.ne.s32.totalorder %s43, %s46
      %p52 = scmp.eq.s32.totalorder %s33, 0
      %p53 = por %p51, %p52
      %p54 = scmp.ne.s32.totalorder %s43, %s46
      %p55 = scmp.eq.s32.totalorder %s38, 1
      %p56 = por %p54, %p55
      %p57 = scmp.ne.s32.totalorder %s46, %s47
      %p58 = scmp.eq.s32.totalorder %s38, 0
      %p59 = por %p57, %p58
      %p60 = scmp.ne.s32.totalorder %s46, %s47
      %p61 = scmp.eq.s32.totalorder %s39, 1
      %p62 = por %p60, %p61
      %p64 = scmp.ne.s32.totalorder %s47, %s63
      %p65 = scmp.eq.s32.totalorder %s39, 0
      %p66 = por %p64, %p65
      %s68 = sadd.s32 %s67, 1
      %p71 = scmp.eq.s32.totalorder %s33, 1
      %p72 = scmp.ne.s32.totalorder %s67, %s69
      %p73 = scmp.eq.s32.totalorder %s33, 0
      %p74 = por %p72, %p73
      %p75 = scmp.ne.s32.totalorder %s67, %s69
      %p76 = scmp.eq.s32.totalorder %s38, 1
      %p77 = por %p75, %p76
      %p78 = scmp.ne.s32.totalorder %s69, %s70
      %p79 = scmp.eq.s32.totalorder %s38, 0
      %p80 = por %p78, %p79
      %p81 = scmp.ne.s32.totalorder %s69, %s70
      %p82 = scmp.eq.s32.totalorder %s39, 1
      %p83 = por %p81, %p82
      %p85 = scmp.ne.s32.totalorder %s70, %s84
      %p86 = scmp.eq.s32.totalorder %s39, 0
      %p87 = por %p85, %p86
      %s89 = sadd.s32 %s88, 1
      %p92 = scmp.eq.s32.totalorder %s33, 1
      %p93 = scmp.ne.s32.totalorder %s88, %s90
      %p94 = scmp.eq.s32.totalorder %s33, 0
      %p95 = por %p93, %p94
      %p96 = scmp.ne.s32.totalorder %s88, %s90
      %p97 = scmp.eq.s32.totalorder %s38, 1
      %p98 = por %p96, %p97
      %p99 = scmp.ne.s32.totalorder %s90, %s91
      %p100 = scmp.eq.s32.totalorder %s38, 0
      %p101 = por %p99, %p100
      %p102 = scmp.ne.s32.totalorder %s90, %s91
      %p103 = scmp.eq.s32.totalorder %s39, 1
      %p104 = por %p102, %p103
      %p106 = scmp.ne.s32.totalorder %s91, %s105
      %p107 = scmp.eq.s32.totalorder %s39, 0
      %p108 = por %p106, %p107
      %s110 = sadd.s32 %s109, 1
      %p113 = scmp.eq.s32.totalorder %s33, 1
      %p114 = scmp.ne.s32.totalorder %s109, %s111
      %p115 = scmp.eq.s32.totalorder %s33, 0
      %p116 = por %p114, %p115
      %p117 = scmp.ne.s32.totalorder %s109, %s111
      %p118 = scmp.eq.s32.totalorder %s38, 1
      %p119 = por %p117, %p118
      %p120 = scmp.ne.s32.totalorder %s111, %s112
      %p121 = scmp.eq.s32.totalorder %s38, 0
      %p122 = por %p120, %p121
      %p123 = scmp.ne.s32.totalorder %s111, %s112
      %p124 = scmp.eq.s32.totalorder %s39, 1
      %p125 = por %p123, %p124
      %p127 = scmp.ne.s32.totalorder %s112, %s126
      %p128 = scmp.eq.s32.totalorder %s39, 0
      %p129 = por %p127, %p128
      %s131 = sadd.s32 %s130, 1
      %p134 = scmp.eq.s32.totalorder %s33, 1
      %p135 = scmp.ne.s32.totalorder %s130, %s132
      %p136 = scmp.eq.s32.totalorder %s33, 0
      %p137 = por %p135, %p136
      %p138 = scmp.ne.s32.totalorder %s130, %s132
      %p139 = scmp.eq.s32.totalorder %s38, 1
      %p140 = por %p138, %p139
      %p141 = scmp.ne.s32.totalorder %s132, %s133
      %p142 = scmp.eq.s32.totalorder %s38, 0
      %p143 = por %p141, %p142
      %p144 = scmp.ne.s32.totalorder %s132, %s133
      %p145 = scmp.eq.s32.totalorder %s39, 1
      %p146 = por %p144, %p145
      %p148 = scmp.ne.s32.totalorder %s133, %s147
      %p149 = scmp.eq.s32.totalorder %s39, 0
      %p150 = por %p148, %p149
      %s152 = sadd.s32 %s151, 1
      %p155 = scmp.eq.s32.totalorder %s33, 1
      %p156 = scmp.ne.s32.totalorder %s151, %s153
      %p157 = scmp.eq.s32.totalorder %s33, 0
      %p158 = por %p156, %p157
      %p159 = scmp.ne.s32.totalorder %s151, %s153
      %p160 = scmp.eq.s32.totalorder %s38, 1
      %p161 = por %p159, %p160
      %p162 = scmp.ne.s32.totalorder %s153, %s154
      %p163 = scmp.eq.s32.totalorder %s38, 0
      %p164 = por %p162, %p163
      %p165 = scmp.ne.s32.totalorder %s153, %s154
      %p166 = scmp.eq.s32.totalorder %s39, 1
      %p167 = por %p165, %p166
      %p169 = scmp.ne.s32.totalorder %s154, %s168
      %p170 = scmp.eq.s32.totalorder %s39, 0
      %p171 = por %p169, %p170
      %s173 = sadd.s32 %s172, 1
      %p176 = scmp.eq.s32.totalorder %s33, 1
      %p177 = scmp.ne.s32.totalorder %s172, %s174
      %p178 = scmp.eq.s32.totalorder %s33, 0
      %p179 = por %p177, %p178
      %p180 = scmp.ne.s32.totalorder %s172, %s174
      %p181 = scmp.eq.s32.totalorder %s38, 1
      %p182 = por %p180, %p181
      %p183 = scmp.ne.s32.totalorder %s174, %s175
      %p184 = scmp.eq.s32.totalorder %s38, 0
      %p185 = por %p183, %p184
      %p186 = scmp.ne.s32.totalorder %s174, %s175
      %p187 = scmp.eq.s32.totalorder %s39, 1
      %p188 = por %p186, %p187
      %p190 = scmp.ne.s32.totalorder %s175, %s189
      %p191 = scmp.eq.s32.totalorder %s39, 0
      %p192 = por %p190, %p191
      %s194 = sadd.s32 %s193, 1
      %p197 = scmp.eq.s32.totalorder %s33, 1
      %p198 = scmp.ne.s32.totalorder %s193, %s195
      %p199 = scmp.eq.s32.totalorder %s33, 0
      %p200 = por %p198, %p199
      %p201 = scmp.ne.s32.totalorder %s193, %s195
      %p202 = scmp.eq.s32.totalorder %s38, 1
      %p203 = por %p201, %p202
      %p204 = scmp.ne.s32.totalorder %s195, %s196
      %p205 = scmp.eq.s32.totalorder %s38, 0
      %p206 = por %p204, %p205
      %p207 = scmp.ne.s32.totalorder %s195, %s196
      %p208 = scmp.eq.s32.totalorder %s39, 1
      %p209 = por %p207, %p208
      %p211 = scmp.ne.s32.totalorder %s196, %s210
      %p212 = scmp.eq.s32.totalorder %s39, 0
      %p213 = por %p211, %p212
      %s215 = sadd.s32 %s214, 1
      %p218 = scmp.eq.s32.totalorder %s33, 1
      %p219 = scmp.ne.s32.totalorder %s214, %s216
      %p220 = scmp.eq.s32.totalorder %s33, 0
      %p221 = por %p219, %p220
      %p222 = scmp.ne.s32.totalorder %s214, %s216
      %p223 = scmp.eq.s32.totalorder %s38, 1
      %p224 = por %p222, %p223
      %p225 = scmp.ne.s32.totalorder %s216, %s217
      %p226 = scmp.eq.s32.totalorder %s38, 0
      %p227 = por %p225, %p226
      %p228 = scmp.ne.s32.totalorder %s216, %s217
      %p229 = scmp.eq.s32.totalorder %s39, 1
      %p230 = por %p228, %p229
      %p232 = scmp.ne.s32.totalorder %s217, %s231
      %p233 = scmp.eq.s32.totalorder %s39, 0
      %p234 = por %p232, %p233
      %s236 = sadd.s32 %s235, 1
      %p239 = scmp.eq.s32.totalorder %s33, 1
      %p240 = scmp.ne.s32.totalorder %s235, %s237
      %p241 = scmp.eq.s32.totalorder %s33, 0
      %p242 = por %p240, %p241
      %p243 = scmp.ne.s32.totalorder %s235, %s237
      %p244 = scmp.eq.s32.totalorder %s38, 1
      %p245 = por %p243, %p244
      %p246 = scmp.ne.s32.totalorder %s237, %s238
      %p247 = scmp.eq.s32.totalorder %s38, 0
      %p248 = por %p246, %p247
      %p249 = scmp.ne.s32.totalorder %s237, %s238
      %p250 = scmp.eq.s32.totalorder %s39, 1
      %p251 = por %p249, %p250
      %p253 = scmp.ne.s32.totalorder %s238, %s252
      %p254 = scmp.eq.s32.totalorder %s39, 0
      %p255 = por %p253, %p254
      %s257 = sadd.s32 %s256, 1
      %p260 = scmp.eq.s32.totalorder %s33, 1
      %p261 = scmp.ne.s32.totalorder %s256, %s258
      %p262 = scmp.eq.s32.totalorder %s33, 0
      %p263 = por %p261, %p262
      %p264 = scmp.ne.s32.totalorder %s256, %s258
      %p265 = scmp.eq.s32.totalorder %s38, 1
      %p266 = por %p264, %p265
      %p267 = scmp.ne.s32.totalorder %s258, %s259
      %p268 = scmp.eq.s32.totalorder %s38, 0
      %p269 = por %p267, %p268
      %p270 = scmp.ne.s32.totalorder %s258, %s259
      %p271 = scmp.eq.s32.totalorder %s39, 1
      %p272 = por %p270, %p271
      %p274 = scmp.ne.s32.totalorder %s259, %s273
      %p275 = scmp.eq.s32.totalorder %s39, 0
      %p276 = por %p274, %p275
      %s278 = sadd.s32 %s277, 1
      %p281 = scmp.eq.s32.totalorder %s33, 1
      %p282 = scmp.ne.s32.totalorder %s277, %s279
      %p283 = scmp.eq.s32.totalorder %s33, 0
      %p284 = por %p282, %p283
      %p285 = scmp.ne.s32.totalorder %s277, %s279
      %p286 = scmp.eq.s32.totalorder %s38, 1
      %p287 = por %p285, %p286
      %p288 = scmp.ne.s32.totalorder %s279, %s280
      %p289 = scmp.eq.s32.totalorder %s38, 0
      %p290 = por %p288, %p289
      %p291 = scmp.ne.s32.totalorder %s279, %s280
      %p292 = scmp.eq.s32.totalorder %s39, 1
      %p293 = por %p291, %p292
      %p295 = scmp.ne.s32.totalorder %s280, %s294
      %p296 = scmp.eq.s32.totalorder %s39, 0
      %p297 = por %p295, %p296
      %s299 = sadd.s32 %s298, 1
      %p302 = scmp.eq.s32.totalorder %s33, 1
      %p303 = scmp.ne.s32.totalorder %s298, %s300
      %p304 = scmp.eq.s32.totalorder %s33, 0
      %p305 = por %p303, %p304
      %p306 = scmp.ne.s32.totalorder %s298, %s300
      %p307 = scmp.eq.s32.totalorder %s38, 1
      %p308 = por %p306, %p307
      %p309 = scmp.ne.s32.totalorder %s300, %s301
      %p310 = scmp.eq.s32.totalorder %s38, 0
      %p311 = por %p309, %p310
      %p312 = scmp.ne.s32.totalorder %s300, %s301
      %p313 = scmp.eq.s32.totalorder %s39, 1
      %p314 = por %p312, %p313
      %p316 = scmp.ne.s32.totalorder %s301, %s315
      %p317 = scmp.eq.s32.totalorder %s39, 0
      %p318 = por %p316, %p317
      %s320 = sadd.s32 %s319, 1
      %p323 = scmp.eq.s32.totalorder %s33, 1
      %p324 = scmp.ne.s32.totalorder %s319, %s321
      %p325 = scmp.eq.s32.totalorder %s33, 0
      %p326 = por %p324, %p325
      %p327 = scmp.ne.s32.totalorder %s319, %s321
      %p328 = scmp.eq.s32.totalorder %s38, 1
      %p329 = por %p327, %p328
      %p330 = scmp.ne.s32.totalorder %s321, %s322
      %p331 = scmp.eq.s32.totalorder %s38, 0
      %p332 = por %p330, %p331
      %p333 = scmp.ne.s32.totalorder %s321, %s322
      %p334 = scmp.eq.s32.totalorder %s39, 1
      %p335 = por %p333, %p334
      %p337 = scmp.ne.s32.totalorder %s322, %s336
      %p338 = scmp.eq.s32.totalorder %s39, 0
      %p339 = por %p337, %p338
      %s341 = sadd.s32 %s340, 1
      %p344 = scmp.eq.s32.totalorder %s33, 1
      %p345 = scmp.ne.s32.totalorder %s340, %s342
      %p346 = scmp.eq.s32.totalorder %s33, 0
      %p347 = por %p345, %p346
      %p348 = scmp.ne.s32.totalorder %s340, %s342
      %p349 = scmp.eq.s32.totalorder %s38, 1
      %p350 = por %p348, %p349
      %p351 = scmp.ne.s32.totalorder %s342, %s343
      %p352 = scmp.eq.s32.totalorder %s38, 0
      %p353 = por %p351, %p352
      %p354 = scmp.ne.s32.totalorder %s342, %s343
      %p355 = scmp.eq.s32.totalorder %s39, 1
      %p356 = por %p354, %p355
      %p358 = scmp.ne.s32.totalorder %s343, %s357
      %p359 = scmp.eq.s32.totalorder %s39, 0
      %p360 = por %p358, %p359
      %s362 = sadd.s32 %s361, 1
      %p365 = scmp.eq.s32.totalorder %s33, 1
      %p366 = scmp.ne.s32.totalorder %s361, %s363
      %p367 = scmp.eq.s32.totalorder %s33, 0
      %p368 = por %p366, %p367
      %p369 = scmp.ne.s32.totalorder %s361, %s363
      %p370 = scmp.eq.s32.totalorder %s38, 1
      %p371 = por %p369, %p370
      %p372 = scmp.ne.s32.totalorder %s363, %s364
      %p373 = scmp.eq.s32.totalorder %s38, 0
      %p374 = por %p372, %p373
      %p375 = scmp.ne.s32.totalorder %s363, %s364
      %p376 = scmp.eq.s32.totalorder %s39, 1
      %p377 = por %p375, %p376
      %p379 = scmp.ne.s32.totalorder %s364, %s378
      %p380 = scmp.eq.s32.totalorder %s39, 0
      %p381 = por %p379, %p380
      %s382 = ssub.s32 %s33, %s40
      %p383 = scmp.eq.s32.totalorder %s382, 0
      %s385 = sadd.s32 %s384, 1
      %s386 = scalar_select %p383, %s384, %s385
      %p389 = pneg %p383
      %p390 = scmp.eq.s32.totalorder %s33, 1
      %p391 = por %p389, %p390
      %p392 = scmp.ne.s32.totalorder %s384, %s387
      %p393 = scmp.eq.s32.totalorder %s33, 0
      %p394 = por %p392, %p393
      %p395 = scmp.ne.s32.totalorder %s384, %s387
      %p396 = scmp.eq.s32.totalorder %s38, 1
      %p397 = por %p395, %p396
      %p398 = scmp.ne.s32.totalorder %s387, %s388
      %p399 = scmp.eq.s32.totalorder %s38, 0
      %p400 = por %p398, %p399
      %p401 = scmp.ne.s32.totalorder %s387, %s388
      %p402 = scmp.eq.s32.totalorder %s39, 1
      %p403 = por %p401, %p402
      %p405 = scmp.ne.s32.totalorder %s388, %s404
      %p406 = scmp.eq.s32.totalorder %s39, 0
      %p407 = por %p405, %p406
      %s408 = ssub.s32 %s33, %s40
      %p409 = scmp.eq.s32.totalorder %s408, 0
      %s411 = sadd.s32 %s410, 1
      %s412 = scalar_select %p409, %s410, %s411
      %p415 = pneg %p409
      %p416 = scmp.eq.s32.totalorder %s33, 1
      %p417 = por %p415, %p416
      %p418 = scmp.ne.s32.totalorder %s410, %s413
      %p419 = scmp.eq.s32.totalorder %s33, 0
      %p420 = por %p418, %p419
      %p421 = scmp.ne.s32.totalorder %s410, %s413
      %p422 = scmp.eq.s32.totalorder %s38, 1
      %p423 = por %p421, %p422
      %p424 = scmp.ne.s32.totalorder %s413, %s414
      %p425 = scmp.eq.s32.totalorder %s38, 0
      %p426 = por %p424, %p425
      %p427 = scmp.ne.s32.totalorder %s413, %s414
      %p428 = scmp.eq.s32.totalorder %s39, 1
      %p429 = por %p427, %p428
      %p431 = scmp.ne.s32.totalorder %s414, %s430
      %p432 = scmp.eq.s32.totalorder %s39, 0
      %p433 = por %p431, %p432
      %s434 = ssub.s32 %s33, %s40
      %p435 = scmp.eq.s32.totalorder %s434, 0
      %s437 = sadd.s32 %s436, 1
      %s438 = scalar_select %p435, %s436, %s437
      %p441 = pneg %p435
      %p442 = scmp.eq.s32.totalorder %s33, 1
      %p443 = por %p441, %p442
      %p444 = scmp.ne.s32.totalorder %s436, %s439
      %p445 = scmp.eq.s32.totalorder %s33, 0
      %p446 = por %p444, %p445
      %p447 = scmp.ne.s32.totalorder %s436, %s439
      %p448 = scmp.eq.s32.totalorder %s38, 1
      %p449 = por %p447, %p448
      %p450 = scmp.ne.s32.totalorder %s439, %s440
      %p451 = scmp.eq.s32.totalorder %s38, 0
      %p452 = por %p450, %p451
      %p453 = scmp.ne.s32.totalorder %s439, %s440
      %p454 = scmp.eq.s32.totalorder %s39, 1
      %p455 = por %p453, %p454
      %p457 = scmp.ne.s32.totalorder %s440, %s456
      %p458 = scmp.eq.s32.totalorder %s39, 0
      %p459 = por %p457, %p458
      %p460 = scmp.le.s32.totalorder 1, %s33
      %p461 = scmp.lt.s32.totalorder %s33, 3
      %p462 = pnand %p460, %p461
      %p463 = pneg %p462
      // Predicated region
      $region9: #{attention_net_cosine_forward.6} parent=5 // pred_check
        _
      $region10: #{attention_net_cosine_forward.6} parent=5 // pred_check_branch
        %465 = sbr.rel (%p462) target = $region12
      $region11: #{attention_net_cosine_forward.6} parent=5 // pred_region
        %s466 = ssub.s32 %s33, 1
        // Predicated region
        $region13: #{attention_net_cosine_forward.6} parent=11 // pred_check
          %p467 = pneg %p80
        $region14: #{attention_net_cosine_forward.6} parent=11 // pred_check_branch
          %469 = sbr.rel (%p467) target = $region16
        $region15: #{attention_net_cosine_forward.6} parent=11 // pred_region
          %471 = vsyncadd [#allocation3], 0
          %s472 = sshll.u32 %s1, 4
          %s473 = int_to_ptr.hbm [resolvable:$true] %s472
          %s474 = sshll.u32 [#allocation2], 4
          %s475 = int_to_ptr.vmem [resolvable:$true] %s474
          %480 = dma.hbm_to_vmem [thread:$0]  %s473, 4608, %s475, [#allocation3], 64, 64, 4
        $region16: #{attention_net_cosine_forward.6} parent=11 // pred_fallthru
          _
        // Predicated region
        $region17: #{attention_net_cosine_forward.6} parent=11 // pred_check
          %p481 = pneg %p101
        $region18: #{attention_net_cosine_forward.6} parent=11 // pred_check_branch
          %483 = sbr.rel (%p481) target = $region20
        $region19: #{attention_net_cosine_forward.6} parent=11 // pred_region
          %485 = vsyncadd [#allocation5], 0
          %s486 = sshll.u32 %s2, 4
          %s487 = int_to_ptr.hbm [resolvable:$true] %s486
          %s488 = sshll.u32 [#allocation4], 4
          %s489 = int_to_ptr.vmem [resolvable:$true] %s488
          %494 = dma.hbm_to_vmem [thread:$0]  %s487, 1152, %s489, [#allocation5], 64, 64, 4
        $region20: #{attention_net_cosine_forward.6} parent=11 // pred_fallthru
          _
        // Predicated region
        $region21: #{attention_net_cosine_forward.6} parent=11 // pred_check
          %p495 = pneg %p122
        $region22: #{attention_net_cosine_forward.6} parent=11 // pred_check_branch
          %497 = sbr.rel (%p495) target = $region24
        $region23: #{attention_net_cosine_forward.6} parent=11 // pred_region
          %499 = vsyncadd [#allocation5], 0
          %s500 = sshll.u32 %s3, 4
          %s501 = int_to_ptr.hbm [resolvable:$true] %s500
          %s502 = sshll.u32 [#allocation6], 4
          %s503 = int_to_ptr.vmem [resolvable:$true] %s502
          %508 = dma.hbm_to_vmem [thread:$0]  %s501, 288, %s503, [#allocation5], 32, 32, 2
        $region24: #{attention_net_cosine_forward.6} parent=11 // pred_fallthru
          _
        // Predicated region
        $region25: #{attention_net_cosine_forward.6} parent=11 // pred_check
          %p509 = pneg %p143
        $region26: #{attention_net_cosine_forward.6} parent=11 // pred_check_branch
          %511 = sbr.rel (%p509) target = $region28
        $region27: #{attention_net_cosine_forward.6} parent=11 // pred_region
          %513 = vsyncadd [#allocation8], 0
          %s514 = sshll.u32 %s4, 4
          %s515 = int_to_ptr.hbm [resolvable:$true] %s514
          %s516 = sshll.u32 [#allocation7], 4
          %s517 = int_to_ptr.vmem [resolvable:$true] %s516
          %522 = dma.hbm_to_vmem [thread:$0]  %s515, 9216, %s517, [#allocation8], 64, 64, 4
        $region28: #{attention_net_cosine_forward.6} parent=11 // pred_fallthru
          _
        // Predicated region
        $region29: #{attention_net_cosine_forward.6} parent=11 // pred_check
          %p523 = pneg %p164
        $region30: #{attention_net_cosine_forward.6} parent=11 // pred_check_branch
          %525 = sbr.rel (%p523) target = $region32
        $region31: #{attention_net_cosine_forward.6} parent=11 // pred_region
          %527 = vsyncadd [#allocation8], 0
          %s529 = sshll.u32 %s5, 4
          %s530 = int_to_ptr.hbm [resolvable:$true] %s529
          %s531 = sshll.u32 [#allocation9], 4
          %s532 = int_to_ptr.vmem [resolvable:$true] %s531
          %534 = dma.hbm_to_vmem [thread:$0]  %s530, 16, %s532, [#allocation8]
        $region32: #{attention_net_cosine_forward.6} parent=11 // pred_fallthru
          _
        // Predicated region
        $region33: #{attention_net_cosine_forward.6} parent=11 // pred_check
          %p535 = pneg %p185
        $region34: #{attention_net_cosine_forward.6} parent=11 // pred_check_branch
          %537 = sbr.rel (%p535) target = $region36
        $region35: #{attention_net_cosine_forward.6} parent=11 // pred_region
          %539 = vsyncadd [#allocation11], 0
          %s540 = sshll.u32 %s6, 4
          %s541 = int_to_ptr.hbm [resolvable:$true] %s540
          %s542 = sshll.u32 [#allocation10], 4
          %s543 = int_to_ptr.vmem [resolvable:$true] %s542
          %548 = dma.hbm_to_vmem [thread:$0]  %s541, 9216, %s543, [#allocation11], 64, 64, 4
        $region36: #{attention_net_cosine_forward.6} parent=11 // pred_fallthru
          _
        // Predicated region
        $region37: #{attention_net_cosine_forward.6} parent=11 // pred_check
          %p549 = pneg %p206
        $region38: #{attention_net_cosine_forward.6} parent=11 // pred_check_branch
          %551 = sbr.rel (%p549) target = $region40
        $region39: #{attention_net_cosine_forward.6} parent=11 // pred_region
          %553 = vsyncadd [#allocation11], 0
          %s555 = sshll.u32 %s7, 4
          %s556 = int_to_ptr.hbm [resolvable:$true] %s555
          %s557 = sshll.u32 [#allocation12], 4
          %s558 = int_to_ptr.vmem [resolvable:$true] %s557
          %560 = dma.hbm_to_vmem [thread:$0]  %s556, 16, %s558, [#allocation11]
        $region40: #{attention_net_cosine_forward.6} parent=11 // pred_fallthru
          _
        // Predicated region
        $region41: #{attention_net_cosine_forward.6} parent=11 // pred_check
          %p561 = pneg %p227
        $region42: #{attention_net_cosine_forward.6} parent=11 // pred_check_branch
          %563 = sbr.rel (%p561) target = $region44
        $region43: #{attention_net_cosine_forward.6} parent=11 // pred_region
          %565 = vsyncadd [#allocation14], 0
          %s566 = sshll.u32 %s8, 4
          %s567 = int_to_ptr.hbm [resolvable:$true] %s566
          %s568 = sshll.u32 [#allocation13], 4
          %s569 = int_to_ptr.vmem [resolvable:$true] %s568
          %574 = dma.hbm_to_vmem [thread:$0]  %s567, 9216, %s569, [#allocation14], 64, 64, 4
        $region44: #{attention_net_cosine_forward.6} parent=11 // pred_fallthru
          _
        // Predicated region
        $region45: #{attention_net_cosine_forward.6} parent=11 // pred_check
          %p575 = pneg %p248
        $region46: #{attention_net_cosine_forward.6} parent=11 // pred_check_branch
          %577 = sbr.rel (%p575) target = $region48
        $region47: #{attention_net_cosine_forward.6} parent=11 // pred_region
          %579 = vsyncadd [#allocation14], 0
          %s581 = sshll.u32 %s9, 4
          %s582 = int_to_ptr.hbm [resolvable:$true] %s581
          %s583 = sshll.u32 [#allocation15], 4
          %s584 = int_to_ptr.vmem [resolvable:$true] %s583
          %586 = dma.hbm_to_vmem [thread:$0]  %s582, 16, %s584, [#allocation14]
        $region48: #{attention_net_cosine_forward.6} parent=11 // pred_fallthru
          _
        // Predicated region
        $region49: #{attention_net_cosine_forward.6} parent=11 // pred_check
          %p587 = pneg %p269
        $region50: #{attention_net_cosine_forward.6} parent=11 // pred_check_branch
          %589 = sbr.rel (%p587) target = $region52
        $region51: #{attention_net_cosine_forward.6} parent=11 // pred_region
          %591 = vsyncadd [#allocation17], 0
          %s592 = sshll.u32 %s10, 4
          %s593 = int_to_ptr.hbm [resolvable:$true] %s592
          %s594 = sshll.u32 [#allocation16], 4
          %s595 = int_to_ptr.vmem [resolvable:$true] %s594
          %600 = dma.hbm_to_vmem [thread:$0]  %s593, 1024, %s595, [#allocation17], 64, 64, 4
        $region52: #{attention_net_cosine_forward.6} parent=11 // pred_fallthru
          _
        // Predicated region
        $region53: #{attention_net_cosine_forward.6} parent=11 // pred_check
          %p601 = pneg %p290
        $region54: #{attention_net_cosine_forward.6} parent=11 // pred_check_branch
          %603 = sbr.rel (%p601) target = $region56
        $region55: #{attention_net_cosine_forward.6} parent=11 // pred_region
          %605 = vsyncadd [#allocation17], 0
          %s607 = sshll.u32 %s11, 4
          %s608 = int_to_ptr.hbm [resolvable:$true] %s607
          %s609 = sshll.u32 [#allocation18], 4
          %s610 = int_to_ptr.vmem [resolvable:$true] %s609
          %612 = dma.hbm_to_vmem [thread:$0]  %s608, 16, %s610, [#allocation17]
        $region56: #{attention_net_cosine_forward.6} parent=11 // pred_fallthru
          _
        // Predicated region
        $region57: #{attention_net_cosine_forward.6} parent=11 // pred_check
          %p613 = pneg %p311
        $region58: #{attention_net_cosine_forward.6} parent=11 // pred_check_branch
          %615 = sbr.rel (%p613) target = $region60
        $region59: #{attention_net_cosine_forward.6} parent=11 // pred_region
          %617 = vsyncadd [#allocation20], 0
          %s618 = sshll.u32 %s12, 4
          %s619 = int_to_ptr.hbm [resolvable:$true] %s618
          %s620 = sshll.u32 [#allocation19], 4
          %s621 = int_to_ptr.vmem [resolvable:$true] %s620
          %626 = dma.hbm_to_vmem [thread:$0]  %s619, 1024, %s621, [#allocation20], 64, 64, 4
        $region60: #{attention_net_cosine_forward.6} parent=11 // pred_fallthru
          _
        // Predicated region
        $region61: #{attention_net_cosine_forward.6} parent=11 // pred_check
          %p627 = pneg %p332
        $region62: #{attention_net_cosine_forward.6} parent=11 // pred_check_branch
          %629 = sbr.rel (%p627) target = $region64
        $region63: #{attention_net_cosine_forward.6} parent=11 // pred_region
          %631 = vsyncadd [#allocation20], 0
          %s633 = sshll.u32 %s13, 4
          %s634 = int_to_ptr.hbm [resolvable:$true] %s633
          %s635 = sshll.u32 [#allocation21], 4
          %s636 = int_to_ptr.vmem [resolvable:$true] %s635
          %638 = dma.hbm_to_vmem [thread:$0]  %s634, 16, %s636, [#allocation20]
        $region64: #{attention_net_cosine_forward.6} parent=11 // pred_fallthru
          _
        // Predicated region
        $region65: #{attention_net_cosine_forward.6} parent=11 // pred_check
          %p639 = pneg %p353
        $region66: #{attention_net_cosine_forward.6} parent=11 // pred_check_branch
          %641 = sbr.rel (%p639) target = $region68
        $region67: #{attention_net_cosine_forward.6} parent=11 // pred_region
          %643 = vsyncadd [#allocation23], 0
          %s644 = sshll.u32 %s14, 4
          %s645 = int_to_ptr.hbm [resolvable:$true] %s644
          %s646 = sshll.u32 [#allocation22], 4
          %s647 = int_to_ptr.vmem [resolvable:$true] %s646
          %652 = dma.hbm_to_vmem [thread:$0]  %s645, 1024, %s647, [#allocation23], 64, 64, 4
        $region68: #{attention_net_cosine_forward.6} parent=11 // pred_fallthru
          _
        // Predicated region
        $region69: #{attention_net_cosine_forward.6} parent=11 // pred_check
          %p653 = pneg %p374
        $region70: #{attention_net_cosine_forward.6} parent=11 // pred_check_branch
          %655 = sbr.rel (%p653) target = $region72
        $region71: #{attention_net_cosine_forward.6} parent=11 // pred_region
          %657 = vsyncadd [#allocation23], 0
          %s659 = sshll.u32 %s15, 4
          %s660 = int_to_ptr.hbm [resolvable:$true] %s659
          %s661 = sshll.u32 [#allocation24], 4
          %s662 = int_to_ptr.vmem [resolvable:$true] %s661
          %664 = dma.hbm_to_vmem [thread:$0]  %s660, 16, %s662, [#allocation23]
        $region72: #{attention_net_cosine_forward.6} parent=11 // pred_fallthru
          _
      $region12: #{attention_net_cosine_forward.6} parent=5 // pred_fallthru
        _
      %p665 = scmp.lt.s32.totalorder %s33, 2
      // Predicated region
      $region73: #{attention_net_cosine_forward.6} parent=5 // pred_check
        %p666 = pneg %p665
      $region74: #{attention_net_cosine_forward.6} parent=5 // pred_check_branch
        %668 = sbr.rel (%p666) target = $region76
      $region75: #{attention_net_cosine_forward.6} parent=5 // pred_region
        // Predicated region
        $region77: #{attention_net_cosine_forward.6} parent=75 // pred_check
          %p669 = pneg %p53
        $region78: #{attention_net_cosine_forward.6} parent=75 // pred_check_branch
          %671 = sbr.rel (%p669) target = $region80
        $region79: #{attention_net_cosine_forward.6} parent=75 // pred_region
          %p672 = scmp.lt.s32.totalorder %s33, 1
          %s673 = scalar_select %p672, %s33, 1
          %s674 = smul.addr %s673, 8
          %s675 = smul.addr %s674, 4
          %s676 = scalar_lea.vmem %s0, %s675
        $region80: #{attention_net_cosine_forward.6} parent=75 // pred_fallthru
          _
      $region76: #{attention_net_cosine_forward.6} parent=5 // pred_fallthru
        _
      %p677 = scmp.le.s32.totalorder 1, %s33
      %p678 = scmp.lt.s32.totalorder %s33, 3
      %p679 = pnand %p677, %p678
      %p680 = pneg %p679
      // Predicated region
      $region81: #{attention_net_cosine_forward.6} parent=5 // pred_check
        _
      $region82: #{attention_net_cosine_forward.6} parent=5 // pred_check_branch
        %682 = sbr.rel (%p679) target = $region84
      $region83: #{attention_net_cosine_forward.6} parent=5 // pred_region
        %s683 = ssub.s32 %s33, 1
        // Predicated region
        $region85: #{attention_net_cosine_forward.6} parent=83 // pred_check
          %p684 = pneg %p80
        $region86: #{attention_net_cosine_forward.6} parent=83 // pred_check_branch
          %686 = sbr.rel (%p684) target = $region88
        $region87: #{attention_net_cosine_forward.6} parent=83 // pred_region
          %688 = dma.done [#allocation3], 4608
        $region88: #{attention_net_cosine_forward.6} parent=83 // pred_fallthru
          _
        // Predicated region
        $region89: #{attention_net_cosine_forward.6} parent=83 // pred_check
          %p689 = pneg %p101
        $region90: #{attention_net_cosine_forward.6} parent=83 // pred_check_branch
          %691 = sbr.rel (%p689) target = $region92
        $region91: #{attention_net_cosine_forward.6} parent=83 // pred_region
          %693 = dma.done [#allocation5], 1152
        $region92: #{attention_net_cosine_forward.6} parent=83 // pred_fallthru
          _
        // Predicated region
        $region93: #{attention_net_cosine_forward.6} parent=83 // pred_check
          %p694 = pneg %p122
        $region94: #{attention_net_cosine_forward.6} parent=83 // pred_check_branch
          %696 = sbr.rel (%p694) target = $region96
        $region95: #{attention_net_cosine_forward.6} parent=83 // pred_region
          %698 = dma.done [#allocation5], 288
        $region96: #{attention_net_cosine_forward.6} parent=83 // pred_fallthru
          _
        // Predicated region
        $region97: #{attention_net_cosine_forward.6} parent=83 // pred_check
          %p699 = pneg %p143
        $region98: #{attention_net_cosine_forward.6} parent=83 // pred_check_branch
          %701 = sbr.rel (%p699) target = $region100
        $region99: #{attention_net_cosine_forward.6} parent=83 // pred_region
          %703 = dma.done [#allocation8], 9216
        $region100: #{attention_net_cosine_forward.6} parent=83 // pred_fallthru
          _
        // Predicated region
        $region101: #{attention_net_cosine_forward.6} parent=83 // pred_check
          %p704 = pneg %p164
        $region102: #{attention_net_cosine_forward.6} parent=83 // pred_check_branch
          %706 = sbr.rel (%p704) target = $region104
        $region103: #{attention_net_cosine_forward.6} parent=83 // pred_region
          %708 = dma.done [#allocation8], 16
        $region104: #{attention_net_cosine_forward.6} parent=83 // pred_fallthru
          _
        // Predicated region
        $region105: #{attention_net_cosine_forward.6} parent=83 // pred_check
          %p709 = pneg %p185
        $region106: #{attention_net_cosine_forward.6} parent=83 // pred_check_branch
          %711 = sbr.rel (%p709) target = $region108
        $region107: #{attention_net_cosine_forward.6} parent=83 // pred_region
          %713 = dma.done [#allocation11], 9216
        $region108: #{attention_net_cosine_forward.6} parent=83 // pred_fallthru
          _
        // Predicated region
        $region109: #{attention_net_cosine_forward.6} parent=83 // pred_check
          %p714 = pneg %p206
        $region110: #{attention_net_cosine_forward.6} parent=83 // pred_check_branch
          %716 = sbr.rel (%p714) target = $region112
        $region111: #{attention_net_cosine_forward.6} parent=83 // pred_region
          %718 = dma.done [#allocation11], 16
        $region112: #{attention_net_cosine_forward.6} parent=83 // pred_fallthru
          _
        // Predicated region
        $region113: #{attention_net_cosine_forward.6} parent=83 // pred_check
          %p719 = pneg %p227
        $region114: #{attention_net_cosine_forward.6} parent=83 // pred_check_branch
          %721 = sbr.rel (%p719) target = $region116
        $region115: #{attention_net_cosine_forward.6} parent=83 // pred_region
          %723 = dma.done [#allocation14], 9216
        $region116: #{attention_net_cosine_forward.6} parent=83 // pred_fallthru
          _
        // Predicated region
        $region117: #{attention_net_cosine_forward.6} parent=83 // pred_check
          %p724 = pneg %p248
        $region118: #{attention_net_cosine_forward.6} parent=83 // pred_check_branch
          %726 = sbr.rel (%p724) target = $region120
        $region119: #{attention_net_cosine_forward.6} parent=83 // pred_region
          %728 = dma.done [#allocation14], 16
        $region120: #{attention_net_cosine_forward.6} parent=83 // pred_fallthru
          _
        // Predicated region
        $region121: #{attention_net_cosine_forward.6} parent=83 // pred_check
          %p729 = pneg %p269
        $region122: #{attention_net_cosine_forward.6} parent=83 // pred_check_branch
          %731 = sbr.rel (%p729) target = $region124
        $region123: #{attention_net_cosine_forward.6} parent=83 // pred_region
          %733 = dma.done [#allocation17], 1024
        $region124: #{attention_net_cosine_forward.6} parent=83 // pred_fallthru
          _
        // Predicated region
        $region125: #{attention_net_cosine_forward.6} parent=83 // pred_check
          %p734 = pneg %p290
        $region126: #{attention_net_cosine_forward.6} parent=83 // pred_check_branch
          %736 = sbr.rel (%p734) target = $region128
        $region127: #{attention_net_cosine_forward.6} parent=83 // pred_region
          %738 = dma.done [#allocation17], 16
        $region128: #{attention_net_cosine_forward.6} parent=83 // pred_fallthru
          _
        // Predicated region
        $region129: #{attention_net_cosine_forward.6} parent=83 // pred_check
          %p739 = pneg %p311
        $region130: #{attention_net_cosine_forward.6} parent=83 // pred_check_branch
          %741 = sbr.rel (%p739) target = $region132
        $region131: #{attention_net_cosine_forward.6} parent=83 // pred_region
          %743 = dma.done [#allocation20], 1024
        $region132: #{attention_net_cosine_forward.6} parent=83 // pred_fallthru
          _
        // Predicated region
        $region133: #{attention_net_cosine_forward.6} parent=83 // pred_check
          %p744 = pneg %p332
        $region134: #{attention_net_cosine_forward.6} parent=83 // pred_check_branch
          %746 = sbr.rel (%p744) target = $region136
        $region135: #{attention_net_cosine_forward.6} parent=83 // pred_region
          %748 = dma.done [#allocation20], 16
        $region136: #{attention_net_cosine_forward.6} parent=83 // pred_fallthru
          _
        // Predicated region
        $region137: #{attention_net_cosine_forward.6} parent=83 // pred_check
          %p749 = pneg %p353
        $region138: #{attention_net_cosine_forward.6} parent=83 // pred_check_branch
          %751 = sbr.rel (%p749) target = $region140
        $region139: #{attention_net_cosine_forward.6} parent=83 // pred_region
          %753 = dma.done [#allocation23], 1024
        $region140: #{attention_net_cosine_forward.6} parent=83 // pred_fallthru
          _
        // Predicated region
        $region141: #{attention_net_cosine_forward.6} parent=83 // pred_check
          %p754 = pneg %p374
        $region142: #{attention_net_cosine_forward.6} parent=83 // pred_check_branch
          %756 = sbr.rel (%p754) target = $region144
        $region143: #{attention_net_cosine_forward.6} parent=83 // pred_region
          %758 = dma.done [#allocation23], 16
        $region144: #{attention_net_cosine_forward.6} parent=83 // pred_fallthru
          _
        %p759 = scmp.lt.s32.totalorder %s38, 1
        %s760 = scalar_select %p759, %s38, 1
        %s761 = smul.addr %s760, 8
        %s762 = smul.addr %s761, 4
        %s763 = scalar_lea.vmem %s0, %s762
        %p764 = pneg %p59
        %p765 = pneg %p56
        %p766 = pneg %p80
        %p767 = pneg %p77
        %p768 = pneg %p101
        %p769 = pneg %p98
        %p770 = pneg %p122
        %p771 = pneg %p119
        %p772 = pneg %p143
        %p773 = pneg %p140
        %p774 = pneg %p164
        %p775 = pneg %p161
        %p776 = pneg %p185
        %p777 = pneg %p182
        %p778 = pneg %p206
        %p779 = pneg %p203
        %p780 = pneg %p227
        %p781 = pneg %p224
        %p782 = pneg %p248
        %p783 = pneg %p245
        %p784 = pneg %p269
        %p785 = pneg %p266
        %p786 = pneg %p290
        %p787 = pneg %p287
        %p788 = pneg %p311
        %p789 = pneg %p308
        %p790 = pneg %p332
        %p791 = pneg %p329
        %p792 = pneg %p353
        %p793 = pneg %p350
        %p794 = pneg %p374
        %p795 = pneg %p371
        %p796 = pneg %p400
        %p797 = pneg %p397
        %p798 = scmp.lt.s32.totalorder %s38, 1
        %s799 = scalar_select %p798, %s38, 1
        %s800 = smul.addr %s799, 8
        %s801 = smul.addr %s800, 8
        %s802 = scalar_lea.vmem %s16, %s801
        %p803 = pneg %p426
        %p804 = pneg %p423
        %p805 = scmp.lt.s32.totalorder %s38, 1
        %s806 = scalar_select %p805, %s38, 1
        %s807 = smul.addr %s806, 2
        %s808 = smul.addr %s807, 8
        %s809 = scalar_lea.vmem %s17, %s808
        %p810 = pneg %p452
        %p811 = pneg %p449
        %p812 = scmp.lt.s32.totalorder %s38, 1
        %s813 = scalar_select %p812, %s38, 1
        %s814 = smul.addr %s813, 4
        %s815 = scalar_lea.vmem %s18, %s814
        %p816 = scmp.lt.s32.totalorder %s38, 1
        %s817 = scalar_select %p816, %s38, 1
        %s818 = smul.addr %s817, 8
        %s819 = smul.addr %s818, 4
        %s820 = scalar_lea.vmem %s0, %s819
        %p821 = scmp.lt.s32.totalorder %s38, 1
        %s822 = scalar_select %p821, %s38, 1
        %s823 = smul.addr %s822, 8
        %s824 = smul.addr %s823, 8
        %s825 = scalar_lea.vmem %s16, %s824
        %p826 = scmp.lt.s32.totalorder %s38, 1
        %s827 = scalar_select %p826, %s38, 1
        %s828 = smul.addr %s827, 2
        %s829 = smul.addr %s828, 8
        %s830 = scalar_lea.vmem %s17, %s829
        %p831 = scmp.lt.s32.totalorder %s38, 1
        %s832 = scalar_select %p831, %s38, 1
        %s833 = smul.addr %s832, 4
        %s834 = scalar_lea.vmem %s18, %s833
        %v836 = vld [vmem:[%s820] sm:$0xf]
        %v837 = vld [vmem:[%s820 + $0x4] sm:$0xf]
        %v838 = vld [vmem:[%s820 + $0x8] sm:$0xf]
        %v839 = vld [vmem:[%s820 + $0xc] sm:$0xf]
        %v840 = vld [vmem:[%s820 + $0x10] sm:$0xf]
        %v841 = vld [vmem:[%s820 + $0x14] sm:$0xf]
        %v842 = vld [vmem:[%s820 + $0x18] sm:$0xf]
        %v843 = vld [vmem:[%s820 + $0x1c] sm:$0xf]
        %v844 = vld [vmem:[#allocation2] sm:$0xf]
        %v845 = vld [vmem:[#allocation2 + $0x4] sm:$0xf]
        %v846 = vld [vmem:[#allocation2 + $0x8] sm:$0xf]
        %v847 = vld [vmem:[#allocation2 + $0xc] sm:$0xf]
        %v848 = vld [vmem:[#allocation2 + $0x10] sm:$0xf]
        %v849 = vld [vmem:[#allocation2 + $0x14] sm:$0xf]
        %v850 = vld [vmem:[#allocation2 + $0x18] sm:$0xf]
        %v851 = vld [vmem:[#allocation2 + $0x1c] sm:$0xf]
        %v860 = vunpack.c.l.b16 %v844
        %v861 = vunpack.c.l.b16 %v845
        %v862 = vunpack.c.l.b16 %v846
        %v863 = vunpack.c.l.b16 %v847
        %v864 = vunpack.c.l.b16 %v848
        %v865 = vunpack.c.l.b16 %v849
        %v866 = vunpack.c.l.b16 %v850
        %v867 = vunpack.c.l.b16 %v851
        %v868 = vpack.c.b16 %v861, %v860
        %v869 = vpack.c.b16 %v863, %v862
        %v870 = vpack.c.b16 %v865, %v864
        %v871 = vpack.c.b16 %v867, %v866
        %v880 = vunpack.c.l.b16 %v836
        %v881 = vunpack.c.l.b16 %v837
        %v882 = vunpack.c.l.b16 %v838
        %v883 = vunpack.c.l.b16 %v839
        %v884 = vunpack.c.l.b16 %v840
        %v885 = vunpack.c.l.b16 %v841
        %v886 = vunpack.c.l.b16 %v842
        %v887 = vunpack.c.l.b16 %v843
        %v888 = vpack.c.b16 %v881, %v880
        %v889 = vpack.c.b16 %v883, %v882
        %v890 = vpack.c.b16 %v885, %v884
        %v891 = vpack.c.b16 %v887, %v886
        %vm896 = vcmask 523264
        %v898 = vsel %vm896, %v868, 0
        %v901 = vsel %vm896, %v869, 0
        %v904 = vsel %vm896, %v870, 0
        %v907 = vsel %vm896, %v871, 0
        %909 = vmatpush.bf16.msra.mxu0 0
        %910 = vmatpush.bf16.msra.mxu0 0
        %911 = vmatpush.bf16.msra.mxu0 0
        %912 = vmatpush.bf16.msra.mxu0 0
        %913 = vmatpush.bf16.msra.mxu0 %v891
        %914 = vmatpush.bf16.msra.mxu0 %v890
        %915 = vmatpush.bf16.msra.mxu0 %v889
        %916 = vmatpush.bf16.msra.mxu0 %v888
        %917 = vmatmul.bf16.gmra.mxu0 %v898
        %v918 = vpop.f32.mrf.mxu0
        %v919 = vadd.f32 0.0, %v918
        %v920 = vpop.f32.mrf.mxu0
        %v921 = vadd.f32 0.0, %v920
        %922 = vmatmul.bf16.gmra.mxu0 %v901
        %v923 = vpop.f32.mrf.mxu0
        %v924 = vadd.f32 0.0, %v923
        %v925 = vpop.f32.mrf.mxu0
        %v926 = vadd.f32 0.0, %v925
        %927 = vmatmul.bf16.gmra.mxu0 %v904
        %v928 = vpop.f32.mrf.mxu0
        %v929 = vadd.f32 0.0, %v928
        %v930 = vpop.f32.mrf.mxu0
        %v931 = vadd.f32 0.0, %v930
        %932 = vmatmul.bf16.gmra.mxu0 %v907
        %v933 = vpop.f32.mrf.mxu0
        %v934 = vadd.f32 0.0, %v933
        %v935 = vpop.f32.mrf.mxu0
        %v936 = vadd.f32 0.0, %v935
        %937 = vdwg.mxu0
        %v938 = vpack.c.bf16 %v921, %v919
        %v939 = vpack.c.bf16 %v926, %v924
        %v940 = vpack.c.bf16 %v931, %v929
        %v941 = vpack.c.bf16 %v936, %v934
        %v942 = vld [vmem:[#allocation7] sm:$0xf]
        %v943 = vld [vmem:[#allocation7 + $0x4] sm:$0xf]
        %v944 = vld [vmem:[#allocation7 + $0x8] sm:$0xf]
        %v945 = vld [vmem:[#allocation7 + $0xc] sm:$0xf]
        %v946 = vld [vmem:[#allocation7 + $0x10] sm:$0xf]
        %v947 = vld [vmem:[#allocation7 + $0x14] sm:$0xf]
        %v948 = vld [vmem:[#allocation7 + $0x18] sm:$0xf]
        %v949 = vld [vmem:[#allocation7 + $0x1c] sm:$0xf]
        %v950 = vld [vmem:[#allocation7 + $0x20] sm:$0xf]
        %v951 = vld [vmem:[#allocation7 + $0x24] sm:$0xf]
        %v952 = vld [vmem:[#allocation7 + $0x28] sm:$0xf]
        %v953 = vld [vmem:[#allocation7 + $0x2c] sm:$0xf]
        %v954 = vld [vmem:[#allocation7 + $0x30] sm:$0xf]
        %v955 = vld [vmem:[#allocation7 + $0x34] sm:$0xf]
        %v956 = vld [vmem:[#allocation7 + $0x38] sm:$0xf]
        %v957 = vld [vmem:[#allocation7 + $0x3c] sm:$0xf]
        %s958 = scalar_lea.vmem [#allocation2], 32
        %v959 = vld [vmem:[%s958] sm:$0xf]
        %v960 = vld [vmem:[%s958 + $0x4] sm:$0xf]
        %v961 = vld [vmem:[%s958 + $0x8] sm:$0xf]
        %v962 = vld [vmem:[%s958 + $0xc] sm:$0xf]
        %v963 = vld [vmem:[%s958 + $0x10] sm:$0xf]
        %v964 = vld [vmem:[%s958 + $0x14] sm:$0xf]
        %v965 = vld [vmem:[%s958 + $0x18] sm:$0xf]
        %v966 = vld [vmem:[%s958 + $0x1c] sm:$0xf]
        %v975 = vunpack.c.l.b16 %v959
        %v976 = vunpack.c.l.b16 %v960
        %v977 = vunpack.c.l.b16 %v961
        %v978 = vunpack.c.l.b16 %v962
        %v979 = vunpack.c.l.b16 %v963
        %v980 = vunpack.c.l.b16 %v964
        %v981 = vunpack.c.l.b16 %v965
        %v982 = vunpack.c.l.b16 %v966
        %v983 = vpack.c.b16 %v976, %v975
        %v984 = vpack.c.b16 %v978, %v977
        %v985 = vpack.c.b16 %v980, %v979
        %v986 = vpack.c.b16 %v982, %v981
        %v988 = vsel %vm896, %v983, 0
        %v991 = vsel %vm896, %v984, 0
        %v994 = vsel %vm896, %v985, 0
        %v997 = vsel %vm896, %v986, 0
        %999 = vmatpush.bf16.msra.mxu0 0
        %1000 = vmatpush.bf16.msra.mxu0 0
        %1001 = vmatpush.bf16.msra.mxu0 0
        %1002 = vmatpush.bf16.msra.mxu0 0
        %1003 = vmatpush.bf16.msra.mxu0 %v891
        %1004 = vmatpush.bf16.msra.mxu0 %v890
        %1005 = vmatpush.bf16.msra.mxu0 %v889
        %1006 = vmatpush.bf16.msra.mxu0 %v888
        %1007 = vmatmul.bf16.gmra.mxu0 %v988
        %v1008 = vpop.f32.mrf.mxu0
        %v1009 = vadd.f32 0.0, %v1008
        %v1010 = vpop.f32.mrf.mxu0
        %v1011 = vadd.f32 0.0, %v1010
        %1012 = vmatmul.bf16.gmra.mxu0 %v991
        %v1013 = vpop.f32.mrf.mxu0
        %v1014 = vadd.f32 0.0, %v1013
        %v1015 = vpop.f32.mrf.mxu0
        %v1016 = vadd.f32 0.0, %v1015
        %1017 = vmatmul.bf16.gmra.mxu0 %v994
        %v1018 = vpop.f32.mrf.mxu0
        %v1019 = vadd.f32 0.0, %v1018
        %v1020 = vpop.f32.mrf.mxu0
        %v1021 = vadd.f32 0.0, %v1020
        %1022 = vmatmul.bf16.gmra.mxu0 %v997
        %v1023 = vpop.f32.mrf.mxu0
        %v1024 = vadd.f32 0.0, %v1023
        %v1025 = vpop.f32.mrf.mxu0
        %v1026 = vadd.f32 0.0, %v1025
        %1027 = vdwg.mxu0
        %v1028 = vpack.c.bf16 %v1011, %v1009
        %v1029 = vpack.c.bf16 %v1016, %v1014
        %v1030 = vpack.c.bf16 %v1021, %v1019
        %v1031 = vpack.c.bf16 %v1026, %v1024
        %s1032 = scalar_lea.vmem [#allocation7], 64
        %v1033 = vld [vmem:[%s1032] sm:$0xf]
        %v1034 = vld [vmem:[%s1032 + $0x4] sm:$0xf]
        %v1035 = vld [vmem:[%s1032 + $0x8] sm:$0xf]
        %v1036 = vld [vmem:[%s1032 + $0xc] sm:$0xf]
        %v1037 = vld [vmem:[%s1032 + $0x10] sm:$0xf]
        %v1038 = vld [vmem:[%s1032 + $0x14] sm:$0xf]
        %v1039 = vld [vmem:[%s1032 + $0x18] sm:$0xf]
        %v1040 = vld [vmem:[%s1032 + $0x1c] sm:$0xf]
        %v1041 = vld [vmem:[%s1032 + $0x20] sm:$0xf]
        %v1042 = vld [vmem:[%s1032 + $0x24] sm:$0xf]
        %v1043 = vld [vmem:[%s1032 + $0x28] sm:$0xf]
        %v1044 = vld [vmem:[%s1032 + $0x2c] sm:$0xf]
        %v1045 = vld [vmem:[%s1032 + $0x30] sm:$0xf]
        %v1046 = vld [vmem:[%s1032 + $0x34] sm:$0xf]
        %v1047 = vld [vmem:[%s1032 + $0x38] sm:$0xf]
        %v1048 = vld [vmem:[%s1032 + $0x3c] sm:$0xf]
        %v1065 = vunpack.c.l.b16 %v1033
        %v1066 = vunpack.c.l.b16 %v1034
        %v1067 = vunpack.c.l.b16 %v1035
        %v1068 = vunpack.c.l.b16 %v1036
        %v1069 = vunpack.c.l.b16 %v1037
        %v1070 = vunpack.c.l.b16 %v1038
        %v1071 = vunpack.c.l.b16 %v1039
        %v1072 = vunpack.c.l.b16 %v1040
        %v1073 = vunpack.c.l.b16 %v1041
        %v1074 = vunpack.c.l.b16 %v1042
        %v1075 = vunpack.c.l.b16 %v1043
        %v1076 = vunpack.c.l.b16 %v1044
        %v1077 = vunpack.c.l.b16 %v1045
        %v1078 = vunpack.c.l.b16 %v1046
        %v1079 = vunpack.c.l.b16 %v1047
        %v1080 = vunpack.c.l.b16 %v1048
        %v1081 = vpack.c.b16 %v1066, %v1065
        %v1082 = vpack.c.b16 %v1068, %v1067
        %v1083 = vpack.c.b16 %v1070, %v1069
        %v1084 = vpack.c.b16 %v1072, %v1071
        %v1085 = vpack.c.b16 %v1074, %v1073
        %v1086 = vpack.c.b16 %v1076, %v1075
        %v1087 = vpack.c.b16 %v1078, %v1077
        %v1088 = vpack.c.b16 %v1080, %v1079
        %1097 = vmatpush.bf16.msra.mxu0 %v1088
        %1098 = vmatpush.bf16.msra.mxu0 %v1087
        %1099 = vmatpush.bf16.msra.mxu0 %v1086
        %1100 = vmatpush.bf16.msra.mxu0 %v1085
        %1101 = vmatpush.bf16.msra.mxu0 %v1084
        %1102 = vmatpush.bf16.msra.mxu0 %v1083
        %1103 = vmatpush.bf16.msra.mxu0 %v1082
        %1104 = vmatpush.bf16.msra.mxu0 %v1081
        %1105 = vmatmul.bf16.gmra.mxu0 %v1028
        %v1106 = vpop.f32.mrf.mxu0
        %v1107 = vadd.f32 0.0, %v1106
        %v1108 = vpop.f32.mrf.mxu0
        %v1109 = vadd.f32 0.0, %v1108
        %1110 = vmatmul.bf16.gmra.mxu0 %v1029
        %v1111 = vpop.f32.mrf.mxu0
        %v1112 = vadd.f32 0.0, %v1111
        %v1113 = vpop.f32.mrf.mxu0
        %v1114 = vadd.f32 0.0, %v1113
        %1115 = vmatmul.bf16.gmra.mxu0 %v1030
        %v1116 = vpop.f32.mrf.mxu0
        %v1117 = vadd.f32 0.0, %v1116
        %v1118 = vpop.f32.mrf.mxu0
        %v1119 = vadd.f32 0.0, %v1118
        %1120 = vmatmul.bf16.gmra.mxu0 %v1031
        %v1121 = vpop.f32.mrf.mxu0
        %v1122 = vadd.f32 0.0, %v1121
        %v1123 = vpop.f32.mrf.mxu0
        %v1124 = vadd.f32 0.0, %v1123
        %1125 = vdwg.mxu0
        %v1142 = vunpack.c.l.b16 %v942
        %v1143 = vunpack.c.l.b16 %v943
        %v1144 = vunpack.c.l.b16 %v944
        %v1145 = vunpack.c.l.b16 %v945
        %v1146 = vunpack.c.l.b16 %v946
        %v1147 = vunpack.c.l.b16 %v947
        %v1148 = vunpack.c.l.b16 %v948
        %v1149 = vunpack.c.l.b16 %v949
        %v1150 = vunpack.c.l.b16 %v950
        %v1151 = vunpack.c.l.b16 %v951
        %v1152 = vunpack.c.l.b16 %v952
        %v1153 = vunpack.c.l.b16 %v953
        %v1154 = vunpack.c.l.b16 %v954
        %v1155 = vunpack.c.l.b16 %v955
        %v1156 = vunpack.c.l.b16 %v956
        %v1157 = vunpack.c.l.b16 %v957
        %v1158 = vpack.c.b16 %v1143, %v1142
        %v1159 = vpack.c.b16 %v1145, %v1144
        %v1160 = vpack.c.b16 %v1147, %v1146
        %v1161 = vpack.c.b16 %v1149, %v1148
        %v1162 = vpack.c.b16 %v1151, %v1150
        %v1163 = vpack.c.b16 %v1153, %v1152
        %v1164 = vpack.c.b16 %v1155, %v1154
        %v1165 = vpack.c.b16 %v1157, %v1156
        %1174 = vmatpush.bf16.msra.mxu0 %v1165
        %1175 = vmatpush.bf16.msra.mxu0 %v1164
        %1176 = vmatpush.bf16.msra.mxu0 %v1163
        %1177 = vmatpush.bf16.msra.mxu0 %v1162
        %1178 = vmatpush.bf16.msra.mxu0 %v1161
        %1179 = vmatpush.bf16.msra.mxu0 %v1160
        %1180 = vmatpush.bf16.msra.mxu0 %v1159
        %1181 = vmatpush.bf16.msra.mxu0 %v1158
        %1182 = vmatmul.bf16.gmra.mxu0 %v938
        %v1183 = vpop.f32.mrf.mxu0
        %v1184 = vadd.f32 %v1107, %v1183
        %v1185 = vpop.f32.mrf.mxu0
        %v1186 = vadd.f32 %v1109, %v1185
        %1187 = vmatmul.bf16.gmra.mxu0 %v939
        %v1188 = vpop.f32.mrf.mxu0
        %v1189 = vadd.f32 %v1112, %v1188
        %v1190 = vpop.f32.mrf.mxu0
        %v1191 = vadd.f32 %v1114, %v1190
        %1192 = vmatmul.bf16.gmra.mxu0 %v940
        %v1193 = vpop.f32.mrf.mxu0
        %v1194 = vadd.f32 %v1117, %v1193
        %v1195 = vpop.f32.mrf.mxu0
        %v1196 = vadd.f32 %v1119, %v1195
        %1197 = vmatmul.bf16.gmra.mxu0 %v941
        %v1198 = vpop.f32.mrf.mxu0
        %v1199 = vadd.f32 %v1122, %v1198
        %v1200 = vpop.f32.mrf.mxu0
        %v1201 = vadd.f32 %v1124, %v1200
        %1202 = vdwg.mxu0
        %s1203 = scalar_lea.vmem [#allocation2], 64
        %v1204 = vld [vmem:[%s1203] sm:$0xf]
        %v1205 = vld [vmem:[%s1203 + $0x4] sm:$0xf]
        %v1206 = vld [vmem:[%s1203 + $0x8] sm:$0xf]
        %v1207 = vld [vmem:[%s1203 + $0xc] sm:$0xf]
        %v1208 = vld [vmem:[%s1203 + $0x10] sm:$0xf]
        %v1209 = vld [vmem:[%s1203 + $0x14] sm:$0xf]
        %v1210 = vld [vmem:[%s1203 + $0x18] sm:$0xf]
        %v1211 = vld [vmem:[%s1203 + $0x1c] sm:$0xf]
        %v1220 = vunpack.c.l.b16 %v1204
        %v1221 = vunpack.c.l.b16 %v1205
        %v1222 = vunpack.c.l.b16 %v1206
        %v1223 = vunpack.c.l.b16 %v1207
        %v1224 = vunpack.c.l.b16 %v1208
        %v1225 = vunpack.c.l.b16 %v1209
        %v1226 = vunpack.c.l.b16 %v1210
        %v1227 = vunpack.c.l.b16 %v1211
        %v1228 = vpack.c.b16 %v1221, %v1220
        %v1229 = vpack.c.b16 %v1223, %v1222
        %v1230 = vpack.c.b16 %v1225, %v1224
        %v1231 = vpack.c.b16 %v1227, %v1226
        %v1233 = vsel %vm896, %v1228, 0
        %v1236 = vsel %vm896, %v1229, 0
        %v1239 = vsel %vm896, %v1230, 0
        %v1242 = vsel %vm896, %v1231, 0
        %1244 = vmatpush.bf16.msra.mxu0 0
        %1245 = vmatpush.bf16.msra.mxu0 0
        %1246 = vmatpush.bf16.msra.mxu0 0
        %1247 = vmatpush.bf16.msra.mxu0 0
        %1248 = vmatpush.bf16.msra.mxu0 %v891
        %1249 = vmatpush.bf16.msra.mxu0 %v890
        %1250 = vmatpush.bf16.msra.mxu0 %v889
        %1251 = vmatpush.bf16.msra.mxu0 %v888
        %1252 = vmatmul.bf16.gmra.mxu0 %v1233
        %v1253 = vpop.f32.mrf.mxu0
        %v1254 = vadd.f32 0.0, %v1253
        %v1255 = vpop.f32.mrf.mxu0
        %v1256 = vadd.f32 0.0, %v1255
        %1257 = vmatmul.bf16.gmra.mxu0 %v1236
        %v1258 = vpop.f32.mrf.mxu0
        %v1259 = vadd.f32 0.0, %v1258
        %v1260 = vpop.f32.mrf.mxu0
        %v1261 = vadd.f32 0.0, %v1260
        %1262 = vmatmul.bf16.gmra.mxu0 %v1239
        %v1263 = vpop.f32.mrf.mxu0
        %v1264 = vadd.f32 0.0, %v1263
        %v1265 = vpop.f32.mrf.mxu0
        %v1266 = vadd.f32 0.0, %v1265
        %1267 = vmatmul.bf16.gmra.mxu0 %v1242
        %v1268 = vpop.f32.mrf.mxu0
        %v1269 = vadd.f32 0.0, %v1268
        %v1270 = vpop.f32.mrf.mxu0
        %v1271 = vadd.f32 0.0, %v1270
        %1272 = vdwg.mxu0
        %v1273 = vpack.c.bf16 %v1256, %v1254
        %v1274 = vpack.c.bf16 %v1261, %v1259
        %v1275 = vpack.c.bf16 %v1266, %v1264
        %v1276 = vpack.c.bf16 %v1271, %v1269
        %s1277 = scalar_lea.vmem [#allocation7], 128
        %v1278 = vld [vmem:[%s1277] sm:$0xf]
        %v1279 = vld [vmem:[%s1277 + $0x4] sm:$0xf]
        %v1280 = vld [vmem:[%s1277 + $0x8] sm:$0xf]
        %v1281 = vld [vmem:[%s1277 + $0xc] sm:$0xf]
        %v1282 = vld [vmem:[%s1277 + $0x10] sm:$0xf]
        %v1283 = vld [vmem:[%s1277 + $0x14] sm:$0xf]
        %v1284 = vld [vmem:[%s1277 + $0x18] sm:$0xf]
        %v1285 = vld [vmem:[%s1277 + $0x1c] sm:$0xf]
        %v1286 = vld [vmem:[%s1277 + $0x20] sm:$0xf]
        %v1287 = vld [vmem:[%s1277 + $0x24] sm:$0xf]
        %v1288 = vld [vmem:[%s1277 + $0x28] sm:$0xf]
        %v1289 = vld [vmem:[%s1277 + $0x2c] sm:$0xf]
        %v1290 = vld [vmem:[%s1277 + $0x30] sm:$0xf]
        %v1291 = vld [vmem:[%s1277 + $0x34] sm:$0xf]
        %v1292 = vld [vmem:[%s1277 + $0x38] sm:$0xf]
        %v1293 = vld [vmem:[%s1277 + $0x3c] sm:$0xf]
        %v1310 = vunpack.c.l.b16 %v1278
        %v1311 = vunpack.c.l.b16 %v1279
        %v1312 = vunpack.c.l.b16 %v1280
        %v1313 = vunpack.c.l.b16 %v1281
        %v1314 = vunpack.c.l.b16 %v1282
        %v1315 = vunpack.c.l.b16 %v1283
        %v1316 = vunpack.c.l.b16 %v1284
        %v1317 = vunpack.c.l.b16 %v1285
        %v1318 = vunpack.c.l.b16 %v1286
        %v1319 = vunpack.c.l.b16 %v1287
        %v1320 = vunpack.c.l.b16 %v1288
        %v1321 = vunpack.c.l.b16 %v1289
        %v1322 = vunpack.c.l.b16 %v1290
        %v1323 = vunpack.c.l.b16 %v1291
        %v1324 = vunpack.c.l.b16 %v1292
        %v1325 = vunpack.c.l.b16 %v1293
        %v1326 = vpack.c.b16 %v1311, %v1310
        %v1327 = vpack.c.b16 %v1313, %v1312
        %v1328 = vpack.c.b16 %v1315, %v1314
        %v1329 = vpack.c.b16 %v1317, %v1316
        %v1330 = vpack.c.b16 %v1319, %v1318
        %v1331 = vpack.c.b16 %v1321, %v1320
        %v1332 = vpack.c.b16 %v1323, %v1322
        %v1333 = vpack.c.b16 %v1325, %v1324
        %1342 = vmatpush.bf16.msra.mxu0 %v1333
        %1343 = vmatpush.bf16.msra.mxu0 %v1332
        %1344 = vmatpush.bf16.msra.mxu0 %v1331
        %1345 = vmatpush.bf16.msra.mxu0 %v1330
        %1346 = vmatpush.bf16.msra.mxu0 %v1329
        %1347 = vmatpush.bf16.msra.mxu0 %v1328
        %1348 = vmatpush.bf16.msra.mxu0 %v1327
        %1349 = vmatpush.bf16.msra.mxu0 %v1326
        %1350 = vmatmul.bf16.gmra.mxu0 %v1273
        %v1351 = vpop.f32.mrf.mxu0
        %v1352 = vadd.f32 0.0, %v1351
        %v1353 = vpop.f32.mrf.mxu0
        %v1354 = vadd.f32 0.0, %v1353
        %1355 = vmatmul.bf16.gmra.mxu0 %v1274
        %v1356 = vpop.f32.mrf.mxu0
        %v1357 = vadd.f32 0.0, %v1356
        %v1358 = vpop.f32.mrf.mxu0
        %v1359 = vadd.f32 0.0, %v1358
        %1360 = vmatmul.bf16.gmra.mxu0 %v1275
        %v1361 = vpop.f32.mrf.mxu0
        %v1362 = vadd.f32 0.0, %v1361
        %v1363 = vpop.f32.mrf.mxu0
        %v1364 = vadd.f32 0.0, %v1363
        %1365 = vmatmul.bf16.gmra.mxu0 %v1276
        %v1366 = vpop.f32.mrf.mxu0
        %v1367 = vadd.f32 0.0, %v1366
        %v1368 = vpop.f32.mrf.mxu0
        %v1369 = vadd.f32 0.0, %v1368
        %1370 = vdwg.mxu0
        %v1371 = vadd.f32 %v1184, %v1352
        %v1372 = vadd.f32 %v1186, %v1354
        %v1373 = vadd.f32 %v1189, %v1357
        %v1374 = vadd.f32 %v1191, %v1359
        %v1375 = vadd.f32 %v1194, %v1362
        %v1376 = vadd.f32 %v1196, %v1364
        %v1377 = vadd.f32 %v1199, %v1367
        %v1378 = vadd.f32 %v1201, %v1369
        %s1379 = scalar_lea.vmem [#allocation2], 96
        %v1380 = vld [vmem:[%s1379] sm:$0xf]
        %v1381 = vld [vmem:[%s1379 + $0x4] sm:$0xf]
        %v1382 = vld [vmem:[%s1379 + $0x8] sm:$0xf]
        %v1383 = vld [vmem:[%s1379 + $0xc] sm:$0xf]
        %v1384 = vld [vmem:[%s1379 + $0x10] sm:$0xf]
        %v1385 = vld [vmem:[%s1379 + $0x14] sm:$0xf]
        %v1386 = vld [vmem:[%s1379 + $0x18] sm:$0xf]
        %v1387 = vld [vmem:[%s1379 + $0x1c] sm:$0xf]
        %v1396 = vunpack.c.l.b16 %v1380
        %v1397 = vunpack.c.l.b16 %v1381
        %v1398 = vunpack.c.l.b16 %v1382
        %v1399 = vunpack.c.l.b16 %v1383
        %v1400 = vunpack.c.l.b16 %v1384
        %v1401 = vunpack.c.l.b16 %v1385
        %v1402 = vunpack.c.l.b16 %v1386
        %v1403 = vunpack.c.l.b16 %v1387
        %v1404 = vpack.c.b16 %v1397, %v1396
        %v1405 = vpack.c.b16 %v1399, %v1398
        %v1406 = vpack.c.b16 %v1401, %v1400
        %v1407 = vpack.c.b16 %v1403, %v1402
        %v1409 = vsel %vm896, %v1404, 0
        %v1412 = vsel %vm896, %v1405, 0
        %v1415 = vsel %vm896, %v1406, 0
        %v1418 = vsel %vm896, %v1407, 0
        %1420 = vmatpush.bf16.msra.mxu0 0
        %1421 = vmatpush.bf16.msra.mxu0 0
        %1422 = vmatpush.bf16.msra.mxu0 0
        %1423 = vmatpush.bf16.msra.mxu0 0
        %1424 = vmatpush.bf16.msra.mxu0 %v891
        %1425 = vmatpush.bf16.msra.mxu0 %v890
        %1426 = vmatpush.bf16.msra.mxu0 %v889
        %1427 = vmatpush.bf16.msra.mxu0 %v888
        %1428 = vmatmul.bf16.gmra.mxu0 %v1409
        %v1429 = vpop.f32.mrf.mxu0
        %v1430 = vadd.f32 0.0, %v1429
        %v1431 = vpop.f32.mrf.mxu0
        %v1432 = vadd.f32 0.0, %v1431
        %1433 = vmatmul.bf16.gmra.mxu0 %v1412
        %v1434 = vpop.f32.mrf.mxu0
        %v1435 = vadd.f32 0.0, %v1434
        %v1436 = vpop.f32.mrf.mxu0
        %v1437 = vadd.f32 0.0, %v1436
        %1438 = vmatmul.bf16.gmra.mxu0 %v1415
        %v1439 = vpop.f32.mrf.mxu0
        %v1440 = vadd.f32 0.0, %v1439
        %v1441 = vpop.f32.mrf.mxu0
        %v1442 = vadd.f32 0.0, %v1441
        %1443 = vmatmul.bf16.gmra.mxu0 %v1418
        %v1444 = vpop.f32.mrf.mxu0
        %v1445 = vadd.f32 0.0, %v1444
        %v1446 = vpop.f32.mrf.mxu0
        %v1447 = vadd.f32 0.0, %v1446
        %1448 = vdwg.mxu0
        %v1449 = vpack.c.bf16 %v1432, %v1430
        %v1450 = vpack.c.bf16 %v1437, %v1435
        %v1451 = vpack.c.bf16 %v1442, %v1440
        %v1452 = vpack.c.bf16 %v1447, %v1445
        %s1453 = scalar_lea.vmem [#allocation7], 192
        %v1454 = vld [vmem:[%s1453] sm:$0xf]
        %v1455 = vld [vmem:[%s1453 + $0x4] sm:$0xf]
        %v1456 = vld [vmem:[%s1453 + $0x8] sm:$0xf]
        %v1457 = vld [vmem:[%s1453 + $0xc] sm:$0xf]
        %v1458 = vld [vmem:[%s1453 + $0x10] sm:$0xf]
        %v1459 = vld [vmem:[%s1453 + $0x14] sm:$0xf]
        %v1460 = vld [vmem:[%s1453 + $0x18] sm:$0xf]
        %v1461 = vld [vmem:[%s1453 + $0x1c] sm:$0xf]
        %v1462 = vld [vmem:[%s1453 + $0x20] sm:$0xf]
        %v1463 = vld [vmem:[%s1453 + $0x24] sm:$0xf]
        %v1464 = vld [vmem:[%s1453 + $0x28] sm:$0xf]
        %v1465 = vld [vmem:[%s1453 + $0x2c] sm:$0xf]
        %v1466 = vld [vmem:[%s1453 + $0x30] sm:$0xf]
        %v1467 = vld [vmem:[%s1453 + $0x34] sm:$0xf]
        %v1468 = vld [vmem:[%s1453 + $0x38] sm:$0xf]
        %v1469 = vld [vmem:[%s1453 + $0x3c] sm:$0xf]
        %v1486 = vunpack.c.l.b16 %v1454
        %v1487 = vunpack.c.l.b16 %v1455
        %v1488 = vunpack.c.l.b16 %v1456
        %v1489 = vunpack.c.l.b16 %v1457
        %v1490 = vunpack.c.l.b16 %v1458
        %v1491 = vunpack.c.l.b16 %v1459
        %v1492 = vunpack.c.l.b16 %v1460
        %v1493 = vunpack.c.l.b16 %v1461
        %v1494 = vunpack.c.l.b16 %v1462
        %v1495 = vunpack.c.l.b16 %v1463
        %v1496 = vunpack.c.l.b16 %v1464
        %v1497 = vunpack.c.l.b16 %v1465
        %v1498 = vunpack.c.l.b16 %v1466
        %v1499 = vunpack.c.l.b16 %v1467
        %v1500 = vunpack.c.l.b16 %v1468
        %v1501 = vunpack.c.l.b16 %v1469
        %v1502 = vpack.c.b16 %v1487, %v1486
        %v1503 = vpack.c.b16 %v1489, %v1488
        %v1504 = vpack.c.b16 %v1491, %v1490
        %v1505 = vpack.c.b16 %v1493, %v1492
        %v1506 = vpack.c.b16 %v1495, %v1494
        %v1507 = vpack.c.b16 %v1497, %v1496
        %v1508 = vpack.c.b16 %v1499, %v1498
        %v1509 = vpack.c.b16 %v1501, %v1500
        %1518 = vmatpush.bf16.msra.mxu0 %v1509
        %1519 = vmatpush.bf16.msra.mxu0 %v1508
        %1520 = vmatpush.bf16.msra.mxu0 %v1507
        %1521 = vmatpush.bf16.msra.mxu0 %v1506
        %1522 = vmatpush.bf16.msra.mxu0 %v1505
        %1523 = vmatpush.bf16.msra.mxu0 %v1504
        %1524 = vmatpush.bf16.msra.mxu0 %v1503
        %1525 = vmatpush.bf16.msra.mxu0 %v1502
        %1526 = vmatmul.bf16.gmra.mxu0 %v1449
        %v1527 = vpop.f32.mrf.mxu0
        %v1528 = vadd.f32 0.0, %v1527
        %v1529 = vpop.f32.mrf.mxu0
        %v1530 = vadd.f32 0.0, %v1529
        %1531 = vmatmul.bf16.gmra.mxu0 %v1450
        %v1532 = vpop.f32.mrf.mxu0
        %v1533 = vadd.f32 0.0, %v1532
        %v1534 = vpop.f32.mrf.mxu0
        %v1535 = vadd.f32 0.0, %v1534
        %1536 = vmatmul.bf16.gmra.mxu0 %v1451
        %v1537 = vpop.f32.mrf.mxu0
        %v1538 = vadd.f32 0.0, %v1537
        %v1539 = vpop.f32.mrf.mxu0
        %v1540 = vadd.f32 0.0, %v1539
        %1541 = vmatmul.bf16.gmra.mxu0 %v1452
        %v1542 = vpop.f32.mrf.mxu0
        %v1543 = vadd.f32 0.0, %v1542
        %v1544 = vpop.f32.mrf.mxu0
        %v1545 = vadd.f32 0.0, %v1544
        %1546 = vdwg.mxu0
        %v1547 = vadd.f32 %v1371, %v1528
        %v1548 = vadd.f32 %v1372, %v1530
        %v1549 = vadd.f32 %v1373, %v1533
        %v1550 = vadd.f32 %v1374, %v1535
        %v1551 = vadd.f32 %v1375, %v1538
        %v1552 = vadd.f32 %v1376, %v1540
        %v1553 = vadd.f32 %v1377, %v1543
        %v1554 = vadd.f32 %v1378, %v1545
        %s1555 = scalar_lea.vmem [#allocation2], 128
        %v1556 = vld [vmem:[%s1555] sm:$0xf]
        %v1557 = vld [vmem:[%s1555 + $0x4] sm:$0xf]
        %v1558 = vld [vmem:[%s1555 + $0x8] sm:$0xf]
        %v1559 = vld [vmem:[%s1555 + $0xc] sm:$0xf]
        %v1560 = vld [vmem:[%s1555 + $0x10] sm:$0xf]
        %v1561 = vld [vmem:[%s1555 + $0x14] sm:$0xf]
        %v1562 = vld [vmem:[%s1555 + $0x18] sm:$0xf]
        %v1563 = vld [vmem:[%s1555 + $0x1c] sm:$0xf]
        %v1572 = vunpack.c.l.b16 %v1556
        %v1573 = vunpack.c.l.b16 %v1557
        %v1574 = vunpack.c.l.b16 %v1558
        %v1575 = vunpack.c.l.b16 %v1559
        %v1576 = vunpack.c.l.b16 %v1560
        %v1577 = vunpack.c.l.b16 %v1561
        %v1578 = vunpack.c.l.b16 %v1562
        %v1579 = vunpack.c.l.b16 %v1563
        %v1580 = vpack.c.b16 %v1573, %v1572
        %v1581 = vpack.c.b16 %v1575, %v1574
        %v1582 = vpack.c.b16 %v1577, %v1576
        %v1583 = vpack.c.b16 %v1579, %v1578
        %v1585 = vsel %vm896, %v1580, 0
        %v1588 = vsel %vm896, %v1581, 0
        %v1591 = vsel %vm896, %v1582, 0
        %v1594 = vsel %vm896, %v1583, 0
        %1596 = vmatpush.bf16.msra.mxu0 0
        %1597 = vmatpush.bf16.msra.mxu0 0
        %1598 = vmatpush.bf16.msra.mxu0 0
        %1599 = vmatpush.bf16.msra.mxu0 0
        %1600 = vmatpush.bf16.msra.mxu0 %v891
        %1601 = vmatpush.bf16.msra.mxu0 %v890
        %1602 = vmatpush.bf16.msra.mxu0 %v889
        %1603 = vmatpush.bf16.msra.mxu0 %v888
        %1604 = vmatmul.bf16.gmra.mxu0 %v1585
        %v1605 = vpop.f32.mrf.mxu0
        %v1606 = vadd.f32 0.0, %v1605
        %v1607 = vpop.f32.mrf.mxu0
        %v1608 = vadd.f32 0.0, %v1607
        %1609 = vmatmul.bf16.gmra.mxu0 %v1588
        %v1610 = vpop.f32.mrf.mxu0
        %v1611 = vadd.f32 0.0, %v1610
        %v1612 = vpop.f32.mrf.mxu0
        %v1613 = vadd.f32 0.0, %v1612
        %1614 = vmatmul.bf16.gmra.mxu0 %v1591
        %v1615 = vpop.f32.mrf.mxu0
        %v1616 = vadd.f32 0.0, %v1615
        %v1617 = vpop.f32.mrf.mxu0
        %v1618 = vadd.f32 0.0, %v1617
        %1619 = vmatmul.bf16.gmra.mxu0 %v1594
        %v1620 = vpop.f32.mrf.mxu0
        %v1621 = vadd.f32 0.0, %v1620
        %v1622 = vpop.f32.mrf.mxu0
        %v1623 = vadd.f32 0.0, %v1622
        %1624 = vdwg.mxu0
        %v1625 = vpack.c.bf16 %v1608, %v1606
        %v1626 = vpack.c.bf16 %v1613, %v1611
        %v1627 = vpack.c.bf16 %v1618, %v1616
        %v1628 = vpack.c.bf16 %v1623, %v1621
        %s1629 = scalar_lea.vmem [#allocation7], 256
        %v1630 = vld [vmem:[%s1629] sm:$0xf]
        %v1631 = vld [vmem:[%s1629 + $0x4] sm:$0xf]
        %v1632 = vld [vmem:[%s1629 + $0x8] sm:$0xf]
        %v1633 = vld [vmem:[%s1629 + $0xc] sm:$0xf]
        %v1634 = vld [vmem:[%s1629 + $0x10] sm:$0xf]
        %v1635 = vld [vmem:[%s1629 + $0x14] sm:$0xf]
        %v1636 = vld [vmem:[%s1629 + $0x18] sm:$0xf]
        %v1637 = vld [vmem:[%s1629 + $0x1c] sm:$0xf]
        %v1638 = vld [vmem:[%s1629 + $0x20] sm:$0xf]
        %v1639 = vld [vmem:[%s1629 + $0x24] sm:$0xf]
        %v1640 = vld [vmem:[%s1629 + $0x28] sm:$0xf]
        %v1641 = vld [vmem:[%s1629 + $0x2c] sm:$0xf]
        %v1642 = vld [vmem:[%s1629 + $0x30] sm:$0xf]
        %v1643 = vld [vmem:[%s1629 + $0x34] sm:$0xf]
        %v1644 = vld [vmem:[%s1629 + $0x38] sm:$0xf]
        %v1645 = vld [vmem:[%s1629 + $0x3c] sm:$0xf]
        %v1662 = vunpack.c.l.b16 %v1630
        %v1663 = vunpack.c.l.b16 %v1631
        %v1664 = vunpack.c.l.b16 %v1632
        %v1665 = vunpack.c.l.b16 %v1633
        %v1666 = vunpack.c.l.b16 %v1634
        %v1667 = vunpack.c.l.b16 %v1635
        %v1668 = vunpack.c.l.b16 %v1636
        %v1669 = vunpack.c.l.b16 %v1637
        %v1670 = vunpack.c.l.b16 %v1638
        %v1671 = vunpack.c.l.b16 %v1639
        %v1672 = vunpack.c.l.b16 %v1640
        %v1673 = vunpack.c.l.b16 %v1641
        %v1674 = vunpack.c.l.b16 %v1642
        %v1675 = vunpack.c.l.b16 %v1643
        %v1676 = vunpack.c.l.b16 %v1644
        %v1677 = vunpack.c.l.b16 %v1645
        %v1678 = vpack.c.b16 %v1663, %v1662
        %v1679 = vpack.c.b16 %v1665, %v1664
        %v1680 = vpack.c.b16 %v1667, %v1666
        %v1681 = vpack.c.b16 %v1669, %v1668
        %v1682 = vpack.c.b16 %v1671, %v1670
        %v1683 = vpack.c.b16 %v1673, %v1672
        %v1684 = vpack.c.b16 %v1675, %v1674
        %v1685 = vpack.c.b16 %v1677, %v1676
        %1694 = vmatpush.bf16.msra.mxu0 %v1685
        %1695 = vmatpush.bf16.msra.mxu0 %v1684
        %1696 = vmatpush.bf16.msra.mxu0 %v1683
        %1697 = vmatpush.bf16.msra.mxu0 %v1682
        %1698 = vmatpush.bf16.msra.mxu0 %v1681
        %1699 = vmatpush.bf16.msra.mxu0 %v1680
        %1700 = vmatpush.bf16.msra.mxu0 %v1679
        %1701 = vmatpush.bf16.msra.mxu0 %v1678
        %1702 = vmatmul.bf16.gmra.mxu0 %v1625
        %v1703 = vpop.f32.mrf.mxu0
        %v1704 = vadd.f32 0.0, %v1703
        %v1705 = vpop.f32.mrf.mxu0
        %v1706 = vadd.f32 0.0, %v1705
        %1707 = vmatmul.bf16.gmra.mxu0 %v1626
        %v1708 = vpop.f32.mrf.mxu0
        %v1709 = vadd.f32 0.0, %v1708
        %v1710 = vpop.f32.mrf.mxu0
        %v1711 = vadd.f32 0.0, %v1710
        %1712 = vmatmul.bf16.gmra.mxu0 %v1627
        %v1713 = vpop.f32.mrf.mxu0
        %v1714 = vadd.f32 0.0, %v1713
        %v1715 = vpop.f32.mrf.mxu0
        %v1716 = vadd.f32 0.0, %v1715
        %1717 = vmatmul.bf16.gmra.mxu0 %v1628
        %v1718 = vpop.f32.mrf.mxu0
        %v1719 = vadd.f32 0.0, %v1718
        %v1720 = vpop.f32.mrf.mxu0
        %v1721 = vadd.f32 0.0, %v1720
        %1722 = vdwg.mxu0
        %v1723 = vadd.f32 %v1547, %v1704
        %v1724 = vadd.f32 %v1548, %v1706
        %v1725 = vadd.f32 %v1549, %v1709
        %v1726 = vadd.f32 %v1550, %v1711
        %v1727 = vadd.f32 %v1551, %v1714
        %v1728 = vadd.f32 %v1552, %v1716
        %v1729 = vadd.f32 %v1553, %v1719
        %v1730 = vadd.f32 %v1554, %v1721
        %s1731 = scalar_lea.vmem [#allocation2], 160
        %v1732 = vld [vmem:[%s1731] sm:$0xf]
        %v1733 = vld [vmem:[%s1731 + $0x4] sm:$0xf]
        %v1734 = vld [vmem:[%s1731 + $0x8] sm:$0xf]
        %v1735 = vld [vmem:[%s1731 + $0xc] sm:$0xf]
        %v1736 = vld [vmem:[%s1731 + $0x10] sm:$0xf]
        %v1737 = vld [vmem:[%s1731 + $0x14] sm:$0xf]
        %v1738 = vld [vmem:[%s1731 + $0x18] sm:$0xf]
        %v1739 = vld [vmem:[%s1731 + $0x1c] sm:$0xf]
        %v1748 = vunpack.c.l.b16 %v1732
        %v1749 = vunpack.c.l.b16 %v1733
        %v1750 = vunpack.c.l.b16 %v1734
        %v1751 = vunpack.c.l.b16 %v1735
        %v1752 = vunpack.c.l.b16 %v1736
        %v1753 = vunpack.c.l.b16 %v1737
        %v1754 = vunpack.c.l.b16 %v1738
        %v1755 = vunpack.c.l.b16 %v1739
        %v1756 = vpack.c.b16 %v1749, %v1748
        %v1757 = vpack.c.b16 %v1751, %v1750
        %v1758 = vpack.c.b16 %v1753, %v1752
        %v1759 = vpack.c.b16 %v1755, %v1754
        %v1761 = vsel %vm896, %v1756, 0
        %v1764 = vsel %vm896, %v1757, 0
        %v1767 = vsel %vm896, %v1758, 0
        %v1770 = vsel %vm896, %v1759, 0
        %1772 = vmatpush.bf16.msra.mxu0 0
        %1773 = vmatpush.bf16.msra.mxu0 0
        %1774 = vmatpush.bf16.msra.mxu0 0
        %1775 = vmatpush.bf16.msra.mxu0 0
        %1776 = vmatpush.bf16.msra.mxu0 %v891
        %1777 = vmatpush.bf16.msra.mxu0 %v890
        %1778 = vmatpush.bf16.msra.mxu0 %v889
        %1779 = vmatpush.bf16.msra.mxu0 %v888
        %1780 = vmatmul.bf16.gmra.mxu0 %v1761
        %v1781 = vpop.f32.mrf.mxu0
        %v1782 = vadd.f32 0.0, %v1781
        %v1783 = vpop.f32.mrf.mxu0
        %v1784 = vadd.f32 0.0, %v1783
        %1785 = vmatmul.bf16.gmra.mxu0 %v1764
        %v1786 = vpop.f32.mrf.mxu0
        %v1787 = vadd.f32 0.0, %v1786
        %v1788 = vpop.f32.mrf.mxu0
        %v1789 = vadd.f32 0.0, %v1788
        %1790 = vmatmul.bf16.gmra.mxu0 %v1767
        %v1791 = vpop.f32.mrf.mxu0
        %v1792 = vadd.f32 0.0, %v1791
        %v1793 = vpop.f32.mrf.mxu0
        %v1794 = vadd.f32 0.0, %v1793
        %1795 = vmatmul.bf16.gmra.mxu0 %v1770
        %v1796 = vpop.f32.mrf.mxu0
        %v1797 = vadd.f32 0.0, %v1796
        %v1798 = vpop.f32.mrf.mxu0
        %v1799 = vadd.f32 0.0, %v1798
        %1800 = vdwg.mxu0
        %v1801 = vpack.c.bf16 %v1784, %v1782
        %v1802 = vpack.c.bf16 %v1789, %v1787
        %v1803 = vpack.c.bf16 %v1794, %v1792
        %v1804 = vpack.c.bf16 %v1799, %v1797
        %s1805 = scalar_lea.vmem [#allocation7], 320
        %v1806 = vld [vmem:[%s1805] sm:$0xf]
        %v1807 = vld [vmem:[%s1805 + $0x4] sm:$0xf]
        %v1808 = vld [vmem:[%s1805 + $0x8] sm:$0xf]
        %v1809 = vld [vmem:[%s1805 + $0xc] sm:$0xf]
        %v1810 = vld [vmem:[%s1805 + $0x10] sm:$0xf]
        %v1811 = vld [vmem:[%s1805 + $0x14] sm:$0xf]
        %v1812 = vld [vmem:[%s1805 + $0x18] sm:$0xf]
        %v1813 = vld [vmem:[%s1805 + $0x1c] sm:$0xf]
        %v1814 = vld [vmem:[%s1805 + $0x20] sm:$0xf]
        %v1815 = vld [vmem:[%s1805 + $0x24] sm:$0xf]
        %v1816 = vld [vmem:[%s1805 + $0x28] sm:$0xf]
        %v1817 = vld [vmem:[%s1805 + $0x2c] sm:$0xf]
        %v1818 = vld [vmem:[%s1805 + $0x30] sm:$0xf]
        %v1819 = vld [vmem:[%s1805 + $0x34] sm:$0xf]
        %v1820 = vld [vmem:[%s1805 + $0x38] sm:$0xf]
        %v1821 = vld [vmem:[%s1805 + $0x3c] sm:$0xf]
        %v1838 = vunpack.c.l.b16 %v1806
        %v1839 = vunpack.c.l.b16 %v1807
        %v1840 = vunpack.c.l.b16 %v1808
        %v1841 = vunpack.c.l.b16 %v1809
        %v1842 = vunpack.c.l.b16 %v1810
        %v1843 = vunpack.c.l.b16 %v1811
        %v1844 = vunpack.c.l.b16 %v1812
        %v1845 = vunpack.c.l.b16 %v1813
        %v1846 = vunpack.c.l.b16 %v1814
        %v1847 = vunpack.c.l.b16 %v1815
        %v1848 = vunpack.c.l.b16 %v1816
        %v1849 = vunpack.c.l.b16 %v1817
        %v1850 = vunpack.c.l.b16 %v1818
        %v1851 = vunpack.c.l.b16 %v1819
        %v1852 = vunpack.c.l.b16 %v1820
        %v1853 = vunpack.c.l.b16 %v1821
        %v1854 = vpack.c.b16 %v1839, %v1838
        %v1855 = vpack.c.b16 %v1841, %v1840
        %v1856 = vpack.c.b16 %v1843, %v1842
        %v1857 = vpack.c.b16 %v1845, %v1844
        %v1858 = vpack.c.b16 %v1847, %v1846
        %v1859 = vpack.c.b16 %v1849, %v1848
        %v1860 = vpack.c.b16 %v1851, %v1850
        %v1861 = vpack.c.b16 %v1853, %v1852
        %1870 = vmatpush.bf16.msra.mxu0 %v1861
        %1871 = vmatpush.bf16.msra.mxu0 %v1860
        %1872 = vmatpush.bf16.msra.mxu0 %v1859
        %1873 = vmatpush.bf16.msra.mxu0 %v1858
        %1874 = vmatpush.bf16.msra.mxu0 %v1857
        %1875 = vmatpush.bf16.msra.mxu0 %v1856
        %1876 = vmatpush.bf16.msra.mxu0 %v1855
        %1877 = vmatpush.bf16.msra.mxu0 %v1854
        %1878 = vmatmul.bf16.gmra.mxu0 %v1801
        %v1879 = vpop.f32.mrf.mxu0
        %v1880 = vadd.f32 0.0, %v1879
        %v1881 = vpop.f32.mrf.mxu0
        %v1882 = vadd.f32 0.0, %v1881
        %1883 = vmatmul.bf16.gmra.mxu0 %v1802
        %v1884 = vpop.f32.mrf.mxu0
        %v1885 = vadd.f32 0.0, %v1884
        %v1886 = vpop.f32.mrf.mxu0
        %v1887 = vadd.f32 0.0, %v1886
        %1888 = vmatmul.bf16.gmra.mxu0 %v1803
        %v1889 = vpop.f32.mrf.mxu0
        %v1890 = vadd.f32 0.0, %v1889
        %v1891 = vpop.f32.mrf.mxu0
        %v1892 = vadd.f32 0.0, %v1891
        %1893 = vmatmul.bf16.gmra.mxu0 %v1804
        %v1894 = vpop.f32.mrf.mxu0
        %v1895 = vadd.f32 0.0, %v1894
        %v1896 = vpop.f32.mrf.mxu0
        %v1897 = vadd.f32 0.0, %v1896
        %1898 = vdwg.mxu0
        %v1899 = vadd.f32 %v1723, %v1880
        %v1900 = vadd.f32 %v1724, %v1882
        %v1901 = vadd.f32 %v1725, %v1885
        %v1902 = vadd.f32 %v1726, %v1887
        %v1903 = vadd.f32 %v1727, %v1890
        %v1904 = vadd.f32 %v1728, %v1892
        %v1905 = vadd.f32 %v1729, %v1895
        %v1906 = vadd.f32 %v1730, %v1897
        %s1907 = scalar_lea.vmem [#allocation2], 192
        %v1908 = vld [vmem:[%s1907] sm:$0xf]
        %v1909 = vld [vmem:[%s1907 + $0x4] sm:$0xf]
        %v1910 = vld [vmem:[%s1907 + $0x8] sm:$0xf]
        %v1911 = vld [vmem:[%s1907 + $0xc] sm:$0xf]
        %v1912 = vld [vmem:[%s1907 + $0x10] sm:$0xf]
        %v1913 = vld [vmem:[%s1907 + $0x14] sm:$0xf]
        %v1914 = vld [vmem:[%s1907 + $0x18] sm:$0xf]
        %v1915 = vld [vmem:[%s1907 + $0x1c] sm:$0xf]
        %v1924 = vunpack.c.l.b16 %v1908
        %v1925 = vunpack.c.l.b16 %v1909
        %v1926 = vunpack.c.l.b16 %v1910
        %v1927 = vunpack.c.l.b16 %v1911
        %v1928 = vunpack.c.l.b16 %v1912
        %v1929 = vunpack.c.l.b16 %v1913
        %v1930 = vunpack.c.l.b16 %v1914
        %v1931 = vunpack.c.l.b16 %v1915
        %v1932 = vpack.c.b16 %v1925, %v1924
        %v1933 = vpack.c.b16 %v1927, %v1926
        %v1934 = vpack.c.b16 %v1929, %v1928
        %v1935 = vpack.c.b16 %v1931, %v1930
        %v1937 = vsel %vm896, %v1932, 0
        %v1940 = vsel %vm896, %v1933, 0
        %v1943 = vsel %vm896, %v1934, 0
        %v1946 = vsel %vm896, %v1935, 0
        %1948 = vmatpush.bf16.msra.mxu0 0
        %1949 = vmatpush.bf16.msra.mxu0 0
        %1950 = vmatpush.bf16.msra.mxu0 0
        %1951 = vmatpush.bf16.msra.mxu0 0
        %1952 = vmatpush.bf16.msra.mxu0 %v891
        %1953 = vmatpush.bf16.msra.mxu0 %v890
        %1954 = vmatpush.bf16.msra.mxu0 %v889
        %1955 = vmatpush.bf16.msra.mxu0 %v888
        %1956 = vmatmul.bf16.gmra.mxu0 %v1937
        %v1957 = vpop.f32.mrf.mxu0
        %v1958 = vadd.f32 0.0, %v1957
        %v1959 = vpop.f32.mrf.mxu0
        %v1960 = vadd.f32 0.0, %v1959
        %1961 = vmatmul.bf16.gmra.mxu0 %v1940
        %v1962 = vpop.f32.mrf.mxu0
        %v1963 = vadd.f32 0.0, %v1962
        %v1964 = vpop.f32.mrf.mxu0
        %v1965 = vadd.f32 0.0, %v1964
        %1966 = vmatmul.bf16.gmra.mxu0 %v1943
        %v1967 = vpop.f32.mrf.mxu0
        %v1968 = vadd.f32 0.0, %v1967
        %v1969 = vpop.f32.mrf.mxu0
        %v1970 = vadd.f32 0.0, %v1969
        %1971 = vmatmul.bf16.gmra.mxu0 %v1946
        %v1972 = vpop.f32.mrf.mxu0
        %v1973 = vadd.f32 0.0, %v1972
        %v1974 = vpop.f32.mrf.mxu0
        %v1975 = vadd.f32 0.0, %v1974
        %1976 = vdwg.mxu0
        %v1977 = vpack.c.bf16 %v1960, %v1958
        %v1978 = vpack.c.bf16 %v1965, %v1963
        %v1979 = vpack.c.bf16 %v1970, %v1968
        %v1980 = vpack.c.bf16 %v1975, %v1973
        %s1981 = scalar_lea.vmem [#allocation7], 384
        %v1982 = vld [vmem:[%s1981] sm:$0xf]
        %v1983 = vld [vmem:[%s1981 + $0x4] sm:$0xf]
        %v1984 = vld [vmem:[%s1981 + $0x8] sm:$0xf]
        %v1985 = vld [vmem:[%s1981 + $0xc] sm:$0xf]
        %v1986 = vld [vmem:[%s1981 + $0x10] sm:$0xf]
        %v1987 = vld [vmem:[%s1981 + $0x14] sm:$0xf]
        %v1988 = vld [vmem:[%s1981 + $0x18] sm:$0xf]
        %v1989 = vld [vmem:[%s1981 + $0x1c] sm:$0xf]
        %v1990 = vld [vmem:[%s1981 + $0x20] sm:$0xf]
        %v1991 = vld [vmem:[%s1981 + $0x24] sm:$0xf]
        %v1992 = vld [vmem:[%s1981 + $0x28] sm:$0xf]
        %v1993 = vld [vmem:[%s1981 + $0x2c] sm:$0xf]
        %v1994 = vld [vmem:[%s1981 + $0x30] sm:$0xf]
        %v1995 = vld [vmem:[%s1981 + $0x34] sm:$0xf]
        %v1996 = vld [vmem:[%s1981 + $0x38] sm:$0xf]
        %v1997 = vld [vmem:[%s1981 + $0x3c] sm:$0xf]
        %v2014 = vunpack.c.l.b16 %v1982
        %v2015 = vunpack.c.l.b16 %v1983
        %v2016 = vunpack.c.l.b16 %v1984
        %v2017 = vunpack.c.l.b16 %v1985
        %v2018 = vunpack.c.l.b16 %v1986
        %v2019 = vunpack.c.l.b16 %v1987
        %v2020 = vunpack.c.l.b16 %v1988
        %v2021 = vunpack.c.l.b16 %v1989
        %v2022 = vunpack.c.l.b16 %v1990
        %v2023 = vunpack.c.l.b16 %v1991
        %v2024 = vunpack.c.l.b16 %v1992
        %v2025 = vunpack.c.l.b16 %v1993
        %v2026 = vunpack.c.l.b16 %v1994
        %v2027 = vunpack.c.l.b16 %v1995
        %v2028 = vunpack.c.l.b16 %v1996
        %v2029 = vunpack.c.l.b16 %v1997
        %v2030 = vpack.c.b16 %v2015, %v2014
        %v2031 = vpack.c.b16 %v2017, %v2016
        %v2032 = vpack.c.b16 %v2019, %v2018
        %v2033 = vpack.c.b16 %v2021, %v2020
        %v2034 = vpack.c.b16 %v2023, %v2022
        %v2035 = vpack.c.b16 %v2025, %v2024
        %v2036 = vpack.c.b16 %v2027, %v2026
        %v2037 = vpack.c.b16 %v2029, %v2028
        %2046 = vmatpush.bf16.msra.mxu0 %v2037
        %2047 = vmatpush.bf16.msra.mxu0 %v2036
        %2048 = vmatpush.bf16.msra.mxu0 %v2035
        %2049 = vmatpush.bf16.msra.mxu0 %v2034
        %2050 = vmatpush.bf16.msra.mxu0 %v2033
        %2051 = vmatpush.bf16.msra.mxu0 %v2032
        %2052 = vmatpush.bf16.msra.mxu0 %v2031
        %2053 = vmatpush.bf16.msra.mxu0 %v2030
        %2054 = vmatmul.bf16.gmra.mxu0 %v1977
        %v2055 = vpop.f32.mrf.mxu0
        %v2056 = vadd.f32 0.0, %v2055
        %v2057 = vpop.f32.mrf.mxu0
        %v2058 = vadd.f32 0.0, %v2057
        %2059 = vmatmul.bf16.gmra.mxu0 %v1978
        %v2060 = vpop.f32.mrf.mxu0
        %v2061 = vadd.f32 0.0, %v2060
        %v2062 = vpop.f32.mrf.mxu0
        %v2063 = vadd.f32 0.0, %v2062
        %2064 = vmatmul.bf16.gmra.mxu0 %v1979
        %v2065 = vpop.f32.mrf.mxu0
        %v2066 = vadd.f32 0.0, %v2065
        %v2067 = vpop.f32.mrf.mxu0
        %v2068 = vadd.f32 0.0, %v2067
        %2069 = vmatmul.bf16.gmra.mxu0 %v1980
        %v2070 = vpop.f32.mrf.mxu0
        %v2071 = vadd.f32 0.0, %v2070
        %v2072 = vpop.f32.mrf.mxu0
        %v2073 = vadd.f32 0.0, %v2072
        %2074 = vdwg.mxu0
        %v2075 = vadd.f32 %v1899, %v2056
        %v2076 = vadd.f32 %v1900, %v2058
        %v2077 = vadd.f32 %v1901, %v2061
        %v2078 = vadd.f32 %v1902, %v2063
        %v2079 = vadd.f32 %v1903, %v2066
        %v2080 = vadd.f32 %v1904, %v2068
        %v2081 = vadd.f32 %v1905, %v2071
        %v2082 = vadd.f32 %v1906, %v2073
        %s2083 = scalar_lea.vmem [#allocation2], 224
        %v2084 = vld [vmem:[%s2083] sm:$0xf]
        %v2085 = vld [vmem:[%s2083 + $0x4] sm:$0xf]
        %v2086 = vld [vmem:[%s2083 + $0x8] sm:$0xf]
        %v2087 = vld [vmem:[%s2083 + $0xc] sm:$0xf]
        %v2088 = vld [vmem:[%s2083 + $0x10] sm:$0xf]
        %v2089 = vld [vmem:[%s2083 + $0x14] sm:$0xf]
        %v2090 = vld [vmem:[%s2083 + $0x18] sm:$0xf]
        %v2091 = vld [vmem:[%s2083 + $0x1c] sm:$0xf]
        %v2100 = vunpack.c.l.b16 %v2084
        %v2101 = vunpack.c.l.b16 %v2085
        %v2102 = vunpack.c.l.b16 %v2086
        %v2103 = vunpack.c.l.b16 %v2087
        %v2104 = vunpack.c.l.b16 %v2088
        %v2105 = vunpack.c.l.b16 %v2089
        %v2106 = vunpack.c.l.b16 %v2090
        %v2107 = vunpack.c.l.b16 %v2091
        %v2108 = vpack.c.b16 %v2101, %v2100
        %v2109 = vpack.c.b16 %v2103, %v2102
        %v2110 = vpack.c.b16 %v2105, %v2104
        %v2111 = vpack.c.b16 %v2107, %v2106
        %v2113 = vsel %vm896, %v2108, 0
        %v2116 = vsel %vm896, %v2109, 0
        %v2119 = vsel %vm896, %v2110, 0
        %v2122 = vsel %vm896, %v2111, 0
        %2124 = vmatpush.bf16.msra.mxu0 0
        %2125 = vmatpush.bf16.msra.mxu0 0
        %2126 = vmatpush.bf16.msra.mxu0 0
        %2127 = vmatpush.bf16.msra.mxu0 0
        %2128 = vmatpush.bf16.msra.mxu0 %v891
        %2129 = vmatpush.bf16.msra.mxu0 %v890
        %2130 = vmatpush.bf16.msra.mxu0 %v889
        %2131 = vmatpush.bf16.msra.mxu0 %v888
        %2132 = vmatmul.bf16.gmra.mxu0 %v2113
        %v2133 = vpop.f32.mrf.mxu0
        %v2134 = vadd.f32 0.0, %v2133
        %v2135 = vpop.f32.mrf.mxu0
        %v2136 = vadd.f32 0.0, %v2135
        %2137 = vmatmul.bf16.gmra.mxu0 %v2116
        %v2138 = vpop.f32.mrf.mxu0
        %v2139 = vadd.f32 0.0, %v2138
        %v2140 = vpop.f32.mrf.mxu0
        %v2141 = vadd.f32 0.0, %v2140
        %2142 = vmatmul.bf16.gmra.mxu0 %v2119
        %v2143 = vpop.f32.mrf.mxu0
        %v2144 = vadd.f32 0.0, %v2143
        %v2145 = vpop.f32.mrf.mxu0
        %v2146 = vadd.f32 0.0, %v2145
        %2147 = vmatmul.bf16.gmra.mxu0 %v2122
        %v2148 = vpop.f32.mrf.mxu0
        %v2149 = vadd.f32 0.0, %v2148
        %v2150 = vpop.f32.mrf.mxu0
        %v2151 = vadd.f32 0.0, %v2150
        %2152 = vdwg.mxu0
        %v2153 = vpack.c.bf16 %v2136, %v2134
        %v2154 = vpack.c.bf16 %v2141, %v2139
        %v2155 = vpack.c.bf16 %v2146, %v2144
        %v2156 = vpack.c.bf16 %v2151, %v2149
        %s2157 = scalar_lea.vmem [#allocation7], 448
        %v2158 = vld [vmem:[%s2157] sm:$0xf]
        %v2159 = vld [vmem:[%s2157 + $0x4] sm:$0xf]
        %v2160 = vld [vmem:[%s2157 + $0x8] sm:$0xf]
        %v2161 = vld [vmem:[%s2157 + $0xc] sm:$0xf]
        %v2162 = vld [vmem:[%s2157 + $0x10] sm:$0xf]
        %v2163 = vld [vmem:[%s2157 + $0x14] sm:$0xf]
        %v2164 = vld [vmem:[%s2157 + $0x18] sm:$0xf]
        %v2165 = vld [vmem:[%s2157 + $0x1c] sm:$0xf]
        %v2166 = vld [vmem:[%s2157 + $0x20] sm:$0xf]
        %v2167 = vld [vmem:[%s2157 + $0x24] sm:$0xf]
        %v2168 = vld [vmem:[%s2157 + $0x28] sm:$0xf]
        %v2169 = vld [vmem:[%s2157 + $0x2c] sm:$0xf]
        %v2170 = vld [vmem:[%s2157 + $0x30] sm:$0xf]
        %v2171 = vld [vmem:[%s2157 + $0x34] sm:$0xf]
        %v2172 = vld [vmem:[%s2157 + $0x38] sm:$0xf]
        %v2173 = vld [vmem:[%s2157 + $0x3c] sm:$0xf]
        %v2190 = vunpack.c.l.b16 %v2158
        %v2191 = vunpack.c.l.b16 %v2159
        %v2192 = vunpack.c.l.b16 %v2160
        %v2193 = vunpack.c.l.b16 %v2161
        %v2194 = vunpack.c.l.b16 %v2162
        %v2195 = vunpack.c.l.b16 %v2163
        %v2196 = vunpack.c.l.b16 %v2164
        %v2197 = vunpack.c.l.b16 %v2165
        %v2198 = vunpack.c.l.b16 %v2166
        %v2199 = vunpack.c.l.b16 %v2167
        %v2200 = vunpack.c.l.b16 %v2168
        %v2201 = vunpack.c.l.b16 %v2169
        %v2202 = vunpack.c.l.b16 %v2170
        %v2203 = vunpack.c.l.b16 %v2171
        %v2204 = vunpack.c.l.b16 %v2172
        %v2205 = vunpack.c.l.b16 %v2173
        %v2206 = vpack.c.b16 %v2191, %v2190
        %v2207 = vpack.c.b16 %v2193, %v2192
        %v2208 = vpack.c.b16 %v2195, %v2194
        %v2209 = vpack.c.b16 %v2197, %v2196
        %v2210 = vpack.c.b16 %v2199, %v2198
        %v2211 = vpack.c.b16 %v2201, %v2200
        %v2212 = vpack.c.b16 %v2203, %v2202
        %v2213 = vpack.c.b16 %v2205, %v2204
        %2222 = vmatpush.bf16.msra.mxu0 %v2213
        %2223 = vmatpush.bf16.msra.mxu0 %v2212
        %2224 = vmatpush.bf16.msra.mxu0 %v2211
        %2225 = vmatpush.bf16.msra.mxu0 %v2210
        %2226 = vmatpush.bf16.msra.mxu0 %v2209
        %2227 = vmatpush.bf16.msra.mxu0 %v2208
        %2228 = vmatpush.bf16.msra.mxu0 %v2207
        %2229 = vmatpush.bf16.msra.mxu0 %v2206
        %2230 = vmatmul.bf16.gmra.mxu0 %v2153
        %v2231 = vpop.f32.mrf.mxu0
        %v2232 = vadd.f32 0.0, %v2231
        %v2233 = vpop.f32.mrf.mxu0
        %v2234 = vadd.f32 0.0, %v2233
        %2235 = vmatmul.bf16.gmra.mxu0 %v2154
        %v2236 = vpop.f32.mrf.mxu0
        %v2237 = vadd.f32 0.0, %v2236
        %v2238 = vpop.f32.mrf.mxu0
        %v2239 = vadd.f32 0.0, %v2238
        %2240 = vmatmul.bf16.gmra.mxu0 %v2155
        %v2241 = vpop.f32.mrf.mxu0
        %v2242 = vadd.f32 0.0, %v2241
        %v2243 = vpop.f32.mrf.mxu0
        %v2244 = vadd.f32 0.0, %v2243
        %2245 = vmatmul.bf16.gmra.mxu0 %v2156
        %v2246 = vpop.f32.mrf.mxu0
        %v2247 = vadd.f32 0.0, %v2246
        %v2248 = vpop.f32.mrf.mxu0
        %v2249 = vadd.f32 0.0, %v2248
        %2250 = vdwg.mxu0
        %v2251 = vadd.f32 %v2075, %v2232
        %v2252 = vadd.f32 %v2076, %v2234
        %v2253 = vadd.f32 %v2077, %v2237
        %v2254 = vadd.f32 %v2078, %v2239
        %v2255 = vadd.f32 %v2079, %v2242
        %v2256 = vadd.f32 %v2080, %v2244
        %v2257 = vadd.f32 %v2081, %v2247
        %v2258 = vadd.f32 %v2082, %v2249
        %s2259 = scalar_lea.vmem [#allocation2], 256
        %v2260 = vld [vmem:[%s2259] sm:$0xf]
        %v2261 = vld [vmem:[%s2259 + $0x4] sm:$0xf]
        %v2262 = vld [vmem:[%s2259 + $0x8] sm:$0xf]
        %v2263 = vld [vmem:[%s2259 + $0xc] sm:$0xf]
        %v2264 = vld [vmem:[%s2259 + $0x10] sm:$0xf]
        %v2265 = vld [vmem:[%s2259 + $0x14] sm:$0xf]
        %v2266 = vld [vmem:[%s2259 + $0x18] sm:$0xf]
        %v2267 = vld [vmem:[%s2259 + $0x1c] sm:$0xf]
        %v2276 = vunpack.c.l.b16 %v2260
        %v2277 = vunpack.c.l.b16 %v2261
        %v2278 = vunpack.c.l.b16 %v2262
        %v2279 = vunpack.c.l.b16 %v2263
        %v2280 = vunpack.c.l.b16 %v2264
        %v2281 = vunpack.c.l.b16 %v2265
        %v2282 = vunpack.c.l.b16 %v2266
        %v2283 = vunpack.c.l.b16 %v2267
        %v2284 = vpack.c.b16 %v2277, %v2276
        %v2285 = vpack.c.b16 %v2279, %v2278
        %v2286 = vpack.c.b16 %v2281, %v2280
        %v2287 = vpack.c.b16 %v2283, %v2282
        %v2289 = vsel %vm896, %v2284, 0
        %v2292 = vsel %vm896, %v2285, 0
        %v2295 = vsel %vm896, %v2286, 0
        %v2298 = vsel %vm896, %v2287, 0
        %2300 = vmatpush.bf16.msra.mxu0 0
        %2301 = vmatpush.bf16.msra.mxu0 0
        %2302 = vmatpush.bf16.msra.mxu0 0
        %2303 = vmatpush.bf16.msra.mxu0 0
        %2304 = vmatpush.bf16.msra.mxu0 %v891
        %2305 = vmatpush.bf16.msra.mxu0 %v890
        %2306 = vmatpush.bf16.msra.mxu0 %v889
        %2307 = vmatpush.bf16.msra.mxu0 %v888
        %2308 = vmatmul.bf16.gmra.mxu0 %v2289
        %v2309 = vpop.f32.mrf.mxu0
        %v2310 = vadd.f32 0.0, %v2309
        %v2311 = vpop.f32.mrf.mxu0
        %v2312 = vadd.f32 0.0, %v2311
        %2313 = vmatmul.bf16.gmra.mxu0 %v2292
        %v2314 = vpop.f32.mrf.mxu0
        %v2315 = vadd.f32 0.0, %v2314
        %v2316 = vpop.f32.mrf.mxu0
        %v2317 = vadd.f32 0.0, %v2316
        %2318 = vmatmul.bf16.gmra.mxu0 %v2295
        %v2319 = vpop.f32.mrf.mxu0
        %v2320 = vadd.f32 0.0, %v2319
        %v2321 = vpop.f32.mrf.mxu0
        %v2322 = vadd.f32 0.0, %v2321
        %2323 = vmatmul.bf16.gmra.mxu0 %v2298
        %v2324 = vpop.f32.mrf.mxu0
        %v2325 = vadd.f32 0.0, %v2324
        %v2326 = vpop.f32.mrf.mxu0
        %v2327 = vadd.f32 0.0, %v2326
        %2328 = vdwg.mxu0
        %v2329 = vpack.c.bf16 %v2312, %v2310
        %v2330 = vpack.c.bf16 %v2317, %v2315
        %v2331 = vpack.c.bf16 %v2322, %v2320
        %v2332 = vpack.c.bf16 %v2327, %v2325
        %s2333 = scalar_lea.vmem [#allocation7], 512
        %v2334 = vld [vmem:[%s2333] sm:$0xf]
        %v2335 = vld [vmem:[%s2333 + $0x4] sm:$0xf]
        %v2336 = vld [vmem:[%s2333 + $0x8] sm:$0xf]
        %v2337 = vld [vmem:[%s2333 + $0xc] sm:$0xf]
        %v2338 = vld [vmem:[%s2333 + $0x10] sm:$0xf]
        %v2339 = vld [vmem:[%s2333 + $0x14] sm:$0xf]
        %v2340 = vld [vmem:[%s2333 + $0x18] sm:$0xf]
        %v2341 = vld [vmem:[%s2333 + $0x1c] sm:$0xf]
        %v2342 = vld [vmem:[%s2333 + $0x20] sm:$0xf]
        %v2343 = vld [vmem:[%s2333 + $0x24] sm:$0xf]
        %v2344 = vld [vmem:[%s2333 + $0x28] sm:$0xf]
        %v2345 = vld [vmem:[%s2333 + $0x2c] sm:$0xf]
        %v2346 = vld [vmem:[%s2333 + $0x30] sm:$0xf]
        %v2347 = vld [vmem:[%s2333 + $0x34] sm:$0xf]
        %v2348 = vld [vmem:[%s2333 + $0x38] sm:$0xf]
        %v2349 = vld [vmem:[%s2333 + $0x3c] sm:$0xf]
        %v2366 = vunpack.c.l.b16 %v2334
        %v2367 = vunpack.c.l.b16 %v2335
        %v2368 = vunpack.c.l.b16 %v2336
        %v2369 = vunpack.c.l.b16 %v2337
        %v2370 = vunpack.c.l.b16 %v2338
        %v2371 = vunpack.c.l.b16 %v2339
        %v2372 = vunpack.c.l.b16 %v2340
        %v2373 = vunpack.c.l.b16 %v2341
        %v2374 = vunpack.c.l.b16 %v2342
        %v2375 = vunpack.c.l.b16 %v2343
        %v2376 = vunpack.c.l.b16 %v2344
        %v2377 = vunpack.c.l.b16 %v2345
        %v2378 = vunpack.c.l.b16 %v2346
        %v2379 = vunpack.c.l.b16 %v2347
        %v2380 = vunpack.c.l.b16 %v2348
        %v2381 = vunpack.c.l.b16 %v2349
        %v2382 = vpack.c.b16 %v2367, %v2366
        %v2383 = vpack.c.b16 %v2369, %v2368
        %v2384 = vpack.c.b16 %v2371, %v2370
        %v2385 = vpack.c.b16 %v2373, %v2372
        %v2386 = vpack.c.b16 %v2375, %v2374
        %v2387 = vpack.c.b16 %v2377, %v2376
        %v2388 = vpack.c.b16 %v2379, %v2378
        %v2389 = vpack.c.b16 %v2381, %v2380
        %2398 = vmatpush.bf16.msra.mxu0 %v2389
        %2399 = vmatpush.bf16.msra.mxu0 %v2388
        %2400 = vmatpush.bf16.msra.mxu0 %v2387
        %2401 = vmatpush.bf16.msra.mxu0 %v2386
        %2402 = vmatpush.bf16.msra.mxu0 %v2385
        %2403 = vmatpush.bf16.msra.mxu0 %v2384
        %2404 = vmatpush.bf16.msra.mxu0 %v2383
        %2405 = vmatpush.bf16.msra.mxu0 %v2382
        %2406 = vmatmul.bf16.gmra.mxu0 %v2329
        %v2407 = vpop.f32.mrf.mxu0
        %v2408 = vadd.f32 0.0, %v2407
        %v2409 = vpop.f32.mrf.mxu0
        %v2410 = vadd.f32 0.0, %v2409
        %2411 = vmatmul.bf16.gmra.mxu0 %v2330
        %v2412 = vpop.f32.mrf.mxu0
        %v2413 = vadd.f32 0.0, %v2412
        %v2414 = vpop.f32.mrf.mxu0
        %v2415 = vadd.f32 0.0, %v2414
        %2416 = vmatmul.bf16.gmra.mxu0 %v2331
        %v2417 = vpop.f32.mrf.mxu0
        %v2418 = vadd.f32 0.0, %v2417
        %v2419 = vpop.f32.mrf.mxu0
        %v2420 = vadd.f32 0.0, %v2419
        %2421 = vmatmul.bf16.gmra.mxu0 %v2332
        %v2422 = vpop.f32.mrf.mxu0
        %v2423 = vadd.f32 0.0, %v2422
        %v2424 = vpop.f32.mrf.mxu0
        %v2425 = vadd.f32 0.0, %v2424
        %2426 = vdwg.mxu0
        %v2427 = vadd.f32 %v2251, %v2408
        %v2428 = vadd.f32 %v2252, %v2410
        %v2429 = vadd.f32 %v2253, %v2413
        %v2430 = vadd.f32 %v2254, %v2415
        %v2431 = vadd.f32 %v2255, %v2418
        %v2432 = vadd.f32 %v2256, %v2420
        %v2433 = vadd.f32 %v2257, %v2423
        %v2434 = vadd.f32 %v2258, %v2425
        %v2435 = vld [vmem:[#allocation9] sm:$0x1]
        %v2437 = vperm.slane %v2435, 0
        %v2439 = vadd.f32 %v2427, %v2437
        %v2440 = vadd.f32 %v2428, %v2437
        %v2441 = vadd.f32 %v2429, %v2437
        %v2442 = vadd.f32 %v2430, %v2437
        %v2443 = vadd.f32 %v2431, %v2437
        %v2444 = vadd.f32 %v2432, %v2437
        %v2445 = vadd.f32 %v2433, %v2437
        %v2446 = vadd.f32 %v2434, %v2437
        %v2447 = vmax.f32 %v2439, 0.0
        %v2448 = vmax.f32 %v2440, 0.0
        %v2449 = vmax.f32 %v2441, 0.0
        %v2450 = vmax.f32 %v2442, 0.0
        %v2451 = vmax.f32 %v2443, 0.0
        %v2452 = vmax.f32 %v2444, 0.0
        %v2453 = vmax.f32 %v2445, 0.0
        %v2454 = vmax.f32 %v2446, 0.0
        %v2455 = vpack.c.bf16 %v2448, %v2447
        %v2456 = vpack.c.bf16 %v2450, %v2449
        %v2457 = vpack.c.bf16 %v2452, %v2451
        %v2458 = vpack.c.bf16 %v2454, %v2453
        %v2459 = vld [vmem:[#allocation16] sm:$0xf]
        %v2460 = vld [vmem:[#allocation16 + $0x4] sm:$0xf]
        %v2461 = vld [vmem:[#allocation16 + $0x8] sm:$0xf]
        %v2462 = vld [vmem:[#allocation16 + $0xc] sm:$0xf]
        %v2463 = vld [vmem:[#allocation16 + $0x10] sm:$0xf]
        %v2464 = vld [vmem:[#allocation16 + $0x14] sm:$0xf]
        %v2465 = vld [vmem:[#allocation16 + $0x18] sm:$0xf]
        %v2466 = vld [vmem:[#allocation16 + $0x1c] sm:$0xf]
        %v2467 = vld [vmem:[#allocation16 + $0x20] sm:$0xf]
        %v2468 = vld [vmem:[#allocation16 + $0x24] sm:$0xf]
        %v2469 = vld [vmem:[#allocation16 + $0x28] sm:$0xf]
        %v2470 = vld [vmem:[#allocation16 + $0x2c] sm:$0xf]
        %v2471 = vld [vmem:[#allocation16 + $0x30] sm:$0xf]
        %v2472 = vld [vmem:[#allocation16 + $0x34] sm:$0xf]
        %v2473 = vld [vmem:[#allocation16 + $0x38] sm:$0xf]
        %v2474 = vld [vmem:[#allocation16 + $0x3c] sm:$0xf]
        %v2475 = vld [vmem:[#allocation18] sm:$0x1]
        %v2477 = vperm.slane %v2475, 0
        %v2495 = vunpack.c.l.b16 %v2459
        %v2496 = vunpack.c.l.b16 %v2460
        %v2497 = vunpack.c.l.b16 %v2461
        %v2498 = vunpack.c.l.b16 %v2462
        %v2499 = vunpack.c.l.b16 %v2463
        %v2500 = vunpack.c.l.b16 %v2464
        %v2501 = vunpack.c.l.b16 %v2465
        %v2502 = vunpack.c.l.b16 %v2466
        %v2503 = vunpack.c.l.b16 %v2467
        %v2504 = vunpack.c.l.b16 %v2468
        %v2505 = vunpack.c.l.b16 %v2469
        %v2506 = vunpack.c.l.b16 %v2470
        %v2507 = vunpack.c.l.b16 %v2471
        %v2508 = vunpack.c.l.b16 %v2472
        %v2509 = vunpack.c.l.b16 %v2473
        %v2510 = vunpack.c.l.b16 %v2474
        %v2511 = vpack.c.b16 %v2496, %v2495
        %v2512 = vpack.c.b16 %v2498, %v2497
        %v2513 = vpack.c.b16 %v2500, %v2499
        %v2514 = vpack.c.b16 %v2502, %v2501
        %v2515 = vpack.c.b16 %v2504, %v2503
        %v2516 = vpack.c.b16 %v2506, %v2505
        %v2517 = vpack.c.b16 %v2508, %v2507
        %v2518 = vpack.c.b16 %v2510, %v2509
        %2527 = vmatpush.bf16.msra.mxu0 %v2518
        %2528 = vmatpush.bf16.msra.mxu0 %v2517
        %2529 = vmatpush.bf16.msra.mxu0 %v2516
        %2530 = vmatpush.bf16.msra.mxu0 %v2515
        %2531 = vmatpush.bf16.msra.mxu0 %v2514
        %2532 = vmatpush.bf16.msra.mxu0 %v2513
        %2533 = vmatpush.bf16.msra.mxu0 %v2512
        %2534 = vmatpush.bf16.msra.mxu0 %v2511
        %2535 = vmatmul.bf16.gmra.mxu0 %v2455
        %v2536 = vpop.f32.mrf.mxu0
        %v2537 = vadd.f32 %v2477, %v2536
        %v2538 = vpop.f32.mrf.mxu0
        %v2539 = vadd.f32 %v2477, %v2538
        %2540 = vmatmul.bf16.gmra.mxu0 %v2456
        %v2541 = vpop.f32.mrf.mxu0
        %v2542 = vadd.f32 %v2477, %v2541
        %v2543 = vpop.f32.mrf.mxu0
        %v2544 = vadd.f32 %v2477, %v2543
        %2545 = vmatmul.bf16.gmra.mxu0 %v2457
        %v2546 = vpop.f32.mrf.mxu0
        %v2547 = vadd.f32 %v2477, %v2546
        %v2548 = vpop.f32.mrf.mxu0
        %v2549 = vadd.f32 %v2477, %v2548
        %2550 = vmatmul.bf16.gmra.mxu0 %v2458
        %v2551 = vpop.f32.mrf.mxu0
        %v2552 = vadd.f32 %v2477, %v2551
        %v2553 = vpop.f32.mrf.mxu0
        %v2554 = vadd.f32 %v2477, %v2553
        %2555 = vdwg.mxu0
        %2556 = vst [vmem:[%s825] sm:$0xff] %v2537
        %2557 = vst [vmem:[%s825 + $0x8] sm:$0xff] %v2539
        %2558 = vst [vmem:[%s825 + $0x10] sm:$0xff] %v2542
        %2559 = vst [vmem:[%s825 + $0x18] sm:$0xff] %v2544
        %2560 = vst [vmem:[%s825 + $0x20] sm:$0xff] %v2547
        %2561 = vst [vmem:[%s825 + $0x28] sm:$0xff] %v2549
        %2562 = vst [vmem:[%s825 + $0x30] sm:$0xff] %v2552
        %2563 = vst [vmem:[%s825 + $0x38] sm:$0xff] %v2554
        %v2564 = vld [vmem:[#allocation4] sm:$0xf]
        %v2565 = vld [vmem:[#allocation4 + $0x4] sm:$0xf]
        %v2568 = vunpack.c.l.b16 %v2564
        %v2569 = vunpack.c.l.b16 %v2565
        %v2570 = vpack.c.b16 %v2569, %v2568
        %v2572 = vsel %vm896, %v2570, 0
        %2574 = vmatpush.bf16.msra.mxu0 0
        %2575 = vmatpush.bf16.msra.mxu0 0
        %2576 = vmatpush.bf16.msra.mxu0 0
        %2577 = vmatpush.bf16.msra.mxu0 0
        %2578 = vmatpush.bf16.msra.mxu0 %v2458
        %2579 = vmatpush.bf16.msra.mxu0 %v2457
        %2580 = vmatpush.bf16.msra.mxu0 %v2456
        %2581 = vmatpush.bf16.msra.mxu0 %v2455
        %2582 = vmatmul.bf16.gmra.mxu0 %v2572
        %v2583 = vpop.f32.mrf.mxu0
        %v2584 = vadd.f32 0.0, %v2583
        %v2585 = vpop.f32.mrf.mxu0
        %v2586 = vadd.f32 0.0, %v2585
        %2587 = vdwg.mxu0
        %v2588 = vpack.c.bf16 %v2586, %v2584
        %v2589 = vld [vmem:[#allocation10] sm:$0xf]
        %v2590 = vld [vmem:[#allocation10 + $0x4] sm:$0xf]
        %v2591 = vld [vmem:[#allocation10 + $0x8] sm:$0xf]
        %v2592 = vld [vmem:[#allocation10 + $0xc] sm:$0xf]
        %v2593 = vld [vmem:[#allocation10 + $0x10] sm:$0xf]
        %v2594 = vld [vmem:[#allocation10 + $0x14] sm:$0xf]
        %v2595 = vld [vmem:[#allocation10 + $0x18] sm:$0xf]
        %v2596 = vld [vmem:[#allocation10 + $0x1c] sm:$0xf]
        %v2597 = vld [vmem:[#allocation10 + $0x20] sm:$0xf]
        %v2598 = vld [vmem:[#allocation10 + $0x24] sm:$0xf]
        %v2599 = vld [vmem:[#allocation10 + $0x28] sm:$0xf]
        %v2600 = vld [vmem:[#allocation10 + $0x2c] sm:$0xf]
        %v2601 = vld [vmem:[#allocation10 + $0x30] sm:$0xf]
        %v2602 = vld [vmem:[#allocation10 + $0x34] sm:$0xf]
        %v2603 = vld [vmem:[#allocation10 + $0x38] sm:$0xf]
        %v2604 = vld [vmem:[#allocation10 + $0x3c] sm:$0xf]
        %s2605 = scalar_lea.vmem [#allocation4], 8
        %v2606 = vld [vmem:[%s2605] sm:$0xf]
        %v2607 = vld [vmem:[%s2605 + $0x4] sm:$0xf]
        %v2610 = vunpack.c.l.b16 %v2606
        %v2611 = vunpack.c.l.b16 %v2607
        %v2612 = vpack.c.b16 %v2611, %v2610
        %v2614 = vsel %vm896, %v2612, 0
        %2616 = vmatpush.bf16.msra.mxu0 0
        %2617 = vmatpush.bf16.msra.mxu0 0
        %2618 = vmatpush.bf16.msra.mxu0 0
        %2619 = vmatpush.bf16.msra.mxu0 0
        %2620 = vmatpush.bf16.msra.mxu0 %v2458
        %2621 = vmatpush.bf16.msra.mxu0 %v2457
        %2622 = vmatpush.bf16.msra.mxu0 %v2456
        %2623 = vmatpush.bf16.msra.mxu0 %v2455
        %2624 = vmatmul.bf16.gmra.mxu0 %v2614
        %v2625 = vpop.f32.mrf.mxu0
        %v2626 = vadd.f32 0.0, %v2625
        %v2627 = vpop.f32.mrf.mxu0
        %v2628 = vadd.f32 0.0, %v2627
        %2629 = vdwg.mxu0
        %v2630 = vpack.c.bf16 %v2628, %v2626
        %s2631 = scalar_lea.vmem [#allocation10], 64
        %v2632 = vld [vmem:[%s2631] sm:$0xf]
        %v2633 = vld [vmem:[%s2631 + $0x4] sm:$0xf]
        %v2634 = vld [vmem:[%s2631 + $0x8] sm:$0xf]
        %v2635 = vld [vmem:[%s2631 + $0xc] sm:$0xf]
        %v2636 = vld [vmem:[%s2631 + $0x10] sm:$0xf]
        %v2637 = vld [vmem:[%s2631 + $0x14] sm:$0xf]
        %v2638 = vld [vmem:[%s2631 + $0x18] sm:$0xf]
        %v2639 = vld [vmem:[%s2631 + $0x1c] sm:$0xf]
        %v2640 = vld [vmem:[%s2631 + $0x20] sm:$0xf]
        %v2641 = vld [vmem:[%s2631 + $0x24] sm:$0xf]
        %v2642 = vld [vmem:[%s2631 + $0x28] sm:$0xf]
        %v2643 = vld [vmem:[%s2631 + $0x2c] sm:$0xf]
        %v2644 = vld [vmem:[%s2631 + $0x30] sm:$0xf]
        %v2645 = vld [vmem:[%s2631 + $0x34] sm:$0xf]
        %v2646 = vld [vmem:[%s2631 + $0x38] sm:$0xf]
        %v2647 = vld [vmem:[%s2631 + $0x3c] sm:$0xf]
        %v2664 = vunpack.c.l.b16 %v2632
        %v2665 = vunpack.c.l.b16 %v2633
        %v2666 = vunpack.c.l.b16 %v2634
        %v2667 = vunpack.c.l.b16 %v2635
        %v2668 = vunpack.c.l.b16 %v2636
        %v2669 = vunpack.c.l.b16 %v2637
        %v2670 = vunpack.c.l.b16 %v2638
        %v2671 = vunpack.c.l.b16 %v2639
        %v2672 = vunpack.c.l.b16 %v2640
        %v2673 = vunpack.c.l.b16 %v2641
        %v2674 = vunpack.c.l.b16 %v2642
        %v2675 = vunpack.c.l.b16 %v2643
        %v2676 = vunpack.c.l.b16 %v2644
        %v2677 = vunpack.c.l.b16 %v2645
        %v2678 = vunpack.c.l.b16 %v2646
        %v2679 = vunpack.c.l.b16 %v2647
        %v2680 = vpack.c.b16 %v2665, %v2664
        %v2681 = vpack.c.b16 %v2667, %v2666
        %v2682 = vpack.c.b16 %v2669, %v2668
        %v2683 = vpack.c.b16 %v2671, %v2670
        %v2684 = vpack.c.b16 %v2673, %v2672
        %v2685 = vpack.c.b16 %v2675, %v2674
        %v2686 = vpack.c.b16 %v2677, %v2676
        %v2687 = vpack.c.b16 %v2679, %v2678
        %2696 = vmatpush.bf16.msra.mxu0 %v2687
        %2697 = vmatpush.bf16.msra.mxu0 %v2686
        %2698 = vmatpush.bf16.msra.mxu0 %v2685
        %2699 = vmatpush.bf16.msra.mxu0 %v2684
        %2700 = vmatpush.bf16.msra.mxu0 %v2683
        %2701 = vmatpush.bf16.msra.mxu0 %v2682
        %2702 = vmatpush.bf16.msra.mxu0 %v2681
        %2703 = vmatpush.bf16.msra.mxu0 %v2680
        %2704 = vmatmul.bf16.gmra.mxu0 %v2630
        %v2705 = vpop.f32.mrf.mxu0
        %v2706 = vadd.f32 0.0, %v2705
        %v2707 = vpop.f32.mrf.mxu0
        %v2708 = vadd.f32 0.0, %v2707
        %2709 = vdwg.mxu0
        %v2726 = vunpack.c.l.b16 %v2589
        %v2727 = vunpack.c.l.b16 %v2590
        %v2728 = vunpack.c.l.b16 %v2591
        %v2729 = vunpack.c.l.b16 %v2592
        %v2730 = vunpack.c.l.b16 %v2593
        %v2731 = vunpack.c.l.b16 %v2594
        %v2732 = vunpack.c.l.b16 %v2595
        %v2733 = vunpack.c.l.b16 %v2596
        %v2734 = vunpack.c.l.b16 %v2597
        %v2735 = vunpack.c.l.b16 %v2598
        %v2736 = vunpack.c.l.b16 %v2599
        %v2737 = vunpack.c.l.b16 %v2600
        %v2738 = vunpack.c.l.b16 %v2601
        %v2739 = vunpack.c.l.b16 %v2602
        %v2740 = vunpack.c.l.b16 %v2603
        %v2741 = vunpack.c.l.b16 %v2604
        %v2742 = vpack.c.b16 %v2727, %v2726
        %v2743 = vpack.c.b16 %v2729, %v2728
        %v2744 = vpack.c.b16 %v2731, %v2730
        %v2745 = vpack.c.b16 %v2733, %v2732
        %v2746 = vpack.c.b16 %v2735, %v2734
        %v2747 = vpack.c.b16 %v2737, %v2736
        %v2748 = vpack.c.b16 %v2739, %v2738
        %v2749 = vpack.c.b16 %v2741, %v2740
        %2758 = vmatpush.bf16.msra.mxu0 %v2749
        %2759 = vmatpush.bf16.msra.mxu0 %v2748
        %2760 = vmatpush.bf16.msra.mxu0 %v2747
        %2761 = vmatpush.bf16.msra.mxu0 %v2746
        %2762 = vmatpush.bf16.msra.mxu0 %v2745
        %2763 = vmatpush.bf16.msra.mxu0 %v2744
        %2764 = vmatpush.bf16.msra.mxu0 %v2743
        %2765 = vmatpush.bf16.msra.mxu0 %v2742
        %2766 = vmatmul.bf16.gmra.mxu0 %v2588
        %v2767 = vpop.f32.mrf.mxu0
        %v2768 = vadd.f32 %v2706, %v2767
        %v2769 = vpop.f32.mrf.mxu0
        %v2770 = vadd.f32 %v2708, %v2769
        %2771 = vdwg.mxu0
        %s2772 = scalar_lea.vmem [#allocation4], 16
        %v2773 = vld [vmem:[%s2772] sm:$0xf]
        %v2774 = vld [vmem:[%s2772 + $0x4] sm:$0xf]
        %v2777 = vunpack.c.l.b16 %v2773
        %v2778 = vunpack.c.l.b16 %v2774
        %v2779 = vpack.c.b16 %v2778, %v2777
        %v2781 = vsel %vm896, %v2779, 0
        %2783 = vmatpush.bf16.msra.mxu0 0
        %2784 = vmatpush.bf16.msra.mxu0 0
        %2785 = vmatpush.bf16.msra.mxu0 0
        %2786 = vmatpush.bf16.msra.mxu0 0
        %2787 = vmatpush.bf16.msra.mxu0 %v2458
        %2788 = vmatpush.bf16.msra.mxu0 %v2457
        %2789 = vmatpush.bf16.msra.mxu0 %v2456
        %2790 = vmatpush.bf16.msra.mxu0 %v2455
        %2791 = vmatmul.bf16.gmra.mxu0 %v2781
        %v2792 = vpop.f32.mrf.mxu0
        %v2793 = vadd.f32 0.0, %v2792
        %v2794 = vpop.f32.mrf.mxu0
        %v2795 = vadd.f32 0.0, %v2794
        %2796 = vdwg.mxu0
        %v2797 = vpack.c.bf16 %v2795, %v2793
        %s2798 = scalar_lea.vmem [#allocation10], 128
        %v2799 = vld [vmem:[%s2798] sm:$0xf]
        %v2800 = vld [vmem:[%s2798 + $0x4] sm:$0xf]
        %v2801 = vld [vmem:[%s2798 + $0x8] sm:$0xf]
        %v2802 = vld [vmem:[%s2798 + $0xc] sm:$0xf]
        %v2803 = vld [vmem:[%s2798 + $0x10] sm:$0xf]
        %v2804 = vld [vmem:[%s2798 + $0x14] sm:$0xf]
        %v2805 = vld [vmem:[%s2798 + $0x18] sm:$0xf]
        %v2806 = vld [vmem:[%s2798 + $0x1c] sm:$0xf]
        %v2807 = vld [vmem:[%s2798 + $0x20] sm:$0xf]
        %v2808 = vld [vmem:[%s2798 + $0x24] sm:$0xf]
        %v2809 = vld [vmem:[%s2798 + $0x28] sm:$0xf]
        %v2810 = vld [vmem:[%s2798 + $0x2c] sm:$0xf]
        %v2811 = vld [vmem:[%s2798 + $0x30] sm:$0xf]
        %v2812 = vld [vmem:[%s2798 + $0x34] sm:$0xf]
        %v2813 = vld [vmem:[%s2798 + $0x38] sm:$0xf]
        %v2814 = vld [vmem:[%s2798 + $0x3c] sm:$0xf]
        %v2831 = vunpack.c.l.b16 %v2799
        %v2832 = vunpack.c.l.b16 %v2800
        %v2833 = vunpack.c.l.b16 %v2801
        %v2834 = vunpack.c.l.b16 %v2802
        %v2835 = vunpack.c.l.b16 %v2803
        %v2836 = vunpack.c.l.b16 %v2804
        %v2837 = vunpack.c.l.b16 %v2805
        %v2838 = vunpack.c.l.b16 %v2806
        %v2839 = vunpack.c.l.b16 %v2807
        %v2840 = vunpack.c.l.b16 %v2808
        %v2841 = vunpack.c.l.b16 %v2809
        %v2842 = vunpack.c.l.b16 %v2810
        %v2843 = vunpack.c.l.b16 %v2811
        %v2844 = vunpack.c.l.b16 %v2812
        %v2845 = vunpack.c.l.b16 %v2813
        %v2846 = vunpack.c.l.b16 %v2814
        %v2847 = vpack.c.b16 %v2832, %v2831
        %v2848 = vpack.c.b16 %v2834, %v2833
        %v2849 = vpack.c.b16 %v2836, %v2835
        %v2850 = vpack.c.b16 %v2838, %v2837
        %v2851 = vpack.c.b16 %v2840, %v2839
        %v2852 = vpack.c.b16 %v2842, %v2841
        %v2853 = vpack.c.b16 %v2844, %v2843
        %v2854 = vpack.c.b16 %v2846, %v2845
        %2863 = vmatpush.bf16.msra.mxu0 %v2854
        %2864 = vmatpush.bf16.msra.mxu0 %v2853
        %2865 = vmatpush.bf16.msra.mxu0 %v2852
        %2866 = vmatpush.bf16.msra.mxu0 %v2851
        %2867 = vmatpush.bf16.msra.mxu0 %v2850
        %2868 = vmatpush.bf16.msra.mxu0 %v2849
        %2869 = vmatpush.bf16.msra.mxu0 %v2848
        %2870 = vmatpush.bf16.msra.mxu0 %v2847
        %2871 = vmatmul.bf16.gmra.mxu0 %v2797
        %v2872 = vpop.f32.mrf.mxu0
        %v2873 = vadd.f32 0.0, %v2872
        %v2874 = vpop.f32.mrf.mxu0
        %v2875 = vadd.f32 0.0, %v2874
        %2876 = vdwg.mxu0
        %v2877 = vadd.f32 %v2768, %v2873
        %v2878 = vadd.f32 %v2770, %v2875
        %s2879 = scalar_lea.vmem [#allocation4], 24
        %v2880 = vld [vmem:[%s2879] sm:$0xf]
        %v2881 = vld [vmem:[%s2879 + $0x4] sm:$0xf]
        %v2884 = vunpack.c.l.b16 %v2880
        %v2885 = vunpack.c.l.b16 %v2881
        %v2886 = vpack.c.b16 %v2885, %v2884
        %v2888 = vsel %vm896, %v2886, 0
        %2890 = vmatpush.bf16.msra.mxu0 0
        %2891 = vmatpush.bf16.msra.mxu0 0
        %2892 = vmatpush.bf16.msra.mxu0 0
        %2893 = vmatpush.bf16.msra.mxu0 0
        %2894 = vmatpush.bf16.msra.mxu0 %v2458
        %2895 = vmatpush.bf16.msra.mxu0 %v2457
        %2896 = vmatpush.bf16.msra.mxu0 %v2456
        %2897 = vmatpush.bf16.msra.mxu0 %v2455
        %2898 = vmatmul.bf16.gmra.mxu0 %v2888
        %v2899 = vpop.f32.mrf.mxu0
        %v2900 = vadd.f32 0.0, %v2899
        %v2901 = vpop.f32.mrf.mxu0
        %v2902 = vadd.f32 0.0, %v2901
        %2903 = vdwg.mxu0
        %v2904 = vpack.c.bf16 %v2902, %v2900
        %s2905 = scalar_lea.vmem [#allocation10], 192
        %v2906 = vld [vmem:[%s2905] sm:$0xf]
        %v2907 = vld [vmem:[%s2905 + $0x4] sm:$0xf]
        %v2908 = vld [vmem:[%s2905 + $0x8] sm:$0xf]
        %v2909 = vld [vmem:[%s2905 + $0xc] sm:$0xf]
        %v2910 = vld [vmem:[%s2905 + $0x10] sm:$0xf]
        %v2911 = vld [vmem:[%s2905 + $0x14] sm:$0xf]
        %v2912 = vld [vmem:[%s2905 + $0x18] sm:$0xf]
        %v2913 = vld [vmem:[%s2905 + $0x1c] sm:$0xf]
        %v2914 = vld [vmem:[%s2905 + $0x20] sm:$0xf]
        %v2915 = vld [vmem:[%s2905 + $0x24] sm:$0xf]
        %v2916 = vld [vmem:[%s2905 + $0x28] sm:$0xf]
        %v2917 = vld [vmem:[%s2905 + $0x2c] sm:$0xf]
        %v2918 = vld [vmem:[%s2905 + $0x30] sm:$0xf]
        %v2919 = vld [vmem:[%s2905 + $0x34] sm:$0xf]
        %v2920 = vld [vmem:[%s2905 + $0x38] sm:$0xf]
        %v2921 = vld [vmem:[%s2905 + $0x3c] sm:$0xf]
        %v2938 = vunpack.c.l.b16 %v2906
        %v2939 = vunpack.c.l.b16 %v2907
        %v2940 = vunpack.c.l.b16 %v2908
        %v2941 = vunpack.c.l.b16 %v2909
        %v2942 = vunpack.c.l.b16 %v2910
        %v2943 = vunpack.c.l.b16 %v2911
        %v2944 = vunpack.c.l.b16 %v2912
        %v2945 = vunpack.c.l.b16 %v2913
        %v2946 = vunpack.c.l.b16 %v2914
        %v2947 = vunpack.c.l.b16 %v2915
        %v2948 = vunpack.c.l.b16 %v2916
        %v2949 = vunpack.c.l.b16 %v2917
        %v2950 = vunpack.c.l.b16 %v2918
        %v2951 = vunpack.c.l.b16 %v2919
        %v2952 = vunpack.c.l.b16 %v2920
        %v2953 = vunpack.c.l.b16 %v2921
        %v2954 = vpack.c.b16 %v2939, %v2938
        %v2955 = vpack.c.b16 %v2941, %v2940
        %v2956 = vpack.c.b16 %v2943, %v2942
        %v2957 = vpack.c.b16 %v2945, %v2944
        %v2958 = vpack.c.b16 %v2947, %v2946
        %v2959 = vpack.c.b16 %v2949, %v2948
        %v2960 = vpack.c.b16 %v2951, %v2950
        %v2961 = vpack.c.b16 %v2953, %v2952
        %2970 = vmatpush.bf16.msra.mxu0 %v2961
        %2971 = vmatpush.bf16.msra.mxu0 %v2960
        %2972 = vmatpush.bf16.msra.mxu0 %v2959
        %2973 = vmatpush.bf16.msra.mxu0 %v2958
        %2974 = vmatpush.bf16.msra.mxu0 %v2957
        %2975 = vmatpush.bf16.msra.mxu0 %v2956
        %2976 = vmatpush.bf16.msra.mxu0 %v2955
        %2977 = vmatpush.bf16.msra.mxu0 %v2954
        %2978 = vmatmul.bf16.gmra.mxu0 %v2904
        %v2979 = vpop.f32.mrf.mxu0
        %v2980 = vadd.f32 0.0, %v2979
        %v2981 = vpop.f32.mrf.mxu0
        %v2982 = vadd.f32 0.0, %v2981
        %2983 = vdwg.mxu0
        %v2984 = vadd.f32 %v2877, %v2980
        %v2985 = vadd.f32 %v2878, %v2982
        %s2986 = scalar_lea.vmem [#allocation4], 32
        %v2987 = vld [vmem:[%s2986] sm:$0xf]
        %v2988 = vld [vmem:[%s2986 + $0x4] sm:$0xf]
        %v2991 = vunpack.c.l.b16 %v2987
        %v2992 = vunpack.c.l.b16 %v2988
        %v2993 = vpack.c.b16 %v2992, %v2991
        %v2995 = vsel %vm896, %v2993, 0
        %2997 = vmatpush.bf16.msra.mxu0 0
        %2998 = vmatpush.bf16.msra.mxu0 0
        %2999 = vmatpush.bf16.msra.mxu0 0
        %3000 = vmatpush.bf16.msra.mxu0 0
        %3001 = vmatpush.bf16.msra.mxu0 %v2458
        %3002 = vmatpush.bf16.msra.mxu0 %v2457
        %3003 = vmatpush.bf16.msra.mxu0 %v2456
        %3004 = vmatpush.bf16.msra.mxu0 %v2455
        %3005 = vmatmul.bf16.gmra.mxu0 %v2995
        %v3006 = vpop.f32.mrf.mxu0
        %v3007 = vadd.f32 0.0, %v3006
        %v3008 = vpop.f32.mrf.mxu0
        %v3009 = vadd.f32 0.0, %v3008
        %3010 = vdwg.mxu0
        %v3011 = vpack.c.bf16 %v3009, %v3007
        %s3012 = scalar_lea.vmem [#allocation10], 256
        %v3013 = vld [vmem:[%s3012] sm:$0xf]
        %v3014 = vld [vmem:[%s3012 + $0x4] sm:$0xf]
        %v3015 = vld [vmem:[%s3012 + $0x8] sm:$0xf]
        %v3016 = vld [vmem:[%s3012 + $0xc] sm:$0xf]
        %v3017 = vld [vmem:[%s3012 + $0x10] sm:$0xf]
        %v3018 = vld [vmem:[%s3012 + $0x14] sm:$0xf]
        %v3019 = vld [vmem:[%s3012 + $0x18] sm:$0xf]
        %v3020 = vld [vmem:[%s3012 + $0x1c] sm:$0xf]
        %v3021 = vld [vmem:[%s3012 + $0x20] sm:$0xf]
        %v3022 = vld [vmem:[%s3012 + $0x24] sm:$0xf]
        %v3023 = vld [vmem:[%s3012 + $0x28] sm:$0xf]
        %v3024 = vld [vmem:[%s3012 + $0x2c] sm:$0xf]
        %v3025 = vld [vmem:[%s3012 + $0x30] sm:$0xf]
        %v3026 = vld [vmem:[%s3012 + $0x34] sm:$0xf]
        %v3027 = vld [vmem:[%s3012 + $0x38] sm:$0xf]
        %v3028 = vld [vmem:[%s3012 + $0x3c] sm:$0xf]
        %v3045 = vunpack.c.l.b16 %v3013
        %v3046 = vunpack.c.l.b16 %v3014
        %v3047 = vunpack.c.l.b16 %v3015
        %v3048 = vunpack.c.l.b16 %v3016
        %v3049 = vunpack.c.l.b16 %v3017
        %v3050 = vunpack.c.l.b16 %v3018
        %v3051 = vunpack.c.l.b16 %v3019
        %v3052 = vunpack.c.l.b16 %v3020
        %v3053 = vunpack.c.l.b16 %v3021
        %v3054 = vunpack.c.l.b16 %v3022
        %v3055 = vunpack.c.l.b16 %v3023
        %v3056 = vunpack.c.l.b16 %v3024
        %v3057 = vunpack.c.l.b16 %v3025
        %v3058 = vunpack.c.l.b16 %v3026
        %v3059 = vunpack.c.l.b16 %v3027
        %v3060 = vunpack.c.l.b16 %v3028
        %v3061 = vpack.c.b16 %v3046, %v3045
        %v3062 = vpack.c.b16 %v3048, %v3047
        %v3063 = vpack.c.b16 %v3050, %v3049
        %v3064 = vpack.c.b16 %v3052, %v3051
        %v3065 = vpack.c.b16 %v3054, %v3053
        %v3066 = vpack.c.b16 %v3056, %v3055
        %v3067 = vpack.c.b16 %v3058, %v3057
        %v3068 = vpack.c.b16 %v3060, %v3059
        %3077 = vmatpush.bf16.msra.mxu0 %v3068
        %3078 = vmatpush.bf16.msra.mxu0 %v3067
        %3079 = vmatpush.bf16.msra.mxu0 %v3066
        %3080 = vmatpush.bf16.msra.mxu0 %v3065
        %3081 = vmatpush.bf16.msra.mxu0 %v3064
        %3082 = vmatpush.bf16.msra.mxu0 %v3063
        %3083 = vmatpush.bf16.msra.mxu0 %v3062
        %3084 = vmatpush.bf16.msra.mxu0 %v3061
        %3085 = vmatmul.bf16.gmra.mxu0 %v3011
        %v3086 = vpop.f32.mrf.mxu0
        %v3087 = vadd.f32 0.0, %v3086
        %v3088 = vpop.f32.mrf.mxu0
        %v3089 = vadd.f32 0.0, %v3088
        %3090 = vdwg.mxu0
        %v3091 = vadd.f32 %v2984, %v3087
        %v3092 = vadd.f32 %v2985, %v3089
        %s3093 = scalar_lea.vmem [#allocation4], 40
        %v3094 = vld [vmem:[%s3093] sm:$0xf]
        %v3095 = vld [vmem:[%s3093 + $0x4] sm:$0xf]
        %v3098 = vunpack.c.l.b16 %v3094
        %v3099 = vunpack.c.l.b16 %v3095
        %v3100 = vpack.c.b16 %v3099, %v3098
        %v3102 = vsel %vm896, %v3100, 0
        %3104 = vmatpush.bf16.msra.mxu0 0
        %3105 = vmatpush.bf16.msra.mxu0 0
        %3106 = vmatpush.bf16.msra.mxu0 0
        %3107 = vmatpush.bf16.msra.mxu0 0
        %3108 = vmatpush.bf16.msra.mxu0 %v2458
        %3109 = vmatpush.bf16.msra.mxu0 %v2457
        %3110 = vmatpush.bf16.msra.mxu0 %v2456
        %3111 = vmatpush.bf16.msra.mxu0 %v2455
        %3112 = vmatmul.bf16.gmra.mxu0 %v3102
        %v3113 = vpop.f32.mrf.mxu0
        %v3114 = vadd.f32 0.0, %v3113
        %v3115 = vpop.f32.mrf.mxu0
        %v3116 = vadd.f32 0.0, %v3115
        %3117 = vdwg.mxu0
        %v3118 = vpack.c.bf16 %v3116, %v3114
        %s3119 = scalar_lea.vmem [#allocation10], 320
        %v3120 = vld [vmem:[%s3119] sm:$0xf]
        %v3121 = vld [vmem:[%s3119 + $0x4] sm:$0xf]
        %v3122 = vld [vmem:[%s3119 + $0x8] sm:$0xf]
        %v3123 = vld [vmem:[%s3119 + $0xc] sm:$0xf]
        %v3124 = vld [vmem:[%s3119 + $0x10] sm:$0xf]
        %v3125 = vld [vmem:[%s3119 + $0x14] sm:$0xf]
        %v3126 = vld [vmem:[%s3119 + $0x18] sm:$0xf]
        %v3127 = vld [vmem:[%s3119 + $0x1c] sm:$0xf]
        %v3128 = vld [vmem:[%s3119 + $0x20] sm:$0xf]
        %v3129 = vld [vmem:[%s3119 + $0x24] sm:$0xf]
        %v3130 = vld [vmem:[%s3119 + $0x28] sm:$0xf]
        %v3131 = vld [vmem:[%s3119 + $0x2c] sm:$0xf]
        %v3132 = vld [vmem:[%s3119 + $0x30] sm:$0xf]
        %v3133 = vld [vmem:[%s3119 + $0x34] sm:$0xf]
        %v3134 = vld [vmem:[%s3119 + $0x38] sm:$0xf]
        %v3135 = vld [vmem:[%s3119 + $0x3c] sm:$0xf]
        %v3152 = vunpack.c.l.b16 %v3120
        %v3153 = vunpack.c.l.b16 %v3121
        %v3154 = vunpack.c.l.b16 %v3122
        %v3155 = vunpack.c.l.b16 %v3123
        %v3156 = vunpack.c.l.b16 %v3124
        %v3157 = vunpack.c.l.b16 %v3125
        %v3158 = vunpack.c.l.b16 %v3126
        %v3159 = vunpack.c.l.b16 %v3127
        %v3160 = vunpack.c.l.b16 %v3128
        %v3161 = vunpack.c.l.b16 %v3129
        %v3162 = vunpack.c.l.b16 %v3130
        %v3163 = vunpack.c.l.b16 %v3131
        %v3164 = vunpack.c.l.b16 %v3132
        %v3165 = vunpack.c.l.b16 %v3133
        %v3166 = vunpack.c.l.b16 %v3134
        %v3167 = vunpack.c.l.b16 %v3135
        %v3168 = vpack.c.b16 %v3153, %v3152
        %v3169 = vpack.c.b16 %v3155, %v3154
        %v3170 = vpack.c.b16 %v3157, %v3156
        %v3171 = vpack.c.b16 %v3159, %v3158
        %v3172 = vpack.c.b16 %v3161, %v3160
        %v3173 = vpack.c.b16 %v3163, %v3162
        %v3174 = vpack.c.b16 %v3165, %v3164
        %v3175 = vpack.c.b16 %v3167, %v3166
        %3184 = vmatpush.bf16.msra.mxu0 %v3175
        %3185 = vmatpush.bf16.msra.mxu0 %v3174
        %3186 = vmatpush.bf16.msra.mxu0 %v3173
        %3187 = vmatpush.bf16.msra.mxu0 %v3172
        %3188 = vmatpush.bf16.msra.mxu0 %v3171
        %3189 = vmatpush.bf16.msra.mxu0 %v3170
        %3190 = vmatpush.bf16.msra.mxu0 %v3169
        %3191 = vmatpush.bf16.msra.mxu0 %v3168
        %3192 = vmatmul.bf16.gmra.mxu0 %v3118
        %v3193 = vpop.f32.mrf.mxu0
        %v3194 = vadd.f32 0.0, %v3193
        %v3195 = vpop.f32.mrf.mxu0
        %v3196 = vadd.f32 0.0, %v3195
        %3197 = vdwg.mxu0
        %v3198 = vadd.f32 %v3091, %v3194
        %v3199 = vadd.f32 %v3092, %v3196
        %s3200 = scalar_lea.vmem [#allocation4], 48
        %v3201 = vld [vmem:[%s3200] sm:$0xf]
        %v3202 = vld [vmem:[%s3200 + $0x4] sm:$0xf]
        %v3205 = vunpack.c.l.b16 %v3201
        %v3206 = vunpack.c.l.b16 %v3202
        %v3207 = vpack.c.b16 %v3206, %v3205
        %v3209 = vsel %vm896, %v3207, 0
        %3211 = vmatpush.bf16.msra.mxu0 0
        %3212 = vmatpush.bf16.msra.mxu0 0
        %3213 = vmatpush.bf16.msra.mxu0 0
        %3214 = vmatpush.bf16.msra.mxu0 0
        %3215 = vmatpush.bf16.msra.mxu0 %v2458
        %3216 = vmatpush.bf16.msra.mxu0 %v2457
        %3217 = vmatpush.bf16.msra.mxu0 %v2456
        %3218 = vmatpush.bf16.msra.mxu0 %v2455
        %3219 = vmatmul.bf16.gmra.mxu0 %v3209
        %v3220 = vpop.f32.mrf.mxu0
        %v3221 = vadd.f32 0.0, %v3220
        %v3222 = vpop.f32.mrf.mxu0
        %v3223 = vadd.f32 0.0, %v3222
        %3224 = vdwg.mxu0
        %v3225 = vpack.c.bf16 %v3223, %v3221
        %s3226 = scalar_lea.vmem [#allocation10], 384
        %v3227 = vld [vmem:[%s3226] sm:$0xf]
        %v3228 = vld [vmem:[%s3226 + $0x4] sm:$0xf]
        %v3229 = vld [vmem:[%s3226 + $0x8] sm:$0xf]
        %v3230 = vld [vmem:[%s3226 + $0xc] sm:$0xf]
        %v3231 = vld [vmem:[%s3226 + $0x10] sm:$0xf]
        %v3232 = vld [vmem:[%s3226 + $0x14] sm:$0xf]
        %v3233 = vld [vmem:[%s3226 + $0x18] sm:$0xf]
        %v3234 = vld [vmem:[%s3226 + $0x1c] sm:$0xf]
        %v3235 = vld [vmem:[%s3226 + $0x20] sm:$0xf]
        %v3236 = vld [vmem:[%s3226 + $0x24] sm:$0xf]
        %v3237 = vld [vmem:[%s3226 + $0x28] sm:$0xf]
        %v3238 = vld [vmem:[%s3226 + $0x2c] sm:$0xf]
        %v3239 = vld [vmem:[%s3226 + $0x30] sm:$0xf]
        %v3240 = vld [vmem:[%s3226 + $0x34] sm:$0xf]
        %v3241 = vld [vmem:[%s3226 + $0x38] sm:$0xf]
        %v3242 = vld [vmem:[%s3226 + $0x3c] sm:$0xf]
        %v3259 = vunpack.c.l.b16 %v3227
        %v3260 = vunpack.c.l.b16 %v3228
        %v3261 = vunpack.c.l.b16 %v3229
        %v3262 = vunpack.c.l.b16 %v3230
        %v3263 = vunpack.c.l.b16 %v3231
        %v3264 = vunpack.c.l.b16 %v3232
        %v3265 = vunpack.c.l.b16 %v3233
        %v3266 = vunpack.c.l.b16 %v3234
        %v3267 = vunpack.c.l.b16 %v3235
        %v3268 = vunpack.c.l.b16 %v3236
        %v3269 = vunpack.c.l.b16 %v3237
        %v3270 = vunpack.c.l.b16 %v3238
        %v3271 = vunpack.c.l.b16 %v3239
        %v3272 = vunpack.c.l.b16 %v3240
        %v3273 = vunpack.c.l.b16 %v3241
        %v3274 = vunpack.c.l.b16 %v3242
        %v3275 = vpack.c.b16 %v3260, %v3259
        %v3276 = vpack.c.b16 %v3262, %v3261
        %v3277 = vpack.c.b16 %v3264, %v3263
        %v3278 = vpack.c.b16 %v3266, %v3265
        %v3279 = vpack.c.b16 %v3268, %v3267
        %v3280 = vpack.c.b16 %v3270, %v3269
        %v3281 = vpack.c.b16 %v3272, %v3271
        %v3282 = vpack.c.b16 %v3274, %v3273
        %3291 = vmatpush.bf16.msra.mxu0 %v3282
        %3292 = vmatpush.bf16.msra.mxu0 %v3281
        %3293 = vmatpush.bf16.msra.mxu0 %v3280
        %3294 = vmatpush.bf16.msra.mxu0 %v3279
        %3295 = vmatpush.bf16.msra.mxu0 %v3278
        %3296 = vmatpush.bf16.msra.mxu0 %v3277
        %3297 = vmatpush.bf16.msra.mxu0 %v3276
        %3298 = vmatpush.bf16.msra.mxu0 %v3275
        %3299 = vmatmul.bf16.gmra.mxu0 %v3225
        %v3300 = vpop.f32.mrf.mxu0
        %v3301 = vadd.f32 0.0, %v3300
        %v3302 = vpop.f32.mrf.mxu0
        %v3303 = vadd.f32 0.0, %v3302
        %3304 = vdwg.mxu0
        %v3305 = vadd.f32 %v3198, %v3301
        %v3306 = vadd.f32 %v3199, %v3303
        %s3307 = scalar_lea.vmem [#allocation4], 56
        %v3308 = vld [vmem:[%s3307] sm:$0xf]
        %v3309 = vld [vmem:[%s3307 + $0x4] sm:$0xf]
        %v3312 = vunpack.c.l.b16 %v3308
        %v3313 = vunpack.c.l.b16 %v3309
        %v3314 = vpack.c.b16 %v3313, %v3312
        %v3316 = vsel %vm896, %v3314, 0
        %3318 = vmatpush.bf16.msra.mxu0 0
        %3319 = vmatpush.bf16.msra.mxu0 0
        %3320 = vmatpush.bf16.msra.mxu0 0
        %3321 = vmatpush.bf16.msra.mxu0 0
        %3322 = vmatpush.bf16.msra.mxu0 %v2458
        %3323 = vmatpush.bf16.msra.mxu0 %v2457
        %3324 = vmatpush.bf16.msra.mxu0 %v2456
        %3325 = vmatpush.bf16.msra.mxu0 %v2455
        %3326 = vmatmul.bf16.gmra.mxu0 %v3316
        %v3327 = vpop.f32.mrf.mxu0
        %v3328 = vadd.f32 0.0, %v3327
        %v3329 = vpop.f32.mrf.mxu0
        %v3330 = vadd.f32 0.0, %v3329
        %3331 = vdwg.mxu0
        %v3332 = vpack.c.bf16 %v3330, %v3328
        %s3333 = scalar_lea.vmem [#allocation10], 448
        %v3334 = vld [vmem:[%s3333] sm:$0xf]
        %v3335 = vld [vmem:[%s3333 + $0x4] sm:$0xf]
        %v3336 = vld [vmem:[%s3333 + $0x8] sm:$0xf]
        %v3337 = vld [vmem:[%s3333 + $0xc] sm:$0xf]
        %v3338 = vld [vmem:[%s3333 + $0x10] sm:$0xf]
        %v3339 = vld [vmem:[%s3333 + $0x14] sm:$0xf]
        %v3340 = vld [vmem:[%s3333 + $0x18] sm:$0xf]
        %v3341 = vld [vmem:[%s3333 + $0x1c] sm:$0xf]
        %v3342 = vld [vmem:[%s3333 + $0x20] sm:$0xf]
        %v3343 = vld [vmem:[%s3333 + $0x24] sm:$0xf]
        %v3344 = vld [vmem:[%s3333 + $0x28] sm:$0xf]
        %v3345 = vld [vmem:[%s3333 + $0x2c] sm:$0xf]
        %v3346 = vld [vmem:[%s3333 + $0x30] sm:$0xf]
        %v3347 = vld [vmem:[%s3333 + $0x34] sm:$0xf]
        %v3348 = vld [vmem:[%s3333 + $0x38] sm:$0xf]
        %v3349 = vld [vmem:[%s3333 + $0x3c] sm:$0xf]
        %v3366 = vunpack.c.l.b16 %v3334
        %v3367 = vunpack.c.l.b16 %v3335
        %v3368 = vunpack.c.l.b16 %v3336
        %v3369 = vunpack.c.l.b16 %v3337
        %v3370 = vunpack.c.l.b16 %v3338
        %v3371 = vunpack.c.l.b16 %v3339
        %v3372 = vunpack.c.l.b16 %v3340
        %v3373 = vunpack.c.l.b16 %v3341
        %v3374 = vunpack.c.l.b16 %v3342
        %v3375 = vunpack.c.l.b16 %v3343
        %v3376 = vunpack.c.l.b16 %v3344
        %v3377 = vunpack.c.l.b16 %v3345
        %v3378 = vunpack.c.l.b16 %v3346
        %v3379 = vunpack.c.l.b16 %v3347
        %v3380 = vunpack.c.l.b16 %v3348
        %v3381 = vunpack.c.l.b16 %v3349
        %v3382 = vpack.c.b16 %v3367, %v3366
        %v3383 = vpack.c.b16 %v3369, %v3368
        %v3384 = vpack.c.b16 %v3371, %v3370
        %v3385 = vpack.c.b16 %v3373, %v3372
        %v3386 = vpack.c.b16 %v3375, %v3374
        %v3387 = vpack.c.b16 %v3377, %v3376
        %v3388 = vpack.c.b16 %v3379, %v3378
        %v3389 = vpack.c.b16 %v3381, %v3380
        %3398 = vmatpush.bf16.msra.mxu0 %v3389
        %3399 = vmatpush.bf16.msra.mxu0 %v3388
        %3400 = vmatpush.bf16.msra.mxu0 %v3387
        %3401 = vmatpush.bf16.msra.mxu0 %v3386
        %3402 = vmatpush.bf16.msra.mxu0 %v3385
        %3403 = vmatpush.bf16.msra.mxu0 %v3384
        %3404 = vmatpush.bf16.msra.mxu0 %v3383
        %3405 = vmatpush.bf16.msra.mxu0 %v3382
        %3406 = vmatmul.bf16.gmra.mxu0 %v3332
        %v3407 = vpop.f32.mrf.mxu0
        %v3408 = vadd.f32 0.0, %v3407
        %v3409 = vpop.f32.mrf.mxu0
        %v3410 = vadd.f32 0.0, %v3409
        %3411 = vdwg.mxu0
        %v3412 = vadd.f32 %v3305, %v3408
        %v3413 = vadd.f32 %v3306, %v3410
        %s3414 = scalar_lea.vmem [#allocation4], 64
        %v3415 = vld [vmem:[%s3414] sm:$0xf]
        %v3416 = vld [vmem:[%s3414 + $0x4] sm:$0xf]
        %v3419 = vunpack.c.l.b16 %v3415
        %v3420 = vunpack.c.l.b16 %v3416
        %v3421 = vpack.c.b16 %v3420, %v3419
        %v3423 = vsel %vm896, %v3421, 0
        %3425 = vmatpush.bf16.msra.mxu0 0
        %3426 = vmatpush.bf16.msra.mxu0 0
        %3427 = vmatpush.bf16.msra.mxu0 0
        %3428 = vmatpush.bf16.msra.mxu0 0
        %3429 = vmatpush.bf16.msra.mxu0 %v2458
        %3430 = vmatpush.bf16.msra.mxu0 %v2457
        %3431 = vmatpush.bf16.msra.mxu0 %v2456
        %3432 = vmatpush.bf16.msra.mxu0 %v2455
        %3433 = vmatmul.bf16.gmra.mxu0 %v3423
        %v3434 = vpop.f32.mrf.mxu0
        %v3435 = vadd.f32 0.0, %v3434
        %v3436 = vpop.f32.mrf.mxu0
        %v3437 = vadd.f32 0.0, %v3436
        %3438 = vdwg.mxu0
        %v3439 = vpack.c.bf16 %v3437, %v3435
        %s3440 = scalar_lea.vmem [#allocation10], 512
        %v3441 = vld [vmem:[%s3440] sm:$0xf]
        %v3442 = vld [vmem:[%s3440 + $0x4] sm:$0xf]
        %v3443 = vld [vmem:[%s3440 + $0x8] sm:$0xf]
        %v3444 = vld [vmem:[%s3440 + $0xc] sm:$0xf]
        %v3445 = vld [vmem:[%s3440 + $0x10] sm:$0xf]
        %v3446 = vld [vmem:[%s3440 + $0x14] sm:$0xf]
        %v3447 = vld [vmem:[%s3440 + $0x18] sm:$0xf]
        %v3448 = vld [vmem:[%s3440 + $0x1c] sm:$0xf]
        %v3449 = vld [vmem:[%s3440 + $0x20] sm:$0xf]
        %v3450 = vld [vmem:[%s3440 + $0x24] sm:$0xf]
        %v3451 = vld [vmem:[%s3440 + $0x28] sm:$0xf]
        %v3452 = vld [vmem:[%s3440 + $0x2c] sm:$0xf]
        %v3453 = vld [vmem:[%s3440 + $0x30] sm:$0xf]
        %v3454 = vld [vmem:[%s3440 + $0x34] sm:$0xf]
        %v3455 = vld [vmem:[%s3440 + $0x38] sm:$0xf]
        %v3456 = vld [vmem:[%s3440 + $0x3c] sm:$0xf]
        %v3473 = vunpack.c.l.b16 %v3441
        %v3474 = vunpack.c.l.b16 %v3442
        %v3475 = vunpack.c.l.b16 %v3443
        %v3476 = vunpack.c.l.b16 %v3444
        %v3477 = vunpack.c.l.b16 %v3445
        %v3478 = vunpack.c.l.b16 %v3446
        %v3479 = vunpack.c.l.b16 %v3447
        %v3480 = vunpack.c.l.b16 %v3448
        %v3481 = vunpack.c.l.b16 %v3449
        %v3482 = vunpack.c.l.b16 %v3450
        %v3483 = vunpack.c.l.b16 %v3451
        %v3484 = vunpack.c.l.b16 %v3452
        %v3485 = vunpack.c.l.b16 %v3453
        %v3486 = vunpack.c.l.b16 %v3454
        %v3487 = vunpack.c.l.b16 %v3455
        %v3488 = vunpack.c.l.b16 %v3456
        %v3489 = vpack.c.b16 %v3474, %v3473
        %v3490 = vpack.c.b16 %v3476, %v3475
        %v3491 = vpack.c.b16 %v3478, %v3477
        %v3492 = vpack.c.b16 %v3480, %v3479
        %v3493 = vpack.c.b16 %v3482, %v3481
        %v3494 = vpack.c.b16 %v3484, %v3483
        %v3495 = vpack.c.b16 %v3486, %v3485
        %v3496 = vpack.c.b16 %v3488, %v3487
        %3505 = vmatpush.bf16.msra.mxu0 %v3496
        %3506 = vmatpush.bf16.msra.mxu0 %v3495
        %3507 = vmatpush.bf16.msra.mxu0 %v3494
        %3508 = vmatpush.bf16.msra.mxu0 %v3493
        %3509 = vmatpush.bf16.msra.mxu0 %v3492
        %3510 = vmatpush.bf16.msra.mxu0 %v3491
        %3511 = vmatpush.bf16.msra.mxu0 %v3490
        %3512 = vmatpush.bf16.msra.mxu0 %v3489
        %3513 = vmatmul.bf16.gmra.mxu0 %v3439
        %v3514 = vpop.f32.mrf.mxu0
        %v3515 = vadd.f32 0.0, %v3514
        %v3516 = vpop.f32.mrf.mxu0
        %v3517 = vadd.f32 0.0, %v3516
        %3518 = vdwg.mxu0
        %v3519 = vadd.f32 %v3412, %v3515
        %v3520 = vadd.f32 %v3413, %v3517
        %v3521 = vld [vmem:[#allocation12] sm:$0x1]
        %v3523 = vperm.slane %v3521, 0
        %v3525 = vadd.f32 %v3519, %v3523
        %v3526 = vadd.f32 %v3520, %v3523
        %v3527 = vmax.f32 %v3525, 0.0
        %v3528 = vmax.f32 %v3526, 0.0
        %v3529 = vpack.c.bf16 %v3528, %v3527
        %v3530 = vld [vmem:[#allocation19] sm:$0xf]
        %v3531 = vld [vmem:[#allocation19 + $0x4] sm:$0xf]
        %v3532 = vld [vmem:[#allocation19 + $0x8] sm:$0xf]
        %v3533 = vld [vmem:[#allocation19 + $0xc] sm:$0xf]
        %v3534 = vld [vmem:[#allocation19 + $0x10] sm:$0xf]
        %v3535 = vld [vmem:[#allocation19 + $0x14] sm:$0xf]
        %v3536 = vld [vmem:[#allocation19 + $0x18] sm:$0xf]
        %v3537 = vld [vmem:[#allocation19 + $0x1c] sm:$0xf]
        %v3538 = vld [vmem:[#allocation19 + $0x20] sm:$0xf]
        %v3539 = vld [vmem:[#allocation19 + $0x24] sm:$0xf]
        %v3540 = vld [vmem:[#allocation19 + $0x28] sm:$0xf]
        %v3541 = vld [vmem:[#allocation19 + $0x2c] sm:$0xf]
        %v3542 = vld [vmem:[#allocation19 + $0x30] sm:$0xf]
        %v3543 = vld [vmem:[#allocation19 + $0x34] sm:$0xf]
        %v3544 = vld [vmem:[#allocation19 + $0x38] sm:$0xf]
        %v3545 = vld [vmem:[#allocation19 + $0x3c] sm:$0xf]
        %v3546 = vld [vmem:[#allocation21] sm:$0x1]
        %v3548 = vperm.slane %v3546, 0
        %v3566 = vunpack.c.l.b16 %v3530
        %v3567 = vunpack.c.l.b16 %v3531
        %v3568 = vunpack.c.l.b16 %v3532
        %v3569 = vunpack.c.l.b16 %v3533
        %v3570 = vunpack.c.l.b16 %v3534
        %v3571 = vunpack.c.l.b16 %v3535
        %v3572 = vunpack.c.l.b16 %v3536
        %v3573 = vunpack.c.l.b16 %v3537
        %v3574 = vunpack.c.l.b16 %v3538
        %v3575 = vunpack.c.l.b16 %v3539
        %v3576 = vunpack.c.l.b16 %v3540
        %v3577 = vunpack.c.l.b16 %v3541
        %v3578 = vunpack.c.l.b16 %v3542
        %v3579 = vunpack.c.l.b16 %v3543
        %v3580 = vunpack.c.l.b16 %v3544
        %v3581 = vunpack.c.l.b16 %v3545
        %v3582 = vpack.c.b16 %v3567, %v3566
        %v3583 = vpack.c.b16 %v3569, %v3568
        %v3584 = vpack.c.b16 %v3571, %v3570
        %v3585 = vpack.c.b16 %v3573, %v3572
        %v3586 = vpack.c.b16 %v3575, %v3574
        %v3587 = vpack.c.b16 %v3577, %v3576
        %v3588 = vpack.c.b16 %v3579, %v3578
        %v3589 = vpack.c.b16 %v3581, %v3580
        %3598 = vmatpush.bf16.msra.mxu0 %v3589
        %3599 = vmatpush.bf16.msra.mxu0 %v3588
        %3600 = vmatpush.bf16.msra.mxu0 %v3587
        %3601 = vmatpush.bf16.msra.mxu0 %v3586
        %3602 = vmatpush.bf16.msra.mxu0 %v3585
        %3603 = vmatpush.bf16.msra.mxu0 %v3584
        %3604 = vmatpush.bf16.msra.mxu0 %v3583
        %3605 = vmatpush.bf16.msra.mxu0 %v3582
        %3606 = vmatmul.bf16.gmra.mxu0 %v3529
        %v3607 = vpop.f32.mrf.mxu0
        %v3608 = vadd.f32 %v3548, %v3607
        %v3609 = vpop.f32.mrf.mxu0
        %v3610 = vadd.f32 %v3548, %v3609
        %3611 = vdwg.mxu0
        %3612 = vst [vmem:[%s830] sm:$0xff] %v3608
        %3613 = vst [vmem:[%s830 + $0x8] sm:$0xff] %v3610
        %v3614 = vld [vmem:[#allocation6] sm:$0x3]
        %vm3615 = vcmask 130048
        %v3617 = vsel %vm3615, %v3614, 0
        %3619 = vmatpush.bf16.msra.mxu0 0
        %3620 = vmatpush.bf16.msra.mxu0 0
        %3621 = vmatpush.bf16.msra.mxu0 0
        %3622 = vmatpush.bf16.msra.mxu0 0
        %3623 = vmatpush.bf16.msra.mxu0 0
        %3624 = vmatpush.bf16.msra.mxu0 0
        %3625 = vmatpush.bf16.msra.mxu0 0
        %3626 = vmatpush.bf16.msra.mxu0 %v3529
        %3627 = vmatmul.bf16.gmra.mxu0 %v3617
        %v3628 = vpop.f32.mrf.mxu0
        %v3629 = vadd.f32 0.0, %v3628
        %v3630 = vpop.f32.mrf.mxu0
        %3631 = vdwg.mxu0
        %v3632 = vpack.c.bf16 %v3629, %v3629
        %v3633 = vld [vmem:[#allocation13] sm:$0xf]
        %v3634 = vld [vmem:[#allocation13 + $0x4] sm:$0xf]
        %v3635 = vld [vmem:[#allocation13 + $0x8] sm:$0xf]
        %v3636 = vld [vmem:[#allocation13 + $0xc] sm:$0xf]
        %v3637 = vld [vmem:[#allocation13 + $0x10] sm:$0xf]
        %v3638 = vld [vmem:[#allocation13 + $0x14] sm:$0xf]
        %v3639 = vld [vmem:[#allocation13 + $0x18] sm:$0xf]
        %v3640 = vld [vmem:[#allocation13 + $0x1c] sm:$0xf]
        %v3641 = vld [vmem:[#allocation13 + $0x20] sm:$0xf]
        %v3642 = vld [vmem:[#allocation13 + $0x24] sm:$0xf]
        %v3643 = vld [vmem:[#allocation13 + $0x28] sm:$0xf]
        %v3644 = vld [vmem:[#allocation13 + $0x2c] sm:$0xf]
        %v3645 = vld [vmem:[#allocation13 + $0x30] sm:$0xf]
        %v3646 = vld [vmem:[#allocation13 + $0x34] sm:$0xf]
        %v3647 = vld [vmem:[#allocation13 + $0x38] sm:$0xf]
        %v3648 = vld [vmem:[#allocation13 + $0x3c] sm:$0xf]
        %s3649 = scalar_lea.vmem [#allocation6], 2
        %v3650 = vld [vmem:[%s3649] sm:$0x3]
        %v3652 = vsel %vm3615, %v3650, 0
        %3654 = vmatpush.bf16.msra.mxu0 0
        %3655 = vmatpush.bf16.msra.mxu0 0
        %3656 = vmatpush.bf16.msra.mxu0 0
        %3657 = vmatpush.bf16.msra.mxu0 0
        %3658 = vmatpush.bf16.msra.mxu0 0
        %3659 = vmatpush.bf16.msra.mxu0 0
        %3660 = vmatpush.bf16.msra.mxu0 0
        %3661 = vmatpush.bf16.msra.mxu0 %v3529
        %3662 = vmatmul.bf16.gmra.mxu0 %v3652
        %v3663 = vpop.f32.mrf.mxu0
        %v3664 = vadd.f32 0.0, %v3663
        %v3665 = vpop.f32.mrf.mxu0
        %3666 = vdwg.mxu0
        %v3667 = vpack.c.bf16 %v3664, %v3664
        %s3668 = scalar_lea.vmem [#allocation13], 64
        %v3669 = vld [vmem:[%s3668] sm:$0xf]
        %v3670 = vld [vmem:[%s3668 + $0x4] sm:$0xf]
        %v3671 = vld [vmem:[%s3668 + $0x8] sm:$0xf]
        %v3672 = vld [vmem:[%s3668 + $0xc] sm:$0xf]
        %v3673 = vld [vmem:[%s3668 + $0x10] sm:$0xf]
        %v3674 = vld [vmem:[%s3668 + $0x14] sm:$0xf]
        %v3675 = vld [vmem:[%s3668 + $0x18] sm:$0xf]
        %v3676 = vld [vmem:[%s3668 + $0x1c] sm:$0xf]
        %v3677 = vld [vmem:[%s3668 + $0x20] sm:$0xf]
        %v3678 = vld [vmem:[%s3668 + $0x24] sm:$0xf]
        %v3679 = vld [vmem:[%s3668 + $0x28] sm:$0xf]
        %v3680 = vld [vmem:[%s3668 + $0x2c] sm:$0xf]
        %v3681 = vld [vmem:[%s3668 + $0x30] sm:$0xf]
        %v3682 = vld [vmem:[%s3668 + $0x34] sm:$0xf]
        %v3683 = vld [vmem:[%s3668 + $0x38] sm:$0xf]
        %v3684 = vld [vmem:[%s3668 + $0x3c] sm:$0xf]
        %v3701 = vunpack.c.l.b16 %v3669
        %v3702 = vunpack.c.l.b16 %v3670
        %v3703 = vunpack.c.l.b16 %v3671
        %v3704 = vunpack.c.l.b16 %v3672
        %v3705 = vunpack.c.l.b16 %v3673
        %v3706 = vunpack.c.l.b16 %v3674
        %v3707 = vunpack.c.l.b16 %v3675
        %v3708 = vunpack.c.l.b16 %v3676
        %v3709 = vunpack.c.l.b16 %v3677
        %v3710 = vunpack.c.l.b16 %v3678
        %v3711 = vunpack.c.l.b16 %v3679
        %v3712 = vunpack.c.l.b16 %v3680
        %v3713 = vunpack.c.l.b16 %v3681
        %v3714 = vunpack.c.l.b16 %v3682
        %v3715 = vunpack.c.l.b16 %v3683
        %v3716 = vunpack.c.l.b16 %v3684
        %v3717 = vpack.c.b16 %v3702, %v3701
        %v3718 = vpack.c.b16 %v3704, %v3703
        %v3719 = vpack.c.b16 %v3706, %v3705
        %v3720 = vpack.c.b16 %v3708, %v3707
        %v3721 = vpack.c.b16 %v3710, %v3709
        %v3722 = vpack.c.b16 %v3712, %v3711
        %v3723 = vpack.c.b16 %v3714, %v3713
        %v3724 = vpack.c.b16 %v3716, %v3715
        %3733 = vmatpush.bf16.msra.mxu0 %v3724
        %3734 = vmatpush.bf16.msra.mxu0 %v3723
        %3735 = vmatpush.bf16.msra.mxu0 %v3722
        %3736 = vmatpush.bf16.msra.mxu0 %v3721
        %3737 = vmatpush.bf16.msra.mxu0 %v3720
        %3738 = vmatpush.bf16.msra.mxu0 %v3719
        %3739 = vmatpush.bf16.msra.mxu0 %v3718
        %3740 = vmatpush.bf16.msra.mxu0 %v3717
        %3741 = vmatmul.bf16.gmra.mxu0 %v3667
        %v3742 = vpop.f32.mrf.mxu0
        %v3743 = vadd.f32 0.0, %v3742
        %v3744 = vpop.f32.mrf.mxu0
        %3745 = vdwg.mxu0
        %v3762 = vunpack.c.l.b16 %v3633
        %v3763 = vunpack.c.l.b16 %v3634
        %v3764 = vunpack.c.l.b16 %v3635
        %v3765 = vunpack.c.l.b16 %v3636
        %v3766 = vunpack.c.l.b16 %v3637
        %v3767 = vunpack.c.l.b16 %v3638
        %v3768 = vunpack.c.l.b16 %v3639
        %v3769 = vunpack.c.l.b16 %v3640
        %v3770 = vunpack.c.l.b16 %v3641
        %v3771 = vunpack.c.l.b16 %v3642
        %v3772 = vunpack.c.l.b16 %v3643
        %v3773 = vunpack.c.l.b16 %v3644
        %v3774 = vunpack.c.l.b16 %v3645
        %v3775 = vunpack.c.l.b16 %v3646
        %v3776 = vunpack.c.l.b16 %v3647
        %v3777 = vunpack.c.l.b16 %v3648
        %v3778 = vpack.c.b16 %v3763, %v3762
        %v3779 = vpack.c.b16 %v3765, %v3764
        %v3780 = vpack.c.b16 %v3767, %v3766
        %v3781 = vpack.c.b16 %v3769, %v3768
        %v3782 = vpack.c.b16 %v3771, %v3770
        %v3783 = vpack.c.b16 %v3773, %v3772
        %v3784 = vpack.c.b16 %v3775, %v3774
        %v3785 = vpack.c.b16 %v3777, %v3776
        %3794 = vmatpush.bf16.msra.mxu0 %v3785
        %3795 = vmatpush.bf16.msra.mxu0 %v3784
        %3796 = vmatpush.bf16.msra.mxu0 %v3783
        %3797 = vmatpush.bf16.msra.mxu0 %v3782
        %3798 = vmatpush.bf16.msra.mxu0 %v3781
        %3799 = vmatpush.bf16.msra.mxu0 %v3780
        %3800 = vmatpush.bf16.msra.mxu0 %v3779
        %3801 = vmatpush.bf16.msra.mxu0 %v3778
        %3802 = vmatmul.bf16.gmra.mxu0 %v3632
        %v3803 = vpop.f32.mrf.mxu0
        %v3804 = vadd.f32 %v3743, %v3803
        %v3805 = vpop.f32.mrf.mxu0
        %3806 = vdwg.mxu0
        %s3807 = scalar_lea.vmem [#allocation6], 4
        %v3808 = vld [vmem:[%s3807] sm:$0x3]
        %v3810 = vsel %vm3615, %v3808, 0
        %3812 = vmatpush.bf16.msra.mxu0 0
        %3813 = vmatpush.bf16.msra.mxu0 0
        %3814 = vmatpush.bf16.msra.mxu0 0
        %3815 = vmatpush.bf16.msra.mxu0 0
        %3816 = vmatpush.bf16.msra.mxu0 0
        %3817 = vmatpush.bf16.msra.mxu0 0
        %3818 = vmatpush.bf16.msra.mxu0 0
        %3819 = vmatpush.bf16.msra.mxu0 %v3529
        %3820 = vmatmul.bf16.gmra.mxu0 %v3810
        %v3821 = vpop.f32.mrf.mxu0
        %v3822 = vadd.f32 0.0, %v3821
        %v3823 = vpop.f32.mrf.mxu0
        %3824 = vdwg.mxu0
        %v3825 = vpack.c.bf16 %v3822, %v3822
        %s3826 = scalar_lea.vmem [#allocation13], 128
        %v3827 = vld [vmem:[%s3826] sm:$0xf]
        %v3828 = vld [vmem:[%s3826 + $0x4] sm:$0xf]
        %v3829 = vld [vmem:[%s3826 + $0x8] sm:$0xf]
        %v3830 = vld [vmem:[%s3826 + $0xc] sm:$0xf]
        %v3831 = vld [vmem:[%s3826 + $0x10] sm:$0xf]
        %v3832 = vld [vmem:[%s3826 + $0x14] sm:$0xf]
        %v3833 = vld [vmem:[%s3826 + $0x18] sm:$0xf]
        %v3834 = vld [vmem:[%s3826 + $0x1c] sm:$0xf]
        %v3835 = vld [vmem:[%s3826 + $0x20] sm:$0xf]
        %v3836 = vld [vmem:[%s3826 + $0x24] sm:$0xf]
        %v3837 = vld [vmem:[%s3826 + $0x28] sm:$0xf]
        %v3838 = vld [vmem:[%s3826 + $0x2c] sm:$0xf]
        %v3839 = vld [vmem:[%s3826 + $0x30] sm:$0xf]
        %v3840 = vld [vmem:[%s3826 + $0x34] sm:$0xf]
        %v3841 = vld [vmem:[%s3826 + $0x38] sm:$0xf]
        %v3842 = vld [vmem:[%s3826 + $0x3c] sm:$0xf]
        %v3859 = vunpack.c.l.b16 %v3827
        %v3860 = vunpack.c.l.b16 %v3828
        %v3861 = vunpack.c.l.b16 %v3829
        %v3862 = vunpack.c.l.b16 %v3830
        %v3863 = vunpack.c.l.b16 %v3831
        %v3864 = vunpack.c.l.b16 %v3832
        %v3865 = vunpack.c.l.b16 %v3833
        %v3866 = vunpack.c.l.b16 %v3834
        %v3867 = vunpack.c.l.b16 %v3835
        %v3868 = vunpack.c.l.b16 %v3836
        %v3869 = vunpack.c.l.b16 %v3837
        %v3870 = vunpack.c.l.b16 %v3838
        %v3871 = vunpack.c.l.b16 %v3839
        %v3872 = vunpack.c.l.b16 %v3840
        %v3873 = vunpack.c.l.b16 %v3841
        %v3874 = vunpack.c.l.b16 %v3842
        %v3875 = vpack.c.b16 %v3860, %v3859
        %v3876 = vpack.c.b16 %v3862, %v3861
        %v3877 = vpack.c.b16 %v3864, %v3863
        %v3878 = vpack.c.b16 %v3866, %v3865
        %v3879 = vpack.c.b16 %v3868, %v3867
        %v3880 = vpack.c.b16 %v3870, %v3869
        %v3881 = vpack.c.b16 %v3872, %v3871
        %v3882 = vpack.c.b16 %v3874, %v3873
        %3891 = vmatpush.bf16.msra.mxu0 %v3882
        %3892 = vmatpush.bf16.msra.mxu0 %v3881
        %3893 = vmatpush.bf16.msra.mxu0 %v3880
        %3894 = vmatpush.bf16.msra.mxu0 %v3879
        %3895 = vmatpush.bf16.msra.mxu0 %v3878
        %3896 = vmatpush.bf16.msra.mxu0 %v3877
        %3897 = vmatpush.bf16.msra.mxu0 %v3876
        %3898 = vmatpush.bf16.msra.mxu0 %v3875
        %3899 = vmatmul.bf16.gmra.mxu0 %v3825
        %v3900 = vpop.f32.mrf.mxu0
        %v3901 = vadd.f32 0.0, %v3900
        %v3902 = vpop.f32.mrf.mxu0
        %3903 = vdwg.mxu0
        %v3904 = vadd.f32 %v3804, %v3901
        %s3905 = scalar_lea.vmem [#allocation6], 6
        %v3906 = vld [vmem:[%s3905] sm:$0x3]
        %v3908 = vsel %vm3615, %v3906, 0
        %3910 = vmatpush.bf16.msra.mxu0 0
        %3911 = vmatpush.bf16.msra.mxu0 0
        %3912 = vmatpush.bf16.msra.mxu0 0
        %3913 = vmatpush.bf16.msra.mxu0 0
        %3914 = vmatpush.bf16.msra.mxu0 0
        %3915 = vmatpush.bf16.msra.mxu0 0
        %3916 = vmatpush.bf16.msra.mxu0 0
        %3917 = vmatpush.bf16.msra.mxu0 %v3529
        %3918 = vmatmul.bf16.gmra.mxu0 %v3908
        %v3919 = vpop.f32.mrf.mxu0
        %v3920 = vadd.f32 0.0, %v3919
        %v3921 = vpop.f32.mrf.mxu0
        %3922 = vdwg.mxu0
        %v3923 = vpack.c.bf16 %v3920, %v3920
        %s3924 = scalar_lea.vmem [#allocation13], 192
        %v3925 = vld [vmem:[%s3924] sm:$0xf]
        %v3926 = vld [vmem:[%s3924 + $0x4] sm:$0xf]
        %v3927 = vld [vmem:[%s3924 + $0x8] sm:$0xf]
        %v3928 = vld [vmem:[%s3924 + $0xc] sm:$0xf]
        %v3929 = vld [vmem:[%s3924 + $0x10] sm:$0xf]
        %v3930 = vld [vmem:[%s3924 + $0x14] sm:$0xf]
        %v3931 = vld [vmem:[%s3924 + $0x18] sm:$0xf]
        %v3932 = vld [vmem:[%s3924 + $0x1c] sm:$0xf]
        %v3933 = vld [vmem:[%s3924 + $0x20] sm:$0xf]
        %v3934 = vld [vmem:[%s3924 + $0x24] sm:$0xf]
        %v3935 = vld [vmem:[%s3924 + $0x28] sm:$0xf]
        %v3936 = vld [vmem:[%s3924 + $0x2c] sm:$0xf]
        %v3937 = vld [vmem:[%s3924 + $0x30] sm:$0xf]
        %v3938 = vld [vmem:[%s3924 + $0x34] sm:$0xf]
        %v3939 = vld [vmem:[%s3924 + $0x38] sm:$0xf]
        %v3940 = vld [vmem:[%s3924 + $0x3c] sm:$0xf]
        %v3957 = vunpack.c.l.b16 %v3925
        %v3958 = vunpack.c.l.b16 %v3926
        %v3959 = vunpack.c.l.b16 %v3927
        %v3960 = vunpack.c.l.b16 %v3928
        %v3961 = vunpack.c.l.b16 %v3929
        %v3962 = vunpack.c.l.b16 %v3930
        %v3963 = vunpack.c.l.b16 %v3931
        %v3964 = vunpack.c.l.b16 %v3932
        %v3965 = vunpack.c.l.b16 %v3933
        %v3966 = vunpack.c.l.b16 %v3934
        %v3967 = vunpack.c.l.b16 %v3935
        %v3968 = vunpack.c.l.b16 %v3936
        %v3969 = vunpack.c.l.b16 %v3937
        %v3970 = vunpack.c.l.b16 %v3938
        %v3971 = vunpack.c.l.b16 %v3939
        %v3972 = vunpack.c.l.b16 %v3940
        %v3973 = vpack.c.b16 %v3958, %v3957
        %v3974 = vpack.c.b16 %v3960, %v3959
        %v3975 = vpack.c.b16 %v3962, %v3961
        %v3976 = vpack.c.b16 %v3964, %v3963
        %v3977 = vpack.c.b16 %v3966, %v3965
        %v3978 = vpack.c.b16 %v3968, %v3967
        %v3979 = vpack.c.b16 %v3970, %v3969
        %v3980 = vpack.c.b16 %v3972, %v3971
        %3989 = vmatpush.bf16.msra.mxu0 %v3980
        %3990 = vmatpush.bf16.msra.mxu0 %v3979
        %3991 = vmatpush.bf16.msra.mxu0 %v3978
        %3992 = vmatpush.bf16.msra.mxu0 %v3977
        %3993 = vmatpush.bf16.msra.mxu0 %v3976
        %3994 = vmatpush.bf16.msra.mxu0 %v3975
        %3995 = vmatpush.bf16.msra.mxu0 %v3974
        %3996 = vmatpush.bf16.msra.mxu0 %v3973
        %3997 = vmatmul.bf16.gmra.mxu0 %v3923
        %v3998 = vpop.f32.mrf.mxu0
        %v3999 = vadd.f32 0.0, %v3998
        %v4000 = vpop.f32.mrf.mxu0
        %4001 = vdwg.mxu0
        %v4002 = vadd.f32 %v3904, %v3999
        %s4003 = scalar_lea.vmem [#allocation6], 8
        %v4004 = vld [vmem:[%s4003] sm:$0x3]
        %v4006 = vsel %vm3615, %v4004, 0
        %4008 = vmatpush.bf16.msra.mxu0 0
        %4009 = vmatpush.bf16.msra.mxu0 0
        %4010 = vmatpush.bf16.msra.mxu0 0
        %4011 = vmatpush.bf16.msra.mxu0 0
        %4012 = vmatpush.bf16.msra.mxu0 0
        %4013 = vmatpush.bf16.msra.mxu0 0
        %4014 = vmatpush.bf16.msra.mxu0 0
        %4015 = vmatpush.bf16.msra.mxu0 %v3529
        %4016 = vmatmul.bf16.gmra.mxu0 %v4006
        %v4017 = vpop.f32.mrf.mxu0
        %v4018 = vadd.f32 0.0, %v4017
        %v4019 = vpop.f32.mrf.mxu0
        %4020 = vdwg.mxu0
        %v4021 = vpack.c.bf16 %v4018, %v4018
        %s4022 = scalar_lea.vmem [#allocation13], 256
        %v4023 = vld [vmem:[%s4022] sm:$0xf]
        %v4024 = vld [vmem:[%s4022 + $0x4] sm:$0xf]
        %v4025 = vld [vmem:[%s4022 + $0x8] sm:$0xf]
        %v4026 = vld [vmem:[%s4022 + $0xc] sm:$0xf]
        %v4027 = vld [vmem:[%s4022 + $0x10] sm:$0xf]
        %v4028 = vld [vmem:[%s4022 + $0x14] sm:$0xf]
        %v4029 = vld [vmem:[%s4022 + $0x18] sm:$0xf]
        %v4030 = vld [vmem:[%s4022 + $0x1c] sm:$0xf]
        %v4031 = vld [vmem:[%s4022 + $0x20] sm:$0xf]
        %v4032 = vld [vmem:[%s4022 + $0x24] sm:$0xf]
        %v4033 = vld [vmem:[%s4022 + $0x28] sm:$0xf]
        %v4034 = vld [vmem:[%s4022 + $0x2c] sm:$0xf]
        %v4035 = vld [vmem:[%s4022 + $0x30] sm:$0xf]
        %v4036 = vld [vmem:[%s4022 + $0x34] sm:$0xf]
        %v4037 = vld [vmem:[%s4022 + $0x38] sm:$0xf]
        %v4038 = vld [vmem:[%s4022 + $0x3c] sm:$0xf]
        %v4055 = vunpack.c.l.b16 %v4023
        %v4056 = vunpack.c.l.b16 %v4024
        %v4057 = vunpack.c.l.b16 %v4025
        %v4058 = vunpack.c.l.b16 %v4026
        %v4059 = vunpack.c.l.b16 %v4027
        %v4060 = vunpack.c.l.b16 %v4028
        %v4061 = vunpack.c.l.b16 %v4029
        %v4062 = vunpack.c.l.b16 %v4030
        %v4063 = vunpack.c.l.b16 %v4031
        %v4064 = vunpack.c.l.b16 %v4032
        %v4065 = vunpack.c.l.b16 %v4033
        %v4066 = vunpack.c.l.b16 %v4034
        %v4067 = vunpack.c.l.b16 %v4035
        %v4068 = vunpack.c.l.b16 %v4036
        %v4069 = vunpack.c.l.b16 %v4037
        %v4070 = vunpack.c.l.b16 %v4038
        %v4071 = vpack.c.b16 %v4056, %v4055
        %v4072 = vpack.c.b16 %v4058, %v4057
        %v4073 = vpack.c.b16 %v4060, %v4059
        %v4074 = vpack.c.b16 %v4062, %v4061
        %v4075 = vpack.c.b16 %v4064, %v4063
        %v4076 = vpack.c.b16 %v4066, %v4065
        %v4077 = vpack.c.b16 %v4068, %v4067
        %v4078 = vpack.c.b16 %v4070, %v4069
        %4087 = vmatpush.bf16.msra.mxu0 %v4078
        %4088 = vmatpush.bf16.msra.mxu0 %v4077
        %4089 = vmatpush.bf16.msra.mxu0 %v4076
        %4090 = vmatpush.bf16.msra.mxu0 %v4075
        %4091 = vmatpush.bf16.msra.mxu0 %v4074
        %4092 = vmatpush.bf16.msra.mxu0 %v4073
        %4093 = vmatpush.bf16.msra.mxu0 %v4072
        %4094 = vmatpush.bf16.msra.mxu0 %v4071
        %4095 = vmatmul.bf16.gmra.mxu0 %v4021
        %v4096 = vpop.f32.mrf.mxu0
        %v4097 = vadd.f32 0.0, %v4096
        %v4098 = vpop.f32.mrf.mxu0
        %4099 = vdwg.mxu0
        %v4100 = vadd.f32 %v4002, %v4097
        %s4101 = scalar_lea.vmem [#allocation6], 10
        %v4102 = vld [vmem:[%s4101] sm:$0x3]
        %v4104 = vsel %vm3615, %v4102, 0
        %4106 = vmatpush.bf16.msra.mxu0 0
        %4107 = vmatpush.bf16.msra.mxu0 0
        %4108 = vmatpush.bf16.msra.mxu0 0
        %4109 = vmatpush.bf16.msra.mxu0 0
        %4110 = vmatpush.bf16.msra.mxu0 0
        %4111 = vmatpush.bf16.msra.mxu0 0
        %4112 = vmatpush.bf16.msra.mxu0 0
        %4113 = vmatpush.bf16.msra.mxu0 %v3529
        %4114 = vmatmul.bf16.gmra.mxu0 %v4104
        %v4115 = vpop.f32.mrf.mxu0
        %v4116 = vadd.f32 0.0, %v4115
        %v4117 = vpop.f32.mrf.mxu0
        %4118 = vdwg.mxu0
        %v4119 = vpack.c.bf16 %v4116, %v4116
        %s4120 = scalar_lea.vmem [#allocation13], 320
        %v4121 = vld [vmem:[%s4120] sm:$0xf]
        %v4122 = vld [vmem:[%s4120 + $0x4] sm:$0xf]
        %v4123 = vld [vmem:[%s4120 + $0x8] sm:$0xf]
        %v4124 = vld [vmem:[%s4120 + $0xc] sm:$0xf]
        %v4125 = vld [vmem:[%s4120 + $0x10] sm:$0xf]
        %v4126 = vld [vmem:[%s4120 + $0x14] sm:$0xf]
        %v4127 = vld [vmem:[%s4120 + $0x18] sm:$0xf]
        %v4128 = vld [vmem:[%s4120 + $0x1c] sm:$0xf]
        %v4129 = vld [vmem:[%s4120 + $0x20] sm:$0xf]
        %v4130 = vld [vmem:[%s4120 + $0x24] sm:$0xf]
        %v4131 = vld [vmem:[%s4120 + $0x28] sm:$0xf]
        %v4132 = vld [vmem:[%s4120 + $0x2c] sm:$0xf]
        %v4133 = vld [vmem:[%s4120 + $0x30] sm:$0xf]
        %v4134 = vld [vmem:[%s4120 + $0x34] sm:$0xf]
        %v4135 = vld [vmem:[%s4120 + $0x38] sm:$0xf]
        %v4136 = vld [vmem:[%s4120 + $0x3c] sm:$0xf]
        %v4153 = vunpack.c.l.b16 %v4121
        %v4154 = vunpack.c.l.b16 %v4122
        %v4155 = vunpack.c.l.b16 %v4123
        %v4156 = vunpack.c.l.b16 %v4124
        %v4157 = vunpack.c.l.b16 %v4125
        %v4158 = vunpack.c.l.b16 %v4126
        %v4159 = vunpack.c.l.b16 %v4127
        %v4160 = vunpack.c.l.b16 %v4128
        %v4161 = vunpack.c.l.b16 %v4129
        %v4162 = vunpack.c.l.b16 %v4130
        %v4163 = vunpack.c.l.b16 %v4131
        %v4164 = vunpack.c.l.b16 %v4132
        %v4165 = vunpack.c.l.b16 %v4133
        %v4166 = vunpack.c.l.b16 %v4134
        %v4167 = vunpack.c.l.b16 %v4135
        %v4168 = vunpack.c.l.b16 %v4136
        %v4169 = vpack.c.b16 %v4154, %v4153
        %v4170 = vpack.c.b16 %v4156, %v4155
        %v4171 = vpack.c.b16 %v4158, %v4157
        %v4172 = vpack.c.b16 %v4160, %v4159
        %v4173 = vpack.c.b16 %v4162, %v4161
        %v4174 = vpack.c.b16 %v4164, %v4163
        %v4175 = vpack.c.b16 %v4166, %v4165
        %v4176 = vpack.c.b16 %v4168, %v4167
        %4185 = vmatpush.bf16.msra.mxu0 %v4176
        %4186 = vmatpush.bf16.msra.mxu0 %v4175
        %4187 = vmatpush.bf16.msra.mxu0 %v4174
        %4188 = vmatpush.bf16.msra.mxu0 %v4173
        %4189 = vmatpush.bf16.msra.mxu0 %v4172
        %4190 = vmatpush.bf16.msra.mxu0 %v4171
        %4191 = vmatpush.bf16.msra.mxu0 %v4170
        %4192 = vmatpush.bf16.msra.mxu0 %v4169
        %4193 = vmatmul.bf16.gmra.mxu0 %v4119
        %v4194 = vpop.f32.mrf.mxu0
        %v4195 = vadd.f32 0.0, %v4194
        %v4196 = vpop.f32.mrf.mxu0
        %4197 = vdwg.mxu0
        %v4198 = vadd.f32 %v4100, %v4195
        %s4199 = scalar_lea.vmem [#allocation6], 12
        %v4200 = vld [vmem:[%s4199] sm:$0x3]
        %v4202 = vsel %vm3615, %v4200, 0
        %4204 = vmatpush.bf16.msra.mxu0 0
        %4205 = vmatpush.bf16.msra.mxu0 0
        %4206 = vmatpush.bf16.msra.mxu0 0
        %4207 = vmatpush.bf16.msra.mxu0 0
        %4208 = vmatpush.bf16.msra.mxu0 0
        %4209 = vmatpush.bf16.msra.mxu0 0
        %4210 = vmatpush.bf16.msra.mxu0 0
        %4211 = vmatpush.bf16.msra.mxu0 %v3529
        %4212 = vmatmul.bf16.gmra.mxu0 %v4202
        %v4213 = vpop.f32.mrf.mxu0
        %v4214 = vadd.f32 0.0, %v4213
        %v4215 = vpop.f32.mrf.mxu0
        %4216 = vdwg.mxu0
        %v4217 = vpack.c.bf16 %v4214, %v4214
        %s4218 = scalar_lea.vmem [#allocation13], 384
        %v4219 = vld [vmem:[%s4218] sm:$0xf]
        %v4220 = vld [vmem:[%s4218 + $0x4] sm:$0xf]
        %v4221 = vld [vmem:[%s4218 + $0x8] sm:$0xf]
        %v4222 = vld [vmem:[%s4218 + $0xc] sm:$0xf]
        %v4223 = vld [vmem:[%s4218 + $0x10] sm:$0xf]
        %v4224 = vld [vmem:[%s4218 + $0x14] sm:$0xf]
        %v4225 = vld [vmem:[%s4218 + $0x18] sm:$0xf]
        %v4226 = vld [vmem:[%s4218 + $0x1c] sm:$0xf]
        %v4227 = vld [vmem:[%s4218 + $0x20] sm:$0xf]
        %v4228 = vld [vmem:[%s4218 + $0x24] sm:$0xf]
        %v4229 = vld [vmem:[%s4218 + $0x28] sm:$0xf]
        %v4230 = vld [vmem:[%s4218 + $0x2c] sm:$0xf]
        %v4231 = vld [vmem:[%s4218 + $0x30] sm:$0xf]
        %v4232 = vld [vmem:[%s4218 + $0x34] sm:$0xf]
        %v4233 = vld [vmem:[%s4218 + $0x38] sm:$0xf]
        %v4234 = vld [vmem:[%s4218 + $0x3c] sm:$0xf]
        %v4251 = vunpack.c.l.b16 %v4219
        %v4252 = vunpack.c.l.b16 %v4220
        %v4253 = vunpack.c.l.b16 %v4221
        %v4254 = vunpack.c.l.b16 %v4222
        %v4255 = vunpack.c.l.b16 %v4223
        %v4256 = vunpack.c.l.b16 %v4224
        %v4257 = vunpack.c.l.b16 %v4225
        %v4258 = vunpack.c.l.b16 %v4226
        %v4259 = vunpack.c.l.b16 %v4227
        %v4260 = vunpack.c.l.b16 %v4228
        %v4261 = vunpack.c.l.b16 %v4229
        %v4262 = vunpack.c.l.b16 %v4230
        %v4263 = vunpack.c.l.b16 %v4231
        %v4264 = vunpack.c.l.b16 %v4232
        %v4265 = vunpack.c.l.b16 %v4233
        %v4266 = vunpack.c.l.b16 %v4234
        %v4267 = vpack.c.b16 %v4252, %v4251
        %v4268 = vpack.c.b16 %v4254, %v4253
        %v4269 = vpack.c.b16 %v4256, %v4255
        %v4270 = vpack.c.b16 %v4258, %v4257
        %v4271 = vpack.c.b16 %v4260, %v4259
        %v4272 = vpack.c.b16 %v4262, %v4261
        %v4273 = vpack.c.b16 %v4264, %v4263
        %v4274 = vpack.c.b16 %v4266, %v4265
        %4283 = vmatpush.bf16.msra.mxu0 %v4274
        %4284 = vmatpush.bf16.msra.mxu0 %v4273
        %4285 = vmatpush.bf16.msra.mxu0 %v4272
        %4286 = vmatpush.bf16.msra.mxu0 %v4271
        %4287 = vmatpush.bf16.msra.mxu0 %v4270
        %4288 = vmatpush.bf16.msra.mxu0 %v4269
        %4289 = vmatpush.bf16.msra.mxu0 %v4268
        %4290 = vmatpush.bf16.msra.mxu0 %v4267
        %4291 = vmatmul.bf16.gmra.mxu0 %v4217
        %v4292 = vpop.f32.mrf.mxu0
        %v4293 = vadd.f32 0.0, %v4292
        %v4294 = vpop.f32.mrf.mxu0
        %4295 = vdwg.mxu0
        %v4296 = vadd.f32 %v4198, %v4293
        %s4297 = scalar_lea.vmem [#allocation6], 14
        %v4298 = vld [vmem:[%s4297] sm:$0x3]
        %v4300 = vsel %vm3615, %v4298, 0
        %4302 = vmatpush.bf16.msra.mxu0 0
        %4303 = vmatpush.bf16.msra.mxu0 0
        %4304 = vmatpush.bf16.msra.mxu0 0
        %4305 = vmatpush.bf16.msra.mxu0 0
        %4306 = vmatpush.bf16.msra.mxu0 0
        %4307 = vmatpush.bf16.msra.mxu0 0
        %4308 = vmatpush.bf16.msra.mxu0 0
        %4309 = vmatpush.bf16.msra.mxu0 %v3529
        %4310 = vmatmul.bf16.gmra.mxu0 %v4300
        %v4311 = vpop.f32.mrf.mxu0
        %v4312 = vadd.f32 0.0, %v4311
        %v4313 = vpop.f32.mrf.mxu0
        %4314 = vdwg.mxu0
        %v4315 = vpack.c.bf16 %v4312, %v4312
        %s4316 = scalar_lea.vmem [#allocation13], 448
        %v4317 = vld [vmem:[%s4316] sm:$0xf]
        %v4318 = vld [vmem:[%s4316 + $0x4] sm:$0xf]
        %v4319 = vld [vmem:[%s4316 + $0x8] sm:$0xf]
        %v4320 = vld [vmem:[%s4316 + $0xc] sm:$0xf]
        %v4321 = vld [vmem:[%s4316 + $0x10] sm:$0xf]
        %v4322 = vld [vmem:[%s4316 + $0x14] sm:$0xf]
        %v4323 = vld [vmem:[%s4316 + $0x18] sm:$0xf]
        %v4324 = vld [vmem:[%s4316 + $0x1c] sm:$0xf]
        %v4325 = vld [vmem:[%s4316 + $0x20] sm:$0xf]
        %v4326 = vld [vmem:[%s4316 + $0x24] sm:$0xf]
        %v4327 = vld [vmem:[%s4316 + $0x28] sm:$0xf]
        %v4328 = vld [vmem:[%s4316 + $0x2c] sm:$0xf]
        %v4329 = vld [vmem:[%s4316 + $0x30] sm:$0xf]
        %v4330 = vld [vmem:[%s4316 + $0x34] sm:$0xf]
        %v4331 = vld [vmem:[%s4316 + $0x38] sm:$0xf]
        %v4332 = vld [vmem:[%s4316 + $0x3c] sm:$0xf]
        %v4349 = vunpack.c.l.b16 %v4317
        %v4350 = vunpack.c.l.b16 %v4318
        %v4351 = vunpack.c.l.b16 %v4319
        %v4352 = vunpack.c.l.b16 %v4320
        %v4353 = vunpack.c.l.b16 %v4321
        %v4354 = vunpack.c.l.b16 %v4322
        %v4355 = vunpack.c.l.b16 %v4323
        %v4356 = vunpack.c.l.b16 %v4324
        %v4357 = vunpack.c.l.b16 %v4325
        %v4358 = vunpack.c.l.b16 %v4326
        %v4359 = vunpack.c.l.b16 %v4327
        %v4360 = vunpack.c.l.b16 %v4328
        %v4361 = vunpack.c.l.b16 %v4329
        %v4362 = vunpack.c.l.b16 %v4330
        %v4363 = vunpack.c.l.b16 %v4331
        %v4364 = vunpack.c.l.b16 %v4332
        %v4365 = vpack.c.b16 %v4350, %v4349
        %v4366 = vpack.c.b16 %v4352, %v4351
        %v4367 = vpack.c.b16 %v4354, %v4353
        %v4368 = vpack.c.b16 %v4356, %v4355
        %v4369 = vpack.c.b16 %v4358, %v4357
        %v4370 = vpack.c.b16 %v4360, %v4359
        %v4371 = vpack.c.b16 %v4362, %v4361
        %v4372 = vpack.c.b16 %v4364, %v4363
        %4381 = vmatpush.bf16.msra.mxu0 %v4372
        %4382 = vmatpush.bf16.msra.mxu0 %v4371
        %4383 = vmatpush.bf16.msra.mxu0 %v4370
        %4384 = vmatpush.bf16.msra.mxu0 %v4369
        %4385 = vmatpush.bf16.msra.mxu0 %v4368
        %4386 = vmatpush.bf16.msra.mxu0 %v4367
        %4387 = vmatpush.bf16.msra.mxu0 %v4366
        %4388 = vmatpush.bf16.msra.mxu0 %v4365
        %4389 = vmatmul.bf16.gmra.mxu0 %v4315
        %v4390 = vpop.f32.mrf.mxu0
        %v4391 = vadd.f32 0.0, %v4390
        %v4392 = vpop.f32.mrf.mxu0
        %4393 = vdwg.mxu0
        %v4394 = vadd.f32 %v4296, %v4391
        %s4395 = scalar_lea.vmem [#allocation6], 16
        %v4396 = vld [vmem:[%s4395] sm:$0x3]
        %v4398 = vsel %vm3615, %v4396, 0
        %4400 = vmatpush.bf16.msra.mxu0 0
        %4401 = vmatpush.bf16.msra.mxu0 0
        %4402 = vmatpush.bf16.msra.mxu0 0
        %4403 = vmatpush.bf16.msra.mxu0 0
        %4404 = vmatpush.bf16.msra.mxu0 0
        %4405 = vmatpush.bf16.msra.mxu0 0
        %4406 = vmatpush.bf16.msra.mxu0 0
        %4407 = vmatpush.bf16.msra.mxu0 %v3529
        %4408 = vmatmul.bf16.gmra.mxu0 %v4398
        %v4409 = vpop.f32.mrf.mxu0
        %v4410 = vadd.f32 0.0, %v4409
        %v4411 = vpop.f32.mrf.mxu0
        %4412 = vdwg.mxu0
        %v4413 = vpack.c.bf16 %v4410, %v4410
        %s4414 = scalar_lea.vmem [#allocation13], 512
        %v4415 = vld [vmem:[%s4414] sm:$0xf]
        %v4416 = vld [vmem:[%s4414 + $0x4] sm:$0xf]
        %v4417 = vld [vmem:[%s4414 + $0x8] sm:$0xf]
        %v4418 = vld [vmem:[%s4414 + $0xc] sm:$0xf]
        %v4419 = vld [vmem:[%s4414 + $0x10] sm:$0xf]
        %v4420 = vld [vmem:[%s4414 + $0x14] sm:$0xf]
        %v4421 = vld [vmem:[%s4414 + $0x18] sm:$0xf]
        %v4422 = vld [vmem:[%s4414 + $0x1c] sm:$0xf]
        %v4423 = vld [vmem:[%s4414 + $0x20] sm:$0xf]
        %v4424 = vld [vmem:[%s4414 + $0x24] sm:$0xf]
        %v4425 = vld [vmem:[%s4414 + $0x28] sm:$0xf]
        %v4426 = vld [vmem:[%s4414 + $0x2c] sm:$0xf]
        %v4427 = vld [vmem:[%s4414 + $0x30] sm:$0xf]
        %v4428 = vld [vmem:[%s4414 + $0x34] sm:$0xf]
        %v4429 = vld [vmem:[%s4414 + $0x38] sm:$0xf]
        %v4430 = vld [vmem:[%s4414 + $0x3c] sm:$0xf]
        %v4447 = vunpack.c.l.b16 %v4415
        %v4448 = vunpack.c.l.b16 %v4416
        %v4449 = vunpack.c.l.b16 %v4417
        %v4450 = vunpack.c.l.b16 %v4418
        %v4451 = vunpack.c.l.b16 %v4419
        %v4452 = vunpack.c.l.b16 %v4420
        %v4453 = vunpack.c.l.b16 %v4421
        %v4454 = vunpack.c.l.b16 %v4422
        %v4455 = vunpack.c.l.b16 %v4423
        %v4456 = vunpack.c.l.b16 %v4424
        %v4457 = vunpack.c.l.b16 %v4425
        %v4458 = vunpack.c.l.b16 %v4426
        %v4459 = vunpack.c.l.b16 %v4427
        %v4460 = vunpack.c.l.b16 %v4428
        %v4461 = vunpack.c.l.b16 %v4429
        %v4462 = vunpack.c.l.b16 %v4430
        %v4463 = vpack.c.b16 %v4448, %v4447
        %v4464 = vpack.c.b16 %v4450, %v4449
        %v4465 = vpack.c.b16 %v4452, %v4451
        %v4466 = vpack.c.b16 %v4454, %v4453
        %v4467 = vpack.c.b16 %v4456, %v4455
        %v4468 = vpack.c.b16 %v4458, %v4457
        %v4469 = vpack.c.b16 %v4460, %v4459
        %v4470 = vpack.c.b16 %v4462, %v4461
        %4479 = vmatpush.bf16.msra.mxu0 %v4470
        %4480 = vmatpush.bf16.msra.mxu0 %v4469
        %4481 = vmatpush.bf16.msra.mxu0 %v4468
        %4482 = vmatpush.bf16.msra.mxu0 %v4467
        %4483 = vmatpush.bf16.msra.mxu0 %v4466
        %4484 = vmatpush.bf16.msra.mxu0 %v4465
        %4485 = vmatpush.bf16.msra.mxu0 %v4464
        %4486 = vmatpush.bf16.msra.mxu0 %v4463
        %4487 = vmatmul.bf16.gmra.mxu0 %v4413
        %v4488 = vpop.f32.mrf.mxu0
        %v4489 = vadd.f32 0.0, %v4488
        %v4490 = vpop.f32.mrf.mxu0
        %4491 = vdwg.mxu0
        %v4492 = vadd.f32 %v4394, %v4489
        %v4493 = vld [vmem:[#allocation15] sm:$0x1]
        %v4495 = vperm.slane %v4493, 0
        %v4497 = vadd.f32 %v4492, %v4495
        %v4498 = vmax.f32 %v4497, 0.0
        %v4499 = vpack.c.bf16 %v4498, %v4498
        %v4500 = vld [vmem:[#allocation22] sm:$0xf]
        %v4501 = vld [vmem:[#allocation22 + $0x4] sm:$0xf]
        %v4502 = vld [vmem:[#allocation22 + $0x8] sm:$0xf]
        %v4503 = vld [vmem:[#allocation22 + $0xc] sm:$0xf]
        %v4504 = vld [vmem:[#allocation22 + $0x10] sm:$0xf]
        %v4505 = vld [vmem:[#allocation22 + $0x14] sm:$0xf]
        %v4506 = vld [vmem:[#allocation22 + $0x18] sm:$0xf]
        %v4507 = vld [vmem:[#allocation22 + $0x1c] sm:$0xf]
        %v4508 = vld [vmem:[#allocation22 + $0x20] sm:$0xf]
        %v4509 = vld [vmem:[#allocation22 + $0x24] sm:$0xf]
        %v4510 = vld [vmem:[#allocation22 + $0x28] sm:$0xf]
        %v4511 = vld [vmem:[#allocation22 + $0x2c] sm:$0xf]
        %v4512 = vld [vmem:[#allocation22 + $0x30] sm:$0xf]
        %v4513 = vld [vmem:[#allocation22 + $0x34] sm:$0xf]
        %v4514 = vld [vmem:[#allocation22 + $0x38] sm:$0xf]
        %v4515 = vld [vmem:[#allocation22 + $0x3c] sm:$0xf]
        %v4516 = vld [vmem:[#allocation24] sm:$0x1]
        %v4518 = vperm.slane %v4516, 0
        %v4536 = vunpack.c.l.b16 %v4500
        %v4537 = vunpack.c.l.b16 %v4501
        %v4538 = vunpack.c.l.b16 %v4502
        %v4539 = vunpack.c.l.b16 %v4503
        %v4540 = vunpack.c.l.b16 %v4504
        %v4541 = vunpack.c.l.b16 %v4505
        %v4542 = vunpack.c.l.b16 %v4506
        %v4543 = vunpack.c.l.b16 %v4507
        %v4544 = vunpack.c.l.b16 %v4508
        %v4545 = vunpack.c.l.b16 %v4509
        %v4546 = vunpack.c.l.b16 %v4510
        %v4547 = vunpack.c.l.b16 %v4511
        %v4548 = vunpack.c.l.b16 %v4512
        %v4549 = vunpack.c.l.b16 %v4513
        %v4550 = vunpack.c.l.b16 %v4514
        %v4551 = vunpack.c.l.b16 %v4515
        %v4552 = vpack.c.b16 %v4537, %v4536
        %v4553 = vpack.c.b16 %v4539, %v4538
        %v4554 = vpack.c.b16 %v4541, %v4540
        %v4555 = vpack.c.b16 %v4543, %v4542
        %v4556 = vpack.c.b16 %v4545, %v4544
        %v4557 = vpack.c.b16 %v4547, %v4546
        %v4558 = vpack.c.b16 %v4549, %v4548
        %v4559 = vpack.c.b16 %v4551, %v4550
        %4568 = vmatpush.bf16.msra.mxu0 %v4559
        %4569 = vmatpush.bf16.msra.mxu0 %v4558
        %4570 = vmatpush.bf16.msra.mxu0 %v4557
        %4571 = vmatpush.bf16.msra.mxu0 %v4556
        %4572 = vmatpush.bf16.msra.mxu0 %v4555
        %4573 = vmatpush.bf16.msra.mxu0 %v4554
        %4574 = vmatpush.bf16.msra.mxu0 %v4553
        %4575 = vmatpush.bf16.msra.mxu0 %v4552
        %4576 = vmatmul.bf16.gmra.mxu0 %v4499
        %v4577 = vpop.f32.mrf.mxu0
        %v4578 = vadd.f32 %v4518, %v4577
        %v4579 = vpop.f32.mrf.mxu0
        %4580 = vdwg.mxu0
        %4581 = vst [vmem:[%s834] sm:$0xf] %v4578
        %p4582 = scmp.lt.s32.totalorder %s38, 1
        %s4583 = scalar_select %p4582, %s38, 1
        %s4584 = smul.addr %s4583, 8
        %s4585 = smul.addr %s4584, 8
        %s4586 = scalar_lea.vmem %s16, %s4585
        %p4587 = scmp.lt.s32.totalorder %s38, 1
        %s4588 = scalar_select %p4587, %s38, 1
        %s4589 = smul.addr %s4588, 2
        %s4590 = smul.addr %s4589, 8
        %s4591 = scalar_lea.vmem %s17, %s4590
        %p4592 = scmp.lt.s32.totalorder %s38, 1
        %s4593 = scalar_select %p4592, %s38, 1
        %s4594 = smul.addr %s4593, 4
        %s4595 = scalar_lea.vmem %s18, %s4594
        // Predicated region
        $region145: #{attention_net_cosine_forward.6} parent=83 // pred_check
          %p4596 = pneg %p397
        $region146: #{attention_net_cosine_forward.6} parent=83 // pred_check_branch
          %4598 = sbr.rel (%p4596) target = $region148
        $region147: #{attention_net_cosine_forward.6} parent=83 // pred_region
          _
        $region148: #{attention_net_cosine_forward.6} parent=83 // pred_fallthru
          _
        // Predicated region
        $region149: #{attention_net_cosine_forward.6} parent=83 // pred_check
          %p4599 = pneg %p423
        $region150: #{attention_net_cosine_forward.6} parent=83 // pred_check_branch
          %4601 = sbr.rel (%p4599) target = $region152
        $region151: #{attention_net_cosine_forward.6} parent=83 // pred_region
          _
        $region152: #{attention_net_cosine_forward.6} parent=83 // pred_fallthru
          _
        // Predicated region
        $region153: #{attention_net_cosine_forward.6} parent=83 // pred_check
          %p4602 = pneg %p449
        $region154: #{attention_net_cosine_forward.6} parent=83 // pred_check_branch
          %4604 = sbr.rel (%p4602) target = $region156
        $region155: #{attention_net_cosine_forward.6} parent=83 // pred_region
          _
        $region156: #{attention_net_cosine_forward.6} parent=83 // pred_fallthru
          _
      $region84: #{attention_net_cosine_forward.6} parent=5 // pred_fallthru
        _
      %p4605 = scmp.le.s32.totalorder 2, %s33
      // Predicated region
      $region157: #{attention_net_cosine_forward.6} parent=5 // pred_check
        %p4606 = pneg %p4605
      $region158: #{attention_net_cosine_forward.6} parent=5 // pred_check_branch
        %4608 = sbr.rel (%p4606) target = $region160
      $region159: #{attention_net_cosine_forward.6} parent=5 // pred_region
        %s4609 = ssub.s32 %s33, 2
        // Predicated region
        $region161: #{attention_net_cosine_forward.6} parent=159 // pred_check
          %p4610 = pneg %p403
        $region162: #{attention_net_cosine_forward.6} parent=159 // pred_check_branch
          %4612 = sbr.rel (%p4610) target = $region164
        $region163: #{attention_net_cosine_forward.6} parent=159 // pred_region
          %p4613 = scmp.lt.s32.totalorder %s39, 1
          %s4614 = scalar_select %p4613, %s39, 1
          %s4615 = smul.addr %s4614, 8
          %s4616 = smul.addr %s4615, 8
          %s4617 = scalar_lea.vmem %s16, %s4616
        $region164: #{attention_net_cosine_forward.6} parent=159 // pred_fallthru
          _
        // Predicated region
        $region165: #{attention_net_cosine_forward.6} parent=159 // pred_check
          %p4618 = pneg %p429
        $region166: #{attention_net_cosine_forward.6} parent=159 // pred_check_branch
          %4620 = sbr.rel (%p4618) target = $region168
        $region167: #{attention_net_cosine_forward.6} parent=159 // pred_region
          %p4621 = scmp.lt.s32.totalorder %s39, 1
          %s4622 = scalar_select %p4621, %s39, 1
          %s4623 = smul.addr %s4622, 2
          %s4624 = smul.addr %s4623, 8
          %s4625 = scalar_lea.vmem %s17, %s4624
        $region168: #{attention_net_cosine_forward.6} parent=159 // pred_fallthru
          _
        // Predicated region
        $region169: #{attention_net_cosine_forward.6} parent=159 // pred_check
          %p4626 = pneg %p455
        $region170: #{attention_net_cosine_forward.6} parent=159 // pred_check_branch
          %4628 = sbr.rel (%p4626) target = $region172
        $region171: #{attention_net_cosine_forward.6} parent=159 // pred_region
          %p4629 = scmp.lt.s32.totalorder %s39, 1
          %s4630 = scalar_select %p4629, %s39, 1
          %s4631 = smul.addr %s4630, 4
          %s4632 = scalar_lea.vmem %s18, %s4631
        $region172: #{attention_net_cosine_forward.6} parent=159 // pred_fallthru
          _
      $region160: #{attention_net_cosine_forward.6} parent=5 // pred_fallthru
        _
    $region6: #{attention_net_cosine_forward.6} parent=1 // loop_footer
      %s37 = sadd.s32 1, %s33
    $region7: #{attention_net_cosine_forward.6} parent=1 // loop_footer_branch
      %32 = sbr.rel target = $region3
    $region8: #{attention_net_cosine_forward.6} parent=1 // loop_exit
      _
    %4633 = vsyncpa [#allocation3], 1
    %s4634 = scalar_lea.sflag [#allocation3], 1
    %4635 = vsyncpa %s4634, 1
    %4636 = vsyncpa [#allocation5], 1
    %4637 = vsyncpa [#allocation8], 1
    %4638 = vsyncpa [#allocation11], 1
    %4639 = vsyncpa [#allocation14], 1
    %4640 = vsyncpa [#allocation17], 1
    %4641 = vsyncpa [#allocation20], 1
    %4642 = vsyncpa [#allocation23], 1

// kernel: attention_net_cosine_forward.7
$region0: #{attention_net_cosine_forward.7}
  #allocation0 [shape = 'u32[]', space=smem, size = 0x4, offset = 0x4, fixed_abs, tag = 'smem constant byte address 0x4 - core index']
  #allocation1 [shape = 'u32[72,128]{1,0:T(1,128)}', space=vmem, size = 0x9000, scoped, tag = 'internal scratch']
  %s0 = inlined_call_operand.vmem [shape: bf16[512,27], index: 0, kind: input, shape index: {}]
  %s1 = inlined_call_operand.vmem [shape: bf16[27,128], index: 1, kind: input, shape index: {}]
  %s2 = inlined_call_operand.vmem [shape: f32[1,128], index: 2, kind: input, shape index: {}]
  %s3 = inlined_call_operand.vmem [shape: bf16[512,128], index: 3, kind: output, shape index: {}]
  %s4 = sld [smem:[#allocation0]]
  $region45: #{attention_net_cosine_forward.7} parent=0
    _
  %s6 = ssub.s32 1, %s4
  %s7 = scalar_select 0, %s6, %s4
  loop: start=0, step=1, limit=6
  $region2: #{attention_net_cosine_forward.7} parent=0 // loop_pre_header
    _
  $region3: #{attention_net_cosine_forward.7} parent=0 // loop_header
    %s9 = sphi 0, %s13
    %p10 = scmp.ge.s32.totalorder %s9, 6
    %s19 = sphi 0, %s21
    %s22 = sphi 0, %s19
    %s23 = sphi 0, %s22
    %s39 = sphi 0, %s23
    %s43 = sphi 0, %s43
    %s45 = sphi 0, %s43
    %s46 = sphi 0, %s45
    %s60 = sphi 0, %s46
    %s64 = sphi 0, %s64
    %s66 = sphi 0, %s64
    %s67 = sphi 0, %s66
    %s81 = sphi 0, %s67
    %s87 = sphi 0, %s89
    %s90 = sphi 0, %s87
    %s91 = sphi 0, %s90
    %s107 = sphi 0, %s91
  $region4: #{attention_net_cosine_forward.7} parent=0 // loop_header_branch
    %12 = sbr.rel (%p10) target = $region8
  $region5: #{attention_net_cosine_forward.7} parent=0 // loop_body
    %s14 = ssub.s32 %s9, 1
    %s15 = ssub.s32 %s9, 2
    %s16 = sadd.s32 %s9, 1
    %s17 = ssub.s32 %s9, %s16
    %p18 = scmp.eq.s32.totalorder %s17, 0
    %s20 = sadd.s32 %s19, 1
    %s21 = scalar_select %p18, %s19, %s20
    %p24 = pneg %p18
    %p25 = scmp.eq.s32.totalorder %s9, 3
    %p26 = por %p24, %p25
    %p27 = scmp.ne.s32.totalorder %s19, %s22
    %p28 = scmp.eq.s32.totalorder %s9, 0
    %p29 = por %p27, %p28
    %p30 = scmp.ne.s32.totalorder %s19, %s22
    %p31 = scmp.eq.s32.totalorder %s14, 3
    %p32 = por %p30, %p31
    %p33 = scmp.ne.s32.totalorder %s22, %s23
    %p34 = scmp.eq.s32.totalorder %s14, 0
    %p35 = por %p33, %p34
    %p36 = scmp.ne.s32.totalorder %s22, %s23
    %p37 = scmp.eq.s32.totalorder %s15, 3
    %p38 = por %p36, %p37
    %p40 = scmp.ne.s32.totalorder %s23, %s39
    %p41 = scmp.eq.s32.totalorder %s15, 0
    %p42 = por %p40, %p41
    %s44 = sadd.s32 %s43, 1
    %p47 = scmp.eq.s32.totalorder %s9, 3
    %p48 = scmp.ne.s32.totalorder %s43, %s45
    %p49 = scmp.eq.s32.totalorder %s9, 0
    %p50 = por %p48, %p49
    %p51 = scmp.ne.s32.totalorder %s43, %s45
    %p52 = scmp.eq.s32.totalorder %s14, 3
    %p53 = por %p51, %p52
    %p54 = scmp.ne.s32.totalorder %s45, %s46
    %p55 = scmp.eq.s32.totalorder %s14, 0
    %p56 = por %p54, %p55
    %p57 = scmp.ne.s32.totalorder %s45, %s46
    %p58 = scmp.eq.s32.totalorder %s15, 3
    %p59 = por %p57, %p58
    %p61 = scmp.ne.s32.totalorder %s46, %s60
    %p62 = scmp.eq.s32.totalorder %s15, 0
    %p63 = por %p61, %p62
    %s65 = sadd.s32 %s64, 1
    %p68 = scmp.eq.s32.totalorder %s9, 3
    %p69 = scmp.ne.s32.totalorder %s64, %s66
    %p70 = scmp.eq.s32.totalorder %s9, 0
    %p71 = por %p69, %p70
    %p72 = scmp.ne.s32.totalorder %s64, %s66
    %p73 = scmp.eq.s32.totalorder %s14, 3
    %p74 = por %p72, %p73
    %p75 = scmp.ne.s32.totalorder %s66, %s67
    %p76 = scmp.eq.s32.totalorder %s14, 0
    %p77 = por %p75, %p76
    %p78 = scmp.ne.s32.totalorder %s66, %s67
    %p79 = scmp.eq.s32.totalorder %s15, 3
    %p80 = por %p78, %p79
    %p82 = scmp.ne.s32.totalorder %s67, %s81
    %p83 = scmp.eq.s32.totalorder %s15, 0
    %p84 = por %p82, %p83
    %s85 = ssub.s32 %s9, %s16
    %p86 = scmp.eq.s32.totalorder %s85, 0
    %s88 = sadd.s32 %s87, 1
    %s89 = scalar_select %p86, %s87, %s88
    %p92 = pneg %p86
    %p93 = scmp.eq.s32.totalorder %s9, 3
    %p94 = por %p92, %p93
    %p95 = scmp.ne.s32.totalorder %s87, %s90
    %p96 = scmp.eq.s32.totalorder %s9, 0
    %p97 = por %p95, %p96
    %p98 = scmp.ne.s32.totalorder %s87, %s90
    %p99 = scmp.eq.s32.totalorder %s14, 3
    %p100 = por %p98, %p99
    %p101 = scmp.ne.s32.totalorder %s90, %s91
    %p102 = scmp.eq.s32.totalorder %s14, 0
    %p103 = por %p101, %p102
    %p104 = scmp.ne.s32.totalorder %s90, %s91
    %p105 = scmp.eq.s32.totalorder %s15, 3
    %p106 = por %p104, %p105
    %p108 = scmp.ne.s32.totalorder %s91, %s107
    %p109 = scmp.eq.s32.totalorder %s15, 0
    %p110 = por %p108, %p109
    %p111 = scmp.le.s32.totalorder 1, %s9
    %p112 = scmp.lt.s32.totalorder %s9, 5
    %p113 = pnand %p111, %p112
    %p114 = pneg %p113
    // Predicated region
    $region9: #{attention_net_cosine_forward.7} parent=5 // pred_check
      _
    $region10: #{attention_net_cosine_forward.7} parent=5 // pred_check_branch
      %116 = sbr.rel (%p113) target = $region12
    $region11: #{attention_net_cosine_forward.7} parent=5 // pred_region
      %s117 = ssub.s32 %s9, 1
      // Predicated region
      $region13: #{attention_net_cosine_forward.7} parent=11 // pred_check
        %p118 = pneg %p56
      $region14: #{attention_net_cosine_forward.7} parent=11 // pred_check_branch
        %120 = sbr.rel (%p118) target = $region16
      $region15: #{attention_net_cosine_forward.7} parent=11 // pred_region
        _
      $region16: #{attention_net_cosine_forward.7} parent=11 // pred_fallthru
        _
      // Predicated region
      $region17: #{attention_net_cosine_forward.7} parent=11 // pred_check
        %p121 = pneg %p77
      $region18: #{attention_net_cosine_forward.7} parent=11 // pred_check_branch
        %123 = sbr.rel (%p121) target = $region20
      $region19: #{attention_net_cosine_forward.7} parent=11 // pred_region
        _
      $region20: #{attention_net_cosine_forward.7} parent=11 // pred_fallthru
        _
    $region12: #{attention_net_cosine_forward.7} parent=5 // pred_fallthru
      _
    %p124 = scmp.lt.s32.totalorder %s9, 4
    // Predicated region
    $region21: #{attention_net_cosine_forward.7} parent=5 // pred_check
      %p125 = pneg %p124
    $region22: #{attention_net_cosine_forward.7} parent=5 // pred_check_branch
      %127 = sbr.rel (%p125) target = $region24
    $region23: #{attention_net_cosine_forward.7} parent=5 // pred_region
      // Predicated region
      $region25: #{attention_net_cosine_forward.7} parent=23 // pred_check
        %p128 = pneg %p29
      $region26: #{attention_net_cosine_forward.7} parent=23 // pred_check_branch
        %130 = sbr.rel (%p128) target = $region28
      $region27: #{attention_net_cosine_forward.7} parent=23 // pred_region
        %s131 = smul.u32 16, %s9
        %p132 = scmp.lt.s32.totalorder %s131, 63
        %s133 = scalar_select %p132, %s131, 63
        %s134 = smul.addr %s133, 4
        %s135 = scalar_lea.vmem %s0, %s134
        %s136 = smul.u32 16, %s9
      $region28: #{attention_net_cosine_forward.7} parent=23 // pred_fallthru
        _
    $region24: #{attention_net_cosine_forward.7} parent=5 // pred_fallthru
      _
    %p137 = scmp.le.s32.totalorder 1, %s9
    %p138 = scmp.lt.s32.totalorder %s9, 5
    %p139 = pnand %p137, %p138
    %p140 = pneg %p139
    // Predicated region
    $region29: #{attention_net_cosine_forward.7} parent=5 // pred_check
      _
    $region30: #{attention_net_cosine_forward.7} parent=5 // pred_check_branch
      %142 = sbr.rel (%p139) target = $region32
    $region31: #{attention_net_cosine_forward.7} parent=5 // pred_region
      %s143 = ssub.s32 %s9, 1
      %s144 = smul.u32 16, %s14
      %p145 = scmp.lt.s32.totalorder %s144, 63
      %s146 = scalar_select %p145, %s144, 63
      %s147 = smul.addr %s146, 4
      %s148 = scalar_lea.vmem %s0, %s147
      %p149 = pneg %p35
      %p150 = pneg %p32
      %p151 = pneg %p56
      %p152 = pneg %p53
      %p153 = pneg %p77
      %p154 = pneg %p74
      %p155 = pneg %p103
      %p156 = pneg %p100
      %s157 = smul.u32 16, %s14
      %p158 = scmp.lt.s32.totalorder %s157, 63
      %s159 = scalar_select %p158, %s157, 63
      %s160 = smul.addr %s159, 4
      %s161 = scalar_lea.vmem %s3, %s160
      %s162 = smul.u32 16, %s14
      %p163 = scmp.lt.s32.totalorder %s162, 63
      %s164 = scalar_select %p163, %s162, 63
      %s165 = smul.addr %s164, 4
      %s166 = scalar_lea.vmem %s0, %s165
      %s167 = smul.u32 16, %s14
      %s168 = smul.u32 16, %s14
      %p169 = scmp.lt.s32.totalorder %s168, 63
      %s170 = scalar_select %p169, %s168, 63
      %s171 = smul.addr %s170, 4
      %s172 = scalar_lea.vmem %s3, %s171
      %s173 = smul.u32 16, %s14
      %v175 = vld [vmem:[%s166] sm:$0xf]
      %v176 = vld [vmem:[%s166 + $0x4] sm:$0xf]
      %v177 = vld [vmem:[%s166 + $0x8] sm:$0xf]
      %v178 = vld [vmem:[%s166 + $0xc] sm:$0xf]
      %v179 = vld [vmem:[%s166 + $0x10] sm:$0xf]
      %v180 = vld [vmem:[%s166 + $0x14] sm:$0xf]
      %v181 = vld [vmem:[%s166 + $0x18] sm:$0xf]
      %v182 = vld [vmem:[%s166 + $0x1c] sm:$0xf]
      %v183 = vld [vmem:[%s166 + $0x20] sm:$0xf]
      %v184 = vld [vmem:[%s166 + $0x24] sm:$0xf]
      %v185 = vld [vmem:[%s166 + $0x28] sm:$0xf]
      %v186 = vld [vmem:[%s166 + $0x2c] sm:$0xf]
      %v187 = vld [vmem:[%s166 + $0x30] sm:$0xf]
      %v188 = vld [vmem:[%s166 + $0x34] sm:$0xf]
      %v189 = vld [vmem:[%s166 + $0x38] sm:$0xf]
      %v190 = vld [vmem:[%s166 + $0x3c] sm:$0xf]
      %v191 = vld [vmem:[%s1] sm:$0xf]
      %v192 = vld [vmem:[%s1 + $0x4] sm:$0xf]
      %v193 = vld [vmem:[%s1 + $0x8] sm:$0xf]
      %v194 = vld [vmem:[%s1 + $0xc] sm:$0x3]
      %v195 = vld [vmem:[%s2] sm:$0x1]
      %v197 = vperm.slane %v195, 0
      %v215 = vunpack.c.l.b16 %v175
      %v216 = vunpack.c.l.b16 %v176
      %v217 = vunpack.c.l.b16 %v177
      %v218 = vunpack.c.l.b16 %v178
      %v219 = vunpack.c.l.b16 %v179
      %v220 = vunpack.c.l.b16 %v180
      %v221 = vunpack.c.l.b16 %v181
      %v222 = vunpack.c.l.b16 %v182
      %v223 = vunpack.c.l.b16 %v183
      %v224 = vunpack.c.l.b16 %v184
      %v225 = vunpack.c.l.b16 %v185
      %v226 = vunpack.c.l.b16 %v186
      %v227 = vunpack.c.l.b16 %v187
      %v228 = vunpack.c.l.b16 %v188
      %v229 = vunpack.c.l.b16 %v189
      %v230 = vunpack.c.l.b16 %v190
      %v231 = vpack.c.b16 %v216, %v215
      %v232 = vpack.c.b16 %v218, %v217
      %v233 = vpack.c.b16 %v220, %v219
      %v234 = vpack.c.b16 %v222, %v221
      %v235 = vpack.c.b16 %v224, %v223
      %v236 = vpack.c.b16 %v226, %v225
      %v237 = vpack.c.b16 %v228, %v227
      %v238 = vpack.c.b16 %v230, %v229
      %v243 = vunpack.c.l.b16 %v191
      %v244 = vunpack.c.l.b16 %v192
      %v245 = vunpack.c.l.b16 %v193
      %v246 = vunpack.c.l.b16 %v194
      %v247 = vpack.c.b16 %v244, %v243
      %v248 = vpack.c.b16 %v246, %v245
      %vm250 = vcmask 220160
      %v252 = vsel %vm250, %v231, 0
      %v255 = vsel %vm250, %v232, 0
      %v258 = vsel %vm250, %v233, 0
      %v261 = vsel %vm250, %v234, 0
      %v264 = vsel %vm250, %v235, 0
      %v267 = vsel %vm250, %v236, 0
      %v270 = vsel %vm250, %v237, 0
      %v273 = vsel %vm250, %v238, 0
      %vm275 = vcmask 1044480
      %vm276 = vcmask 1045504
      %v277 = vsel %vm275, 4294967295, 65535
      %v278 = vsel %vm276, %v277, 0
      %v280 = vand.u32 %v248, %v278
      %282 = vmatpush.bf16.msra.mxu0 0
      %283 = vmatpush.bf16.msra.mxu0 0
      %284 = vmatpush.bf16.msra.mxu0 0
      %285 = vmatpush.bf16.msra.mxu0 0
      %286 = vmatpush.bf16.msra.mxu0 0
      %287 = vmatpush.bf16.msra.mxu0 0
      %288 = vmatpush.bf16.msra.mxu0 %v280
      %289 = vmatpush.bf16.msra.mxu0 %v247
      %290 = vmatmul.bf16.gmra.mxu0 %v252
      %v291 = vpop.f32.mrf.mxu0
      %v292 = vadd.f32 %v197, %v291
      %v293 = vpop.f32.mrf.mxu0
      %v294 = vadd.f32 %v197, %v293
      %295 = vmatmul.bf16.gmra.mxu0 %v255
      %v296 = vpop.f32.mrf.mxu0
      %v297 = vadd.f32 %v197, %v296
      %v298 = vpop.f32.mrf.mxu0
      %v299 = vadd.f32 %v197, %v298
      %300 = vmatmul.bf16.gmra.mxu0 %v258
      %v301 = vpop.f32.mrf.mxu0
      %v302 = vadd.f32 %v197, %v301
      %v303 = vpop.f32.mrf.mxu0
      %v304 = vadd.f32 %v197, %v303
      %305 = vmatmul.bf16.gmra.mxu0 %v261
      %v306 = vpop.f32.mrf.mxu0
      %v307 = vadd.f32 %v197, %v306
      %v308 = vpop.f32.mrf.mxu0
      %v309 = vadd.f32 %v197, %v308
      %310 = vmatmul.bf16.gmra.mxu0 %v264
      %v311 = vpop.f32.mrf.mxu0
      %v312 = vadd.f32 %v197, %v311
      %v313 = vpop.f32.mrf.mxu0
      %v314 = vadd.f32 %v197, %v313
      %315 = vmatmul.bf16.gmra.mxu0 %v267
      %v316 = vpop.f32.mrf.mxu0
      %v317 = vadd.f32 %v197, %v316
      %v318 = vpop.f32.mrf.mxu0
      %v319 = vadd.f32 %v197, %v318
      %320 = vmatmul.bf16.gmra.mxu0 %v270
      %v321 = vpop.f32.mrf.mxu0
      %v322 = vadd.f32 %v197, %v321
      %v323 = vpop.f32.mrf.mxu0
      %v324 = vadd.f32 %v197, %v323
      %325 = vmatmul.bf16.gmra.mxu0 %v273
      %v326 = vpop.f32.mrf.mxu0
      %v327 = vadd.f32 %v197, %v326
      %v328 = vpop.f32.mrf.mxu0
      %v329 = vadd.f32 %v197, %v328
      %330 = vdwg.mxu0
      %v331 = vmax.f32 %v292, 0.0
      %v332 = vmax.f32 %v294, 0.0
      %v333 = vmax.f32 %v297, 0.0
      %v334 = vmax.f32 %v299, 0.0
      %v335 = vmax.f32 %v302, 0.0
      %v336 = vmax.f32 %v304, 0.0
      %v337 = vmax.f32 %v307, 0.0
      %v338 = vmax.f32 %v309, 0.0
      %v339 = vmax.f32 %v312, 0.0
      %v340 = vmax.f32 %v314, 0.0
      %v341 = vmax.f32 %v317, 0.0
      %v342 = vmax.f32 %v319, 0.0
      %v343 = vmax.f32 %v322, 0.0
      %v344 = vmax.f32 %v324, 0.0
      %v345 = vmax.f32 %v327, 0.0
      %v346 = vmax.f32 %v329, 0.0
      %v347 = vpack.c.bf16 %v331, %v331
      %v348 = vpack.c.bf16 %v332, %v332
      %v349 = vpack.c.bf16 %v333, %v333
      %v350 = vpack.c.bf16 %v334, %v334
      %v351 = vpack.c.bf16 %v335, %v335
      %v352 = vpack.c.bf16 %v336, %v336
      %v353 = vpack.c.bf16 %v337, %v337
      %v354 = vpack.c.bf16 %v338, %v338
      %v355 = vpack.c.bf16 %v339, %v339
      %v356 = vpack.c.bf16 %v340, %v340
      %v357 = vpack.c.bf16 %v341, %v341
      %v358 = vpack.c.bf16 %v342, %v342
      %v359 = vpack.c.bf16 %v343, %v343
      %v360 = vpack.c.bf16 %v344, %v344
      %v361 = vpack.c.bf16 %v345, %v345
      %v362 = vpack.c.bf16 %v346, %v346
      %363 = vst [vmem:[%s172] sm:$0xf] %v347
      %364 = vst [vmem:[%s172 + $0x4] sm:$0xf] %v348
      %365 = vst [vmem:[%s172 + $0x8] sm:$0xf] %v349
      %366 = vst [vmem:[%s172 + $0xc] sm:$0xf] %v350
      %367 = vst [vmem:[%s172 + $0x10] sm:$0xf] %v351
      %368 = vst [vmem:[%s172 + $0x14] sm:$0xf] %v352
      %369 = vst [vmem:[%s172 + $0x18] sm:$0xf] %v353
      %370 = vst [vmem:[%s172 + $0x1c] sm:$0xf] %v354
      %371 = vst [vmem:[%s172 + $0x20] sm:$0xf] %v355
      %372 = vst [vmem:[%s172 + $0x24] sm:$0xf] %v356
      %373 = vst [vmem:[%s172 + $0x28] sm:$0xf] %v357
      %374 = vst [vmem:[%s172 + $0x2c] sm:$0xf] %v358
      %375 = vst [vmem:[%s172 + $0x30] sm:$0xf] %v359
      %376 = vst [vmem:[%s172 + $0x34] sm:$0xf] %v360
      %377 = vst [vmem:[%s172 + $0x38] sm:$0xf] %v361
      %378 = vst [vmem:[%s172 + $0x3c] sm:$0xf] %v362
      %s379 = smul.u32 16, %s14
      %p380 = scmp.lt.s32.totalorder %s379, 63
      %s381 = scalar_select %p380, %s379, 63
      %s382 = smul.addr %s381, 4
      %s383 = scalar_lea.vmem %s3, %s382
      // Predicated region
      $region33: #{attention_net_cosine_forward.7} parent=31 // pred_check
        %p384 = pneg %p100
      $region34: #{attention_net_cosine_forward.7} parent=31 // pred_check_branch
        %386 = sbr.rel (%p384) target = $region36
      $region35: #{attention_net_cosine_forward.7} parent=31 // pred_region
        %s387 = smul.u32 16, %s14
      $region36: #{attention_net_cosine_forward.7} parent=31 // pred_fallthru
        _
    $region32: #{attention_net_cosine_forward.7} parent=5 // pred_fallthru
      _
    %p388 = scmp.le.s32.totalorder 2, %s9
    // Predicated region
    $region37: #{attention_net_cosine_forward.7} parent=5 // pred_check
      %p389 = pneg %p388
    $region38: #{attention_net_cosine_forward.7} parent=5 // pred_check_branch
      %391 = sbr.rel (%p389) target = $region40
    $region39: #{attention_net_cosine_forward.7} parent=5 // pred_region
      %s392 = ssub.s32 %s9, 2
      // Predicated region
      $region41: #{attention_net_cosine_forward.7} parent=39 // pred_check
        %p393 = pneg %p106
      $region42: #{attention_net_cosine_forward.7} parent=39 // pred_check_branch
        %395 = sbr.rel (%p393) target = $region44
      $region43: #{attention_net_cosine_forward.7} parent=39 // pred_region
        %s396 = smul.u32 16, %s15
        %p397 = scmp.lt.s32.totalorder %s396, 63
        %s398 = scalar_select %p397, %s396, 63
        %s399 = smul.addr %s398, 4
        %s400 = scalar_lea.vmem %s3, %s399
      $region44: #{attention_net_cosine_forward.7} parent=39 // pred_fallthru
        _
    $region40: #{attention_net_cosine_forward.7} parent=5 // pred_fallthru
      _
  $region6: #{attention_net_cosine_forward.7} parent=0 // loop_footer
    %s13 = sadd.s32 1, %s9
  $region7: #{attention_net_cosine_forward.7} parent=0 // loop_footer_branch
    %8 = sbr.rel target = $region3
  $region8: #{attention_net_cosine_forward.7} parent=0 // loop_exit
    _

// kernel: attention_net_cosine_forward.9
$region0: #{attention_net_cosine_forward.9}
  #allocation0 [shape = 'u32[]', space=smem, size = 0x4, offset = 0x4, fixed_abs, tag = 'smem constant byte address 0x4 - core index']
  #allocation1 [shape = 'u32[72,128]{1,0:T(1,128)}', space=vmem, size = 0x9000, scoped, tag = 'internal scratch']
  %s0 = inlined_call_operand.vmem [shape: bf16[8,64], index: 0, kind: input, shape index: {}]
  %s1 = inlined_call_operand.vmem [shape: bf16[64,128], index: 1, kind: input, shape index: {}]
  %s2 = inlined_call_operand.vmem [shape: f32[1,128], index: 2, kind: input, shape index: {}]
  %s3 = inlined_call_operand.hbm [shape: f32[8,128], index: 3, kind: output, shape index: {}]
  %s4 = sld [smem:[#allocation0]]
  $region22: #{attention_net_cosine_forward.9} parent=0
    _
  %s6 = ssub.s32 1, %s4
  %s7 = scalar_select 0, %s6, %s4
  $region1: #{attention_net_cosine_forward.9} parent=0
    #allocation2 [shape = 'u8[4096]{0}', space=vmem, size = 0x1000, scoped, tag = 'output window, operand 0, single buffered']
    #allocation3 [shape = 's32[1]{0}', space=sflag, size = 0x4, scoped, tag = 'scoped memory for attention_net_cosine_forward.9']
    %8 = vsyncpa [#allocation3], 0
    // Predicated region
    $region2: #{attention_net_cosine_forward.9} parent=1 // pred_check
      _
    $region3: #{attention_net_cosine_forward.9} parent=1 // pred_check_branch
      %10 = sbr.rel (0) target = $region5
    $region4: #{attention_net_cosine_forward.9} parent=1 // pred_region
      _
    $region5: #{attention_net_cosine_forward.9} parent=1 // pred_fallthru
      _
    // Predicated region
    $region6: #{attention_net_cosine_forward.9} parent=1 // pred_check
      _
    $region7: #{attention_net_cosine_forward.9} parent=1 // pred_check_branch
      %12 = sbr.rel (0) target = $region9
    $region8: #{attention_net_cosine_forward.9} parent=1 // pred_region
      _
    $region9: #{attention_net_cosine_forward.9} parent=1 // pred_fallthru
      _
    // Predicated region
    $region10: #{attention_net_cosine_forward.9} parent=1 // pred_check
      _
    $region11: #{attention_net_cosine_forward.9} parent=1 // pred_check_branch
      %14 = sbr.rel (0) target = $region13
    $region12: #{attention_net_cosine_forward.9} parent=1 // pred_region
      _
    $region13: #{attention_net_cosine_forward.9} parent=1 // pred_fallthru
      _
    %v16 = vld [vmem:[%s0] sm:$0xf]
    %v17 = vld [vmem:[%s1] sm:$0xf]
    %v18 = vld [vmem:[%s1 + $0x4] sm:$0xf]
    %v19 = vld [vmem:[%s1 + $0x8] sm:$0xf]
    %v20 = vld [vmem:[%s1 + $0xc] sm:$0xf]
    %v21 = vld [vmem:[%s1 + $0x10] sm:$0xf]
    %v22 = vld [vmem:[%s1 + $0x14] sm:$0xf]
    %v23 = vld [vmem:[%s1 + $0x18] sm:$0xf]
    %v24 = vld [vmem:[%s1 + $0x1c] sm:$0xf]
    %v25 = vld [vmem:[%s2] sm:$0x1]
    %v27 = vperm.slane %v25, 0
    %v37 = vunpack.c.l.b16 %v17
    %v38 = vunpack.c.l.b16 %v18
    %v39 = vunpack.c.l.b16 %v19
    %v40 = vunpack.c.l.b16 %v20
    %v41 = vunpack.c.l.b16 %v21
    %v42 = vunpack.c.l.b16 %v22
    %v43 = vunpack.c.l.b16 %v23
    %v44 = vunpack.c.l.b16 %v24
    %v45 = vpack.c.b16 %v38, %v37
    %v46 = vpack.c.b16 %v40, %v39
    %v47 = vpack.c.b16 %v42, %v41
    %v48 = vpack.c.b16 %v44, %v43
    %vm53 = vcmask 523264
    %v55 = vsel %vm53, %v16, 0
    %57 = vmatpush.bf16.msra.mxu0 0
    %58 = vmatpush.bf16.msra.mxu0 0
    %59 = vmatpush.bf16.msra.mxu0 0
    %60 = vmatpush.bf16.msra.mxu0 0
    %61 = vmatpush.bf16.msra.mxu0 %v48
    %62 = vmatpush.bf16.msra.mxu0 %v47
    %63 = vmatpush.bf16.msra.mxu0 %v46
    %64 = vmatpush.bf16.msra.mxu0 %v45
    %65 = vmatmul.bf16.gmra.mxu0 %v55
    %v66 = vpop.f32.mrf.mxu0
    %v67 = vadd.f32 %v27, %v66
    %v68 = vpop.f32.mrf.mxu0
    %69 = vdwg.mxu0
    %70 = vst [vmem:[#allocation2] sm:$0xff] %v67
    // Predicated region
    $region14: #{attention_net_cosine_forward.9} parent=1 // pred_check
      _
    $region15: #{attention_net_cosine_forward.9} parent=1 // pred_check_branch
      %72 = sbr.rel (0) target = $region17
    $region16: #{attention_net_cosine_forward.9} parent=1 // pred_region
      %74 = vsyncadd [#allocation3], 0
      %s76 = sshll.u32 [#allocation2], 4
      %s77 = int_to_ptr.vmem [resolvable:$true] %s76
      %s78 = sshll.u32 %s3, 4
      %s79 = int_to_ptr.hbm [resolvable:$true] %s78
      %81 = dma.vmem_to_hbm [thread:$0]  %s77, 128, %s79, [#allocation3]
    $region17: #{attention_net_cosine_forward.9} parent=1 // pred_fallthru
      _
    // Predicated region
    $region18: #{attention_net_cosine_forward.9} parent=1 // pred_check
      _
    $region19: #{attention_net_cosine_forward.9} parent=1 // pred_check_branch
      %83 = sbr.rel (0) target = $region21
    $region20: #{attention_net_cosine_forward.9} parent=1 // pred_region
      %85 = dma.done [#allocation3], 128
    $region21: #{attention_net_cosine_forward.9} parent=1 // pred_fallthru
      _
    %86 = vsyncpa [#allocation3], 1

// kernel: attention_net_cosine_forward.8
$region0: #{attention_net_cosine_forward.8}
  #allocation0 [shape = 'u32[]', space=smem, size = 0x4, offset = 0x4, fixed_abs, tag = 'smem constant byte address 0x4 - core index']
  #allocation1 [shape = 'u32[72,128]{1,0:T(1,128)}', space=vmem, size = 0x9000, scoped, tag = 'internal scratch']
  %s0 = inlined_call_operand.vmem [shape: bf16[2,320], index: 0, kind: input, shape index: {}]
  %s1 = inlined_call_operand.vmem [shape: bf16[320,128], index: 1, kind: input, shape index: {}]
  %s2 = inlined_call_operand.vmem [shape: f32[1,128], index: 2, kind: input, shape index: {}]
  %s3 = inlined_call_operand.hbm [shape: f32[2,128], index: 3, kind: output, shape index: {}]
  %s4 = sld [smem:[#allocation0]]
  $region22: #{attention_net_cosine_forward.8} parent=0
    _
  %s6 = ssub.s32 1, %s4
  %s7 = scalar_select 0, %s6, %s4
  $region1: #{attention_net_cosine_forward.8} parent=0
    #allocation2 [shape = 'u8[1024]{0}', space=vmem, size = 0x400, scoped, tag = 'output window, operand 0, single buffered']
    #allocation3 [shape = 's32[1]{0}', space=sflag, size = 0x4, scoped, tag = 'scoped memory for attention_net_cosine_forward.8']
    %8 = vsyncpa [#allocation3], 0
    // Predicated region
    $region2: #{attention_net_cosine_forward.8} parent=1 // pred_check
      _
    $region3: #{attention_net_cosine_forward.8} parent=1 // pred_check_branch
      %10 = sbr.rel (0) target = $region5
    $region4: #{attention_net_cosine_forward.8} parent=1 // pred_region
      _
    $region5: #{attention_net_cosine_forward.8} parent=1 // pred_fallthru
      _
    // Predicated region
    $region6: #{attention_net_cosine_forward.8} parent=1 // pred_check
      _
    $region7: #{attention_net_cosine_forward.8} parent=1 // pred_check_branch
      %12 = sbr.rel (0) target = $region9
    $region8: #{attention_net_cosine_forward.8} parent=1 // pred_region
      _
    $region9: #{attention_net_cosine_forward.8} parent=1 // pred_fallthru
      _
    // Predicated region
    $region10: #{attention_net_cosine_forward.8} parent=1 // pred_check
      _
    $region11: #{attention_net_cosine_forward.8} parent=1 // pred_check_branch
      %14 = sbr.rel (0) target = $region13
    $region12: #{attention_net_cosine_forward.8} parent=1 // pred_region
      _
    $region13: #{attention_net_cosine_forward.8} parent=1 // pred_fallthru
      _
    %v16 = vld [vmem:[%s0] sm:$0x7]
    %v17 = vld [vmem:[%s1] sm:$0xf]
    %v18 = vld [vmem:[%s1 + $0x4] sm:$0xf]
    %v19 = vld [vmem:[%s1 + $0x8] sm:$0xf]
    %v20 = vld [vmem:[%s1 + $0xc] sm:$0xf]
    %v21 = vld [vmem:[%s1 + $0x10] sm:$0xf]
    %v22 = vld [vmem:[%s1 + $0x14] sm:$0xf]
    %v23 = vld [vmem:[%s1 + $0x18] sm:$0xf]
    %v24 = vld [vmem:[%s1 + $0x1c] sm:$0xf]
    %v25 = vld [vmem:[%s1 + $0x20] sm:$0xf]
    %v26 = vld [vmem:[%s1 + $0x24] sm:$0xf]
    %v27 = vld [vmem:[%s1 + $0x28] sm:$0xf]
    %v28 = vld [vmem:[%s1 + $0x2c] sm:$0xf]
    %v29 = vld [vmem:[%s1 + $0x30] sm:$0xf]
    %v30 = vld [vmem:[%s1 + $0x34] sm:$0xf]
    %v31 = vld [vmem:[%s1 + $0x38] sm:$0xf]
    %v32 = vld [vmem:[%s1 + $0x3c] sm:$0xf]
    %v33 = vld [vmem:[%s1 + $0x40] sm:$0xf]
    %v34 = vld [vmem:[%s1 + $0x44] sm:$0xf]
    %v35 = vld [vmem:[%s1 + $0x48] sm:$0xf]
    %v36 = vld [vmem:[%s1 + $0x4c] sm:$0xf]
    %v37 = vld [vmem:[%s1 + $0x50] sm:$0xf]
    %v38 = vld [vmem:[%s1 + $0x54] sm:$0xf]
    %v39 = vld [vmem:[%s1 + $0x58] sm:$0xf]
    %v40 = vld [vmem:[%s1 + $0x5c] sm:$0xf]
    %v41 = vld [vmem:[%s1 + $0x60] sm:$0xf]
    %v42 = vld [vmem:[%s1 + $0x64] sm:$0xf]
    %v43 = vld [vmem:[%s1 + $0x68] sm:$0xf]
    %v44 = vld [vmem:[%s1 + $0x6c] sm:$0xf]
    %v45 = vld [vmem:[%s1 + $0x70] sm:$0xf]
    %v46 = vld [vmem:[%s1 + $0x74] sm:$0xf]
    %v47 = vld [vmem:[%s1 + $0x78] sm:$0xf]
    %v48 = vld [vmem:[%s1 + $0x7c] sm:$0xf]
    %v49 = vld [vmem:[%s1 + $0x80] sm:$0xf]
    %v50 = vld [vmem:[%s1 + $0x84] sm:$0xf]
    %v51 = vld [vmem:[%s1 + $0x88] sm:$0xf]
    %v52 = vld [vmem:[%s1 + $0x8c] sm:$0xf]
    %v53 = vld [vmem:[%s1 + $0x90] sm:$0xf]
    %v54 = vld [vmem:[%s1 + $0x94] sm:$0xf]
    %v55 = vld [vmem:[%s1 + $0x98] sm:$0xf]
    %v56 = vld [vmem:[%s1 + $0x9c] sm:$0xf]
    %v57 = vld [vmem:[%s2] sm:$0x1]
    %v59 = vperm.slane %v57, 0
    %62 = vst [vmem:[#allocation1] ss:$9 sm:$0xff] %v16
    %v63 = vld [vmem:[#allocation1] sm:$0xff]
    %v64 = vld [vmem:[#allocation1 + $0x9] sm:$0xff]
    %v65 = vld [vmem:[#allocation1 + $0x12] sm:$0xff]
    %v108 = vunpack.c.l.b16 %v17
    %v109 = vunpack.c.l.b16 %v18
    %v110 = vunpack.c.l.b16 %v19
    %v111 = vunpack.c.l.b16 %v20
    %v112 = vunpack.c.l.b16 %v21
    %v113 = vunpack.c.l.b16 %v22
    %v114 = vunpack.c.l.b16 %v23
    %v115 = vunpack.c.l.b16 %v24
    %v116 = vunpack.c.l.b16 %v25
    %v117 = vunpack.c.l.b16 %v26
    %v118 = vunpack.c.l.b16 %v27
    %v119 = vunpack.c.l.b16 %v28
    %v120 = vunpack.c.l.b16 %v29
    %v121 = vunpack.c.l.b16 %v30
    %v122 = vunpack.c.l.b16 %v31
    %v123 = vunpack.c.l.b16 %v32
    %v124 = vunpack.c.l.b16 %v33
    %v125 = vunpack.c.l.b16 %v34
    %v126 = vunpack.c.l.b16 %v35
    %v127 = vunpack.c.l.b16 %v36
    %v128 = vunpack.c.l.b16 %v37
    %v129 = vunpack.c.l.b16 %v38
    %v130 = vunpack.c.l.b16 %v39
    %v131 = vunpack.c.l.b16 %v40
    %v132 = vunpack.c.l.b16 %v41
    %v133 = vunpack.c.l.b16 %v42
    %v134 = vunpack.c.l.b16 %v43
    %v135 = vunpack.c.l.b16 %v44
    %v136 = vunpack.c.l.b16 %v45
    %v137 = vunpack.c.l.b16 %v46
    %v138 = vunpack.c.l.b16 %v47
    %v139 = vunpack.c.l.b16 %v48
    %v140 = vunpack.c.l.b16 %v49
    %v141 = vunpack.c.l.b16 %v50
    %v142 = vunpack.c.l.b16 %v51
    %v143 = vunpack.c.l.b16 %v52
    %v144 = vunpack.c.l.b16 %v53
    %v145 = vunpack.c.l.b16 %v54
    %v146 = vunpack.c.l.b16 %v55
    %v147 = vunpack.c.l.b16 %v56
    %v148 = vpack.c.b16 %v109, %v108
    %v149 = vpack.c.b16 %v111, %v110
    %v150 = vpack.c.b16 %v113, %v112
    %v151 = vpack.c.b16 %v115, %v114
    %v152 = vpack.c.b16 %v117, %v116
    %v153 = vpack.c.b16 %v119, %v118
    %v154 = vpack.c.b16 %v121, %v120
    %v155 = vpack.c.b16 %v123, %v122
    %v156 = vpack.c.b16 %v125, %v124
    %v157 = vpack.c.b16 %v127, %v126
    %v158 = vpack.c.b16 %v129, %v128
    %v159 = vpack.c.b16 %v131, %v130
    %v160 = vpack.c.b16 %v133, %v132
    %v161 = vpack.c.b16 %v135, %v134
    %v162 = vpack.c.b16 %v137, %v136
    %v163 = vpack.c.b16 %v139, %v138
    %v164 = vpack.c.b16 %v141, %v140
    %v165 = vpack.c.b16 %v143, %v142
    %v166 = vpack.c.b16 %v145, %v144
    %v167 = vpack.c.b16 %v147, %v146
    %vm188 = vcmask 523264
    %v189 = vsel %vm188, %v65, 0
    %191 = vmatpush.bf16.msra.mxu0 %v155
    %192 = vmatpush.bf16.msra.mxu0 %v154
    %193 = vmatpush.bf16.msra.mxu0 %v153
    %194 = vmatpush.bf16.msra.mxu0 %v152
    %195 = vmatpush.bf16.msra.mxu0 %v151
    %196 = vmatpush.bf16.msra.mxu0 %v150
    %197 = vmatpush.bf16.msra.mxu0 %v149
    %198 = vmatpush.bf16.msra.mxu0 %v148
    %199 = vmatmul.bf16.gmra.mxu0 %v63
    %v200 = vpop.f32.mrf.mxu0
    %v201 = vadd.f32 %v59, %v200
    %v202 = vpop.f32.mrf.mxu0
    %203 = vdwg.mxu0
    %204 = vmatpush.bf16.msra.mxu0 %v163
    %205 = vmatpush.bf16.msra.mxu0 %v162
    %206 = vmatpush.bf16.msra.mxu0 %v161
    %207 = vmatpush.bf16.msra.mxu0 %v160
    %208 = vmatpush.bf16.msra.mxu0 %v159
    %209 = vmatpush.bf16.msra.mxu0 %v158
    %210 = vmatpush.bf16.msra.mxu0 %v157
    %211 = vmatpush.bf16.msra.mxu0 %v156
    %212 = vmatmul.bf16.gmra.mxu0 %v64
    %v213 = vpop.f32.mrf.mxu0
    %v214 = vadd.f32 %v201, %v213
    %v215 = vpop.f32.mrf.mxu0
    %216 = vdwg.mxu0
    %217 = vmatpush.bf16.msra.mxu0 0
    %218 = vmatpush.bf16.msra.mxu0 0
    %219 = vmatpush.bf16.msra.mxu0 0
    %220 = vmatpush.bf16.msra.mxu0 0
    %221 = vmatpush.bf16.msra.mxu0 %v167
    %222 = vmatpush.bf16.msra.mxu0 %v166
    %223 = vmatpush.bf16.msra.mxu0 %v165
    %224 = vmatpush.bf16.msra.mxu0 %v164
    %225 = vmatmul.bf16.gmra.mxu0 %v189
    %v226 = vpop.f32.mrf.mxu0
    %v227 = vadd.f32 %v214, %v226
    %v228 = vpop.f32.mrf.mxu0
    %229 = vdwg.mxu0
    %230 = vst [vmem:[#allocation2] sm:$0x3] %v227
    // Predicated region
    $region14: #{attention_net_cosine_forward.8} parent=1 // pred_check
      _
    $region15: #{attention_net_cosine_forward.8} parent=1 // pred_check_branch
      %232 = sbr.rel (0) target = $region17
    $region16: #{attention_net_cosine_forward.8} parent=1 // pred_region
      %234 = vsyncadd [#allocation3], 0
      %s236 = sshll.u32 [#allocation2], 4
      %s237 = int_to_ptr.vmem [resolvable:$true] %s236
      %s238 = sshll.u32 %s3, 4
      %s239 = int_to_ptr.hbm [resolvable:$true] %s238
      %241 = dma.vmem_to_hbm [thread:$0]  %s237, 32, %s239, [#allocation3]
    $region17: #{attention_net_cosine_forward.8} parent=1 // pred_fallthru
      _
    // Predicated region
    $region18: #{attention_net_cosine_forward.8} parent=1 // pred_check
      _
    $region19: #{attention_net_cosine_forward.8} parent=1 // pred_check_branch
      %243 = sbr.rel (0) target = $region21
    $region20: #{attention_net_cosine_forward.8} parent=1 // pred_region
      %245 = dma.done [#allocation3], 32
    $region21: #{attention_net_cosine_forward.8} parent=1 // pred_fallthru
      _
    %246 = vsyncpa [#allocation3], 1

</llo_original>
